<compile_context>
chip_gen: v7x
topology: tpu7x:2x2x1
jax: 0.10.0
libtpu: 0.0.40
codegen_flags: <defaults>
</compile_context>

<pallas_src>
import functools

import jax
import jax.numpy as jnp
from jax import lax
from jax.experimental import pallas as pl
from jax.experimental.pallas import tpu as pltpu


# ----------------------------------------------------------------------------
# Pallas kernels
# ----------------------------------------------------------------------------

def _conv3x3_s1_kernel(xp_ref, w_ref, b_ref, o_ref, *, Ho, Wo):
    """3x3 conv (stride 1, padding 1) + folded-BN bias + ReLU for one image.

    xp_ref: (1, Ho+2, Wo+2, Cin) bf16 zero-padded input (no planes tensor)
    w_ref:  (3, 3*Cin, Cout)     bf16, BN scale folded, kw taps packed along K
    b_ref:  (1, Cout)            f32 folded BN bias
    o_ref:  (1, Ho, Wo, Cout)    bf16
    """
    Cin = xp_ref.shape[-1]
    Cout = o_ref.shape[-1]
    acc = jnp.zeros((Ho * Wo, Cout), jnp.float32)
    for kh in range(3):
        # pack the three kw taps along the channel axis -> K = 3*Cin matmul
        taps = [xp_ref[0, kh:kh + Ho, kw:kw + Wo, :] for kw in range(3)]
        patch = jnp.concatenate(taps, axis=-1).reshape(Ho * Wo, 3 * Cin)
        acc = acc + jnp.dot(patch, w_ref[kh],
                            preferred_element_type=jnp.float32)
    y = jnp.maximum(acc + b_ref[...], 0.0)
    o_ref[0] = y.reshape(Ho, Wo, Cout).astype(o_ref.dtype)


def _conv3x3_s2_kernel(p_ref, w_ref, b_ref, o_ref, *, Ho, Wo):
    """3x3 conv (stride 2, padding 1) + folded-BN bias + ReLU for one image.

    p_ref: (1, 4, Ho+1, Wo+1, Cin) bf16 space-to-depth planes of padded input
    w_ref: (3, 3*Cin, Cout)        bf16 (same packed layout as stride-1)
    b_ref: (1, Cout)               f32
    o_ref: (1, Ho, Wo, Cout)       bf16
    """
    Cin = p_ref.shape[-1]
    Cout = o_ref.shape[-1]
    acc = jnp.zeros((Ho * Wo, Cout), jnp.float32)
    for kh in range(3):
        taps = []
        for kw in range(3):
            p = (kh % 2) * 2 + (kw % 2)
            oh, ow = kh // 2, kw // 2
            taps.append(p_ref[0, p, oh:oh + Ho, ow:ow + Wo, :])
        patch = jnp.concatenate(taps, axis=-1).reshape(Ho * Wo, 3 * Cin)
        acc = acc + jnp.dot(patch, w_ref[kh],
                            preferred_element_type=jnp.float32)
    y = jnp.maximum(acc + b_ref[...], 0.0)
    o_ref[0] = y.reshape(Ho, Wo, Cout).astype(o_ref.dtype)


def conv3x3_bn_relu(x, w_packed, bias, stride):
    """x: (N, H, W, Cin) NHWC bf16 -> (N, H//stride, W//stride, Cout) bf16."""
    assert stride in (1, 2)
    N, H, W, Cin = x.shape
    Cout = w_packed.shape[-1]
    Ho, Wo = H // stride, W // stride

    cparams = pltpu.CompilerParams(
        dimension_semantics=("parallel",),
        vmem_limit_bytes=48 * 1024 * 1024)
    w_spec = pl.BlockSpec((3, 3 * Cin, Cout), lambda n: (0, 0, 0))
    b_spec = pl.BlockSpec((1, Cout), lambda n: (0, 0))
    out_spec = pl.BlockSpec((1, Ho, Wo, Cout), lambda n: (n, 0, 0, 0))
    out_shape = jax.ShapeDtypeStruct((N, Ho, Wo, Cout), x.dtype)

    if stride == 1:
        # Pass the zero-padded map directly (no planes materialization).
        xp = jnp.pad(x, ((0, 0), (1, 1), (1, 1), (0, 0)))
        kernel = functools.partial(_conv3x3_s1_kernel, Ho=Ho, Wo=Wo)
        in_spec = pl.BlockSpec((1, H + 2, W + 2, Cin), lambda n: (n, 0, 0, 0))
        operand = xp
    else:
        # One strided conv per block: space-to-depth planes of the padded map,
        # so the kernel only needs contiguous slices.
        xp = jnp.pad(x, ((0, 0), (1, 1), (1, 1), (0, 0)))
        planes = jnp.stack([xp[:, a::2, b::2, :]
                            for a in range(2) for b in range(2)], axis=1)
        hp, wp = planes.shape[2], planes.shape[3]
        kernel = functools.partial(_conv3x3_s2_kernel, Ho=Ho, Wo=Wo)
        in_spec = pl.BlockSpec((1, 4, hp, wp, Cin), lambda n: (n, 0, 0, 0, 0))
        operand = planes

    return pl.pallas_call(
        kernel,
        out_shape=out_shape,
        grid=(N,),
        in_specs=[in_spec, w_spec, b_spec],
        out_specs=out_spec,
        compiler_params=cparams,
    )(operand, w_packed, bias)


def _pillar_enc_ln_kernel(x_ref, w_ref, b_ref, g_ref, beta_ref, o_ref, *, eps):
    """Fused Linear + LayerNorm over a tile of pillar rows (bf16 in, f32 math)."""
    h = jnp.dot(x_ref[...], w_ref[...], preferred_element_type=jnp.float32)
    h = h + b_ref[...]
    mu = jnp.mean(h, axis=-1, keepdims=True)
    var = jnp.mean((h - mu) ** 2, axis=-1, keepdims=True)
    hn = (h - mu) * lax.rsqrt(var + eps)
    o_ref[...] = (hn * g_ref[...] + beta_ref[...]).astype(o_ref.dtype)


def pillar_position_enc(x_cat, w, b, gamma, beta, *, tile=256, eps=1e-5):
    """x_cat: (Npil, K) f32 -> (Npil, D) bf16 ; Linear + LayerNorm fused.

    Rows are padded up to a multiple of `tile` (no silent tail truncation) and
    K is zero-padded to match the pre-padded bf16 weight (Kp rows).
    """
    Np, K = x_cat.shape
    Kp, D = w.shape
    assert K <= Kp
    Np_pad = -(-Np // tile) * tile
    xp = jnp.zeros((Np_pad, Kp), jnp.bfloat16)
    xp = xp.at[:Np, :K].set(x_cat.astype(jnp.bfloat16))

    kernel = functools.partial(_pillar_enc_ln_kernel, eps=eps)
    out = pl.pallas_call(
        kernel,
        out_shape=jax.ShapeDtypeStruct((Np_pad, D), jnp.bfloat16),
        grid=(Np_pad // tile,),
        in_specs=[
            pl.BlockSpec((tile, Kp), lambda i: (i, 0)),
            pl.BlockSpec((Kp, D), lambda i: (0, 0)),
            pl.BlockSpec((1, D), lambda i: (0, 0)),
            pl.BlockSpec((1, D), lambda i: (0, 0)),
            pl.BlockSpec((1, D), lambda i: (0, 0)),
        ],
        out_specs=pl.BlockSpec((tile, D), lambda i: (i, 0)),
        compiler_params=pltpu.CompilerParams(
            dimension_semantics=("parallel",)),
    )(xp, w, b, gamma, beta)
    return out[:Np]


# ----------------------------------------------------------------------------
# Plain-JAX glue
# ----------------------------------------------------------------------------

def bilinear_downsample(x, s):
    """F.interpolate(scale_factor=1/s, mode='bilinear', align_corners=False)
    for power-of-two s: out[i, j] is the mean of the 2x2 input window at
    (s*i + s//2 - 1, s*j + s//2 - 1).  Kept in plain JAX (XLA fuses the strided
    slices + average; a Pallas kernel here only added HBM traffic + overhead).
    """
    N, H, W, C = x.shape
    assert H % s == 0 and W % s == 0
    Ho, Wo = H // s, W // s
    off = s // 2 - 1
    acc = None
    for a in range(2):
        for b in range(2):
            t = x[:, off + a::s, off + b::s, :][:, :Ho, :Wo, :]
            t = t.astype(jnp.float32)
            acc = t if acc is None else acc + t
    return (0.25 * acc).astype(x.dtype)


# ----------------------------------------------------------------------------
# Parameter init (deterministic, synthetic); BN folded, taps K-packed, bf16.
# ----------------------------------------------------------------------------

def init_params(key, in_channels, out_channels, layer_nums, layer_strides,
                pillar_in_dim, enc_dim):
    params = {"blocks": []}
    in_filters = [in_channels] + list(out_channels[:-1])
    bn_eps = 1e-3  # norm_cfg eps
    for i, ln in enumerate(layer_nums):
        layers = []
        cin = in_filters[i]
        for j in range(ln + 1):                     # 1 strided conv + ln convs
            cout = out_channels[i]
            key, k1, k2, k3, k4, k5 = jax.random.split(key, 6)
            fan_in = 9 * cin
            w = jax.random.normal(k1, (3, 3, cin, cout), jnp.float32) * (2.0 / fan_in) ** 0.5
            gamma = jax.random.uniform(k2, (cout,), jnp.float32, 0.5, 1.5)
            beta = jax.random.normal(k3, (cout,), jnp.float32) * 0.1
            mean = jax.random.normal(k4, (cout,), jnp.float32) * 0.1
            var = jax.random.uniform(k5, (cout,), jnp.float32, 0.5, 1.5)
            scale = gamma / jnp.sqrt(var + bn_eps)
            bias = beta - mean * scale
            # fold BN scale into the conv weight (conv is linear), then pack
            # (kw, cin) -> K so the kernel does 3 matmuls with K = 3*Cin.
            w_folded = w * scale[None, None, None, :]
            w_packed = w_folded.reshape(3, 3 * cin, cout).astype(jnp.bfloat16)
            layers.append(dict(w=w_packed, bias=bias.reshape(1, cout)))
            cin = cout
        params["blocks"].append(layers)

    key, k1, k2 = jax.random.split(key, 3)
    cin2 = pillar_in_dim + 3                        # features ++ pillar center xyz
    kp = -(-cin2 // 16) * 16                        # pad K for bf16 layout
    enc_w = jax.random.normal(k1, (cin2, enc_dim), jnp.float32) * (1.0 / cin2) ** 0.5
    params["enc_w"] = (jnp.zeros((kp, enc_dim), jnp.bfloat16)
                       .at[:cin2, :].set(enc_w.astype(jnp.bfloat16)))
    params["enc_b"] = jax.random.normal(k2, (1, enc_dim), jnp.float32) * 0.01
    params["ln_gamma"] = jnp.ones((1, enc_dim), jnp.float32)
    params["ln_beta"] = jnp.zeros((1, enc_dim), jnp.float32)
    return params


# ----------------------------------------------------------------------------
# Forward pass (mirrors SECOND_DSA.forward)
# ----------------------------------------------------------------------------

def second_dsa_forward(params, x, pillar_features, coors, *,
                       layer_strides, nx, ny, voxel_size, pc_range):
    # 1) multi-scale 2D backbone: stacks of Conv3x3 + (folded)BN + ReLU (Pallas)
    spatial_features = []
    h = x
    for i, layers in enumerate(params["blocks"]):
        for j, lyr in enumerate(layers):
            stride = layer_strides[i] if j == 0 else 1
            h = conv3x3_bn_relu(h, lyr["w"], lyr["bias"], stride)
        spatial_features.append(h)

    # 2) pillar positional encoding + LayerNorm (fused Pallas kernel)
    vx, vy, vz = voxel_size
    x_off = vx / 2 + pc_range[0]
    y_off = vy / 2 + pc_range[1]
    z_off = vz / 2 + pc_range[2]
    cx = coors[:, 3].astype(jnp.float32) * vx + x_off
    cy = coors[:, 2].astype(jnp.float32) * vy + y_off
    cz = coors[:, 1].astype(jnp.float32) * vz + z_off
    pos = jnp.stack([cx, cy, cz], axis=1)
    x_cat = jnp.concatenate([pillar_features.astype(jnp.float32), pos], axis=1)
    pillar_pos_enc = pillar_position_enc(
        x_cat, params["enc_w"], params["enc_b"],
        params["ln_gamma"], params["ln_beta"])

    # 3) scatter encoded pillars onto the BEV canvas (data-dependent, plain JAX)
    #    flat index = z + y*nx + x, matching the reference (nz == 1 so z == 0)
    B = x.shape[0]
    enc_dim = pillar_pos_enc.shape[-1]
    flat_idx = coors[:, 1] + coors[:, 2] * nx + coors[:, 3]
    canvas = jnp.zeros((B, ny * nx, enc_dim), pillar_pos_enc.dtype)
    canvas = canvas.at[coors[:, 0], flat_idx].set(pillar_pos_enc)
    context_features = canvas.reshape(B, ny, nx, enc_dim)   # NHWC

    # 4) bilinear downsample (x0.5, x0.25, x0.125) + channel concat per level
    outs = []
    for i, s in enumerate((2, 4, 8)):
        ctx = bilinear_downsample(context_features, s)
        outs.append(jnp.concatenate([spatial_features[i], ctx], axis=-1))
    return tuple(outs)


# ----------------------------------------------------------------------------

if __name__ == "__main__":
    key = jax.random.PRNGKey(0)

    # small, self-consistent configuration
    B = 2
    H = W = 32                    # BEV canvas: ny == H, nx == W
    nx = ny = 32
    in_channels = 32
    out_channels = [32, 32, 64]
    layer_nums = [2, 2, 2]
    layer_strides = [2, 2, 2]
    enc_dim = 32                  # context (pillar encoding) channels
    P = 60                        # pillars / sample (NOT a multiple of the tile)
    voxel_size = (0.16, 0.16, 4.0)
    pc_range = (0.0, -39.68, -3.0, 69.12, 39.68, 1.0)

    key, kx, kf, kc = jax.random.split(key, 4)
    x = jax.random.normal(kx, (B, H, W, in_channels), jnp.float32).astype(jnp.bfloat16)
    pillar_features = jax.random.normal(kf, (B * P, in_channels), jnp.float32)

    # coors: (Npil, 4) = (batch, z, y, x) with unique cells per sample
    coors_list = []
    for b in range(B):
        kc, sub = jax.random.split(kc)
        cells = jax.random.permutation(sub, ny * nx)[:P]
        ys = (cells // nx).astype(jnp.int32)
        xs = (cells % nx).astype(jnp.int32)
        bcol = jnp.full((P,), b, jnp.int32)
        zcol = jnp.zeros((P,), jnp.int32)
        coors_list.append(jnp.stack([bcol, zcol, ys, xs], axis=1))
    coors = jnp.concatenate(coors_list, axis=0)

    params = init_params(key, in_channels, out_channels, layer_nums,
                         layer_strides, in_channels, enc_dim)

    fwd = jax.jit(functools.partial(
        second_dsa_forward,
        layer_strides=tuple(layer_strides),
        nx=nx, ny=ny, voxel_size=voxel_size, pc_range=pc_range))

    outs = jax.block_until_ready(fwd(params, x, pillar_features, coors))

    expected = ((B, H // 2, W // 2, out_channels[0] + enc_dim),
                (B, H // 4, W // 4, out_channels[1] + enc_dim),
                (B, H // 8, W // 8, out_channels[2] + enc_dim))
    assert tuple(o.shape for o in outs) == expected, [o.shape for o in outs]
    print("KERNEL_OK")
</pallas_src>

<mosaic_0001>
module attributes {stable_mosaic.version = 11 : i64} {
  func.func @_conv3x3_s2_kernel(%arg0: i32, %arg1: memref<1x4x17x17x32xbf16, #tpu.memory_space<vmem>>, %arg2: memref<3x96x32xbf16, #tpu.memory_space<vmem>>, %arg3: memref<1x32xf32, #tpu.memory_space<vmem>>, %arg4: memref<1x16x16x32xbf16, #tpu.memory_space<vmem>>) attributes {dimension_semantics = [#tpu.dimension_semantics<parallel>], iteration_bounds = array<i64: 2>, scalar_prefetch = 0 : i64, scratch_operands = 0 : i64, tpu.core_type = #tpu.core_type<tc>, window_params = [{transform_indices = @transform_0, window_bounds = array<i64: 1, 4, 17, 17, 32>}, {pipeline_mode = #tpu.pipeline_mode<synchronous>, transform_indices = @transform_1, window_bounds = array<i64: 3, 96, 32>}, {pipeline_mode = #tpu.pipeline_mode<synchronous>, transform_indices = @transform_2, window_bounds = array<i64: 1, 32>}, {transform_indices = @transform_3, window_bounds = array<i64: 1, 16, 16, 32>}]} {
    %cst = arith.constant 0.000000e+00 : f32
    %0 = vector.broadcast %cst : f32 to vector<256x32xf32>
    %c0 = arith.constant 0 : index
    %c0_0 = arith.constant 0 : index
    %c0_1 = arith.constant 0 : index
    %c0_2 = arith.constant 0 : index
    %c0_3 = arith.constant 0 : index
    %1 = vector.load %arg1[%c0, %c0_0, %c0_1, %c0_2, %c0_3] : memref<1x4x17x17x32xbf16, #tpu.memory_space<vmem>>, vector<1x1x16x16x32xbf16>
    %2 = vector.shape_cast %1 : vector<1x1x16x16x32xbf16> to vector<16x16x32xbf16>
    %c0_4 = arith.constant 0 : index
    %c1 = arith.constant 1 : index
    %c0_5 = arith.constant 0 : index
    %c0_6 = arith.constant 0 : index
    %c0_7 = arith.constant 0 : index
    %3 = vector.load %arg1[%c0_4, %c1, %c0_5, %c0_6, %c0_7] : memref<1x4x17x17x32xbf16, #tpu.memory_space<vmem>>, vector<1x1x16x16x32xbf16>
    %4 = vector.shape_cast %3 : vector<1x1x16x16x32xbf16> to vector<16x16x32xbf16>
    %c0_8 = arith.constant 0 : index
    %c0_9 = arith.constant 0 : index
    %c0_10 = arith.constant 0 : index
    %c1_11 = arith.constant 1 : index
    %c0_12 = arith.constant 0 : index
    %5 = vector.load %arg1[%c0_8, %c0_9, %c0_10, %c1_11, %c0_12] : memref<1x4x17x17x32xbf16, #tpu.memory_space<vmem>>, vector<1x1x16x16x32xbf16>
    %6 = vector.shape_cast %5 : vector<1x1x16x16x32xbf16> to vector<16x16x32xbf16>
    %7 = tpu.concatenate %2, %4, %6 in 2 : vector<16x16x32xbf16>, vector<16x16x32xbf16>, vector<16x16x32xbf16> -> vector<16x16x96xbf16>
    %8 = vector.shape_cast %7 : vector<16x16x96xbf16> to vector<256x96xbf16>
    %c0_13 = arith.constant 0 : index
    %c0_14 = arith.constant 0 : index
    %c0_15 = arith.constant 0 : index
    %9 = vector.load %arg2[%c0_13, %c0_14, %c0_15] : memref<3x96x32xbf16, #tpu.memory_space<vmem>>, vector<1x96x32xbf16>
    %10 = vector.shape_cast %9 : vector<1x96x32xbf16> to vector<96x32xbf16>
    %cst_16 = arith.constant dense<0.000000e+00> : vector<256x32xf32>
    %11 = tpu.matmul %8, %10, %cst_16 {dimension_numbers = #tpu.dot_dimension_numbers<[1], [0], [0], [1], [0, 0, 1, 1], [], []>} : vector<256x96xbf16>, vector<96x32xbf16>, vector<256x32xf32> -> vector<256x32xf32>
    %12 = arith.addf %0, %11 : vector<256x32xf32>
    %c0_17 = arith.constant 0 : index
    %c2 = arith.constant 2 : index
    %c0_18 = arith.constant 0 : index
    %c0_19 = arith.constant 0 : index
    %c0_20 = arith.constant 0 : index
    %13 = vector.load %arg1[%c0_17, %c2, %c0_18, %c0_19, %c0_20] : memref<1x4x17x17x32xbf16, #tpu.memory_space<vmem>>, vector<1x1x16x16x32xbf16>
    %14 = vector.shape_cast %13 : vector<1x1x16x16x32xbf16> to vector<16x16x32xbf16>
    %c0_21 = arith.constant 0 : index
    %c3 = arith.constant 3 : index
    %c0_22 = arith.constant 0 : index
    %c0_23 = arith.constant 0 : index
    %c0_24 = arith.constant 0 : index
    %15 = vector.load %arg1[%c0_21, %c3, %c0_22, %c0_23, %c0_24] : memref<1x4x17x17x32xbf16, #tpu.memory_space<vmem>>, vector<1x1x16x16x32xbf16>
    %16 = vector.shape_cast %15 : vector<1x1x16x16x32xbf16> to vector<16x16x32xbf16>
    %c0_25 = arith.constant 0 : index
    %c2_26 = arith.constant 2 : index
    %c0_27 = arith.constant 0 : index
    %c1_28 = arith.constant 1 : index
    %c0_29 = arith.constant 0 : index
    %17 = vector.load %arg1[%c0_25, %c2_26, %c0_27, %c1_28, %c0_29] : memref<1x4x17x17x32xbf16, #tpu.memory_space<vmem>>, vector<1x1x16x16x32xbf16>
    %18 = vector.shape_cast %17 : vector<1x1x16x16x32xbf16> to vector<16x16x32xbf16>
    %19 = tpu.concatenate %14, %16, %18 in 2 : vector<16x16x32xbf16>, vector<16x16x32xbf16>, vector<16x16x32xbf16> -> vector<16x16x96xbf16>
    %20 = vector.shape_cast %19 : vector<16x16x96xbf16> to vector<256x96xbf16>
    %c1_30 = arith.constant 1 : index
    %c0_31 = arith.constant 0 : index
    %c0_32 = arith.constant 0 : index
    %21 = vector.load %arg2[%c1_30, %c0_31, %c0_32] : memref<3x96x32xbf16, #tpu.memory_space<vmem>>, vector<1x96x32xbf16>
    %22 = vector.shape_cast %21 : vector<1x96x32xbf16> to vector<96x32xbf16>
    %cst_33 = arith.constant dense<0.000000e+00> : vector<256x32xf32>
    %23 = tpu.matmul %20, %22, %cst_33 {dimension_numbers = #tpu.dot_dimension_numbers<[1], [0], [0], [1], [0, 0, 1, 1], [], []>} : vector<256x96xbf16>, vector<96x32xbf16>, vector<256x32xf32> -> vector<256x32xf32>
    %24 = arith.addf %12, %23 : vector<256x32xf32>
    %c0_34 = arith.constant 0 : index
    %c0_35 = arith.constant 0 : index
    %c1_36 = arith.constant 1 : index
    %c0_37 = arith.constant 0 : index
    %c0_38 = arith.constant 0 : index
    %25 = vector.load %arg1[%c0_34, %c0_35, %c1_36, %c0_37, %c0_38] : memref<1x4x17x17x32xbf16, #tpu.memory_space<vmem>>, vector<1x1x16x16x32xbf16>
    %26 = vector.shape_cast %25 : vector<1x1x16x16x32xbf16> to vector<16x16x32xbf16>
    %c0_39 = arith.constant 0 : index
    %c1_40 = arith.constant 1 : index
    %c1_41 = arith.constant 1 : index
    %c0_42 = arith.constant 0 : index
    %c0_43 = arith.constant 0 : index
    %27 = vector.load %arg1[%c0_39, %c1_40, %c1_41, %c0_42, %c0_43] : memref<1x4x17x17x32xbf16, #tpu.memory_space<vmem>>, vector<1x1x16x16x32xbf16>
    %28 = vector.shape_cast %27 : vector<1x1x16x16x32xbf16> to vector<16x16x32xbf16>
    %c0_44 = arith.constant 0 : index
    %c0_45 = arith.constant 0 : index
    %c1_46 = arith.constant 1 : index
    %c1_47 = arith.constant 1 : index
    %c0_48 = arith.constant 0 : index
    %29 = vector.load %arg1[%c0_44, %c0_45, %c1_46, %c1_47, %c0_48] : memref<1x4x17x17x32xbf16, #tpu.memory_space<vmem>>, vector<1x1x16x16x32xbf16>
    %30 = vector.shape_cast %29 : vector<1x1x16x16x32xbf16> to vector<16x16x32xbf16>
    %31 = tpu.concatenate %26, %28, %30 in 2 : vector<16x16x32xbf16>, vector<16x16x32xbf16>, vector<16x16x32xbf16> -> vector<16x16x96xbf16>
    %32 = vector.shape_cast %31 : vector<16x16x96xbf16> to vector<256x96xbf16>
    %c2_49 = arith.constant 2 : index
    %c0_50 = arith.constant 0 : index
    %c0_51 = arith.constant 0 : index
    %33 = vector.load %arg2[%c2_49, %c0_50, %c0_51] : memref<3x96x32xbf16, #tpu.memory_space<vmem>>, vector<1x96x32xbf16>
    %34 = vector.shape_cast %33 : vector<1x96x32xbf16> to vector<96x32xbf16>
    %cst_52 = arith.constant dense<0.000000e+00> : vector<256x32xf32>
    %35 = tpu.matmul %32, %34, %cst_52 {dimension_numbers = #tpu.dot_dimension_numbers<[1], [0], [0], [1], [0, 0, 1, 1], [], []>} : vector<256x96xbf16>, vector<96x32xbf16>, vector<256x32xf32> -> vector<256x32xf32>
    %36 = arith.addf %24, %35 : vector<256x32xf32>
    %c0_53 = arith.constant 0 : index
    %c0_54 = arith.constant 0 : index
    %37 = vector.load %arg3[%c0_53, %c0_54] : memref<1x32xf32, #tpu.memory_space<vmem>>, vector<1x32xf32>
    %38 = vector.broadcast %37 : vector<1x32xf32> to vector<256x32xf32>
    %39 = arith.addf %36, %38 : vector<256x32xf32>
    %cst_55 = arith.constant 0.000000e+00 : f32
    %40 = vector.broadcast %cst_55 : f32 to vector<256x32xf32>
    %41 = arith.maximumf %39, %40 : vector<256x32xf32>
    %42 = vector.shape_cast %41 : vector<256x32xf32> to vector<16x16x32xf32>
    %43 = arith.truncf %42 : vector<16x16x32xf32> to vector<16x16x32xbf16>
    %c0_56 = arith.constant 0 : index
    %c0_57 = arith.constant 0 : index
    %c0_58 = arith.constant 0 : index
    %c0_59 = arith.constant 0 : index
    %44 = vector.load %arg4[%c0_56, %c0_57, %c0_58, %c0_59] : memref<1x16x16x32xbf16, #tpu.memory_space<vmem>>, vector<1x16x16x32xbf16>
    %45 = vector.shape_cast %44 : vector<1x16x16x32xbf16> to vector<16x16x32xbf16>
    %46 = vector.shape_cast %43 : vector<16x16x32xbf16> to vector<1x16x16x32xbf16>
    tpu.vector_store %arg4[%c0_56, %c0_57, %c0_58, %c0_59], %46 {strides = array<i32>} : memref<1x16x16x32xbf16, #tpu.memory_space<vmem>>, vector<1x16x16x32xbf16>,
    return
  }
  func.func @transform_0(%arg0: i32) -> (i32, i32, i32, i32, i32) {
    %c0_i32 = arith.constant 0 : i32
    %c0_i32_0 = arith.constant 0 : i32
    %c0_i32_1 = arith.constant 0 : i32
    %c0_i32_2 = arith.constant 0 : i32
    %c0_i32_3 = arith.constant 0 : i32
    return %arg0, %c0_i32, %c0_i32_0, %c0_i32_1, %c0_i32_2 : i32, i32, i32, i32, i32
  }
  func.func @transform_1(%arg0: i32) -> (i32, i32, i32) {
    %c0_i32 = arith.constant 0 : i32
    %c0_i32_0 = arith.constant 0 : i32
    %c0_i32_1 = arith.constant 0 : i32
    %c0_i32_2 = arith.constant 0 : i32
    return %c0_i32, %c0_i32_0, %c0_i32_1 : i32, i32, i32
  }
  func.func @transform_2(%arg0: i32) -> (i32, i32) {
    %c0_i32 = arith.constant 0 : i32
    %c0_i32_0 = arith.constant 0 : i32
    %c0_i32_1 = arith.constant 0 : i32
    return %c0_i32, %c0_i32_0 : i32, i32
  }
  func.func @transform_3(%arg0: i32) -> (i32, i32, i32, i32) {
    %c0_i32 = arith.constant 0 : i32
    %c0_i32_0 = arith.constant 0 : i32
    %c0_i32_1 = arith.constant 0 : i32
    %c0_i32_2 = arith.constant 0 : i32
    return %arg0, %c0_i32, %c0_i32_0, %c0_i32_1 : i32, i32, i32, i32
  }
}

module attributes {stable_mosaic.version = 11 : i64} {
  func.func @_conv3x3_s1_kernel(%arg0: i32, %arg1: memref<1x18x18x32xbf16, #tpu.memory_space<vmem>>, %arg2: memref<3x96x32xbf16, #tpu.memory_space<vmem>>, %arg3: memref<1x32xf32, #tpu.memory_space<vmem>>, %arg4: memref<1x16x16x32xbf16, #tpu.memory_space<vmem>>) attributes {dimension_semantics = [#tpu.dimension_semantics<parallel>], iteration_bounds = array<i64: 2>, scalar_prefetch = 0 : i64, scratch_operands = 0 : i64, tpu.core_type = #tpu.core_type<tc>, window_params = [{transform_indices = @transform_0, window_bounds = array<i64: 1, 18, 18, 32>}, {pipeline_mode = #tpu.pipeline_mode<synchronous>, transform_indices = @transform_1, window_bounds = array<i64: 3, 96, 32>}, {pipeline_mode = #tpu.pipeline_mode<synchronous>, transform_indices = @transform_2, window_bounds = array<i64: 1, 32>}, {transform_indices = @transform_3, window_bounds = array<i64: 1, 16, 16, 32>}]} {
    %cst = arith.constant 0.000000e+00 : f32
    %0 = vector.broadcast %cst : f32 to vector<256x32xf32>
    %c0 = arith.constant 0 : index
    %c0_0 = arith.constant 0 : index
    %c0_1 = arith.constant 0 : index
    %c0_2 = arith.constant 0 : index
    %1 = vector.load %arg1[%c0, %c0_0, %c0_1, %c0_2] : memref<1x18x18x32xbf16, #tpu.memory_space<vmem>>, vector<1x16x16x32xbf16>
    %2 = vector.shape_cast %1 : vector<1x16x16x32xbf16> to vector<16x16x32xbf16>
    %c0_3 = arith.constant 0 : index
    %c0_4 = arith.constant 0 : index
    %c1 = arith.constant 1 : index
    %c0_5 = arith.constant 0 : index
    %3 = vector.load %arg1[%c0_3, %c0_4, %c1, %c0_5] : memref<1x18x18x32xbf16, #tpu.memory_space<vmem>>, vector<1x16x16x32xbf16>
    %4 = vector.shape_cast %3 : vector<1x16x16x32xbf16> to vector<16x16x32xbf16>
    %c0_6 = arith.constant 0 : index
    %c0_7 = arith.constant 0 : index
    %c2 = arith.constant 2 : index
    %c0_8 = arith.constant 0 : index
    %5 = vector.load %arg1[%c0_6, %c0_7, %c2, %c0_8] : memref<1x18x18x32xbf16, #tpu.memory_space<vmem>>, vector<1x16x16x32xbf16>
    %6 = vector.shape_cast %5 : vector<1x16x16x32xbf16> to vector<16x16x32xbf16>
    %7 = tpu.concatenate %2, %4, %6 in 2 : vector<16x16x32xbf16>, vector<16x16x32xbf16>, vector<16x16x32xbf16> -> vector<16x16x96xbf16>
    %8 = vector.shape_cast %7 : vector<16x16x96xbf16> to vector<256x96xbf16>
    %c0_9 = arith.constant 0 : index
    %c0_10 = arith.constant 0 : index
    %c0_11 = arith.constant 0 : index
    %9 = vector.load %arg2[%c0_9, %c0_10, %c0_11] : memref<3x96x32xbf16, #tpu.memory_space<vmem>>, vector<1x96x32xbf16>
    %10 = vector.shape_cast %9 : vector<1x96x32xbf16> to vector<96x32xbf16>
    %cst_12 = arith.constant dense<0.000000e+00> : vector<256x32xf32>
    %11 = tpu.matmul %8, %10, %cst_12 {dimension_numbers = #tpu.dot_dimension_numbers<[1], [0], [0], [1], [0, 0, 1, 1], [], []>} : vector<256x96xbf16>, vector<96x32xbf16>, vector<256x32xf32> -> vector<256x32xf32>
    %12 = arith.addf %0, %11 : vector<256x32xf32>
    %c0_13 = arith.constant 0 : index
    %c1_14 = arith.constant 1 : index
    %c0_15 = arith.constant 0 : index
    %c0_16 = arith.constant 0 : index
    %13 = vector.load %arg1[%c0_13, %c1_14, %c0_15, %c0_16] : memref<1x18x18x32xbf16, #tpu.memory_space<vmem>>, vector<1x16x16x32xbf16>
    %14 = vector.shape_cast %13 : vector<1x16x16x32xbf16> to vector<16x16x32xbf16>
    %c0_17 = arith.constant 0 : index
    %c1_18 = arith.constant 1 : index
    %c1_19 = arith.constant 1 : index
    %c0_20 = arith.constant 0 : index
    %15 = vector.load %arg1[%c0_17, %c1_18, %c1_19, %c0_20] : memref<1x18x18x32xbf16, #tpu.memory_space<vmem>>, vector<1x16x16x32xbf16>
    %16 = vector.shape_cast %15 : vector<1x16x16x32xbf16> to vector<16x16x32xbf16>
    %c0_21 = arith.constant 0 : index
    %c1_22 = arith.constant 1 : index
    %c2_23 = arith.constant 2 : index
    %c0_24 = arith.constant 0 : index
    %17 = vector.load %arg1[%c0_21, %c1_22, %c2_23, %c0_24] : memref<1x18x18x32xbf16, #tpu.memory_space<vmem>>, vector<1x16x16x32xbf16>
    %18 = vector.shape_cast %17 : vector<1x16x16x32xbf16> to vector<16x16x32xbf16>
    %19 = tpu.concatenate %14, %16, %18 in 2 : vector<16x16x32xbf16>, vector<16x16x32xbf16>, vector<16x16x32xbf16> -> vector<16x16x96xbf16>
    %20 = vector.shape_cast %19 : vector<16x16x96xbf16> to vector<256x96xbf16>
    %c1_25 = arith.constant 1 : index
    %c0_26 = arith.constant 0 : index
    %c0_27 = arith.constant 0 : index
    %21 = vector.load %arg2[%c1_25, %c0_26, %c0_27] : memref<3x96x32xbf16, #tpu.memory_space<vmem>>, vector<1x96x32xbf16>
    %22 = vector.shape_cast %21 : vector<1x96x32xbf16> to vector<96x32xbf16>
    %cst_28 = arith.constant dense<0.000000e+00> : vector<256x32xf32>
    %23 = tpu.matmul %20, %22, %cst_28 {dimension_numbers = #tpu.dot_dimension_numbers<[1], [0], [0], [1], [0, 0, 1, 1], [], []>} : vector<256x96xbf16>, vector<96x32xbf16>, vector<256x32xf32> -> vector<256x32xf32>
    %24 = arith.addf %12, %23 : vector<256x32xf32>
    %c0_29 = arith.constant 0 : index
    %c2_30 = arith.constant 2 : index
    %c0_31 = arith.constant 0 : index
    %c0_32 = arith.constant 0 : index
    %25 = vector.load %arg1[%c0_29, %c2_30, %c0_31, %c0_32] : memref<1x18x18x32xbf16, #tpu.memory_space<vmem>>, vector<1x16x16x32xbf16>
    %26 = vector.shape_cast %25 : vector<1x16x16x32xbf16> to vector<16x16x32xbf16>
    %c0_33 = arith.constant 0 : index
    %c2_34 = arith.constant 2 : index
    %c1_35 = arith.constant 1 : index
    %c0_36 = arith.constant 0 : index
    %27 = vector.load %arg1[%c0_33, %c2_34, %c1_35, %c0_36] : memref<1x18x18x32xbf16, #tpu.memory_space<vmem>>, vector<1x16x16x32xbf16>
    %28 = vector.shape_cast %27 : vector<1x16x16x32xbf16> to vector<16x16x32xbf16>
    %c0_37 = arith.constant 0 : index
    %c2_38 = arith.constant 2 : index
    %c2_39 = arith.constant 2 : index
    %c0_40 = arith.constant 0 : index
    %29 = vector.load %arg1[%c0_37, %c2_38, %c2_39, %c0_40] : memref<1x18x18x32xbf16, #tpu.memory_space<vmem>>, vector<1x16x16x32xbf16>
    %30 = vector.shape_cast %29 : vector<1x16x16x32xbf16> to vector<16x16x32xbf16>
    %31 = tpu.concatenate %26, %28, %30 in 2 : vector<16x16x32xbf16>, vector<16x16x32xbf16>, vector<16x16x32xbf16> -> vector<16x16x96xbf16>
    %32 = vector.shape_cast %31 : vector<16x16x96xbf16> to vector<256x96xbf16>
    %c2_41 = arith.constant 2 : index
    %c0_42 = arith.constant 0 : index
    %c0_43 = arith.constant 0 : index
    %33 = vector.load %arg2[%c2_41, %c0_42, %c0_43] : memref<3x96x32xbf16, #tpu.memory_space<vmem>>, vector<1x96x32xbf16>
    %34 = vector.shape_cast %33 : vector<1x96x32xbf16> to vector<96x32xbf16>
    %cst_44 = arith.constant dense<0.000000e+00> : vector<256x32xf32>
    %35 = tpu.matmul %32, %34, %cst_44 {dimension_numbers = #tpu.dot_dimension_numbers<[1], [0], [0], [1], [0, 0, 1, 1], [], []>} : vector<256x96xbf16>, vector<96x32xbf16>, vector<256x32xf32> -> vector<256x32xf32>
    %36 = arith.addf %24, %35 : vector<256x32xf32>
    %c0_45 = arith.constant 0 : index
    %c0_46 = arith.constant 0 : index
    %37 = vector.load %arg3[%c0_45, %c0_46] : memref<1x32xf32, #tpu.memory_space<vmem>>, vector<1x32xf32>
    %38 = vector.broadcast %37 : vector<1x32xf32> to vector<256x32xf32>
    %39 = arith.addf %36, %38 : vector<256x32xf32>
    %cst_47 = arith.constant 0.000000e+00 : f32
    %40 = vector.broadcast %cst_47 : f32 to vector<256x32xf32>
    %41 = arith.maximumf %39, %40 : vector<256x32xf32>
    %42 = vector.shape_cast %41 : vector<256x32xf32> to vector<16x16x32xf32>
    %43 = arith.truncf %42 : vector<16x16x32xf32> to vector<16x16x32xbf16>
    %c0_48 = arith.constant 0 : index
    %c0_49 = arith.constant 0 : index
    %c0_50 = arith.constant 0 : index
    %c0_51 = arith.constant 0 : index
    %44 = vector.load %arg4[%c0_48, %c0_49, %c0_50, %c0_51] : memref<1x16x16x32xbf16, #tpu.memory_space<vmem>>, vector<1x16x16x32xbf16>
    %45 = vector.shape_cast %44 : vector<1x16x16x32xbf16> to vector<16x16x32xbf16>
    %46 = vector.shape_cast %43 : vector<16x16x32xbf16> to vector<1x16x16x32xbf16>
    tpu.vector_store %arg4[%c0_48, %c0_49, %c0_50, %c0_51], %46 {strides = array<i32>} : memref<1x16x16x32xbf16, #tpu.memory_space<vmem>>, vector<1x16x16x32xbf16>,
    return
  }
  func.func @transform_0(%arg0: i32) -> (i32, i32, i32, i32) {
    %c0_i32 = arith.constant 0 : i32
    %c0_i32_0 = arith.constant 0 : i32
    %c0_i32_1 = arith.constant 0 : i32
    %c0_i32_2 = arith.constant 0 : i32
    return %arg0, %c0_i32, %c0_i32_0, %c0_i32_1 : i32, i32, i32, i32
  }
  func.func @transform_1(%arg0: i32) -> (i32, i32, i32) {
    %c0_i32 = arith.constant 0 : i32
    %c0_i32_0 = arith.constant 0 : i32
    %c0_i32_1 = arith.constant 0 : i32
    %c0_i32_2 = arith.constant 0 : i32
    return %c0_i32, %c0_i32_0, %c0_i32_1 : i32, i32, i32
  }
  func.func @transform_2(%arg0: i32) -> (i32, i32) {
    %c0_i32 = arith.constant 0 : i32
    %c0_i32_0 = arith.constant 0 : i32
    %c0_i32_1 = arith.constant 0 : i32
    return %c0_i32, %c0_i32_0 : i32, i32
  }
  func.func @transform_3(%arg0: i32) -> (i32, i32, i32, i32) {
    %c0_i32 = arith.constant 0 : i32
    %c0_i32_0 = arith.constant 0 : i32
    %c0_i32_1 = arith.constant 0 : i32
    %c0_i32_2 = arith.constant 0 : i32
    return %arg0, %c0_i32, %c0_i32_0, %c0_i32_1 : i32, i32, i32, i32
  }
}

module attributes {stable_mosaic.version = 11 : i64} {
  func.func @_conv3x3_s2_kernel(%arg0: i32, %arg1: memref<1x4x9x9x32xbf16, #tpu.memory_space<vmem>>, %arg2: memref<3x96x32xbf16, #tpu.memory_space<vmem>>, %arg3: memref<1x32xf32, #tpu.memory_space<vmem>>, %arg4: memref<1x8x8x32xbf16, #tpu.memory_space<vmem>>) attributes {dimension_semantics = [#tpu.dimension_semantics<parallel>], iteration_bounds = array<i64: 2>, scalar_prefetch = 0 : i64, scratch_operands = 0 : i64, tpu.core_type = #tpu.core_type<tc>, window_params = [{transform_indices = @transform_0, window_bounds = array<i64: 1, 4, 9, 9, 32>}, {pipeline_mode = #tpu.pipeline_mode<synchronous>, transform_indices = @transform_1, window_bounds = array<i64: 3, 96, 32>}, {pipeline_mode = #tpu.pipeline_mode<synchronous>, transform_indices = @transform_2, window_bounds = array<i64: 1, 32>}, {transform_indices = @transform_3, window_bounds = array<i64: 1, 8, 8, 32>}]} {
    %cst = arith.constant 0.000000e+00 : f32
    %0 = vector.broadcast %cst : f32 to vector<64x32xf32>
    %c0 = arith.constant 0 : index
    %c0_0 = arith.constant 0 : index
    %c0_1 = arith.constant 0 : index
    %c0_2 = arith.constant 0 : index
    %c0_3 = arith.constant 0 : index
    %1 = vector.load %arg1[%c0, %c0_0, %c0_1, %c0_2, %c0_3] : memref<1x4x9x9x32xbf16, #tpu.memory_space<vmem>>, vector<1x1x8x8x32xbf16>
    %2 = vector.shape_cast %1 : vector<1x1x8x8x32xbf16> to vector<8x8x32xbf16>
    %c0_4 = arith.constant 0 : index
    %c1 = arith.constant 1 : index
    %c0_5 = arith.constant 0 : index
    %c0_6 = arith.constant 0 : index
    %c0_7 = arith.constant 0 : index
    %3 = vector.load %arg1[%c0_4, %c1, %c0_5, %c0_6, %c0_7] : memref<1x4x9x9x32xbf16, #tpu.memory_space<vmem>>, vector<1x1x8x8x32xbf16>
    %4 = vector.shape_cast %3 : vector<1x1x8x8x32xbf16> to vector<8x8x32xbf16>
    %c0_8 = arith.constant 0 : index
    %c0_9 = arith.constant 0 : index
    %c0_10 = arith.constant 0 : index
    %c1_11 = arith.constant 1 : index
    %c0_12 = arith.constant 0 : index
    %5 = vector.load %arg1[%c0_8, %c0_9, %c0_10, %c1_11, %c0_12] : memref<1x4x9x9x32xbf16, #tpu.memory_space<vmem>>, vector<1x1x8x8x32xbf16>
    %6 = vector.shape_cast %5 : vector<1x1x8x8x32xbf16> to vector<8x8x32xbf16>
    %7 = tpu.concatenate %2, %4, %6 in 2 : vector<8x8x32xbf16>, vector<8x8x32xbf16>, vector<8x8x32xbf16> -> vector<8x8x96xbf16>
    %8 = vector.shape_cast %7 : vector<8x8x96xbf16> to vector<64x96xbf16>
    %c0_13 = arith.constant 0 : index
    %c0_14 = arith.constant 0 : index
    %c0_15 = arith.constant 0 : index
    %9 = vector.load %arg2[%c0_13, %c0_14, %c0_15] : memref<3x96x32xbf16, #tpu.memory_space<vmem>>, vector<1x96x32xbf16>
    %10 = vector.shape_cast %9 : vector<1x96x32xbf16> to vector<96x32xbf16>
    %cst_16 = arith.constant dense<0.000000e+00> : vector<64x32xf32>
    %11 = tpu.matmul %8, %10, %cst_16 {dimension_numbers = #tpu.dot_dimension_numbers<[1], [0], [0], [1], [0, 0, 1, 1], [], []>} : vector<64x96xbf16>, vector<96x32xbf16>, vector<64x32xf32> -> vector<64x32xf32>
    %12 = arith.addf %0, %11 : vector<64x32xf32>
    %c0_17 = arith.constant 0 : index
    %c2 = arith.constant 2 : index
    %c0_18 = arith.constant 0 : index
    %c0_19 = arith.constant 0 : index
    %c0_20 = arith.constant 0 : index
    %13 = vector.load %arg1[%c0_17, %c2, %c0_18, %c0_19, %c0_20] : memref<1x4x9x9x32xbf16, #tpu.memory_space<vmem>>, vector<1x1x8x8x32xbf16>
    %14 = vector.shape_cast %13 : vector<1x1x8x8x32xbf16> to vector<8x8x32xbf16>
    %c0_21 = arith.constant 0 : index
    %c3 = arith.constant 3 : index
    %c0_22 = arith.constant 0 : index
    %c0_23 = arith.constant 0 : index
    %c0_24 = arith.constant 0 : index
    %15 = vector.load %arg1[%c0_21, %c3, %c0_22, %c0_23, %c0_24] : memref<1x4x9x9x32xbf16, #tpu.memory_space<vmem>>, vector<1x1x8x8x32xbf16>
    %16 = vector.shape_cast %15 : vector<1x1x8x8x32xbf16> to vector<8x8x32xbf16>
    %c0_25 = arith.constant 0 : index
    %c2_26 = arith.constant 2 : index
    %c0_27 = arith.constant 0 : index
    %c1_28 = arith.constant 1 : index
    %c0_29 = arith.constant 0 : index
    %17 = vector.load %arg1[%c0_25, %c2_26, %c0_27, %c1_28, %c0_29] : memref<1x4x9x9x32xbf16, #tpu.memory_space<vmem>>, vector<1x1x8x8x32xbf16>
    %18 = vector.shape_cast %17 : vector<1x1x8x8x32xbf16> to vector<8x8x32xbf16>
    %19 = tpu.concatenate %14, %16, %18 in 2 : vector<8x8x32xbf16>, vector<8x8x32xbf16>, vector<8x8x32xbf16> -> vector<8x8x96xbf16>
    %20 = vector.shape_cast %19 : vector<8x8x96xbf16> to vector<64x96xbf16>
    %c1_30 = arith.constant 1 : index
    %c0_31 = arith.constant 0 : index
    %c0_32 = arith.constant 0 : index
    %21 = vector.load %arg2[%c1_30, %c0_31, %c0_32] : memref<3x96x32xbf16, #tpu.memory_space<vmem>>, vector<1x96x32xbf16>
    %22 = vector.shape_cast %21 : vector<1x96x32xbf16> to vector<96x32xbf16>
    %cst_33 = arith.constant dense<0.000000e+00> : vector<64x32xf32>
    %23 = tpu.matmul %20, %22, %cst_33 {dimension_numbers = #tpu.dot_dimension_numbers<[1], [0], [0], [1], [0, 0, 1, 1], [], []>} : vector<64x96xbf16>, vector<96x32xbf16>, vector<64x32xf32> -> vector<64x32xf32>
    %24 = arith.addf %12, %23 : vector<64x32xf32>
    %c0_34 = arith.constant 0 : index
    %c0_35 = arith.constant 0 : index
    %c1_36 = arith.constant 1 : index
    %c0_37 = arith.constant 0 : index
    %c0_38 = arith.constant 0 : index
    %25 = vector.load %arg1[%c0_34, %c0_35, %c1_36, %c0_37, %c0_38] : memref<1x4x9x9x32xbf16, #tpu.memory_space<vmem>>, vector<1x1x8x8x32xbf16>
    %26 = vector.shape_cast %25 : vector<1x1x8x8x32xbf16> to vector<8x8x32xbf16>
    %c0_39 = arith.constant 0 : index
    %c1_40 = arith.constant 1 : index
    %c1_41 = arith.constant 1 : index
    %c0_42 = arith.constant 0 : index
    %c0_43 = arith.constant 0 : index
    %27 = vector.load %arg1[%c0_39, %c1_40, %c1_41, %c0_42, %c0_43] : memref<1x4x9x9x32xbf16, #tpu.memory_space<vmem>>, vector<1x1x8x8x32xbf16>
    %28 = vector.shape_cast %27 : vector<1x1x8x8x32xbf16> to vector<8x8x32xbf16>
    %c0_44 = arith.constant 0 : index
    %c0_45 = arith.constant 0 : index
    %c1_46 = arith.constant 1 : index
    %c1_47 = arith.constant 1 : index
    %c0_48 = arith.constant 0 : index
    %29 = vector.load %arg1[%c0_44, %c0_45, %c1_46, %c1_47, %c0_48] : memref<1x4x9x9x32xbf16, #tpu.memory_space<vmem>>, vector<1x1x8x8x32xbf16>
    %30 = vector.shape_cast %29 : vector<1x1x8x8x32xbf16> to vector<8x8x32xbf16>
    %31 = tpu.concatenate %26, %28, %30 in 2 : vector<8x8x32xbf16>, vector<8x8x32xbf16>, vector<8x8x32xbf16> -> vector<8x8x96xbf16>
    %32 = vector.shape_cast %31 : vector<8x8x96xbf16> to vector<64x96xbf16>
    %c2_49 = arith.constant 2 : index
    %c0_50 = arith.constant 0 : index
    %c0_51 = arith.constant 0 : index
    %33 = vector.load %arg2[%c2_49, %c0_50, %c0_51] : memref<3x96x32xbf16, #tpu.memory_space<vmem>>, vector<1x96x32xbf16>
    %34 = vector.shape_cast %33 : vector<1x96x32xbf16> to vector<96x32xbf16>
    %cst_52 = arith.constant dense<0.000000e+00> : vector<64x32xf32>
    %35 = tpu.matmul %32, %34, %cst_52 {dimension_numbers = #tpu.dot_dimension_numbers<[1], [0], [0], [1], [0, 0, 1, 1], [], []>} : vector<64x96xbf16>, vector<96x32xbf16>, vector<64x32xf32> -> vector<64x32xf32>
    %36 = arith.addf %24, %35 : vector<64x32xf32>
    %c0_53 = arith.constant 0 : index
    %c0_54 = arith.constant 0 : index
    %37 = vector.load %arg3[%c0_53, %c0_54] : memref<1x32xf32, #tpu.memory_space<vmem>>, vector<1x32xf32>
    %38 = vector.broadcast %37 : vector<1x32xf32> to vector<64x32xf32>
    %39 = arith.addf %36, %38 : vector<64x32xf32>
    %cst_55 = arith.constant 0.000000e+00 : f32
    %40 = vector.broadcast %cst_55 : f32 to vector<64x32xf32>
    %41 = arith.maximumf %39, %40 : vector<64x32xf32>
    %42 = vector.shape_cast %41 : vector<64x32xf32> to vector<8x8x32xf32>
    %43 = arith.truncf %42 : vector<8x8x32xf32> to vector<8x8x32xbf16>
    %c0_56 = arith.constant 0 : index
    %c0_57 = arith.constant 0 : index
    %c0_58 = arith.constant 0 : index
    %c0_59 = arith.constant 0 : index
    %44 = vector.load %arg4[%c0_56, %c0_57, %c0_58, %c0_59] : memref<1x8x8x32xbf16, #tpu.memory_space<vmem>>, vector<1x8x8x32xbf16>
    %45 = vector.shape_cast %44 : vector<1x8x8x32xbf16> to vector<8x8x32xbf16>
    %46 = vector.shape_cast %43 : vector<8x8x32xbf16> to vector<1x8x8x32xbf16>
    tpu.vector_store %arg4[%c0_56, %c0_57, %c0_58, %c0_59], %46 {strides = array<i32>} : memref<1x8x8x32xbf16, #tpu.memory_space<vmem>>, vector<1x8x8x32xbf16>,
    return
  }
  func.func @transform_0(%arg0: i32) -> (i32, i32, i32, i32, i32) {
    %c0_i32 = arith.constant 0 : i32
    %c0_i32_0 = arith.constant 0 : i32
    %c0_i32_1 = arith.constant 0 : i32
    %c0_i32_2 = arith.constant 0 : i32
    %c0_i32_3 = arith.constant 0 : i32
    return %arg0, %c0_i32, %c0_i32_0, %c0_i32_1, %c0_i32_2 : i32, i32, i32, i32, i32
  }
  func.func @transform_1(%arg0: i32) -> (i32, i32, i32) {
    %c0_i32 = arith.constant 0 : i32
    %c0_i32_0 = arith.constant 0 : i32
    %c0_i32_1 = arith.constant 0 : i32
    %c0_i32_2 = arith.constant 0 : i32
    return %c0_i32, %c0_i32_0, %c0_i32_1 : i32, i32, i32
  }
  func.func @transform_2(%arg0: i32) -> (i32, i32) {
    %c0_i32 = arith.constant 0 : i32
    %c0_i32_0 = arith.constant 0 : i32
    %c0_i32_1 = arith.constant 0 : i32
    return %c0_i32, %c0_i32_0 : i32, i32
  }
  func.func @transform_3(%arg0: i32) -> (i32, i32, i32, i32) {
    %c0_i32 = arith.constant 0 : i32
    %c0_i32_0 = arith.constant 0 : i32
    %c0_i32_1 = arith.constant 0 : i32
    %c0_i32_2 = arith.constant 0 : i32
    return %arg0, %c0_i32, %c0_i32_0, %c0_i32_1 : i32, i32, i32, i32
  }
}

module attributes {stable_mosaic.version = 11 : i64} {
  func.func @_conv3x3_s1_kernel(%arg0: i32, %arg1: memref<1x10x10x32xbf16, #tpu.memory_space<vmem>>, %arg2: memref<3x96x32xbf16, #tpu.memory_space<vmem>>, %arg3: memref<1x32xf32, #tpu.memory_space<vmem>>, %arg4: memref<1x8x8x32xbf16, #tpu.memory_space<vmem>>) attributes {dimension_semantics = [#tpu.dimension_semantics<parallel>], iteration_bounds = array<i64: 2>, scalar_prefetch = 0 : i64, scratch_operands = 0 : i64, tpu.core_type = #tpu.core_type<tc>, window_params = [{transform_indices = @transform_0, window_bounds = array<i64: 1, 10, 10, 32>}, {pipeline_mode = #tpu.pipeline_mode<synchronous>, transform_indices = @transform_1, window_bounds = array<i64: 3, 96, 32>}, {pipeline_mode = #tpu.pipeline_mode<synchronous>, transform_indices = @transform_2, window_bounds = array<i64: 1, 32>}, {transform_indices = @transform_3, window_bounds = array<i64: 1, 8, 8, 32>}]} {
    %cst = arith.constant 0.000000e+00 : f32
    %0 = vector.broadcast %cst : f32 to vector<64x32xf32>
    %c0 = arith.constant 0 : index
    %c0_0 = arith.constant 0 : index
    %c0_1 = arith.constant 0 : index
    %c0_2 = arith.constant 0 : index
    %1 = vector.load %arg1[%c0, %c0_0, %c0_1, %c0_2] : memref<1x10x10x32xbf16, #tpu.memory_space<vmem>>, vector<1x8x8x32xbf16>
    %2 = vector.shape_cast %1 : vector<1x8x8x32xbf16> to vector<8x8x32xbf16>
    %c0_3 = arith.constant 0 : index
    %c0_4 = arith.constant 0 : index
    %c1 = arith.constant 1 : index
    %c0_5 = arith.constant 0 : index
    %3 = vector.load %arg1[%c0_3, %c0_4, %c1, %c0_5] : memref<1x10x10x32xbf16, #tpu.memory_space<vmem>>, vector<1x8x8x32xbf16>
    %4 = vector.shape_cast %3 : vector<1x8x8x32xbf16> to vector<8x8x32xbf16>
    %c0_6 = arith.constant 0 : index
    %c0_7 = arith.constant 0 : index
    %c2 = arith.constant 2 : index
    %c0_8 = arith.constant 0 : index
    %5 = vector.load %arg1[%c0_6, %c0_7, %c2, %c0_8] : memref<1x10x10x32xbf16, #tpu.memory_space<vmem>>, vector<1x8x8x32xbf16>
    %6 = vector.shape_cast %5 : vector<1x8x8x32xbf16> to vector<8x8x32xbf16>
    %7 = tpu.concatenate %2, %4, %6 in 2 : vector<8x8x32xbf16>, vector<8x8x32xbf16>, vector<8x8x32xbf16> -> vector<8x8x96xbf16>
    %8 = vector.shape_cast %7 : vector<8x8x96xbf16> to vector<64x96xbf16>
    %c0_9 = arith.constant 0 : index
    %c0_10 = arith.constant 0 : index
    %c0_11 = arith.constant 0 : index
    %9 = vector.load %arg2[%c0_9, %c0_10, %c0_11] : memref<3x96x32xbf16, #tpu.memory_space<vmem>>, vector<1x96x32xbf16>
    %10 = vector.shape_cast %9 : vector<1x96x32xbf16> to vector<96x32xbf16>
    %cst_12 = arith.constant dense<0.000000e+00> : vector<64x32xf32>
    %11 = tpu.matmul %8, %10, %cst_12 {dimension_numbers = #tpu.dot_dimension_numbers<[1], [0], [0], [1], [0, 0, 1, 1], [], []>} : vector<64x96xbf16>, vector<96x32xbf16>, vector<64x32xf32> -> vector<64x32xf32>
    %12 = arith.addf %0, %11 : vector<64x32xf32>
    %c0_13 = arith.constant 0 : index
    %c1_14 = arith.constant 1 : index
    %c0_15 = arith.constant 0 : index
    %c0_16 = arith.constant 0 : index
    %13 = vector.load %arg1[%c0_13, %c1_14, %c0_15, %c0_16] : memref<1x10x10x32xbf16, #tpu.memory_space<vmem>>, vector<1x8x8x32xbf16>
    %14 = vector.shape_cast %13 : vector<1x8x8x32xbf16> to vector<8x8x32xbf16>
    %c0_17 = arith.constant 0 : index
    %c1_18 = arith.constant 1 : index
    %c1_19 = arith.constant 1 : index
    %c0_20 = arith.constant 0 : index
    %15 = vector.load %arg1[%c0_17, %c1_18, %c1_19, %c0_20] : memref<1x10x10x32xbf16, #tpu.memory_space<vmem>>, vector<1x8x8x32xbf16>
    %16 = vector.shape_cast %15 : vector<1x8x8x32xbf16> to vector<8x8x32xbf16>
    %c0_21 = arith.constant 0 : index
    %c1_22 = arith.constant 1 : index
    %c2_23 = arith.constant 2 : index
    %c0_24 = arith.constant 0 : index
    %17 = vector.load %arg1[%c0_21, %c1_22, %c2_23, %c0_24] : memref<1x10x10x32xbf16, #tpu.memory_space<vmem>>, vector<1x8x8x32xbf16>
    %18 = vector.shape_cast %17 : vector<1x8x8x32xbf16> to vector<8x8x32xbf16>
    %19 = tpu.concatenate %14, %16, %18 in 2 : vector<8x8x32xbf16>, vector<8x8x32xbf16>, vector<8x8x32xbf16> -> vector<8x8x96xbf16>
    %20 = vector.shape_cast %19 : vector<8x8x96xbf16> to vector<64x96xbf16>
    %c1_25 = arith.constant 1 : index
    %c0_26 = arith.constant 0 : index
    %c0_27 = arith.constant 0 : index
    %21 = vector.load %arg2[%c1_25, %c0_26, %c0_27] : memref<3x96x32xbf16, #tpu.memory_space<vmem>>, vector<1x96x32xbf16>
    %22 = vector.shape_cast %21 : vector<1x96x32xbf16> to vector<96x32xbf16>
    %cst_28 = arith.constant dense<0.000000e+00> : vector<64x32xf32>
    %23 = tpu.matmul %20, %22, %cst_28 {dimension_numbers = #tpu.dot_dimension_numbers<[1], [0], [0], [1], [0, 0, 1, 1], [], []>} : vector<64x96xbf16>, vector<96x32xbf16>, vector<64x32xf32> -> vector<64x32xf32>
    %24 = arith.addf %12, %23 : vector<64x32xf32>
    %c0_29 = arith.constant 0 : index
    %c2_30 = arith.constant 2 : index
    %c0_31 = arith.constant 0 : index
    %c0_32 = arith.constant 0 : index
    %25 = vector.load %arg1[%c0_29, %c2_30, %c0_31, %c0_32] : memref<1x10x10x32xbf16, #tpu.memory_space<vmem>>, vector<1x8x8x32xbf16>
    %26 = vector.shape_cast %25 : vector<1x8x8x32xbf16> to vector<8x8x32xbf16>
    %c0_33 = arith.constant 0 : index
    %c2_34 = arith.constant 2 : index
    %c1_35 = arith.constant 1 : index
    %c0_36 = arith.constant 0 : index
    %27 = vector.load %arg1[%c0_33, %c2_34, %c1_35, %c0_36] : memref<1x10x10x32xbf16, #tpu.memory_space<vmem>>, vector<1x8x8x32xbf16>
    %28 = vector.shape_cast %27 : vector<1x8x8x32xbf16> to vector<8x8x32xbf16>
    %c0_37 = arith.constant 0 : index
    %c2_38 = arith.constant 2 : index
    %c2_39 = arith.constant 2 : index
    %c0_40 = arith.constant 0 : index
    %29 = vector.load %arg1[%c0_37, %c2_38, %c2_39, %c0_40] : memref<1x10x10x32xbf16, #tpu.memory_space<vmem>>, vector<1x8x8x32xbf16>
    %30 = vector.shape_cast %29 : vector<1x8x8x32xbf16> to vector<8x8x32xbf16>
    %31 = tpu.concatenate %26, %28, %30 in 2 : vector<8x8x32xbf16>, vector<8x8x32xbf16>, vector<8x8x32xbf16> -> vector<8x8x96xbf16>
    %32 = vector.shape_cast %31 : vector<8x8x96xbf16> to vector<64x96xbf16>
    %c2_41 = arith.constant 2 : index
    %c0_42 = arith.constant 0 : index
    %c0_43 = arith.constant 0 : index
    %33 = vector.load %arg2[%c2_41, %c0_42, %c0_43] : memref<3x96x32xbf16, #tpu.memory_space<vmem>>, vector<1x96x32xbf16>
    %34 = vector.shape_cast %33 : vector<1x96x32xbf16> to vector<96x32xbf16>
    %cst_44 = arith.constant dense<0.000000e+00> : vector<64x32xf32>
    %35 = tpu.matmul %32, %34, %cst_44 {dimension_numbers = #tpu.dot_dimension_numbers<[1], [0], [0], [1], [0, 0, 1, 1], [], []>} : vector<64x96xbf16>, vector<96x32xbf16>, vector<64x32xf32> -> vector<64x32xf32>
    %36 = arith.addf %24, %35 : vector<64x32xf32>
    %c0_45 = arith.constant 0 : index
    %c0_46 = arith.constant 0 : index
    %37 = vector.load %arg3[%c0_45, %c0_46] : memref<1x32xf32, #tpu.memory_space<vmem>>, vector<1x32xf32>
    %38 = vector.broadcast %37 : vector<1x32xf32> to vector<64x32xf32>
    %39 = arith.addf %36, %38 : vector<64x32xf32>
    %cst_47 = arith.constant 0.000000e+00 : f32
    %40 = vector.broadcast %cst_47 : f32 to vector<64x32xf32>
    %41 = arith.maximumf %39, %40 : vector<64x32xf32>
    %42 = vector.shape_cast %41 : vector<64x32xf32> to vector<8x8x32xf32>
    %43 = arith.truncf %42 : vector<8x8x32xf32> to vector<8x8x32xbf16>
    %c0_48 = arith.constant 0 : index
    %c0_49 = arith.constant 0 : index
    %c0_50 = arith.constant 0 : index
    %c0_51 = arith.constant 0 : index
    %44 = vector.load %arg4[%c0_48, %c0_49, %c0_50, %c0_51] : memref<1x8x8x32xbf16, #tpu.memory_space<vmem>>, vector<1x8x8x32xbf16>
    %45 = vector.shape_cast %44 : vector<1x8x8x32xbf16> to vector<8x8x32xbf16>
    %46 = vector.shape_cast %43 : vector<8x8x32xbf16> to vector<1x8x8x32xbf16>
    tpu.vector_store %arg4[%c0_48, %c0_49, %c0_50, %c0_51], %46 {strides = array<i32>} : memref<1x8x8x32xbf16, #tpu.memory_space<vmem>>, vector<1x8x8x32xbf16>,
    return
  }
  func.func @transform_0(%arg0: i32) -> (i32, i32, i32, i32) {
    %c0_i32 = arith.constant 0 : i32
    %c0_i32_0 = arith.constant 0 : i32
    %c0_i32_1 = arith.constant 0 : i32
    %c0_i32_2 = arith.constant 0 : i32
    return %arg0, %c0_i32, %c0_i32_0, %c0_i32_1 : i32, i32, i32, i32
  }
  func.func @transform_1(%arg0: i32) -> (i32, i32, i32) {
    %c0_i32 = arith.constant 0 : i32
    %c0_i32_0 = arith.constant 0 : i32
    %c0_i32_1 = arith.constant 0 : i32
    %c0_i32_2 = arith.constant 0 : i32
    return %c0_i32, %c0_i32_0, %c0_i32_1 : i32, i32, i32
  }
  func.func @transform_2(%arg0: i32) -> (i32, i32) {
    %c0_i32 = arith.constant 0 : i32
    %c0_i32_0 = arith.constant 0 : i32
    %c0_i32_1 = arith.constant 0 : i32
    return %c0_i32, %c0_i32_0 : i32, i32
  }
  func.func @transform_3(%arg0: i32) -> (i32, i32, i32, i32) {
    %c0_i32 = arith.constant 0 : i32
    %c0_i32_0 = arith.constant 0 : i32
    %c0_i32_1 = arith.constant 0 : i32
    %c0_i32_2 = arith.constant 0 : i32
    return %arg0, %c0_i32, %c0_i32_0, %c0_i32_1 : i32, i32, i32, i32
  }
}

module attributes {stable_mosaic.version = 11 : i64} {
  func.func @_conv3x3_s2_kernel(%arg0: i32, %arg1: memref<1x4x5x5x32xbf16, #tpu.memory_space<vmem>>, %arg2: memref<3x96x64xbf16, #tpu.memory_space<vmem>>, %arg3: memref<1x64xf32, #tpu.memory_space<vmem>>, %arg4: memref<1x4x4x64xbf16, #tpu.memory_space<vmem>>) attributes {dimension_semantics = [#tpu.dimension_semantics<parallel>], iteration_bounds = array<i64: 2>, scalar_prefetch = 0 : i64, scratch_operands = 0 : i64, tpu.core_type = #tpu.core_type<tc>, window_params = [{transform_indices = @transform_0, window_bounds = array<i64: 1, 4, 5, 5, 32>}, {pipeline_mode = #tpu.pipeline_mode<synchronous>, transform_indices = @transform_1, window_bounds = array<i64: 3, 96, 64>}, {pipeline_mode = #tpu.pipeline_mode<synchronous>, transform_indices = @transform_2, window_bounds = array<i64: 1, 64>}, {transform_indices = @transform_3, window_bounds = array<i64: 1, 4, 4, 64>}]} {
    %cst = arith.constant 0.000000e+00 : f32
    %0 = vector.broadcast %cst : f32 to vector<16x64xf32>
    %c0 = arith.constant 0 : index
    %c0_0 = arith.constant 0 : index
    %c0_1 = arith.constant 0 : index
    %c0_2 = arith.constant 0 : index
    %c0_3 = arith.constant 0 : index
    %1 = vector.load %arg1[%c0, %c0_0, %c0_1, %c0_2, %c0_3] : memref<1x4x5x5x32xbf16, #tpu.memory_space<vmem>>, vector<1x1x4x4x32xbf16>
    %2 = vector.shape_cast %1 : vector<1x1x4x4x32xbf16> to vector<4x4x32xbf16>
    %c0_4 = arith.constant 0 : index
    %c1 = arith.constant 1 : index
    %c0_5 = arith.constant 0 : index
    %c0_6 = arith.constant 0 : index
    %c0_7 = arith.constant 0 : index
    %3 = vector.load %arg1[%c0_4, %c1, %c0_5, %c0_6, %c0_7] : memref<1x4x5x5x32xbf16, #tpu.memory_space<vmem>>, vector<1x1x4x4x32xbf16>
    %4 = vector.shape_cast %3 : vector<1x1x4x4x32xbf16> to vector<4x4x32xbf16>
    %c0_8 = arith.constant 0 : index
    %c0_9 = arith.constant 0 : index
    %c0_10 = arith.constant 0 : index
    %c1_11 = arith.constant 1 : index
    %c0_12 = arith.constant 0 : index
    %5 = vector.load %arg1[%c0_8, %c0_9, %c0_10, %c1_11, %c0_12] : memref<1x4x5x5x32xbf16, #tpu.memory_space<vmem>>, vector<1x1x4x4x32xbf16>
    %6 = vector.shape_cast %5 : vector<1x1x4x4x32xbf16> to vector<4x4x32xbf16>
    %7 = tpu.concatenate %2, %4, %6 in 2 : vector<4x4x32xbf16>, vector<4x4x32xbf16>, vector<4x4x32xbf16> -> vector<4x4x96xbf16>
    %8 = vector.shape_cast %7 : vector<4x4x96xbf16> to vector<16x96xbf16>
    %c0_13 = arith.constant 0 : index
    %c0_14 = arith.constant 0 : index
    %c0_15 = arith.constant 0 : index
    %9 = vector.load %arg2[%c0_13, %c0_14, %c0_15] : memref<3x96x64xbf16, #tpu.memory_space<vmem>>, vector<1x96x64xbf16>
    %10 = vector.shape_cast %9 : vector<1x96x64xbf16> to vector<96x64xbf16>
    %cst_16 = arith.constant dense<0.000000e+00> : vector<16x64xf32>
    %11 = tpu.matmul %8, %10, %cst_16 {dimension_numbers = #tpu.dot_dimension_numbers<[1], [0], [0], [1], [0, 0, 1, 1], [], []>} : vector<16x96xbf16>, vector<96x64xbf16>, vector<16x64xf32> -> vector<16x64xf32>
    %12 = arith.addf %0, %11 : vector<16x64xf32>
    %c0_17 = arith.constant 0 : index
    %c2 = arith.constant 2 : index
    %c0_18 = arith.constant 0 : index
    %c0_19 = arith.constant 0 : index
    %c0_20 = arith.constant 0 : index
    %13 = vector.load %arg1[%c0_17, %c2, %c0_18, %c0_19, %c0_20] : memref<1x4x5x5x32xbf16, #tpu.memory_space<vmem>>, vector<1x1x4x4x32xbf16>
    %14 = vector.shape_cast %13 : vector<1x1x4x4x32xbf16> to vector<4x4x32xbf16>
    %c0_21 = arith.constant 0 : index
    %c3 = arith.constant 3 : index
    %c0_22 = arith.constant 0 : index
    %c0_23 = arith.constant 0 : index
    %c0_24 = arith.constant 0 : index
    %15 = vector.load %arg1[%c0_21, %c3, %c0_22, %c0_23, %c0_24] : memref<1x4x5x5x32xbf16, #tpu.memory_space<vmem>>, vector<1x1x4x4x32xbf16>
    %16 = vector.shape_cast %15 : vector<1x1x4x4x32xbf16> to vector<4x4x32xbf16>
    %c0_25 = arith.constant 0 : index
    %c2_26 = arith.constant 2 : index
    %c0_27 = arith.constant 0 : index
    %c1_28 = arith.constant 1 : index
    %c0_29 = arith.constant 0 : index
    %17 = vector.load %arg1[%c0_25, %c2_26, %c0_27, %c1_28, %c0_29] : memref<1x4x5x5x32xbf16, #tpu.memory_space<vmem>>, vector<1x1x4x4x32xbf16>
    %18 = vector.shape_cast %17 : vector<1x1x4x4x32xbf16> to vector<4x4x32xbf16>
    %19 = tpu.concatenate %14, %16, %18 in 2 : vector<4x4x32xbf16>, vector<4x4x32xbf16>, vector<4x4x32xbf16> -> vector<4x4x96xbf16>
    %20 = vector.shape_cast %19 : vector<4x4x96xbf16> to vector<16x96xbf16>
    %c1_30 = arith.constant 1 : index
    %c0_31 = arith.constant 0 : index
    %c0_32 = arith.constant 0 : index
    %21 = vector.load %arg2[%c1_30, %c0_31, %c0_32] : memref<3x96x64xbf16, #tpu.memory_space<vmem>>, vector<1x96x64xbf16>
    %22 = vector.shape_cast %21 : vector<1x96x64xbf16> to vector<96x64xbf16>
    %cst_33 = arith.constant dense<0.000000e+00> : vector<16x64xf32>
    %23 = tpu.matmul %20, %22, %cst_33 {dimension_numbers = #tpu.dot_dimension_numbers<[1], [0], [0], [1], [0, 0, 1, 1], [], []>} : vector<16x96xbf16>, vector<96x64xbf16>, vector<16x64xf32> -> vector<16x64xf32>
    %24 = arith.addf %12, %23 : vector<16x64xf32>
    %c0_34 = arith.constant 0 : index
    %c0_35 = arith.constant 0 : index
    %c1_36 = arith.constant 1 : index
    %c0_37 = arith.constant 0 : index
    %c0_38 = arith.constant 0 : index
    %25 = vector.load %arg1[%c0_34, %c0_35, %c1_36, %c0_37, %c0_38] : memref<1x4x5x5x32xbf16, #tpu.memory_space<vmem>>, vector<1x1x4x4x32xbf16>
    %26 = vector.shape_cast %25 : vector<1x1x4x4x32xbf16> to vector<4x4x32xbf16>
    %c0_39 = arith.constant 0 : index
    %c1_40 = arith.constant 1 : index
    %c1_41 = arith.constant 1 : index
    %c0_42 = arith.constant 0 : index
    %c0_43 = arith.constant 0 : index
    %27 = vector.load %arg1[%c0_39, %c1_40, %c1_41, %c0_42, %c0_43] : memref<1x4x5x5x32xbf16, #tpu.memory_space<vmem>>, vector<1x1x4x4x32xbf16>
    %28 = vector.shape_cast %27 : vector<1x1x4x4x32xbf16> to vector<4x4x32xbf16>
    %c0_44 = arith.constant 0 : index
    %c0_45 = arith.constant 0 : index
    %c1_46 = arith.constant 1 : index
    %c1_47 = arith.constant 1 : index
    %c0_48 = arith.constant 0 : index
    %29 = vector.load %arg1[%c0_44, %c0_45, %c1_46, %c1_47, %c0_48] : memref<1x4x5x5x32xbf16, #tpu.memory_space<vmem>>, vector<1x1x4x4x32xbf16>
    %30 = vector.shape_cast %29 : vector<1x1x4x4x32xbf16> to vector<4x4x32xbf16>
    %31 = tpu.concatenate %26, %28, %30 in 2 : vector<4x4x32xbf16>, vector<4x4x32xbf16>, vector<4x4x32xbf16> -> vector<4x4x96xbf16>
    %32 = vector.shape_cast %31 : vector<4x4x96xbf16> to vector<16x96xbf16>
    %c2_49 = arith.constant 2 : index
    %c0_50 = arith.constant 0 : index
    %c0_51 = arith.constant 0 : index
    %33 = vector.load %arg2[%c2_49, %c0_50, %c0_51] : memref<3x96x64xbf16, #tpu.memory_space<vmem>>, vector<1x96x64xbf16>
    %34 = vector.shape_cast %33 : vector<1x96x64xbf16> to vector<96x64xbf16>
    %cst_52 = arith.constant dense<0.000000e+00> : vector<16x64xf32>
    %35 = tpu.matmul %32, %34, %cst_52 {dimension_numbers = #tpu.dot_dimension_numbers<[1], [0], [0], [1], [0, 0, 1, 1], [], []>} : vector<16x96xbf16>, vector<96x64xbf16>, vector<16x64xf32> -> vector<16x64xf32>
    %36 = arith.addf %24, %35 : vector<16x64xf32>
    %c0_53 = arith.constant 0 : index
    %c0_54 = arith.constant 0 : index
    %37 = vector.load %arg3[%c0_53, %c0_54] : memref<1x64xf32, #tpu.memory_space<vmem>>, vector<1x64xf32>
    %38 = vector.broadcast %37 : vector<1x64xf32> to vector<16x64xf32>
    %39 = arith.addf %36, %38 : vector<16x64xf32>
    %cst_55 = arith.constant 0.000000e+00 : f32
    %40 = vector.broadcast %cst_55 : f32 to vector<16x64xf32>
    %41 = arith.maximumf %39, %40 : vector<16x64xf32>
    %42 = vector.shape_cast %41 : vector<16x64xf32> to vector<4x4x64xf32>
    %43 = arith.truncf %42 : vector<4x4x64xf32> to vector<4x4x64xbf16>
    %c0_56 = arith.constant 0 : index
    %c0_57 = arith.constant 0 : index
    %c0_58 = arith.constant 0 : index
    %c0_59 = arith.constant 0 : index
    %44 = vector.load %arg4[%c0_56, %c0_57, %c0_58, %c0_59] : memref<1x4x4x64xbf16, #tpu.memory_space<vmem>>, vector<1x4x4x64xbf16>
    %45 = vector.shape_cast %44 : vector<1x4x4x64xbf16> to vector<4x4x64xbf16>
    %46 = vector.shape_cast %43 : vector<4x4x64xbf16> to vector<1x4x4x64xbf16>
    tpu.vector_store %arg4[%c0_56, %c0_57, %c0_58, %c0_59], %46 {strides = array<i32>} : memref<1x4x4x64xbf16, #tpu.memory_space<vmem>>, vector<1x4x4x64xbf16>,
    return
  }
  func.func @transform_0(%arg0: i32) -> (i32, i32, i32, i32, i32) {
    %c0_i32 = arith.constant 0 : i32
    %c0_i32_0 = arith.constant 0 : i32
    %c0_i32_1 = arith.constant 0 : i32
    %c0_i32_2 = arith.constant 0 : i32
    %c0_i32_3 = arith.constant 0 : i32
    return %arg0, %c0_i32, %c0_i32_0, %c0_i32_1, %c0_i32_2 : i32, i32, i32, i32, i32
  }
  func.func @transform_1(%arg0: i32) -> (i32, i32, i32) {
    %c0_i32 = arith.constant 0 : i32
    %c0_i32_0 = arith.constant 0 : i32
    %c0_i32_1 = arith.constant 0 : i32
    %c0_i32_2 = arith.constant 0 : i32
    return %c0_i32, %c0_i32_0, %c0_i32_1 : i32, i32, i32
  }
  func.func @transform_2(%arg0: i32) -> (i32, i32) {
    %c0_i32 = arith.constant 0 : i32
    %c0_i32_0 = arith.constant 0 : i32
    %c0_i32_1 = arith.constant 0 : i32
    return %c0_i32, %c0_i32_0 : i32, i32
  }
  func.func @transform_3(%arg0: i32) -> (i32, i32, i32, i32) {
    %c0_i32 = arith.constant 0 : i32
    %c0_i32_0 = arith.constant 0 : i32
    %c0_i32_1 = arith.constant 0 : i32
    %c0_i32_2 = arith.constant 0 : i32
    return %arg0, %c0_i32, %c0_i32_0, %c0_i32_1 : i32, i32, i32, i32
  }
}

module attributes {stable_mosaic.version = 11 : i64} {
  func.func @_conv3x3_s1_kernel(%arg0: i32, %arg1: memref<1x6x6x64xbf16, #tpu.memory_space<vmem>>, %arg2: memref<3x192x64xbf16, #tpu.memory_space<vmem>>, %arg3: memref<1x64xf32, #tpu.memory_space<vmem>>, %arg4: memref<1x4x4x64xbf16, #tpu.memory_space<vmem>>) attributes {dimension_semantics = [#tpu.dimension_semantics<parallel>], iteration_bounds = array<i64: 2>, scalar_prefetch = 0 : i64, scratch_operands = 0 : i64, tpu.core_type = #tpu.core_type<tc>, window_params = [{transform_indices = @transform_0, window_bounds = array<i64: 1, 6, 6, 64>}, {pipeline_mode = #tpu.pipeline_mode<synchronous>, transform_indices = @transform_1, window_bounds = array<i64: 3, 192, 64>}, {pipeline_mode = #tpu.pipeline_mode<synchronous>, transform_indices = @transform_2, window_bounds = array<i64: 1, 64>}, {transform_indices = @transform_3, window_bounds = array<i64: 1, 4, 4, 64>}]} {
    %cst = arith.constant 0.000000e+00 : f32
    %0 = vector.broadcast %cst : f32 to vector<16x64xf32>
    %c0 = arith.constant 0 : index
    %c0_0 = arith.constant 0 : index
    %c0_1 = arith.constant 0 : index
    %c0_2 = arith.constant 0 : index
    %1 = vector.load %arg1[%c0, %c0_0, %c0_1, %c0_2] : memref<1x6x6x64xbf16, #tpu.memory_space<vmem>>, vector<1x4x4x64xbf16>
    %2 = vector.shape_cast %1 : vector<1x4x4x64xbf16> to vector<4x4x64xbf16>
    %c0_3 = arith.constant 0 : index
    %c0_4 = arith.constant 0 : index
    %c1 = arith.constant 1 : index
    %c0_5 = arith.constant 0 : index
    %3 = vector.load %arg1[%c0_3, %c0_4, %c1, %c0_5] : memref<1x6x6x64xbf16, #tpu.memory_space<vmem>>, vector<1x4x4x64xbf16>
    %4 = vector.shape_cast %3 : vector<1x4x4x64xbf16> to vector<4x4x64xbf16>
    %c0_6 = arith.constant 0 : index
    %c0_7 = arith.constant 0 : index
    %c2 = arith.constant 2 : index
    %c0_8 = arith.constant 0 : index
    %5 = vector.load %arg1[%c0_6, %c0_7, %c2, %c0_8] : memref<1x6x6x64xbf16, #tpu.memory_space<vmem>>, vector<1x4x4x64xbf16>
    %6 = vector.shape_cast %5 : vector<1x4x4x64xbf16> to vector<4x4x64xbf16>
    %7 = tpu.concatenate %2, %4, %6 in 2 : vector<4x4x64xbf16>, vector<4x4x64xbf16>, vector<4x4x64xbf16> -> vector<4x4x192xbf16>
    %8 = vector.shape_cast %7 : vector<4x4x192xbf16> to vector<16x192xbf16>
    %c0_9 = arith.constant 0 : index
    %c0_10 = arith.constant 0 : index
    %c0_11 = arith.constant 0 : index
    %9 = vector.load %arg2[%c0_9, %c0_10, %c0_11] : memref<3x192x64xbf16, #tpu.memory_space<vmem>>, vector<1x192x64xbf16>
    %10 = vector.shape_cast %9 : vector<1x192x64xbf16> to vector<192x64xbf16>
    %cst_12 = arith.constant dense<0.000000e+00> : vector<16x64xf32>
    %11 = tpu.matmul %8, %10, %cst_12 {dimension_numbers = #tpu.dot_dimension_numbers<[1], [0], [0], [1], [0, 0, 1, 1], [], []>} : vector<16x192xbf16>, vector<192x64xbf16>, vector<16x64xf32> -> vector<16x64xf32>
    %12 = arith.addf %0, %11 : vector<16x64xf32>
    %c0_13 = arith.constant 0 : index
    %c1_14 = arith.constant 1 : index
    %c0_15 = arith.constant 0 : index
    %c0_16 = arith.constant 0 : index
    %13 = vector.load %arg1[%c0_13, %c1_14, %c0_15, %c0_16] : memref<1x6x6x64xbf16, #tpu.memory_space<vmem>>, vector<1x4x4x64xbf16>
    %14 = vector.shape_cast %13 : vector<1x4x4x64xbf16> to vector<4x4x64xbf16>
    %c0_17 = arith.constant 0 : index
    %c1_18 = arith.constant 1 : index
    %c1_19 = arith.constant 1 : index
    %c0_20 = arith.constant 0 : index
    %15 = vector.load %arg1[%c0_17, %c1_18, %c1_19, %c0_20] : memref<1x6x6x64xbf16, #tpu.memory_space<vmem>>, vector<1x4x4x64xbf16>
    %16 = vector.shape_cast %15 : vector<1x4x4x64xbf16> to vector<4x4x64xbf16>
    %c0_21 = arith.constant 0 : index
    %c1_22 = arith.constant 1 : index
    %c2_23 = arith.constant 2 : index
    %c0_24 = arith.constant 0 : index
    %17 = vector.load %arg1[%c0_21, %c1_22, %c2_23, %c0_24] : memref<1x6x6x64xbf16, #tpu.memory_space<vmem>>, vector<1x4x4x64xbf16>
    %18 = vector.shape_cast %17 : vector<1x4x4x64xbf16> to vector<4x4x64xbf16>
    %19 = tpu.concatenate %14, %16, %18 in 2 : vector<4x4x64xbf16>, vector<4x4x64xbf16>, vector<4x4x64xbf16> -> vector<4x4x192xbf16>
    %20 = vector.shape_cast %19 : vector<4x4x192xbf16> to vector<16x192xbf16>
    %c1_25 = arith.constant 1 : index
    %c0_26 = arith.constant 0 : index
    %c0_27 = arith.constant 0 : index
    %21 = vector.load %arg2[%c1_25, %c0_26, %c0_27] : memref<3x192x64xbf16, #tpu.memory_space<vmem>>, vector<1x192x64xbf16>
    %22 = vector.shape_cast %21 : vector<1x192x64xbf16> to vector<192x64xbf16>
    %cst_28 = arith.constant dense<0.000000e+00> : vector<16x64xf32>
    %23 = tpu.matmul %20, %22, %cst_28 {dimension_numbers = #tpu.dot_dimension_numbers<[1], [0], [0], [1], [0, 0, 1, 1], [], []>} : vector<16x192xbf16>, vector<192x64xbf16>, vector<16x64xf32> -> vector<16x64xf32>
    %24 = arith.addf %12, %23 : vector<16x64xf32>
    %c0_29 = arith.constant 0 : index
    %c2_30 = arith.constant 2 : index
    %c0_31 = arith.constant 0 : index
    %c0_32 = arith.constant 0 : index
    %25 = vector.load %arg1[%c0_29, %c2_30, %c0_31, %c0_32] : memref<1x6x6x64xbf16, #tpu.memory_space<vmem>>, vector<1x4x4x64xbf16>
    %26 = vector.shape_cast %25 : vector<1x4x4x64xbf16> to vector<4x4x64xbf16>
    %c0_33 = arith.constant 0 : index
    %c2_34 = arith.constant 2 : index
    %c1_35 = arith.constant 1 : index
    %c0_36 = arith.constant 0 : index
    %27 = vector.load %arg1[%c0_33, %c2_34, %c1_35, %c0_36] : memref<1x6x6x64xbf16, #tpu.memory_space<vmem>>, vector<1x4x4x64xbf16>
    %28 = vector.shape_cast %27 : vector<1x4x4x64xbf16> to vector<4x4x64xbf16>
    %c0_37 = arith.constant 0 : index
    %c2_38 = arith.constant 2 : index
    %c2_39 = arith.constant 2 : index
    %c0_40 = arith.constant 0 : index
    %29 = vector.load %arg1[%c0_37, %c2_38, %c2_39, %c0_40] : memref<1x6x6x64xbf16, #tpu.memory_space<vmem>>, vector<1x4x4x64xbf16>
    %30 = vector.shape_cast %29 : vector<1x4x4x64xbf16> to vector<4x4x64xbf16>
    %31 = tpu.concatenate %26, %28, %30 in 2 : vector<4x4x64xbf16>, vector<4x4x64xbf16>, vector<4x4x64xbf16> -> vector<4x4x192xbf16>
    %32 = vector.shape_cast %31 : vector<4x4x192xbf16> to vector<16x192xbf16>
    %c2_41 = arith.constant 2 : index
    %c0_42 = arith.constant 0 : index
    %c0_43 = arith.constant 0 : index
    %33 = vector.load %arg2[%c2_41, %c0_42, %c0_43] : memref<3x192x64xbf16, #tpu.memory_space<vmem>>, vector<1x192x64xbf16>
    %34 = vector.shape_cast %33 : vector<1x192x64xbf16> to vector<192x64xbf16>
    %cst_44 = arith.constant dense<0.000000e+00> : vector<16x64xf32>
    %35 = tpu.matmul %32, %34, %cst_44 {dimension_numbers = #tpu.dot_dimension_numbers<[1], [0], [0], [1], [0, 0, 1, 1], [], []>} : vector<16x192xbf16>, vector<192x64xbf16>, vector<16x64xf32> -> vector<16x64xf32>
    %36 = arith.addf %24, %35 : vector<16x64xf32>
    %c0_45 = arith.constant 0 : index
    %c0_46 = arith.constant 0 : index
    %37 = vector.load %arg3[%c0_45, %c0_46] : memref<1x64xf32, #tpu.memory_space<vmem>>, vector<1x64xf32>
    %38 = vector.broadcast %37 : vector<1x64xf32> to vector<16x64xf32>
    %39 = arith.addf %36, %38 : vector<16x64xf32>
    %cst_47 = arith.constant 0.000000e+00 : f32
    %40 = vector.broadcast %cst_47 : f32 to vector<16x64xf32>
    %41 = arith.maximumf %39, %40 : vector<16x64xf32>
    %42 = vector.shape_cast %41 : vector<16x64xf32> to vector<4x4x64xf32>
    %43 = arith.truncf %42 : vector<4x4x64xf32> to vector<4x4x64xbf16>
    %c0_48 = arith.constant 0 : index
    %c0_49 = arith.constant 0 : index
    %c0_50 = arith.constant 0 : index
    %c0_51 = arith.constant 0 : index
    %44 = vector.load %arg4[%c0_48, %c0_49, %c0_50, %c0_51] : memref<1x4x4x64xbf16, #tpu.memory_space<vmem>>, vector<1x4x4x64xbf16>
    %45 = vector.shape_cast %44 : vector<1x4x4x64xbf16> to vector<4x4x64xbf16>
    %46 = vector.shape_cast %43 : vector<4x4x64xbf16> to vector<1x4x4x64xbf16>
    tpu.vector_store %arg4[%c0_48, %c0_49, %c0_50, %c0_51], %46 {strides = array<i32>} : memref<1x4x4x64xbf16, #tpu.memory_space<vmem>>, vector<1x4x4x64xbf16>,
    return
  }
  func.func @transform_0(%arg0: i32) -> (i32, i32, i32, i32) {
    %c0_i32 = arith.constant 0 : i32
    %c0_i32_0 = arith.constant 0 : i32
    %c0_i32_1 = arith.constant 0 : i32
    %c0_i32_2 = arith.constant 0 : i32
    return %arg0, %c0_i32, %c0_i32_0, %c0_i32_1 : i32, i32, i32, i32
  }
  func.func @transform_1(%arg0: i32) -> (i32, i32, i32) {
    %c0_i32 = arith.constant 0 : i32
    %c0_i32_0 = arith.constant 0 : i32
    %c0_i32_1 = arith.constant 0 : i32
    %c0_i32_2 = arith.constant 0 : i32
    return %c0_i32, %c0_i32_0, %c0_i32_1 : i32, i32, i32
  }
  func.func @transform_2(%arg0: i32) -> (i32, i32) {
    %c0_i32 = arith.constant 0 : i32
    %c0_i32_0 = arith.constant 0 : i32
    %c0_i32_1 = arith.constant 0 : i32
    return %c0_i32, %c0_i32_0 : i32, i32
  }
  func.func @transform_3(%arg0: i32) -> (i32, i32, i32, i32) {
    %c0_i32 = arith.constant 0 : i32
    %c0_i32_0 = arith.constant 0 : i32
    %c0_i32_1 = arith.constant 0 : i32
    %c0_i32_2 = arith.constant 0 : i32
    return %arg0, %c0_i32, %c0_i32_0, %c0_i32_1 : i32, i32, i32, i32
  }
}

module attributes {stable_mosaic.version = 11 : i64} {
  func.func @_pillar_enc_ln_kernel(%arg0: i32, %arg1: memref<256x48xbf16, #tpu.memory_space<vmem>>, %arg2: memref<48x32xbf16, #tpu.memory_space<vmem>>, %arg3: memref<1x32xf32, #tpu.memory_space<vmem>>, %arg4: memref<1x32xf32, #tpu.memory_space<vmem>>, %arg5: memref<1x32xf32, #tpu.memory_space<vmem>>, %arg6: memref<256x32xbf16, #tpu.memory_space<vmem>>) attributes {dimension_semantics = [#tpu.dimension_semantics<parallel>], iteration_bounds = array<i64: 1>, scalar_prefetch = 0 : i64, scratch_operands = 0 : i64, tpu.core_type = #tpu.core_type<tc>, window_params = [{transform_indices = @transform_0, window_bounds = array<i64: 256, 48>}, {pipeline_mode = #tpu.pipeline_mode<synchronous>, transform_indices = @transform_1, window_bounds = array<i64: 48, 32>}, {pipeline_mode = #tpu.pipeline_mode<synchronous>, transform_indices = @transform_2, window_bounds = array<i64: 1, 32>}, {pipeline_mode = #tpu.pipeline_mode<synchronous>, transform_indices = @transform_3, window_bounds = array<i64: 1, 32>}, {pipeline_mode = #tpu.pipeline_mode<synchronous>, transform_indices = @transform_4, window_bounds = array<i64: 1, 32>}, {transform_indices = @transform_5, window_bounds = array<i64: 256, 32>}]} {
    %c0 = arith.constant 0 : index
    %c0_0 = arith.constant 0 : index
    %0 = vector.load %arg1[%c0, %c0_0] : memref<256x48xbf16, #tpu.memory_space<vmem>>, vector<256x48xbf16>
    %c0_1 = arith.constant 0 : index
    %c0_2 = arith.constant 0 : index
    %1 = vector.load %arg2[%c0_1, %c0_2] : memref<48x32xbf16, #tpu.memory_space<vmem>>, vector<48x32xbf16>
    %cst = arith.constant dense<0.000000e+00> : vector<256x32xf32>
    %2 = tpu.matmul %0, %1, %cst {dimension_numbers = #tpu.dot_dimension_numbers<[1], [0], [0], [1], [0, 0, 1, 1], [], []>} : vector<256x48xbf16>, vector<48x32xbf16>, vector<256x32xf32> -> vector<256x32xf32>
    %c0_3 = arith.constant 0 : index
    %c0_4 = arith.constant 0 : index
    %3 = vector.load %arg3[%c0_3, %c0_4] : memref<1x32xf32, #tpu.memory_space<vmem>>, vector<1x32xf32>
    %4 = vector.broadcast %3 : vector<1x32xf32> to vector<256x32xf32>
    %5 = arith.addf %2, %4 : vector<256x32xf32>
    %cst_5 = arith.constant dense<0.000000e+00> : vector<256xf32>
    %6 = vector.multi_reduction <add>, %5, %cst_5 [1] : vector<256x32xf32> to vector<256xf32>
    %7 = vector.shape_cast %6 : vector<256xf32> to vector<256x1xf32>
    %cst_6 = arith.constant 3.200000e+01 : f32
    %8 = vector.broadcast %cst_6 : f32 to vector<256x1xf32>
    %9 = arith.divf %7, %8 : vector<256x1xf32>
    %10 = vector.broadcast %9 : vector<256x1xf32> to vector<256x32xf32>
    %11 = arith.subf %5, %10 : vector<256x32xf32>
    %12 = arith.mulf %11, %11 : vector<256x32xf32>
    %cst_7 = arith.constant dense<0.000000e+00> : vector<256xf32>
    %13 = vector.multi_reduction <add>, %12, %cst_7 [1] : vector<256x32xf32> to vector<256xf32>
    %14 = vector.shape_cast %13 : vector<256xf32> to vector<256x1xf32>
    %cst_8 = arith.constant 3.200000e+01 : f32
    %15 = vector.broadcast %cst_8 : f32 to vector<256x1xf32>
    %16 = arith.divf %14, %15 : vector<256x1xf32>
    %17 = vector.broadcast %9 : vector<256x1xf32> to vector<256x32xf32>
    %18 = arith.subf %5, %17 : vector<256x32xf32>
    %cst_9 = arith.constant 9.99999974E-6 : f32
    %19 = vector.broadcast %cst_9 : f32 to vector<256x1xf32>
    %20 = arith.addf %16, %19 : vector<256x1xf32>
    %21 = math.rsqrt %20 : vector<256x1xf32>
    %22 = vector.broadcast %21 : vector<256x1xf32> to vector<256x32xf32>
    %23 = arith.mulf %18, %22 : vector<256x32xf32>
    %c0_10 = arith.constant 0 : index
    %c0_11 = arith.constant 0 : index
    %24 = vector.load %arg4[%c0_10, %c0_11] : memref<1x32xf32, #tpu.memory_space<vmem>>, vector<1x32xf32>
    %25 = vector.broadcast %24 : vector<1x32xf32> to vector<256x32xf32>
    %26 = arith.mulf %23, %25 : vector<256x32xf32>
    %c0_12 = arith.constant 0 : index
    %c0_13 = arith.constant 0 : index
    %27 = vector.load %arg5[%c0_12, %c0_13] : memref<1x32xf32, #tpu.memory_space<vmem>>, vector<1x32xf32>
    %28 = vector.broadcast %27 : vector<1x32xf32> to vector<256x32xf32>
    %29 = arith.addf %26, %28 : vector<256x32xf32>
    %30 = arith.truncf %29 : vector<256x32xf32> to vector<256x32xbf16>
    %c0_14 = arith.constant 0 : index
    %c0_15 = arith.constant 0 : index
    %31 = vector.load %arg6[%c0_14, %c0_15] : memref<256x32xbf16, #tpu.memory_space<vmem>>, vector<256x32xbf16>
    tpu.vector_store %arg6[%c0_14, %c0_15], %30 {strides = array<i32>} : memref<256x32xbf16, #tpu.memory_space<vmem>>, vector<256x32xbf16>,
    return
  }
  func.func @transform_0(%arg0: i32) -> (i32, i32) {
    %c0_i32 = arith.constant 0 : i32
    %c0_i32_0 = arith.constant 0 : i32
    return %arg0, %c0_i32 : i32, i32
  }
  func.func @transform_1(%arg0: i32) -> (i32, i32) {
    %c0_i32 = arith.constant 0 : i32
    %c0_i32_0 = arith.constant 0 : i32
    %c0_i32_1 = arith.constant 0 : i32
    return %c0_i32, %c0_i32_0 : i32, i32
  }
  func.func @transform_2(%arg0: i32) -> (i32, i32) {
    %c0_i32 = arith.constant 0 : i32
    %c0_i32_0 = arith.constant 0 : i32
    %c0_i32_1 = arith.constant 0 : i32
    return %c0_i32, %c0_i32_0 : i32, i32
  }
  func.func @transform_3(%arg0: i32) -> (i32, i32) {
    %c0_i32 = arith.constant 0 : i32
    %c0_i32_0 = arith.constant 0 : i32
    %c0_i32_1 = arith.constant 0 : i32
    return %c0_i32, %c0_i32_0 : i32, i32
  }
  func.func @transform_4(%arg0: i32) -> (i32, i32) {
    %c0_i32 = arith.constant 0 : i32
    %c0_i32_0 = arith.constant 0 : i32
    %c0_i32_1 = arith.constant 0 : i32
    return %c0_i32, %c0_i32_0 : i32, i32
  }
  func.func @transform_5(%arg0: i32) -> (i32, i32) {
    %c0_i32 = arith.constant 0 : i32
    %c0_i32_0 = arith.constant 0 : i32
    return %arg0, %c0_i32 : i32, i32
  }
}

</mosaic_0001>

<llo_original>
// kernel: second_dsa_forward.10
$region0: #{second_dsa_forward.10}
  #allocation0 [shape = 'u32[]', space=smem, size = 0x4, offset = 0x4, fixed_abs, tag = 'smem constant byte address 0x4 - core index']
  #allocation1 [shape = 'u32[144,128]{1,0:T(1,128)}', space=vmem, size = 0x12000, scoped, tag = 'internal scratch']
  %s0 = inlined_call_operand.vmem [shape: bf16[2,4,17,17,32], index: 0, kind: input, shape index: {}]
  %s1 = inlined_call_operand.vmem [shape: bf16[3,96,32], index: 1, kind: input, shape index: {}]
  %s2 = inlined_call_operand.vmem [shape: f32[1,32], index: 2, kind: input, shape index: {}]
  %s3 = inlined_call_operand.vmem [shape: bf16[2,16,16,32], index: 3, kind: output, shape index: {}]
  %s4 = sld [smem:[#allocation0]]
  $region45: #{second_dsa_forward.10} parent=0
    _
  %s6 = ssub.s32 1, %s4
  %s7 = scalar_select 0, %s6, %s4
  loop: start=0, step=1, limit=4
  $region2: #{second_dsa_forward.10} parent=0 // loop_pre_header
    _
  $region3: #{second_dsa_forward.10} parent=0 // loop_header
    %s9 = sphi 0, %s13
    %p10 = scmp.ge.s32.totalorder %s9, 4
    %s19 = sphi 0, %s21
    %s22 = sphi 0, %s19
    %s23 = sphi 0, %s22
    %s39 = sphi 0, %s23
    %s43 = sphi 0, %s43
    %s45 = sphi 0, %s43
    %s46 = sphi 0, %s45
    %s60 = sphi 0, %s46
    %s64 = sphi 0, %s64
    %s66 = sphi 0, %s64
    %s67 = sphi 0, %s66
    %s81 = sphi 0, %s67
    %s87 = sphi 0, %s89
    %s90 = sphi 0, %s87
    %s91 = sphi 0, %s90
    %s107 = sphi 0, %s91
  $region4: #{second_dsa_forward.10} parent=0 // loop_header_branch
    %12 = sbr.rel (%p10) target = $region8
  $region5: #{second_dsa_forward.10} parent=0 // loop_body
    %s14 = ssub.s32 %s9, 1
    %s15 = ssub.s32 %s9, 2
    %s16 = sadd.s32 %s9, 1
    %s17 = ssub.s32 %s9, %s16
    %p18 = scmp.eq.s32.totalorder %s17, 0
    %s20 = sadd.s32 %s19, 1
    %s21 = scalar_select %p18, %s19, %s20
    %p24 = pneg %p18
    %p25 = scmp.eq.s32.totalorder %s9, 1
    %p26 = por %p24, %p25
    %p27 = scmp.ne.s32.totalorder %s19, %s22
    %p28 = scmp.eq.s32.totalorder %s9, 0
    %p29 = por %p27, %p28
    %p30 = scmp.ne.s32.totalorder %s19, %s22
    %p31 = scmp.eq.s32.totalorder %s14, 1
    %p32 = por %p30, %p31
    %p33 = scmp.ne.s32.totalorder %s22, %s23
    %p34 = scmp.eq.s32.totalorder %s14, 0
    %p35 = por %p33, %p34
    %p36 = scmp.ne.s32.totalorder %s22, %s23
    %p37 = scmp.eq.s32.totalorder %s15, 1
    %p38 = por %p36, %p37
    %p40 = scmp.ne.s32.totalorder %s23, %s39
    %p41 = scmp.eq.s32.totalorder %s15, 0
    %p42 = por %p40, %p41
    %s44 = sadd.s32 %s43, 1
    %p47 = scmp.eq.s32.totalorder %s9, 1
    %p48 = scmp.ne.s32.totalorder %s43, %s45
    %p49 = scmp.eq.s32.totalorder %s9, 0
    %p50 = por %p48, %p49
    %p51 = scmp.ne.s32.totalorder %s43, %s45
    %p52 = scmp.eq.s32.totalorder %s14, 1
    %p53 = por %p51, %p52
    %p54 = scmp.ne.s32.totalorder %s45, %s46
    %p55 = scmp.eq.s32.totalorder %s14, 0
    %p56 = por %p54, %p55
    %p57 = scmp.ne.s32.totalorder %s45, %s46
    %p58 = scmp.eq.s32.totalorder %s15, 1
    %p59 = por %p57, %p58
    %p61 = scmp.ne.s32.totalorder %s46, %s60
    %p62 = scmp.eq.s32.totalorder %s15, 0
    %p63 = por %p61, %p62
    %s65 = sadd.s32 %s64, 1
    %p68 = scmp.eq.s32.totalorder %s9, 1
    %p69 = scmp.ne.s32.totalorder %s64, %s66
    %p70 = scmp.eq.s32.totalorder %s9, 0
    %p71 = por %p69, %p70
    %p72 = scmp.ne.s32.totalorder %s64, %s66
    %p73 = scmp.eq.s32.totalorder %s14, 1
    %p74 = por %p72, %p73
    %p75 = scmp.ne.s32.totalorder %s66, %s67
    %p76 = scmp.eq.s32.totalorder %s14, 0
    %p77 = por %p75, %p76
    %p78 = scmp.ne.s32.totalorder %s66, %s67
    %p79 = scmp.eq.s32.totalorder %s15, 1
    %p80 = por %p78, %p79
    %p82 = scmp.ne.s32.totalorder %s67, %s81
    %p83 = scmp.eq.s32.totalorder %s15, 0
    %p84 = por %p82, %p83
    %s85 = ssub.s32 %s9, %s16
    %p86 = scmp.eq.s32.totalorder %s85, 0
    %s88 = sadd.s32 %s87, 1
    %s89 = scalar_select %p86, %s87, %s88
    %p92 = pneg %p86
    %p93 = scmp.eq.s32.totalorder %s9, 1
    %p94 = por %p92, %p93
    %p95 = scmp.ne.s32.totalorder %s87, %s90
    %p96 = scmp.eq.s32.totalorder %s9, 0
    %p97 = por %p95, %p96
    %p98 = scmp.ne.s32.totalorder %s87, %s90
    %p99 = scmp.eq.s32.totalorder %s14, 1
    %p100 = por %p98, %p99
    %p101 = scmp.ne.s32.totalorder %s90, %s91
    %p102 = scmp.eq.s32.totalorder %s14, 0
    %p103 = por %p101, %p102
    %p104 = scmp.ne.s32.totalorder %s90, %s91
    %p105 = scmp.eq.s32.totalorder %s15, 1
    %p106 = por %p104, %p105
    %p108 = scmp.ne.s32.totalorder %s91, %s107
    %p109 = scmp.eq.s32.totalorder %s15, 0
    %p110 = por %p108, %p109
    %p111 = scmp.le.s32.totalorder 1, %s9
    %p112 = scmp.lt.s32.totalorder %s9, 3
    %p113 = pnand %p111, %p112
    %p114 = pneg %p113
    // Predicated region
    $region9: #{second_dsa_forward.10} parent=5 // pred_check
      _
    $region10: #{second_dsa_forward.10} parent=5 // pred_check_branch
      %116 = sbr.rel (%p113) target = $region12
    $region11: #{second_dsa_forward.10} parent=5 // pred_region
      %s117 = ssub.s32 %s9, 1
      // Predicated region
      $region13: #{second_dsa_forward.10} parent=11 // pred_check
        %p118 = pneg %p56
      $region14: #{second_dsa_forward.10} parent=11 // pred_check_branch
        %120 = sbr.rel (%p118) target = $region16
      $region15: #{second_dsa_forward.10} parent=11 // pred_region
        _
      $region16: #{second_dsa_forward.10} parent=11 // pred_fallthru
        _
      // Predicated region
      $region17: #{second_dsa_forward.10} parent=11 // pred_check
        %p121 = pneg %p77
      $region18: #{second_dsa_forward.10} parent=11 // pred_check_branch
        %123 = sbr.rel (%p121) target = $region20
      $region19: #{second_dsa_forward.10} parent=11 // pred_region
        _
      $region20: #{second_dsa_forward.10} parent=11 // pred_fallthru
        _
    $region12: #{second_dsa_forward.10} parent=5 // pred_fallthru
      _
    %p124 = scmp.lt.s32.totalorder %s9, 2
    // Predicated region
    $region21: #{second_dsa_forward.10} parent=5 // pred_check
      %p125 = pneg %p124
    $region22: #{second_dsa_forward.10} parent=5 // pred_check_branch
      %127 = sbr.rel (%p125) target = $region24
    $region23: #{second_dsa_forward.10} parent=5 // pred_region
      // Predicated region
      $region25: #{second_dsa_forward.10} parent=23 // pred_check
        %p128 = pneg %p29
      $region26: #{second_dsa_forward.10} parent=23 // pred_check_branch
        %130 = sbr.rel (%p128) target = $region28
      $region27: #{second_dsa_forward.10} parent=23 // pred_region
        %p131 = scmp.lt.s32.totalorder %s9, 1
        %s132 = scalar_select %p131, %s9, 1
        %s133 = smul.addr %s132, 204
        %s134 = smul.addr %s133, 4
        %s135 = scalar_lea.vmem %s0, %s134
      $region28: #{second_dsa_forward.10} parent=23 // pred_fallthru
        _
    $region24: #{second_dsa_forward.10} parent=5 // pred_fallthru
      _
    %p136 = scmp.le.s32.totalorder 1, %s9
    %p137 = scmp.lt.s32.totalorder %s9, 3
    %p138 = pnand %p136, %p137
    %p139 = pneg %p138
    // Predicated region
    $region29: #{second_dsa_forward.10} parent=5 // pred_check
      _
    $region30: #{second_dsa_forward.10} parent=5 // pred_check_branch
      %141 = sbr.rel (%p138) target = $region32
    $region31: #{second_dsa_forward.10} parent=5 // pred_region
      %s142 = ssub.s32 %s9, 1
      %p143 = scmp.lt.s32.totalorder %s14, 1
      %s144 = scalar_select %p143, %s14, 1
      %s145 = smul.addr %s144, 204
      %s146 = smul.addr %s145, 4
      %s147 = scalar_lea.vmem %s0, %s146
      %p148 = pneg %p35
      %p149 = pneg %p32
      %p150 = pneg %p56
      %p151 = pneg %p53
      %p152 = pneg %p77
      %p153 = pneg %p74
      %p154 = pneg %p103
      %p155 = pneg %p100
      %p156 = scmp.lt.s32.totalorder %s14, 1
      %s157 = scalar_select %p156, %s14, 1
      %s158 = smul.addr %s157, 32
      %s159 = smul.addr %s158, 4
      %s160 = scalar_lea.vmem %s3, %s159
      %p161 = scmp.lt.s32.totalorder %s14, 1
      %s162 = scalar_select %p161, %s14, 1
      %s163 = smul.addr %s162, 204
      %s164 = smul.addr %s163, 4
      %s165 = scalar_lea.vmem %s0, %s164
      %p166 = scmp.lt.s32.totalorder %s14, 1
      %s167 = scalar_select %p166, %s14, 1
      %s168 = smul.addr %s167, 32
      %s169 = smul.addr %s168, 4
      %s170 = scalar_lea.vmem %s3, %s169
      %v172 = vld [vmem:[%s165] sm:$0xf]
      %v173 = vld [vmem:[%s165 + $0x4] sm:$0xf]
      %v174 = vld [vmem:[%s165 + $0xc] sm:$0xf]
      %v175 = vld [vmem:[%s165 + $0x10] sm:$0xf]
      %v176 = vld [vmem:[%s165 + $0x18] sm:$0xf]
      %v177 = vld [vmem:[%s165 + $0x1c] sm:$0xf]
      %v178 = vld [vmem:[%s165 + $0x24] sm:$0xf]
      %v179 = vld [vmem:[%s165 + $0x28] sm:$0xf]
      %v180 = vld [vmem:[%s165 + $0x30] sm:$0xf]
      %v181 = vld [vmem:[%s165 + $0x34] sm:$0xf]
      %v182 = vld [vmem:[%s165 + $0x3c] sm:$0xf]
      %v183 = vld [vmem:[%s165 + $0x40] sm:$0xf]
      %v184 = vld [vmem:[%s165 + $0x48] sm:$0xf]
      %v185 = vld [vmem:[%s165 + $0x4c] sm:$0xf]
      %v186 = vld [vmem:[%s165 + $0x54] sm:$0xf]
      %v187 = vld [vmem:[%s165 + $0x58] sm:$0xf]
      %v188 = vld [vmem:[%s165 + $0x60] sm:$0xf]
      %v189 = vld [vmem:[%s165 + $0x64] sm:$0xf]
      %v190 = vld [vmem:[%s165 + $0x6c] sm:$0xf]
      %v191 = vld [vmem:[%s165 + $0x70] sm:$0xf]
      %v192 = vld [vmem:[%s165 + $0x78] sm:$0xf]
      %v193 = vld [vmem:[%s165 + $0x7c] sm:$0xf]
      %v194 = vld [vmem:[%s165 + $0x84] sm:$0xf]
      %v195 = vld [vmem:[%s165 + $0x88] sm:$0xf]
      %v196 = vld [vmem:[%s165 + $0x90] sm:$0xf]
      %v197 = vld [vmem:[%s165 + $0x94] sm:$0xf]
      %v198 = vld [vmem:[%s165 + $0x9c] sm:$0xf]
      %v199 = vld [vmem:[%s165 + $0xa0] sm:$0xf]
      %v200 = vld [vmem:[%s165 + $0xa8] sm:$0xf]
      %v201 = vld [vmem:[%s165 + $0xac] sm:$0xf]
      %v202 = vld [vmem:[%s165 + $0xb4] sm:$0xf]
      %v203 = vld [vmem:[%s165 + $0xb8] sm:$0xf]
      %s204 = scalar_lea.vmem %s165, 204
      %v205 = vld [vmem:[%s204] sm:$0xf]
      %v206 = vld [vmem:[%s204 + $0x4] sm:$0xf]
      %v207 = vld [vmem:[%s204 + $0xc] sm:$0xf]
      %v208 = vld [vmem:[%s204 + $0x10] sm:$0xf]
      %v209 = vld [vmem:[%s204 + $0x18] sm:$0xf]
      %v210 = vld [vmem:[%s204 + $0x1c] sm:$0xf]
      %v211 = vld [vmem:[%s204 + $0x24] sm:$0xf]
      %v212 = vld [vmem:[%s204 + $0x28] sm:$0xf]
      %v213 = vld [vmem:[%s204 + $0x30] sm:$0xf]
      %v214 = vld [vmem:[%s204 + $0x34] sm:$0xf]
      %v215 = vld [vmem:[%s204 + $0x3c] sm:$0xf]
      %v216 = vld [vmem:[%s204 + $0x40] sm:$0xf]
      %v217 = vld [vmem:[%s204 + $0x48] sm:$0xf]
      %v218 = vld [vmem:[%s204 + $0x4c] sm:$0xf]
      %v219 = vld [vmem:[%s204 + $0x54] sm:$0xf]
      %v220 = vld [vmem:[%s204 + $0x58] sm:$0xf]
      %v221 = vld [vmem:[%s204 + $0x60] sm:$0xf]
      %v222 = vld [vmem:[%s204 + $0x64] sm:$0xf]
      %v223 = vld [vmem:[%s204 + $0x6c] sm:$0xf]
      %v224 = vld [vmem:[%s204 + $0x70] sm:$0xf]
      %v225 = vld [vmem:[%s204 + $0x78] sm:$0xf]
      %v226 = vld [vmem:[%s204 + $0x7c] sm:$0xf]
      %v227 = vld [vmem:[%s204 + $0x84] sm:$0xf]
      %v228 = vld [vmem:[%s204 + $0x88] sm:$0xf]
      %v229 = vld [vmem:[%s204 + $0x90] sm:$0xf]
      %v230 = vld [vmem:[%s204 + $0x94] sm:$0xf]
      %v231 = vld [vmem:[%s204 + $0x9c] sm:$0xf]
      %v232 = vld [vmem:[%s204 + $0xa0] sm:$0xf]
      %v233 = vld [vmem:[%s204 + $0xa8] sm:$0xf]
      %v234 = vld [vmem:[%s204 + $0xac] sm:$0xf]
      %v235 = vld [vmem:[%s204 + $0xb4] sm:$0xf]
      %v236 = vld [vmem:[%s204 + $0xb8] sm:$0xf]
      %v237 = vld [vmem:[%s165 + $0x8] sm:$0x1]
      %v238 = vld [vmem:[%s165 + $0x14] sm:$0x1]
      %v239 = vld [vmem:[%s165 + $0x20] sm:$0x1]
      %v240 = vld [vmem:[%s165 + $0x2c] sm:$0x1]
      %v241 = vld [vmem:[%s165 + $0x38] sm:$0x1]
      %v242 = vld [vmem:[%s165 + $0x44] sm:$0x1]
      %v243 = vld [vmem:[%s165 + $0x50] sm:$0x1]
      %v244 = vld [vmem:[%s165 + $0x5c] sm:$0x1]
      %v245 = vld [vmem:[%s165 + $0x68] sm:$0x1]
      %v246 = vld [vmem:[%s165 + $0x74] sm:$0x1]
      %v247 = vld [vmem:[%s165 + $0x80] sm:$0x1]
      %v248 = vld [vmem:[%s165 + $0x8c] sm:$0x1]
      %v249 = vld [vmem:[%s165 + $0x98] sm:$0x1]
      %v250 = vld [vmem:[%s165 + $0xa4] sm:$0x1]
      %v251 = vld [vmem:[%s165 + $0xb0] sm:$0x1]
      %v252 = vld [vmem:[%s165 + $0xbc] sm:$0x1]
      %v285 = vunpack.c.l.b16 %v172
      %v286 = vunpack.c.l.b16 %v173
      %v287 = vunpack.c.l.b16 %v174
      %v288 = vunpack.c.l.b16 %v175
      %v289 = vunpack.c.l.b16 %v176
      %v290 = vunpack.c.l.b16 %v177
      %v291 = vunpack.c.l.b16 %v178
      %v292 = vunpack.c.l.b16 %v179
      %v293 = vunpack.c.l.b16 %v180
      %v294 = vunpack.c.l.b16 %v181
      %v295 = vunpack.c.l.b16 %v182
      %v296 = vunpack.c.l.b16 %v183
      %v297 = vunpack.c.l.b16 %v184
      %v298 = vunpack.c.l.b16 %v185
      %v299 = vunpack.c.l.b16 %v186
      %v300 = vunpack.c.l.b16 %v187
      %v301 = vunpack.c.l.b16 %v188
      %v302 = vunpack.c.l.b16 %v189
      %v303 = vunpack.c.l.b16 %v190
      %v304 = vunpack.c.l.b16 %v191
      %v305 = vunpack.c.l.b16 %v192
      %v306 = vunpack.c.l.b16 %v193
      %v307 = vunpack.c.l.b16 %v194
      %v308 = vunpack.c.l.b16 %v195
      %v309 = vunpack.c.l.b16 %v196
      %v310 = vunpack.c.l.b16 %v197
      %v311 = vunpack.c.l.b16 %v198
      %v312 = vunpack.c.l.b16 %v199
      %v313 = vunpack.c.l.b16 %v200
      %v314 = vunpack.c.l.b16 %v201
      %v315 = vunpack.c.l.b16 %v202
      %v316 = vunpack.c.l.b16 %v203
      %v317 = vpack.c.b16 %v286, %v285
      %v318 = vpack.c.b16 %v288, %v287
      %v319 = vpack.c.b16 %v290, %v289
      %v320 = vpack.c.b16 %v292, %v291
      %v321 = vpack.c.b16 %v294, %v293
      %v322 = vpack.c.b16 %v296, %v295
      %v323 = vpack.c.b16 %v298, %v297
      %v324 = vpack.c.b16 %v300, %v299
      %v325 = vpack.c.b16 %v302, %v301
      %v326 = vpack.c.b16 %v304, %v303
      %v327 = vpack.c.b16 %v306, %v305
      %v328 = vpack.c.b16 %v308, %v307
      %v329 = vpack.c.b16 %v310, %v309
      %v330 = vpack.c.b16 %v312, %v311
      %v331 = vpack.c.b16 %v314, %v313
      %v332 = vpack.c.b16 %v316, %v315
      %v365 = vunpack.c.l.b16 %v205
      %v366 = vunpack.c.l.b16 %v206
      %v367 = vunpack.c.l.b16 %v207
      %v368 = vunpack.c.l.b16 %v208
      %v369 = vunpack.c.l.b16 %v209
      %v370 = vunpack.c.l.b16 %v210
      %v371 = vunpack.c.l.b16 %v211
      %v372 = vunpack.c.l.b16 %v212
      %v373 = vunpack.c.l.b16 %v213
      %v374 = vunpack.c.l.b16 %v214
      %v375 = vunpack.c.l.b16 %v215
      %v376 = vunpack.c.l.b16 %v216
      %v377 = vunpack.c.l.b16 %v217
      %v378 = vunpack.c.l.b16 %v218
      %v379 = vunpack.c.l.b16 %v219
      %v380 = vunpack.c.l.b16 %v220
      %v381 = vunpack.c.l.b16 %v221
      %v382 = vunpack.c.l.b16 %v222
      %v383 = vunpack.c.l.b16 %v223
      %v384 = vunpack.c.l.b16 %v224
      %v385 = vunpack.c.l.b16 %v225
      %v386 = vunpack.c.l.b16 %v226
      %v387 = vunpack.c.l.b16 %v227
      %v388 = vunpack.c.l.b16 %v228
      %v389 = vunpack.c.l.b16 %v229
      %v390 = vunpack.c.l.b16 %v230
      %v391 = vunpack.c.l.b16 %v231
      %v392 = vunpack.c.l.b16 %v232
      %v393 = vunpack.c.l.b16 %v233
      %v394 = vunpack.c.l.b16 %v234
      %v395 = vunpack.c.l.b16 %v235
      %v396 = vunpack.c.l.b16 %v236
      %v397 = vpack.c.b16 %v366, %v365
      %v398 = vpack.c.b16 %v368, %v367
      %v399 = vpack.c.b16 %v370, %v369
      %v400 = vpack.c.b16 %v372, %v371
      %v401 = vpack.c.b16 %v374, %v373
      %v402 = vpack.c.b16 %v376, %v375
      %v403 = vpack.c.b16 %v378, %v377
      %v404 = vpack.c.b16 %v380, %v379
      %v405 = vpack.c.b16 %v382, %v381
      %v406 = vpack.c.b16 %v384, %v383
      %v407 = vpack.c.b16 %v386, %v385
      %v408 = vpack.c.b16 %v388, %v387
      %v409 = vpack.c.b16 %v390, %v389
      %v410 = vpack.c.b16 %v392, %v391
      %v411 = vpack.c.b16 %v394, %v393
      %v412 = vpack.c.b16 %v396, %v395
      %413 = vrot.lane.b32.xlu0 %v397, 32
      %v414 = vpop.permute.xlu0 %413
      %415 = vrot.lane.b32.xlu0 %v398, 32
      %v416 = vpop.permute.xlu0 %415
      %417 = vrot.lane.b32.xlu0 %v399, 32
      %v418 = vpop.permute.xlu0 %417
      %419 = vrot.lane.b32.xlu0 %v400, 32
      %v420 = vpop.permute.xlu0 %419
      %421 = vrot.lane.b32.xlu0 %v401, 32
      %v422 = vpop.permute.xlu0 %421
      %423 = vrot.lane.b32.xlu0 %v402, 32
      %v424 = vpop.permute.xlu0 %423
      %425 = vrot.lane.b32.xlu0 %v403, 32
      %v426 = vpop.permute.xlu0 %425
      %427 = vrot.lane.b32.xlu0 %v404, 32
      %v428 = vpop.permute.xlu0 %427
      %429 = vrot.lane.b32.xlu0 %v405, 32
      %v430 = vpop.permute.xlu0 %429
      %431 = vrot.lane.b32.xlu0 %v406, 32
      %v432 = vpop.permute.xlu0 %431
      %433 = vrot.lane.b32.xlu0 %v407, 32
      %v434 = vpop.permute.xlu0 %433
      %435 = vrot.lane.b32.xlu0 %v408, 32
      %v436 = vpop.permute.xlu0 %435
      %437 = vrot.lane.b32.xlu0 %v409, 32
      %v438 = vpop.permute.xlu0 %437
      %439 = vrot.lane.b32.xlu0 %v410, 32
      %v440 = vpop.permute.xlu0 %439
      %441 = vrot.lane.b32.xlu0 %v411, 32
      %v442 = vpop.permute.xlu0 %441
      %443 = vrot.lane.b32.xlu0 %v412, 32
      %v444 = vpop.permute.xlu0 %443
      %v461 = vunpack.c.l.b16 %v237
      %v462 = vunpack.c.l.b16 %v238
      %v463 = vunpack.c.l.b16 %v239
      %v464 = vunpack.c.l.b16 %v240
      %v465 = vunpack.c.l.b16 %v241
      %v466 = vunpack.c.l.b16 %v242
      %v467 = vunpack.c.l.b16 %v243
      %v468 = vunpack.c.l.b16 %v244
      %v469 = vunpack.c.l.b16 %v245
      %v470 = vunpack.c.l.b16 %v246
      %v471 = vunpack.c.l.b16 %v247
      %v472 = vunpack.c.l.b16 %v248
      %v473 = vunpack.c.l.b16 %v249
      %v474 = vunpack.c.l.b16 %v250
      %v475 = vunpack.c.l.b16 %v251
      %v476 = vunpack.c.l.b16 %v252
      %v477 = vpack.c.b16 %v461, %v461
      %v478 = vpack.c.b16 %v462, %v462
      %v479 = vpack.c.b16 %v463, %v463
      %v480 = vpack.c.b16 %v464, %v464
      %v481 = vpack.c.b16 %v465, %v465
      %v482 = vpack.c.b16 %v466, %v466
      %v483 = vpack.c.b16 %v467, %v467
      %v484 = vpack.c.b16 %v468, %v468
      %v485 = vpack.c.b16 %v469, %v469
      %v486 = vpack.c.b16 %v470, %v470
      %v487 = vpack.c.b16 %v471, %v471
      %v488 = vpack.c.b16 %v472, %v472
      %v489 = vpack.c.b16 %v473, %v473
      %v490 = vpack.c.b16 %v474, %v474
      %v491 = vpack.c.b16 %v475, %v475
      %v492 = vpack.c.b16 %v476, %v476
      %vm493 = vsmask.f32 7424
      %v495 = vshrl.u32 %v317, 16
      %v497 = vshll.u32 %v317, 16
      %v499 = vrot.slane %v497, 1
      %v500 = vor.u32 %v495, %v499
      %v502 = vshll.u32 %v477, 16
      %v504 = vrot.slane %v502, 1
      %v505 = vsel %vm493, %v500, %v504
      %v507 = vshrl.u32 %v318, 16
      %v509 = vshll.u32 %v318, 16
      %v511 = vrot.slane %v509, 1
      %v512 = vor.u32 %v507, %v511
      %v514 = vshll.u32 %v478, 16
      %v516 = vrot.slane %v514, 1
      %v517 = vsel %vm493, %v512, %v516
      %v519 = vshrl.u32 %v319, 16
      %v521 = vshll.u32 %v319, 16
      %v523 = vrot.slane %v521, 1
      %v524 = vor.u32 %v519, %v523
      %v526 = vshll.u32 %v479, 16
      %v528 = vrot.slane %v526, 1
      %v529 = vsel %vm493, %v524, %v528
      %v531 = vshrl.u32 %v320, 16
      %v533 = vshll.u32 %v320, 16
      %v535 = vrot.slane %v533, 1
      %v536 = vor.u32 %v531, %v535
      %v538 = vshll.u32 %v480, 16
      %v540 = vrot.slane %v538, 1
      %v541 = vsel %vm493, %v536, %v540
      %v543 = vshrl.u32 %v321, 16
      %v545 = vshll.u32 %v321, 16
      %v547 = vrot.slane %v545, 1
      %v548 = vor.u32 %v543, %v547
      %v550 = vshll.u32 %v481, 16
      %v552 = vrot.slane %v550, 1
      %v553 = vsel %vm493, %v548, %v552
      %v555 = vshrl.u32 %v322, 16
      %v557 = vshll.u32 %v322, 16
      %v559 = vrot.slane %v557, 1
      %v560 = vor.u32 %v555, %v559
      %v562 = vshll.u32 %v482, 16
      %v564 = vrot.slane %v562, 1
      %v565 = vsel %vm493, %v560, %v564
      %v567 = vshrl.u32 %v323, 16
      %v569 = vshll.u32 %v323, 16
      %v571 = vrot.slane %v569, 1
      %v572 = vor.u32 %v567, %v571
      %v574 = vshll.u32 %v483, 16
      %v576 = vrot.slane %v574, 1
      %v577 = vsel %vm493, %v572, %v576
      %v579 = vshrl.u32 %v324, 16
      %v581 = vshll.u32 %v324, 16
      %v583 = vrot.slane %v581, 1
      %v584 = vor.u32 %v579, %v583
      %v586 = vshll.u32 %v484, 16
      %v588 = vrot.slane %v586, 1
      %v589 = vsel %vm493, %v584, %v588
      %v591 = vshrl.u32 %v325, 16
      %v593 = vshll.u32 %v325, 16
      %v595 = vrot.slane %v593, 1
      %v596 = vor.u32 %v591, %v595
      %v598 = vshll.u32 %v485, 16
      %v600 = vrot.slane %v598, 1
      %v601 = vsel %vm493, %v596, %v600
      %v603 = vshrl.u32 %v326, 16
      %v605 = vshll.u32 %v326, 16
      %v607 = vrot.slane %v605, 1
      %v608 = vor.u32 %v603, %v607
      %v610 = vshll.u32 %v486, 16
      %v612 = vrot.slane %v610, 1
      %v613 = vsel %vm493, %v608, %v612
      %v615 = vshrl.u32 %v327, 16
      %v617 = vshll.u32 %v327, 16
      %v619 = vrot.slane %v617, 1
      %v620 = vor.u32 %v615, %v619
      %v622 = vshll.u32 %v487, 16
      %v624 = vrot.slane %v622, 1
      %v625 = vsel %vm493, %v620, %v624
      %v627 = vshrl.u32 %v328, 16
      %v629 = vshll.u32 %v328, 16
      %v631 = vrot.slane %v629, 1
      %v632 = vor.u32 %v627, %v631
      %v634 = vshll.u32 %v488, 16
      %v636 = vrot.slane %v634, 1
      %v637 = vsel %vm493, %v632, %v636
      %v639 = vshrl.u32 %v329, 16
      %v641 = vshll.u32 %v329, 16
      %v643 = vrot.slane %v641, 1
      %v644 = vor.u32 %v639, %v643
      %v646 = vshll.u32 %v489, 16
      %v648 = vrot.slane %v646, 1
      %v649 = vsel %vm493, %v644, %v648
      %v651 = vshrl.u32 %v330, 16
      %v653 = vshll.u32 %v330, 16
      %v655 = vrot.slane %v653, 1
      %v656 = vor.u32 %v651, %v655
      %v658 = vshll.u32 %v490, 16
      %v660 = vrot.slane %v658, 1
      %v661 = vsel %vm493, %v656, %v660
      %v663 = vshrl.u32 %v331, 16
      %v665 = vshll.u32 %v331, 16
      %v667 = vrot.slane %v665, 1
      %v668 = vor.u32 %v663, %v667
      %v670 = vshll.u32 %v491, 16
      %v672 = vrot.slane %v670, 1
      %v673 = vsel %vm493, %v668, %v672
      %v675 = vshrl.u32 %v332, 16
      %v677 = vshll.u32 %v332, 16
      %v679 = vrot.slane %v677, 1
      %v680 = vor.u32 %v675, %v679
      %v682 = vshll.u32 %v492, 16
      %v684 = vrot.slane %v682, 1
      %v685 = vsel %vm493, %v680, %v684
      %686 = vrot.lane.b32.xlu0 %v505, 64
      %v687 = vpop.permute.xlu0 %686
      %688 = vrot.lane.b32.xlu0 %v517, 64
      %v689 = vpop.permute.xlu0 %688
      %690 = vrot.lane.b32.xlu0 %v529, 64
      %v691 = vpop.permute.xlu0 %690
      %692 = vrot.lane.b32.xlu0 %v541, 64
      %v693 = vpop.permute.xlu0 %692
      %694 = vrot.lane.b32.xlu0 %v553, 64
      %v695 = vpop.permute.xlu0 %694
      %696 = vrot.lane.b32.xlu0 %v565, 64
      %v697 = vpop.permute.xlu0 %696
      %698 = vrot.lane.b32.xlu0 %v577, 64
      %v699 = vpop.permute.xlu0 %698
      %700 = vrot.lane.b32.xlu0 %v589, 64
      %v701 = vpop.permute.xlu0 %700
      %702 = vrot.lane.b32.xlu0 %v601, 64
      %v703 = vpop.permute.xlu0 %702
      %704 = vrot.lane.b32.xlu0 %v613, 64
      %v705 = vpop.permute.xlu0 %704
      %706 = vrot.lane.b32.xlu0 %v625, 64
      %v707 = vpop.permute.xlu0 %706
      %708 = vrot.lane.b32.xlu0 %v637, 64
      %v709 = vpop.permute.xlu0 %708
      %710 = vrot.lane.b32.xlu0 %v649, 64
      %v711 = vpop.permute.xlu0 %710
      %712 = vrot.lane.b32.xlu0 %v661, 64
      %v713 = vpop.permute.xlu0 %712
      %714 = vrot.lane.b32.xlu0 %v673, 64
      %v715 = vpop.permute.xlu0 %714
      %716 = vrot.lane.b32.xlu0 %v685, 64
      %v717 = vpop.permute.xlu0 %716
      %vm718 = vcmask 261120
      %v720 = vsel %vm718, %v317, %v414
      %v722 = vsel %vm718, %v318, %v416
      %v724 = vsel %vm718, %v319, %v418
      %v726 = vsel %vm718, %v320, %v420
      %v728 = vsel %vm718, %v321, %v422
      %v730 = vsel %vm718, %v322, %v424
      %v732 = vsel %vm718, %v323, %v426
      %v734 = vsel %vm718, %v324, %v428
      %v736 = vsel %vm718, %v325, %v430
      %v738 = vsel %vm718, %v326, %v432
      %v740 = vsel %vm718, %v327, %v434
      %v742 = vsel %vm718, %v328, %v436
      %v744 = vsel %vm718, %v329, %v438
      %v746 = vsel %vm718, %v330, %v440
      %v748 = vsel %vm718, %v331, %v442
      %v750 = vsel %vm718, %v332, %v444
      %vm751 = vcmask 523264
      %v753 = vsel %vm751, %v720, %v687
      %v755 = vsel %vm751, %v722, %v689
      %v757 = vsel %vm751, %v724, %v691
      %v759 = vsel %vm751, %v726, %v693
      %v761 = vsel %vm751, %v728, %v695
      %v763 = vsel %vm751, %v730, %v697
      %v765 = vsel %vm751, %v732, %v699
      %v767 = vsel %vm751, %v734, %v701
      %v769 = vsel %vm751, %v736, %v703
      %v771 = vsel %vm751, %v738, %v705
      %v773 = vsel %vm751, %v740, %v707
      %v775 = vsel %vm751, %v742, %v709
      %v777 = vsel %vm751, %v744, %v711
      %v779 = vsel %vm751, %v746, %v713
      %v781 = vsel %vm751, %v748, %v715
      %v783 = vsel %vm751, %v750, %v717
      %v784 = vld [vmem:[%s1] sm:$0xf]
      %v785 = vld [vmem:[%s1 + $0x4] sm:$0xf]
      %v786 = vld [vmem:[%s1 + $0x8] sm:$0xf]
      %v787 = vld [vmem:[%s1 + $0xc] sm:$0xf]
      %v788 = vld [vmem:[%s1 + $0x10] sm:$0xf]
      %v789 = vld [vmem:[%s1 + $0x14] sm:$0xf]
      %v790 = vld [vmem:[%s1 + $0x18] sm:$0xf]
      %v791 = vld [vmem:[%s1 + $0x1c] sm:$0xf]
      %v792 = vld [vmem:[%s1 + $0x20] sm:$0xf]
      %v793 = vld [vmem:[%s1 + $0x24] sm:$0xf]
      %v794 = vld [vmem:[%s1 + $0x28] sm:$0xf]
      %v795 = vld [vmem:[%s1 + $0x2c] sm:$0xf]
      %s796 = scalar_lea.vmem %s165, 408
      %v797 = vld [vmem:[%s796] sm:$0xf]
      %v798 = vld [vmem:[%s796 + $0x4] sm:$0xf]
      %v799 = vld [vmem:[%s796 + $0xc] sm:$0xf]
      %v800 = vld [vmem:[%s796 + $0x10] sm:$0xf]
      %v801 = vld [vmem:[%s796 + $0x18] sm:$0xf]
      %v802 = vld [vmem:[%s796 + $0x1c] sm:$0xf]
      %v803 = vld [vmem:[%s796 + $0x24] sm:$0xf]
      %v804 = vld [vmem:[%s796 + $0x28] sm:$0xf]
      %v805 = vld [vmem:[%s796 + $0x30] sm:$0xf]
      %v806 = vld [vmem:[%s796 + $0x34] sm:$0xf]
      %v807 = vld [vmem:[%s796 + $0x3c] sm:$0xf]
      %v808 = vld [vmem:[%s796 + $0x40] sm:$0xf]
      %v809 = vld [vmem:[%s796 + $0x48] sm:$0xf]
      %v810 = vld [vmem:[%s796 + $0x4c] sm:$0xf]
      %v811 = vld [vmem:[%s796 + $0x54] sm:$0xf]
      %v812 = vld [vmem:[%s796 + $0x58] sm:$0xf]
      %v813 = vld [vmem:[%s796 + $0x60] sm:$0xf]
      %v814 = vld [vmem:[%s796 + $0x64] sm:$0xf]
      %v815 = vld [vmem:[%s796 + $0x6c] sm:$0xf]
      %v816 = vld [vmem:[%s796 + $0x70] sm:$0xf]
      %v817 = vld [vmem:[%s796 + $0x78] sm:$0xf]
      %v818 = vld [vmem:[%s796 + $0x7c] sm:$0xf]
      %v819 = vld [vmem:[%s796 + $0x84] sm:$0xf]
      %v820 = vld [vmem:[%s796 + $0x88] sm:$0xf]
      %v821 = vld [vmem:[%s796 + $0x90] sm:$0xf]
      %v822 = vld [vmem:[%s796 + $0x94] sm:$0xf]
      %v823 = vld [vmem:[%s796 + $0x9c] sm:$0xf]
      %v824 = vld [vmem:[%s796 + $0xa0] sm:$0xf]
      %v825 = vld [vmem:[%s796 + $0xa8] sm:$0xf]
      %v826 = vld [vmem:[%s796 + $0xac] sm:$0xf]
      %v827 = vld [vmem:[%s796 + $0xb4] sm:$0xf]
      %v828 = vld [vmem:[%s796 + $0xb8] sm:$0xf]
      %s829 = scalar_lea.vmem %s165, 612
      %v830 = vld [vmem:[%s829] sm:$0xf]
      %v831 = vld [vmem:[%s829 + $0x4] sm:$0xf]
      %v832 = vld [vmem:[%s829 + $0xc] sm:$0xf]
      %v833 = vld [vmem:[%s829 + $0x10] sm:$0xf]
      %v834 = vld [vmem:[%s829 + $0x18] sm:$0xf]
      %v835 = vld [vmem:[%s829 + $0x1c] sm:$0xf]
      %v836 = vld [vmem:[%s829 + $0x24] sm:$0xf]
      %v837 = vld [vmem:[%s829 + $0x28] sm:$0xf]
      %v838 = vld [vmem:[%s829 + $0x30] sm:$0xf]
      %v839 = vld [vmem:[%s829 + $0x34] sm:$0xf]
      %v840 = vld [vmem:[%s829 + $0x3c] sm:$0xf]
      %v841 = vld [vmem:[%s829 + $0x40] sm:$0xf]
      %v842 = vld [vmem:[%s829 + $0x48] sm:$0xf]
      %v843 = vld [vmem:[%s829 + $0x4c] sm:$0xf]
      %v844 = vld [vmem:[%s829 + $0x54] sm:$0xf]
      %v845 = vld [vmem:[%s829 + $0x58] sm:$0xf]
      %v846 = vld [vmem:[%s829 + $0x60] sm:$0xf]
      %v847 = vld [vmem:[%s829 + $0x64] sm:$0xf]
      %v848 = vld [vmem:[%s829 + $0x6c] sm:$0xf]
      %v849 = vld [vmem:[%s829 + $0x70] sm:$0xf]
      %v850 = vld [vmem:[%s829 + $0x78] sm:$0xf]
      %v851 = vld [vmem:[%s829 + $0x7c] sm:$0xf]
      %v852 = vld [vmem:[%s829 + $0x84] sm:$0xf]
      %v853 = vld [vmem:[%s829 + $0x88] sm:$0xf]
      %v854 = vld [vmem:[%s829 + $0x90] sm:$0xf]
      %v855 = vld [vmem:[%s829 + $0x94] sm:$0xf]
      %v856 = vld [vmem:[%s829 + $0x9c] sm:$0xf]
      %v857 = vld [vmem:[%s829 + $0xa0] sm:$0xf]
      %v858 = vld [vmem:[%s829 + $0xa8] sm:$0xf]
      %v859 = vld [vmem:[%s829 + $0xac] sm:$0xf]
      %v860 = vld [vmem:[%s829 + $0xb4] sm:$0xf]
      %v861 = vld [vmem:[%s829 + $0xb8] sm:$0xf]
      %v862 = vld [vmem:[%s796 + $0x8] sm:$0x1]
      %v863 = vld [vmem:[%s796 + $0x14] sm:$0x1]
      %v864 = vld [vmem:[%s796 + $0x20] sm:$0x1]
      %v865 = vld [vmem:[%s796 + $0x2c] sm:$0x1]
      %v866 = vld [vmem:[%s796 + $0x38] sm:$0x1]
      %v867 = vld [vmem:[%s796 + $0x44] sm:$0x1]
      %v868 = vld [vmem:[%s796 + $0x50] sm:$0x1]
      %v869 = vld [vmem:[%s796 + $0x5c] sm:$0x1]
      %v870 = vld [vmem:[%s796 + $0x68] sm:$0x1]
      %v871 = vld [vmem:[%s796 + $0x74] sm:$0x1]
      %v872 = vld [vmem:[%s796 + $0x80] sm:$0x1]
      %v873 = vld [vmem:[%s796 + $0x8c] sm:$0x1]
      %v874 = vld [vmem:[%s796 + $0x98] sm:$0x1]
      %v875 = vld [vmem:[%s796 + $0xa4] sm:$0x1]
      %v876 = vld [vmem:[%s796 + $0xb0] sm:$0x1]
      %v877 = vld [vmem:[%s796 + $0xbc] sm:$0x1]
      %v910 = vunpack.c.l.b16 %v797
      %v911 = vunpack.c.l.b16 %v798
      %v912 = vunpack.c.l.b16 %v799
      %v913 = vunpack.c.l.b16 %v800
      %v914 = vunpack.c.l.b16 %v801
      %v915 = vunpack.c.l.b16 %v802
      %v916 = vunpack.c.l.b16 %v803
      %v917 = vunpack.c.l.b16 %v804
      %v918 = vunpack.c.l.b16 %v805
      %v919 = vunpack.c.l.b16 %v806
      %v920 = vunpack.c.l.b16 %v807
      %v921 = vunpack.c.l.b16 %v808
      %v922 = vunpack.c.l.b16 %v809
      %v923 = vunpack.c.l.b16 %v810
      %v924 = vunpack.c.l.b16 %v811
      %v925 = vunpack.c.l.b16 %v812
      %v926 = vunpack.c.l.b16 %v813
      %v927 = vunpack.c.l.b16 %v814
      %v928 = vunpack.c.l.b16 %v815
      %v929 = vunpack.c.l.b16 %v816
      %v930 = vunpack.c.l.b16 %v817
      %v931 = vunpack.c.l.b16 %v818
      %v932 = vunpack.c.l.b16 %v819
      %v933 = vunpack.c.l.b16 %v820
      %v934 = vunpack.c.l.b16 %v821
      %v935 = vunpack.c.l.b16 %v822
      %v936 = vunpack.c.l.b16 %v823
      %v937 = vunpack.c.l.b16 %v824
      %v938 = vunpack.c.l.b16 %v825
      %v939 = vunpack.c.l.b16 %v826
      %v940 = vunpack.c.l.b16 %v827
      %v941 = vunpack.c.l.b16 %v828
      %v942 = vpack.c.b16 %v911, %v910
      %v943 = vpack.c.b16 %v913, %v912
      %v944 = vpack.c.b16 %v915, %v914
      %v945 = vpack.c.b16 %v917, %v916
      %v946 = vpack.c.b16 %v919, %v918
      %v947 = vpack.c.b16 %v921, %v920
      %v948 = vpack.c.b16 %v923, %v922
      %v949 = vpack.c.b16 %v925, %v924
      %v950 = vpack.c.b16 %v927, %v926
      %v951 = vpack.c.b16 %v929, %v928
      %v952 = vpack.c.b16 %v931, %v930
      %v953 = vpack.c.b16 %v933, %v932
      %v954 = vpack.c.b16 %v935, %v934
      %v955 = vpack.c.b16 %v937, %v936
      %v956 = vpack.c.b16 %v939, %v938
      %v957 = vpack.c.b16 %v941, %v940
      %v990 = vunpack.c.l.b16 %v830
      %v991 = vunpack.c.l.b16 %v831
      %v992 = vunpack.c.l.b16 %v832
      %v993 = vunpack.c.l.b16 %v833
      %v994 = vunpack.c.l.b16 %v834
      %v995 = vunpack.c.l.b16 %v835
      %v996 = vunpack.c.l.b16 %v836
      %v997 = vunpack.c.l.b16 %v837
      %v998 = vunpack.c.l.b16 %v838
      %v999 = vunpack.c.l.b16 %v839
      %v1000 = vunpack.c.l.b16 %v840
      %v1001 = vunpack.c.l.b16 %v841
      %v1002 = vunpack.c.l.b16 %v842
      %v1003 = vunpack.c.l.b16 %v843
      %v1004 = vunpack.c.l.b16 %v844
      %v1005 = vunpack.c.l.b16 %v845
      %v1006 = vunpack.c.l.b16 %v846
      %v1007 = vunpack.c.l.b16 %v847
      %v1008 = vunpack.c.l.b16 %v848
      %v1009 = vunpack.c.l.b16 %v849
      %v1010 = vunpack.c.l.b16 %v850
      %v1011 = vunpack.c.l.b16 %v851
      %v1012 = vunpack.c.l.b16 %v852
      %v1013 = vunpack.c.l.b16 %v853
      %v1014 = vunpack.c.l.b16 %v854
      %v1015 = vunpack.c.l.b16 %v855
      %v1016 = vunpack.c.l.b16 %v856
      %v1017 = vunpack.c.l.b16 %v857
      %v1018 = vunpack.c.l.b16 %v858
      %v1019 = vunpack.c.l.b16 %v859
      %v1020 = vunpack.c.l.b16 %v860
      %v1021 = vunpack.c.l.b16 %v861
      %v1022 = vpack.c.b16 %v991, %v990
      %v1023 = vpack.c.b16 %v993, %v992
      %v1024 = vpack.c.b16 %v995, %v994
      %v1025 = vpack.c.b16 %v997, %v996
      %v1026 = vpack.c.b16 %v999, %v998
      %v1027 = vpack.c.b16 %v1001, %v1000
      %v1028 = vpack.c.b16 %v1003, %v1002
      %v1029 = vpack.c.b16 %v1005, %v1004
      %v1030 = vpack.c.b16 %v1007, %v1006
      %v1031 = vpack.c.b16 %v1009, %v1008
      %v1032 = vpack.c.b16 %v1011, %v1010
      %v1033 = vpack.c.b16 %v1013, %v1012
      %v1034 = vpack.c.b16 %v1015, %v1014
      %v1035 = vpack.c.b16 %v1017, %v1016
      %v1036 = vpack.c.b16 %v1019, %v1018
      %v1037 = vpack.c.b16 %v1021, %v1020
      %1038 = vrot.lane.b32.xlu0 %v1022, 32
      %v1039 = vpop.permute.xlu0 %1038
      %1040 = vrot.lane.b32.xlu0 %v1023, 32
      %v1041 = vpop.permute.xlu0 %1040
      %1042 = vrot.lane.b32.xlu0 %v1024, 32
      %v1043 = vpop.permute.xlu0 %1042
      %1044 = vrot.lane.b32.xlu0 %v1025, 32
      %v1045 = vpop.permute.xlu0 %1044
      %1046 = vrot.lane.b32.xlu0 %v1026, 32
      %v1047 = vpop.permute.xlu0 %1046
      %1048 = vrot.lane.b32.xlu0 %v1027, 32
      %v1049 = vpop.permute.xlu0 %1048
      %1050 = vrot.lane.b32.xlu0 %v1028, 32
      %v1051 = vpop.permute.xlu0 %1050
      %1052 = vrot.lane.b32.xlu0 %v1029, 32
      %v1053 = vpop.permute.xlu0 %1052
      %1054 = vrot.lane.b32.xlu0 %v1030, 32
      %v1055 = vpop.permute.xlu0 %1054
      %1056 = vrot.lane.b32.xlu0 %v1031, 32
      %v1057 = vpop.permute.xlu0 %1056
      %1058 = vrot.lane.b32.xlu0 %v1032, 32
      %v1059 = vpop.permute.xlu0 %1058
      %1060 = vrot.lane.b32.xlu0 %v1033, 32
      %v1061 = vpop.permute.xlu0 %1060
      %1062 = vrot.lane.b32.xlu0 %v1034, 32
      %v1063 = vpop.permute.xlu0 %1062
      %1064 = vrot.lane.b32.xlu0 %v1035, 32
      %v1065 = vpop.permute.xlu0 %1064
      %1066 = vrot.lane.b32.xlu0 %v1036, 32
      %v1067 = vpop.permute.xlu0 %1066
      %1068 = vrot.lane.b32.xlu0 %v1037, 32
      %v1069 = vpop.permute.xlu0 %1068
      %v1086 = vunpack.c.l.b16 %v862
      %v1087 = vunpack.c.l.b16 %v863
      %v1088 = vunpack.c.l.b16 %v864
      %v1089 = vunpack.c.l.b16 %v865
      %v1090 = vunpack.c.l.b16 %v866
      %v1091 = vunpack.c.l.b16 %v867
      %v1092 = vunpack.c.l.b16 %v868
      %v1093 = vunpack.c.l.b16 %v869
      %v1094 = vunpack.c.l.b16 %v870
      %v1095 = vunpack.c.l.b16 %v871
      %v1096 = vunpack.c.l.b16 %v872
      %v1097 = vunpack.c.l.b16 %v873
      %v1098 = vunpack.c.l.b16 %v874
      %v1099 = vunpack.c.l.b16 %v875
      %v1100 = vunpack.c.l.b16 %v876
      %v1101 = vunpack.c.l.b16 %v877
      %v1102 = vpack.c.b16 %v1086, %v1086
      %v1103 = vpack.c.b16 %v1087, %v1087
      %v1104 = vpack.c.b16 %v1088, %v1088
      %v1105 = vpack.c.b16 %v1089, %v1089
      %v1106 = vpack.c.b16 %v1090, %v1090
      %v1107 = vpack.c.b16 %v1091, %v1091
      %v1108 = vpack.c.b16 %v1092, %v1092
      %v1109 = vpack.c.b16 %v1093, %v1093
      %v1110 = vpack.c.b16 %v1094, %v1094
      %v1111 = vpack.c.b16 %v1095, %v1095
      %v1112 = vpack.c.b16 %v1096, %v1096
      %v1113 = vpack.c.b16 %v1097, %v1097
      %v1114 = vpack.c.b16 %v1098, %v1098
      %v1115 = vpack.c.b16 %v1099, %v1099
      %v1116 = vpack.c.b16 %v1100, %v1100
      %v1117 = vpack.c.b16 %v1101, %v1101
      %v1119 = vshrl.u32 %v942, 16
      %v1121 = vshll.u32 %v942, 16
      %v1123 = vrot.slane %v1121, 1
      %v1124 = vor.u32 %v1119, %v1123
      %v1126 = vshll.u32 %v1102, 16
      %v1128 = vrot.slane %v1126, 1
      %v1129 = vsel %vm493, %v1124, %v1128
      %v1131 = vshrl.u32 %v943, 16
      %v1133 = vshll.u32 %v943, 16
      %v1135 = vrot.slane %v1133, 1
      %v1136 = vor.u32 %v1131, %v1135
      %v1138 = vshll.u32 %v1103, 16
      %v1140 = vrot.slane %v1138, 1
      %v1141 = vsel %vm493, %v1136, %v1140
      %v1143 = vshrl.u32 %v944, 16
      %v1145 = vshll.u32 %v944, 16
      %v1147 = vrot.slane %v1145, 1
      %v1148 = vor.u32 %v1143, %v1147
      %v1150 = vshll.u32 %v1104, 16
      %v1152 = vrot.slane %v1150, 1
      %v1153 = vsel %vm493, %v1148, %v1152
      %v1155 = vshrl.u32 %v945, 16
      %v1157 = vshll.u32 %v945, 16
      %v1159 = vrot.slane %v1157, 1
      %v1160 = vor.u32 %v1155, %v1159
      %v1162 = vshll.u32 %v1105, 16
      %v1164 = vrot.slane %v1162, 1
      %v1165 = vsel %vm493, %v1160, %v1164
      %v1167 = vshrl.u32 %v946, 16
      %v1169 = vshll.u32 %v946, 16
      %v1171 = vrot.slane %v1169, 1
      %v1172 = vor.u32 %v1167, %v1171
      %v1174 = vshll.u32 %v1106, 16
      %v1176 = vrot.slane %v1174, 1
      %v1177 = vsel %vm493, %v1172, %v1176
      %v1179 = vshrl.u32 %v947, 16
      %v1181 = vshll.u32 %v947, 16
      %v1183 = vrot.slane %v1181, 1
      %v1184 = vor.u32 %v1179, %v1183
      %v1186 = vshll.u32 %v1107, 16
      %v1188 = vrot.slane %v1186, 1
      %v1189 = vsel %vm493, %v1184, %v1188
      %v1191 = vshrl.u32 %v948, 16
      %v1193 = vshll.u32 %v948, 16
      %v1195 = vrot.slane %v1193, 1
      %v1196 = vor.u32 %v1191, %v1195
      %v1198 = vshll.u32 %v1108, 16
      %v1200 = vrot.slane %v1198, 1
      %v1201 = vsel %vm493, %v1196, %v1200
      %v1203 = vshrl.u32 %v949, 16
      %v1205 = vshll.u32 %v949, 16
      %v1207 = vrot.slane %v1205, 1
      %v1208 = vor.u32 %v1203, %v1207
      %v1210 = vshll.u32 %v1109, 16
      %v1212 = vrot.slane %v1210, 1
      %v1213 = vsel %vm493, %v1208, %v1212
      %v1215 = vshrl.u32 %v950, 16
      %v1217 = vshll.u32 %v950, 16
      %v1219 = vrot.slane %v1217, 1
      %v1220 = vor.u32 %v1215, %v1219
      %v1222 = vshll.u32 %v1110, 16
      %v1224 = vrot.slane %v1222, 1
      %v1225 = vsel %vm493, %v1220, %v1224
      %v1227 = vshrl.u32 %v951, 16
      %v1229 = vshll.u32 %v951, 16
      %v1231 = vrot.slane %v1229, 1
      %v1232 = vor.u32 %v1227, %v1231
      %v1234 = vshll.u32 %v1111, 16
      %v1236 = vrot.slane %v1234, 1
      %v1237 = vsel %vm493, %v1232, %v1236
      %v1239 = vshrl.u32 %v952, 16
      %v1241 = vshll.u32 %v952, 16
      %v1243 = vrot.slane %v1241, 1
      %v1244 = vor.u32 %v1239, %v1243
      %v1246 = vshll.u32 %v1112, 16
      %v1248 = vrot.slane %v1246, 1
      %v1249 = vsel %vm493, %v1244, %v1248
      %v1251 = vshrl.u32 %v953, 16
      %v1253 = vshll.u32 %v953, 16
      %v1255 = vrot.slane %v1253, 1
      %v1256 = vor.u32 %v1251, %v1255
      %v1258 = vshll.u32 %v1113, 16
      %v1260 = vrot.slane %v1258, 1
      %v1261 = vsel %vm493, %v1256, %v1260
      %v1263 = vshrl.u32 %v954, 16
      %v1265 = vshll.u32 %v954, 16
      %v1267 = vrot.slane %v1265, 1
      %v1268 = vor.u32 %v1263, %v1267
      %v1270 = vshll.u32 %v1114, 16
      %v1272 = vrot.slane %v1270, 1
      %v1273 = vsel %vm493, %v1268, %v1272
      %v1275 = vshrl.u32 %v955, 16
      %v1277 = vshll.u32 %v955, 16
      %v1279 = vrot.slane %v1277, 1
      %v1280 = vor.u32 %v1275, %v1279
      %v1282 = vshll.u32 %v1115, 16
      %v1284 = vrot.slane %v1282, 1
      %v1285 = vsel %vm493, %v1280, %v1284
      %v1287 = vshrl.u32 %v956, 16
      %v1289 = vshll.u32 %v956, 16
      %v1291 = vrot.slane %v1289, 1
      %v1292 = vor.u32 %v1287, %v1291
      %v1294 = vshll.u32 %v1116, 16
      %v1296 = vrot.slane %v1294, 1
      %v1297 = vsel %vm493, %v1292, %v1296
      %v1299 = vshrl.u32 %v957, 16
      %v1301 = vshll.u32 %v957, 16
      %v1303 = vrot.slane %v1301, 1
      %v1304 = vor.u32 %v1299, %v1303
      %v1306 = vshll.u32 %v1117, 16
      %v1308 = vrot.slane %v1306, 1
      %v1309 = vsel %vm493, %v1304, %v1308
      %1310 = vrot.lane.b32.xlu0 %v1129, 64
      %v1311 = vpop.permute.xlu0 %1310
      %1312 = vrot.lane.b32.xlu0 %v1141, 64
      %v1313 = vpop.permute.xlu0 %1312
      %1314 = vrot.lane.b32.xlu0 %v1153, 64
      %v1315 = vpop.permute.xlu0 %1314
      %1316 = vrot.lane.b32.xlu0 %v1165, 64
      %v1317 = vpop.permute.xlu0 %1316
      %1318 = vrot.lane.b32.xlu0 %v1177, 64
      %v1319 = vpop.permute.xlu0 %1318
      %1320 = vrot.lane.b32.xlu0 %v1189, 64
      %v1321 = vpop.permute.xlu0 %1320
      %1322 = vrot.lane.b32.xlu0 %v1201, 64
      %v1323 = vpop.permute.xlu0 %1322
      %1324 = vrot.lane.b32.xlu0 %v1213, 64
      %v1325 = vpop.permute.xlu0 %1324
      %1326 = vrot.lane.b32.xlu0 %v1225, 64
      %v1327 = vpop.permute.xlu0 %1326
      %1328 = vrot.lane.b32.xlu0 %v1237, 64
      %v1329 = vpop.permute.xlu0 %1328
      %1330 = vrot.lane.b32.xlu0 %v1249, 64
      %v1331 = vpop.permute.xlu0 %1330
      %1332 = vrot.lane.b32.xlu0 %v1261, 64
      %v1333 = vpop.permute.xlu0 %1332
      %1334 = vrot.lane.b32.xlu0 %v1273, 64
      %v1335 = vpop.permute.xlu0 %1334
      %1336 = vrot.lane.b32.xlu0 %v1285, 64
      %v1337 = vpop.permute.xlu0 %1336
      %1338 = vrot.lane.b32.xlu0 %v1297, 64
      %v1339 = vpop.permute.xlu0 %1338
      %1340 = vrot.lane.b32.xlu0 %v1309, 64
      %v1341 = vpop.permute.xlu0 %1340
      %v1343 = vsel %vm718, %v942, %v1039
      %v1345 = vsel %vm718, %v943, %v1041
      %v1347 = vsel %vm718, %v944, %v1043
      %v1349 = vsel %vm718, %v945, %v1045
      %v1351 = vsel %vm718, %v946, %v1047
      %v1353 = vsel %vm718, %v947, %v1049
      %v1355 = vsel %vm718, %v948, %v1051
      %v1357 = vsel %vm718, %v949, %v1053
      %v1359 = vsel %vm718, %v950, %v1055
      %v1361 = vsel %vm718, %v951, %v1057
      %v1363 = vsel %vm718, %v952, %v1059
      %v1365 = vsel %vm718, %v953, %v1061
      %v1367 = vsel %vm718, %v954, %v1063
      %v1369 = vsel %vm718, %v955, %v1065
      %v1371 = vsel %vm718, %v956, %v1067
      %v1373 = vsel %vm718, %v957, %v1069
      %v1375 = vsel %vm751, %v1343, %v1311
      %v1377 = vsel %vm751, %v1345, %v1313
      %v1379 = vsel %vm751, %v1347, %v1315
      %v1381 = vsel %vm751, %v1349, %v1317
      %v1383 = vsel %vm751, %v1351, %v1319
      %v1385 = vsel %vm751, %v1353, %v1321
      %v1387 = vsel %vm751, %v1355, %v1323
      %v1389 = vsel %vm751, %v1357, %v1325
      %v1391 = vsel %vm751, %v1359, %v1327
      %v1393 = vsel %vm751, %v1361, %v1329
      %v1395 = vsel %vm751, %v1363, %v1331
      %v1397 = vsel %vm751, %v1365, %v1333
      %v1399 = vsel %vm751, %v1367, %v1335
      %v1401 = vsel %vm751, %v1369, %v1337
      %v1403 = vsel %vm751, %v1371, %v1339
      %v1405 = vsel %vm751, %v1373, %v1341
      %s1406 = scalar_lea.vmem %s1, 48
      %v1407 = vld [vmem:[%s1406] sm:$0xf]
      %v1408 = vld [vmem:[%s1406 + $0x4] sm:$0xf]
      %v1409 = vld [vmem:[%s1406 + $0x8] sm:$0xf]
      %v1410 = vld [vmem:[%s1406 + $0xc] sm:$0xf]
      %v1411 = vld [vmem:[%s1406 + $0x10] sm:$0xf]
      %v1412 = vld [vmem:[%s1406 + $0x14] sm:$0xf]
      %v1413 = vld [vmem:[%s1406 + $0x18] sm:$0xf]
      %v1414 = vld [vmem:[%s1406 + $0x1c] sm:$0xf]
      %v1415 = vld [vmem:[%s1406 + $0x20] sm:$0xf]
      %v1416 = vld [vmem:[%s1406 + $0x24] sm:$0xf]
      %v1417 = vld [vmem:[%s1406 + $0x28] sm:$0xf]
      %v1418 = vld [vmem:[%s1406 + $0x2c] sm:$0xf]
      %v1431 = vunpack.c.l.b16 %v1407
      %v1432 = vunpack.c.l.b16 %v1408
      %v1433 = vunpack.c.l.b16 %v1409
      %v1434 = vunpack.c.l.b16 %v1410
      %v1435 = vunpack.c.l.b16 %v1411
      %v1436 = vunpack.c.l.b16 %v1412
      %v1437 = vunpack.c.l.b16 %v1413
      %v1438 = vunpack.c.l.b16 %v1414
      %v1439 = vunpack.c.l.b16 %v1415
      %v1440 = vunpack.c.l.b16 %v1416
      %v1441 = vunpack.c.l.b16 %v1417
      %v1442 = vunpack.c.l.b16 %v1418
      %v1443 = vpack.c.b16 %v1432, %v1431
      %v1444 = vpack.c.b16 %v1434, %v1433
      %v1445 = vpack.c.b16 %v1436, %v1435
      %v1446 = vpack.c.b16 %v1438, %v1437
      %v1447 = vpack.c.b16 %v1440, %v1439
      %v1448 = vpack.c.b16 %v1442, %v1441
      %vm1455 = vcmask 785408
      %v1456 = vsel %vm1455, %v1375, 0
      %v1458 = vsel %vm1455, %v1377, 0
      %v1460 = vsel %vm1455, %v1379, 0
      %v1462 = vsel %vm1455, %v1381, 0
      %v1464 = vsel %vm1455, %v1383, 0
      %v1466 = vsel %vm1455, %v1385, 0
      %v1468 = vsel %vm1455, %v1387, 0
      %v1470 = vsel %vm1455, %v1389, 0
      %v1472 = vsel %vm1455, %v1391, 0
      %v1474 = vsel %vm1455, %v1393, 0
      %v1476 = vsel %vm1455, %v1395, 0
      %v1478 = vsel %vm1455, %v1397, 0
      %v1480 = vsel %vm1455, %v1399, 0
      %v1482 = vsel %vm1455, %v1401, 0
      %v1484 = vsel %vm1455, %v1403, 0
      %v1486 = vsel %vm1455, %v1405, 0
      %1488 = vmatprep.subr.bf16.mxu0 0
      %1489 = vmatpush1.bf16.msra.mxu0 %v1443
      %1490 = vmatprep.subr.bf16.mxu0 0
      %1491 = vmatpush1.bf16.msra.mxu0 %v1444
      %1492 = vmatprep.subr.bf16.mxu0 0
      %1493 = vmatpush1.bf16.msra.mxu0 %v1445
      %1494 = vmatprep.subr.bf16.mxu0 0
      %1495 = vmatpush1.bf16.msra.mxu0 %v1446
      %1496 = vmatprep.subr.bf16.mxu0 0
      %1497 = vmatpush1.bf16.msra.mxu0 %v1447
      %1498 = vmatprep.subr.bf16.mxu0 0
      %1499 = vmatpush1.bf16.msra.mxu0 %v1448
      %1500 = vmatprep.subr.bf16.mxu0 0
      %1501 = vmatpush1.bf16.msra.mxu0 0
      %1502 = vmatprep.subr.bf16.mxu0 0
      %1503 = vmatpush1.bf16.msra.mxu0 0
      %1504 = vmatprep.subr.bf16.mxu0 0
      %1505 = vmatpush1.bf16.msra.mxu0 0
      %1506 = vmatprep.subr.bf16.mxu0 0
      %1507 = vmatpush1.bf16.msra.mxu0 0
      %1508 = vmatprep.subr.bf16.mxu0 0
      %1509 = vmatpush1.bf16.msra.mxu0 0
      %1510 = vmatprep.subr.bf16.mxu0 0
      %1511 = vmatpush1.bf16.msra.mxu0 0
      %1512 = vmatprep.subr.bf16.mxu0 0
      %1513 = vmatpush1.bf16.msra.mxu0 0
      %1514 = vmatprep.subr.bf16.mxu0 0
      %1515 = vmatpush1.bf16.msra.mxu0 0
      %1516 = vmatprep.subr.bf16.mxu0 0
      %1517 = vmatpush1.bf16.msra.mxu0 0
      %1518 = vmatprep.subr.bf16.mxu0 0
      %1519 = vmatpush1.bf16.msra.mxu0 0
      %1520 = vmatprep.mubr.bf16.mxu0 0
      %1521 = vmatmul.mubr.bf16.gmra.mrb[0].mxu0 %v1456
      %v1522 = vpop.f32.mrb[0].mxu0
      %v1523 = vadd.f32 0.0, %v1522
      %v1524 = vpop.f32.mrb[0].mxu0
      %v1525 = vpop.f32.mrb[0].mxu0
      %v1526 = vadd.f32 0.0, %v1525
      %v1527 = vpop.f32.mrb[0].mxu0
      %1528 = vmatprep.mubr.bf16.mxu0 0
      %1529 = vmatmul.mubr.bf16.gmra.mrb[0].mxu0 %v1458
      %v1530 = vpop.f32.mrb[0].mxu0
      %v1531 = vadd.f32 0.0, %v1530
      %v1532 = vpop.f32.mrb[0].mxu0
      %v1533 = vpop.f32.mrb[0].mxu0
      %v1534 = vadd.f32 0.0, %v1533
      %v1535 = vpop.f32.mrb[0].mxu0
      %1536 = vmatprep.mubr.bf16.mxu0 0
      %1537 = vmatmul.mubr.bf16.gmra.mrb[0].mxu0 %v1460
      %v1538 = vpop.f32.mrb[0].mxu0
      %v1539 = vadd.f32 0.0, %v1538
      %v1540 = vpop.f32.mrb[0].mxu0
      %v1541 = vpop.f32.mrb[0].mxu0
      %v1542 = vadd.f32 0.0, %v1541
      %v1543 = vpop.f32.mrb[0].mxu0
      %1544 = vmatprep.mubr.bf16.mxu0 0
      %1545 = vmatmul.mubr.bf16.gmra.mrb[0].mxu0 %v1462
      %v1546 = vpop.f32.mrb[0].mxu0
      %v1547 = vadd.f32 0.0, %v1546
      %v1548 = vpop.f32.mrb[0].mxu0
      %v1549 = vpop.f32.mrb[0].mxu0
      %v1550 = vadd.f32 0.0, %v1549
      %v1551 = vpop.f32.mrb[0].mxu0
      %1552 = vmatprep.mubr.bf16.mxu0 0
      %1553 = vmatmul.mubr.bf16.gmra.mrb[0].mxu0 %v1464
      %v1554 = vpop.f32.mrb[0].mxu0
      %v1555 = vadd.f32 0.0, %v1554
      %v1556 = vpop.f32.mrb[0].mxu0
      %v1557 = vpop.f32.mrb[0].mxu0
      %v1558 = vadd.f32 0.0, %v1557
      %v1559 = vpop.f32.mrb[0].mxu0
      %1560 = vmatprep.mubr.bf16.mxu0 0
      %1561 = vmatmul.mubr.bf16.gmra.mrb[0].mxu0 %v1466
      %v1562 = vpop.f32.mrb[0].mxu0
      %v1563 = vadd.f32 0.0, %v1562
      %v1564 = vpop.f32.mrb[0].mxu0
      %v1565 = vpop.f32.mrb[0].mxu0
      %v1566 = vadd.f32 0.0, %v1565
      %v1567 = vpop.f32.mrb[0].mxu0
      %1568 = vmatprep.mubr.bf16.mxu0 0
      %1569 = vmatmul.mubr.bf16.gmra.mrb[0].mxu0 %v1468
      %v1570 = vpop.f32.mrb[0].mxu0
      %v1571 = vadd.f32 0.0, %v1570
      %v1572 = vpop.f32.mrb[0].mxu0
      %v1573 = vpop.f32.mrb[0].mxu0
      %v1574 = vadd.f32 0.0, %v1573
      %v1575 = vpop.f32.mrb[0].mxu0
      %1576 = vmatprep.mubr.bf16.mxu0 0
      %1577 = vmatmul.mubr.bf16.gmra.mrb[0].mxu0 %v1470
      %v1578 = vpop.f32.mrb[0].mxu0
      %v1579 = vadd.f32 0.0, %v1578
      %v1580 = vpop.f32.mrb[0].mxu0
      %v1581 = vpop.f32.mrb[0].mxu0
      %v1582 = vadd.f32 0.0, %v1581
      %v1583 = vpop.f32.mrb[0].mxu0
      %1584 = vmatprep.mubr.bf16.mxu0 0
      %1585 = vmatmul.mubr.bf16.gmra.mrb[0].mxu0 %v1472
      %v1586 = vpop.f32.mrb[0].mxu0
      %v1587 = vadd.f32 0.0, %v1586
      %v1588 = vpop.f32.mrb[0].mxu0
      %v1589 = vpop.f32.mrb[0].mxu0
      %v1590 = vadd.f32 0.0, %v1589
      %v1591 = vpop.f32.mrb[0].mxu0
      %1592 = vmatprep.mubr.bf16.mxu0 0
      %1593 = vmatmul.mubr.bf16.gmra.mrb[0].mxu0 %v1474
      %v1594 = vpop.f32.mrb[0].mxu0
      %v1595 = vadd.f32 0.0, %v1594
      %v1596 = vpop.f32.mrb[0].mxu0
      %v1597 = vpop.f32.mrb[0].mxu0
      %v1598 = vadd.f32 0.0, %v1597
      %v1599 = vpop.f32.mrb[0].mxu0
      %1600 = vmatprep.mubr.bf16.mxu0 0
      %1601 = vmatmul.mubr.bf16.gmra.mrb[0].mxu0 %v1476
      %v1602 = vpop.f32.mrb[0].mxu0
      %v1603 = vadd.f32 0.0, %v1602
      %v1604 = vpop.f32.mrb[0].mxu0
      %v1605 = vpop.f32.mrb[0].mxu0
      %v1606 = vadd.f32 0.0, %v1605
      %v1607 = vpop.f32.mrb[0].mxu0
      %1608 = vmatprep.mubr.bf16.mxu0 0
      %1609 = vmatmul.mubr.bf16.gmra.mrb[0].mxu0 %v1478
      %v1610 = vpop.f32.mrb[0].mxu0
      %v1611 = vadd.f32 0.0, %v1610
      %v1612 = vpop.f32.mrb[0].mxu0
      %v1613 = vpop.f32.mrb[0].mxu0
      %v1614 = vadd.f32 0.0, %v1613
      %v1615 = vpop.f32.mrb[0].mxu0
      %1616 = vmatprep.mubr.bf16.mxu0 0
      %1617 = vmatmul.mubr.bf16.gmra.mrb[0].mxu0 %v1480
      %v1618 = vpop.f32.mrb[0].mxu0
      %v1619 = vadd.f32 0.0, %v1618
      %v1620 = vpop.f32.mrb[0].mxu0
      %v1621 = vpop.f32.mrb[0].mxu0
      %v1622 = vadd.f32 0.0, %v1621
      %v1623 = vpop.f32.mrb[0].mxu0
      %1624 = vmatprep.mubr.bf16.mxu0 0
      %1625 = vmatmul.mubr.bf16.gmra.mrb[0].mxu0 %v1482
      %v1626 = vpop.f32.mrb[0].mxu0
      %v1627 = vadd.f32 0.0, %v1626
      %v1628 = vpop.f32.mrb[0].mxu0
      %v1629 = vpop.f32.mrb[0].mxu0
      %v1630 = vadd.f32 0.0, %v1629
      %v1631 = vpop.f32.mrb[0].mxu0
      %1632 = vmatprep.mubr.bf16.mxu0 0
      %1633 = vmatmul.mubr.bf16.gmra.mrb[0].mxu0 %v1484
      %v1634 = vpop.f32.mrb[0].mxu0
      %v1635 = vadd.f32 0.0, %v1634
      %v1636 = vpop.f32.mrb[0].mxu0
      %v1637 = vpop.f32.mrb[0].mxu0
      %v1638 = vadd.f32 0.0, %v1637
      %v1639 = vpop.f32.mrb[0].mxu0
      %1640 = vmatprep.mubr.bf16.mxu0 0
      %1641 = vmatmul.mubr.bf16.gmra.mrb[0].mxu0 %v1486
      %v1642 = vpop.f32.mrb[0].mxu0
      %v1643 = vadd.f32 0.0, %v1642
      %v1644 = vpop.f32.mrb[0].mxu0
      %v1645 = vpop.f32.mrb[0].mxu0
      %v1646 = vadd.f32 0.0, %v1645
      %v1647 = vpop.f32.mrb[0].mxu0
      %1648 = vdwg.mxu0
      %v1661 = vunpack.c.l.b16 %v784
      %v1662 = vunpack.c.l.b16 %v785
      %v1663 = vunpack.c.l.b16 %v786
      %v1664 = vunpack.c.l.b16 %v787
      %v1665 = vunpack.c.l.b16 %v788
      %v1666 = vunpack.c.l.b16 %v789
      %v1667 = vunpack.c.l.b16 %v790
      %v1668 = vunpack.c.l.b16 %v791
      %v1669 = vunpack.c.l.b16 %v792
      %v1670 = vunpack.c.l.b16 %v793
      %v1671 = vunpack.c.l.b16 %v794
      %v1672 = vunpack.c.l.b16 %v795
      %v1673 = vpack.c.b16 %v1662, %v1661
      %v1674 = vpack.c.b16 %v1664, %v1663
      %v1675 = vpack.c.b16 %v1666, %v1665
      %v1676 = vpack.c.b16 %v1668, %v1667
      %v1677 = vpack.c.b16 %v1670, %v1669
      %v1678 = vpack.c.b16 %v1672, %v1671
      %v1685 = vsel %vm1455, %v753, 0
      %v1687 = vsel %vm1455, %v755, 0
      %v1689 = vsel %vm1455, %v757, 0
      %v1691 = vsel %vm1455, %v759, 0
      %v1693 = vsel %vm1455, %v761, 0
      %v1695 = vsel %vm1455, %v763, 0
      %v1697 = vsel %vm1455, %v765, 0
      %v1699 = vsel %vm1455, %v767, 0
      %v1701 = vsel %vm1455, %v769, 0
      %v1703 = vsel %vm1455, %v771, 0
      %v1705 = vsel %vm1455, %v773, 0
      %v1707 = vsel %vm1455, %v775, 0
      %v1709 = vsel %vm1455, %v777, 0
      %v1711 = vsel %vm1455, %v779, 0
      %v1713 = vsel %vm1455, %v781, 0
      %v1715 = vsel %vm1455, %v783, 0
      %1717 = vmatprep.subr.bf16.mxu0 0
      %1718 = vmatpush1.bf16.msra.mxu0 %v1673
      %1719 = vmatprep.subr.bf16.mxu0 0
      %1720 = vmatpush1.bf16.msra.mxu0 %v1674
      %1721 = vmatprep.subr.bf16.mxu0 0
      %1722 = vmatpush1.bf16.msra.mxu0 %v1675
      %1723 = vmatprep.subr.bf16.mxu0 0
      %1724 = vmatpush1.bf16.msra.mxu0 %v1676
      %1725 = vmatprep.subr.bf16.mxu0 0
      %1726 = vmatpush1.bf16.msra.mxu0 %v1677
      %1727 = vmatprep.subr.bf16.mxu0 0
      %1728 = vmatpush1.bf16.msra.mxu0 %v1678
      %1729 = vmatprep.subr.bf16.mxu0 0
      %1730 = vmatpush1.bf16.msra.mxu0 0
      %1731 = vmatprep.subr.bf16.mxu0 0
      %1732 = vmatpush1.bf16.msra.mxu0 0
      %1733 = vmatprep.subr.bf16.mxu0 0
      %1734 = vmatpush1.bf16.msra.mxu0 0
      %1735 = vmatprep.subr.bf16.mxu0 0
      %1736 = vmatpush1.bf16.msra.mxu0 0
      %1737 = vmatprep.subr.bf16.mxu0 0
      %1738 = vmatpush1.bf16.msra.mxu0 0
      %1739 = vmatprep.subr.bf16.mxu0 0
      %1740 = vmatpush1.bf16.msra.mxu0 0
      %1741 = vmatprep.subr.bf16.mxu0 0
      %1742 = vmatpush1.bf16.msra.mxu0 0
      %1743 = vmatprep.subr.bf16.mxu0 0
      %1744 = vmatpush1.bf16.msra.mxu0 0
      %1745 = vmatprep.subr.bf16.mxu0 0
      %1746 = vmatpush1.bf16.msra.mxu0 0
      %1747 = vmatprep.subr.bf16.mxu0 0
      %1748 = vmatpush1.bf16.msra.mxu0 0
      %1749 = vmatprep.mubr.bf16.mxu0 0
      %1750 = vmatmul.mubr.bf16.gmra.mrb[0].mxu0 %v1685
      %v1751 = vpop.f32.mrb[0].mxu0
      %v1752 = vadd.f32 %v1523, %v1751
      %v1753 = vpop.f32.mrb[0].mxu0
      %v1754 = vpop.f32.mrb[0].mxu0
      %v1755 = vadd.f32 %v1526, %v1754
      %v1756 = vpop.f32.mrb[0].mxu0
      %1757 = vmatprep.mubr.bf16.mxu0 0
      %1758 = vmatmul.mubr.bf16.gmra.mrb[0].mxu0 %v1687
      %v1759 = vpop.f32.mrb[0].mxu0
      %v1760 = vadd.f32 %v1531, %v1759
      %v1761 = vpop.f32.mrb[0].mxu0
      %v1762 = vpop.f32.mrb[0].mxu0
      %v1763 = vadd.f32 %v1534, %v1762
      %v1764 = vpop.f32.mrb[0].mxu0
      %1765 = vmatprep.mubr.bf16.mxu0 0
      %1766 = vmatmul.mubr.bf16.gmra.mrb[0].mxu0 %v1689
      %v1767 = vpop.f32.mrb[0].mxu0
      %v1768 = vadd.f32 %v1539, %v1767
      %v1769 = vpop.f32.mrb[0].mxu0
      %v1770 = vpop.f32.mrb[0].mxu0
      %v1771 = vadd.f32 %v1542, %v1770
      %v1772 = vpop.f32.mrb[0].mxu0
      %1773 = vmatprep.mubr.bf16.mxu0 0
      %1774 = vmatmul.mubr.bf16.gmra.mrb[0].mxu0 %v1691
      %v1775 = vpop.f32.mrb[0].mxu0
      %v1776 = vadd.f32 %v1547, %v1775
      %v1777 = vpop.f32.mrb[0].mxu0
      %v1778 = vpop.f32.mrb[0].mxu0
      %v1779 = vadd.f32 %v1550, %v1778
      %v1780 = vpop.f32.mrb[0].mxu0
      %1781 = vmatprep.mubr.bf16.mxu0 0
      %1782 = vmatmul.mubr.bf16.gmra.mrb[0].mxu0 %v1693
      %v1783 = vpop.f32.mrb[0].mxu0
      %v1784 = vadd.f32 %v1555, %v1783
      %v1785 = vpop.f32.mrb[0].mxu0
      %v1786 = vpop.f32.mrb[0].mxu0
      %v1787 = vadd.f32 %v1558, %v1786
      %v1788 = vpop.f32.mrb[0].mxu0
      %1789 = vmatprep.mubr.bf16.mxu0 0
      %1790 = vmatmul.mubr.bf16.gmra.mrb[0].mxu0 %v1695
      %v1791 = vpop.f32.mrb[0].mxu0
      %v1792 = vadd.f32 %v1563, %v1791
      %v1793 = vpop.f32.mrb[0].mxu0
      %v1794 = vpop.f32.mrb[0].mxu0
      %v1795 = vadd.f32 %v1566, %v1794
      %v1796 = vpop.f32.mrb[0].mxu0
      %1797 = vmatprep.mubr.bf16.mxu0 0
      %1798 = vmatmul.mubr.bf16.gmra.mrb[0].mxu0 %v1697
      %v1799 = vpop.f32.mrb[0].mxu0
      %v1800 = vadd.f32 %v1571, %v1799
      %v1801 = vpop.f32.mrb[0].mxu0
      %v1802 = vpop.f32.mrb[0].mxu0
      %v1803 = vadd.f32 %v1574, %v1802
      %v1804 = vpop.f32.mrb[0].mxu0
      %1805 = vmatprep.mubr.bf16.mxu0 0
      %1806 = vmatmul.mubr.bf16.gmra.mrb[0].mxu0 %v1699
      %v1807 = vpop.f32.mrb[0].mxu0
      %v1808 = vadd.f32 %v1579, %v1807
      %v1809 = vpop.f32.mrb[0].mxu0
      %v1810 = vpop.f32.mrb[0].mxu0
      %v1811 = vadd.f32 %v1582, %v1810
      %v1812 = vpop.f32.mrb[0].mxu0
      %1813 = vmatprep.mubr.bf16.mxu0 0
      %1814 = vmatmul.mubr.bf16.gmra.mrb[0].mxu0 %v1701
      %v1815 = vpop.f32.mrb[0].mxu0
      %v1816 = vadd.f32 %v1587, %v1815
      %v1817 = vpop.f32.mrb[0].mxu0
      %v1818 = vpop.f32.mrb[0].mxu0
      %v1819 = vadd.f32 %v1590, %v1818
      %v1820 = vpop.f32.mrb[0].mxu0
      %1821 = vmatprep.mubr.bf16.mxu0 0
      %1822 = vmatmul.mubr.bf16.gmra.mrb[0].mxu0 %v1703
      %v1823 = vpop.f32.mrb[0].mxu0
      %v1824 = vadd.f32 %v1595, %v1823
      %v1825 = vpop.f32.mrb[0].mxu0
      %v1826 = vpop.f32.mrb[0].mxu0
      %v1827 = vadd.f32 %v1598, %v1826
      %v1828 = vpop.f32.mrb[0].mxu0
      %1829 = vmatprep.mubr.bf16.mxu0 0
      %1830 = vmatmul.mubr.bf16.gmra.mrb[0].mxu0 %v1705
      %v1831 = vpop.f32.mrb[0].mxu0
      %v1832 = vadd.f32 %v1603, %v1831
      %v1833 = vpop.f32.mrb[0].mxu0
      %v1834 = vpop.f32.mrb[0].mxu0
      %v1835 = vadd.f32 %v1606, %v1834
      %v1836 = vpop.f32.mrb[0].mxu0
      %1837 = vmatprep.mubr.bf16.mxu0 0
      %1838 = vmatmul.mubr.bf16.gmra.mrb[0].mxu0 %v1707
      %v1839 = vpop.f32.mrb[0].mxu0
      %v1840 = vadd.f32 %v1611, %v1839
      %v1841 = vpop.f32.mrb[0].mxu0
      %v1842 = vpop.f32.mrb[0].mxu0
      %v1843 = vadd.f32 %v1614, %v1842
      %v1844 = vpop.f32.mrb[0].mxu0
      %1845 = vmatprep.mubr.bf16.mxu0 0
      %1846 = vmatmul.mubr.bf16.gmra.mrb[0].mxu0 %v1709
      %v1847 = vpop.f32.mrb[0].mxu0
      %v1848 = vadd.f32 %v1619, %v1847
      %v1849 = vpop.f32.mrb[0].mxu0
      %v1850 = vpop.f32.mrb[0].mxu0
      %v1851 = vadd.f32 %v1622, %v1850
      %v1852 = vpop.f32.mrb[0].mxu0
      %1853 = vmatprep.mubr.bf16.mxu0 0
      %1854 = vmatmul.mubr.bf16.gmra.mrb[0].mxu0 %v1711
      %v1855 = vpop.f32.mrb[0].mxu0
      %v1856 = vadd.f32 %v1627, %v1855
      %v1857 = vpop.f32.mrb[0].mxu0
      %v1858 = vpop.f32.mrb[0].mxu0
      %v1859 = vadd.f32 %v1630, %v1858
      %v1860 = vpop.f32.mrb[0].mxu0
      %1861 = vmatprep.mubr.bf16.mxu0 0
      %1862 = vmatmul.mubr.bf16.gmra.mrb[0].mxu0 %v1713
      %v1863 = vpop.f32.mrb[0].mxu0
      %v1864 = vadd.f32 %v1635, %v1863
      %v1865 = vpop.f32.mrb[0].mxu0
      %v1866 = vpop.f32.mrb[0].mxu0
      %v1867 = vadd.f32 %v1638, %v1866
      %v1868 = vpop.f32.mrb[0].mxu0
      %1869 = vmatprep.mubr.bf16.mxu0 0
      %1870 = vmatmul.mubr.bf16.gmra.mrb[0].mxu0 %v1715
      %v1871 = vpop.f32.mrb[0].mxu0
      %v1872 = vadd.f32 %v1643, %v1871
      %v1873 = vpop.f32.mrb[0].mxu0
      %v1874 = vpop.f32.mrb[0].mxu0
      %v1875 = vadd.f32 %v1646, %v1874
      %v1876 = vpop.f32.mrb[0].mxu0
      %1877 = vdwg.mxu0
      %s1878 = scalar_lea.vmem %s165, 12
      %v1879 = vld [vmem:[%s1878] sm:$0xf]
      %v1880 = vld [vmem:[%s1878 + $0x4] sm:$0xf]
      %v1881 = vld [vmem:[%s1878 + $0xc] sm:$0xf]
      %v1882 = vld [vmem:[%s1878 + $0x10] sm:$0xf]
      %v1883 = vld [vmem:[%s1878 + $0x18] sm:$0xf]
      %v1884 = vld [vmem:[%s1878 + $0x1c] sm:$0xf]
      %v1885 = vld [vmem:[%s1878 + $0x24] sm:$0xf]
      %v1886 = vld [vmem:[%s1878 + $0x28] sm:$0xf]
      %v1887 = vld [vmem:[%s1878 + $0x30] sm:$0xf]
      %v1888 = vld [vmem:[%s1878 + $0x34] sm:$0xf]
      %v1889 = vld [vmem:[%s1878 + $0x3c] sm:$0xf]
      %v1890 = vld [vmem:[%s1878 + $0x40] sm:$0xf]
      %v1891 = vld [vmem:[%s1878 + $0x48] sm:$0xf]
      %v1892 = vld [vmem:[%s1878 + $0x4c] sm:$0xf]
      %v1893 = vld [vmem:[%s1878 + $0x54] sm:$0xf]
      %v1894 = vld [vmem:[%s1878 + $0x58] sm:$0xf]
      %v1895 = vld [vmem:[%s1878 + $0x60] sm:$0xf]
      %v1896 = vld [vmem:[%s1878 + $0x64] sm:$0xf]
      %v1897 = vld [vmem:[%s1878 + $0x6c] sm:$0xf]
      %v1898 = vld [vmem:[%s1878 + $0x70] sm:$0xf]
      %v1899 = vld [vmem:[%s1878 + $0x78] sm:$0xf]
      %v1900 = vld [vmem:[%s1878 + $0x7c] sm:$0xf]
      %v1901 = vld [vmem:[%s1878 + $0x84] sm:$0xf]
      %v1902 = vld [vmem:[%s1878 + $0x88] sm:$0xf]
      %v1903 = vld [vmem:[%s1878 + $0x90] sm:$0xf]
      %v1904 = vld [vmem:[%s1878 + $0x94] sm:$0xf]
      %v1905 = vld [vmem:[%s1878 + $0x9c] sm:$0xf]
      %v1906 = vld [vmem:[%s1878 + $0xa0] sm:$0xf]
      %v1907 = vld [vmem:[%s1878 + $0xa8] sm:$0xf]
      %v1908 = vld [vmem:[%s1878 + $0xac] sm:$0xf]
      %v1909 = vld [vmem:[%s1878 + $0xb4] sm:$0xf]
      %v1910 = vld [vmem:[%s1878 + $0xb8] sm:$0xf]
      %s1911 = scalar_lea.vmem %s165, 216
      %v1912 = vld [vmem:[%s1911] sm:$0xf]
      %v1913 = vld [vmem:[%s1911 + $0x4] sm:$0xf]
      %v1914 = vld [vmem:[%s1911 + $0xc] sm:$0xf]
      %v1915 = vld [vmem:[%s1911 + $0x10] sm:$0xf]
      %v1916 = vld [vmem:[%s1911 + $0x18] sm:$0xf]
      %v1917 = vld [vmem:[%s1911 + $0x1c] sm:$0xf]
      %v1918 = vld [vmem:[%s1911 + $0x24] sm:$0xf]
      %v1919 = vld [vmem:[%s1911 + $0x28] sm:$0xf]
      %v1920 = vld [vmem:[%s1911 + $0x30] sm:$0xf]
      %v1921 = vld [vmem:[%s1911 + $0x34] sm:$0xf]
      %v1922 = vld [vmem:[%s1911 + $0x3c] sm:$0xf]
      %v1923 = vld [vmem:[%s1911 + $0x40] sm:$0xf]
      %v1924 = vld [vmem:[%s1911 + $0x48] sm:$0xf]
      %v1925 = vld [vmem:[%s1911 + $0x4c] sm:$0xf]
      %v1926 = vld [vmem:[%s1911 + $0x54] sm:$0xf]
      %v1927 = vld [vmem:[%s1911 + $0x58] sm:$0xf]
      %v1928 = vld [vmem:[%s1911 + $0x60] sm:$0xf]
      %v1929 = vld [vmem:[%s1911 + $0x64] sm:$0xf]
      %v1930 = vld [vmem:[%s1911 + $0x6c] sm:$0xf]
      %v1931 = vld [vmem:[%s1911 + $0x70] sm:$0xf]
      %v1932 = vld [vmem:[%s1911 + $0x78] sm:$0xf]
      %v1933 = vld [vmem:[%s1911 + $0x7c] sm:$0xf]
      %v1934 = vld [vmem:[%s1911 + $0x84] sm:$0xf]
      %v1935 = vld [vmem:[%s1911 + $0x88] sm:$0xf]
      %v1936 = vld [vmem:[%s1911 + $0x90] sm:$0xf]
      %v1937 = vld [vmem:[%s1911 + $0x94] sm:$0xf]
      %v1938 = vld [vmem:[%s1911 + $0x9c] sm:$0xf]
      %v1939 = vld [vmem:[%s1911 + $0xa0] sm:$0xf]
      %v1940 = vld [vmem:[%s1911 + $0xa8] sm:$0xf]
      %v1941 = vld [vmem:[%s1911 + $0xac] sm:$0xf]
      %v1942 = vld [vmem:[%s1911 + $0xb4] sm:$0xf]
      %v1943 = vld [vmem:[%s1911 + $0xb8] sm:$0xf]
      %v1944 = vld [vmem:[%s1878 + $0x8] sm:$0x1]
      %v1945 = vld [vmem:[%s1878 + $0x14] sm:$0x1]
      %v1946 = vld [vmem:[%s1878 + $0x20] sm:$0x1]
      %v1947 = vld [vmem:[%s1878 + $0x2c] sm:$0x1]
      %v1948 = vld [vmem:[%s1878 + $0x38] sm:$0x1]
      %v1949 = vld [vmem:[%s1878 + $0x44] sm:$0x1]
      %v1950 = vld [vmem:[%s1878 + $0x50] sm:$0x1]
      %v1951 = vld [vmem:[%s1878 + $0x5c] sm:$0x1]
      %v1952 = vld [vmem:[%s1878 + $0x68] sm:$0x1]
      %v1953 = vld [vmem:[%s1878 + $0x74] sm:$0x1]
      %v1954 = vld [vmem:[%s1878 + $0x80] sm:$0x1]
      %v1955 = vld [vmem:[%s1878 + $0x8c] sm:$0x1]
      %v1956 = vld [vmem:[%s1878 + $0x98] sm:$0x1]
      %v1957 = vld [vmem:[%s1878 + $0xa4] sm:$0x1]
      %v1958 = vld [vmem:[%s1878 + $0xb0] sm:$0x1]
      %v1959 = vld [vmem:[%s1878 + $0xbc] sm:$0x1]
      %v1992 = vunpack.c.l.b16 %v1879
      %v1993 = vunpack.c.l.b16 %v1880
      %v1994 = vunpack.c.l.b16 %v1881
      %v1995 = vunpack.c.l.b16 %v1882
      %v1996 = vunpack.c.l.b16 %v1883
      %v1997 = vunpack.c.l.b16 %v1884
      %v1998 = vunpack.c.l.b16 %v1885
      %v1999 = vunpack.c.l.b16 %v1886
      %v2000 = vunpack.c.l.b16 %v1887
      %v2001 = vunpack.c.l.b16 %v1888
      %v2002 = vunpack.c.l.b16 %v1889
      %v2003 = vunpack.c.l.b16 %v1890
      %v2004 = vunpack.c.l.b16 %v1891
      %v2005 = vunpack.c.l.b16 %v1892
      %v2006 = vunpack.c.l.b16 %v1893
      %v2007 = vunpack.c.l.b16 %v1894
      %v2008 = vunpack.c.l.b16 %v1895
      %v2009 = vunpack.c.l.b16 %v1896
      %v2010 = vunpack.c.l.b16 %v1897
      %v2011 = vunpack.c.l.b16 %v1898
      %v2012 = vunpack.c.l.b16 %v1899
      %v2013 = vunpack.c.l.b16 %v1900
      %v2014 = vunpack.c.l.b16 %v1901
      %v2015 = vunpack.c.l.b16 %v1902
      %v2016 = vunpack.c.l.b16 %v1903
      %v2017 = vunpack.c.l.b16 %v1904
      %v2018 = vunpack.c.l.b16 %v1905
      %v2019 = vunpack.c.l.b16 %v1906
      %v2020 = vunpack.c.l.b16 %v1907
      %v2021 = vunpack.c.l.b16 %v1908
      %v2022 = vunpack.c.l.b16 %v1909
      %v2023 = vunpack.c.l.b16 %v1910
      %v2024 = vpack.c.b16 %v1993, %v1992
      %v2025 = vpack.c.b16 %v1995, %v1994
      %v2026 = vpack.c.b16 %v1997, %v1996
      %v2027 = vpack.c.b16 %v1999, %v1998
      %v2028 = vpack.c.b16 %v2001, %v2000
      %v2029 = vpack.c.b16 %v2003, %v2002
      %v2030 = vpack.c.b16 %v2005, %v2004
      %v2031 = vpack.c.b16 %v2007, %v2006
      %v2032 = vpack.c.b16 %v2009, %v2008
      %v2033 = vpack.c.b16 %v2011, %v2010
      %v2034 = vpack.c.b16 %v2013, %v2012
      %v2035 = vpack.c.b16 %v2015, %v2014
      %v2036 = vpack.c.b16 %v2017, %v2016
      %v2037 = vpack.c.b16 %v2019, %v2018
      %v2038 = vpack.c.b16 %v2021, %v2020
      %v2039 = vpack.c.b16 %v2023, %v2022
      %v2072 = vunpack.c.l.b16 %v1912
      %v2073 = vunpack.c.l.b16 %v1913
      %v2074 = vunpack.c.l.b16 %v1914
      %v2075 = vunpack.c.l.b16 %v1915
      %v2076 = vunpack.c.l.b16 %v1916
      %v2077 = vunpack.c.l.b16 %v1917
      %v2078 = vunpack.c.l.b16 %v1918
      %v2079 = vunpack.c.l.b16 %v1919
      %v2080 = vunpack.c.l.b16 %v1920
      %v2081 = vunpack.c.l.b16 %v1921
      %v2082 = vunpack.c.l.b16 %v1922
      %v2083 = vunpack.c.l.b16 %v1923
      %v2084 = vunpack.c.l.b16 %v1924
      %v2085 = vunpack.c.l.b16 %v1925
      %v2086 = vunpack.c.l.b16 %v1926
      %v2087 = vunpack.c.l.b16 %v1927
      %v2088 = vunpack.c.l.b16 %v1928
      %v2089 = vunpack.c.l.b16 %v1929
      %v2090 = vunpack.c.l.b16 %v1930
      %v2091 = vunpack.c.l.b16 %v1931
      %v2092 = vunpack.c.l.b16 %v1932
      %v2093 = vunpack.c.l.b16 %v1933
      %v2094 = vunpack.c.l.b16 %v1934
      %v2095 = vunpack.c.l.b16 %v1935
      %v2096 = vunpack.c.l.b16 %v1936
      %v2097 = vunpack.c.l.b16 %v1937
      %v2098 = vunpack.c.l.b16 %v1938
      %v2099 = vunpack.c.l.b16 %v1939
      %v2100 = vunpack.c.l.b16 %v1940
      %v2101 = vunpack.c.l.b16 %v1941
      %v2102 = vunpack.c.l.b16 %v1942
      %v2103 = vunpack.c.l.b16 %v1943
      %v2104 = vpack.c.b16 %v2073, %v2072
      %v2105 = vpack.c.b16 %v2075, %v2074
      %v2106 = vpack.c.b16 %v2077, %v2076
      %v2107 = vpack.c.b16 %v2079, %v2078
      %v2108 = vpack.c.b16 %v2081, %v2080
      %v2109 = vpack.c.b16 %v2083, %v2082
      %v2110 = vpack.c.b16 %v2085, %v2084
      %v2111 = vpack.c.b16 %v2087, %v2086
      %v2112 = vpack.c.b16 %v2089, %v2088
      %v2113 = vpack.c.b16 %v2091, %v2090
      %v2114 = vpack.c.b16 %v2093, %v2092
      %v2115 = vpack.c.b16 %v2095, %v2094
      %v2116 = vpack.c.b16 %v2097, %v2096
      %v2117 = vpack.c.b16 %v2099, %v2098
      %v2118 = vpack.c.b16 %v2101, %v2100
      %v2119 = vpack.c.b16 %v2103, %v2102
      %2120 = vrot.lane.b32.xlu0 %v2104, 32
      %v2121 = vpop.permute.xlu0 %2120
      %2122 = vrot.lane.b32.xlu0 %v2105, 32
      %v2123 = vpop.permute.xlu0 %2122
      %2124 = vrot.lane.b32.xlu0 %v2106, 32
      %v2125 = vpop.permute.xlu0 %2124
      %2126 = vrot.lane.b32.xlu0 %v2107, 32
      %v2127 = vpop.permute.xlu0 %2126
      %2128 = vrot.lane.b32.xlu0 %v2108, 32
      %v2129 = vpop.permute.xlu0 %2128
      %2130 = vrot.lane.b32.xlu0 %v2109, 32
      %v2131 = vpop.permute.xlu0 %2130
      %2132 = vrot.lane.b32.xlu0 %v2110, 32
      %v2133 = vpop.permute.xlu0 %2132
      %2134 = vrot.lane.b32.xlu0 %v2111, 32
      %v2135 = vpop.permute.xlu0 %2134
      %2136 = vrot.lane.b32.xlu0 %v2112, 32
      %v2137 = vpop.permute.xlu0 %2136
      %2138 = vrot.lane.b32.xlu0 %v2113, 32
      %v2139 = vpop.permute.xlu0 %2138
      %2140 = vrot.lane.b32.xlu0 %v2114, 32
      %v2141 = vpop.permute.xlu0 %2140
      %2142 = vrot.lane.b32.xlu0 %v2115, 32
      %v2143 = vpop.permute.xlu0 %2142
      %2144 = vrot.lane.b32.xlu0 %v2116, 32
      %v2145 = vpop.permute.xlu0 %2144
      %2146 = vrot.lane.b32.xlu0 %v2117, 32
      %v2147 = vpop.permute.xlu0 %2146
      %2148 = vrot.lane.b32.xlu0 %v2118, 32
      %v2149 = vpop.permute.xlu0 %2148
      %2150 = vrot.lane.b32.xlu0 %v2119, 32
      %v2151 = vpop.permute.xlu0 %2150
      %v2168 = vunpack.c.l.b16 %v1944
      %v2169 = vunpack.c.l.b16 %v1945
      %v2170 = vunpack.c.l.b16 %v1946
      %v2171 = vunpack.c.l.b16 %v1947
      %v2172 = vunpack.c.l.b16 %v1948
      %v2173 = vunpack.c.l.b16 %v1949
      %v2174 = vunpack.c.l.b16 %v1950
      %v2175 = vunpack.c.l.b16 %v1951
      %v2176 = vunpack.c.l.b16 %v1952
      %v2177 = vunpack.c.l.b16 %v1953
      %v2178 = vunpack.c.l.b16 %v1954
      %v2179 = vunpack.c.l.b16 %v1955
      %v2180 = vunpack.c.l.b16 %v1956
      %v2181 = vunpack.c.l.b16 %v1957
      %v2182 = vunpack.c.l.b16 %v1958
      %v2183 = vunpack.c.l.b16 %v1959
      %v2184 = vpack.c.b16 %v2168, %v2168
      %v2185 = vpack.c.b16 %v2169, %v2169
      %v2186 = vpack.c.b16 %v2170, %v2170
      %v2187 = vpack.c.b16 %v2171, %v2171
      %v2188 = vpack.c.b16 %v2172, %v2172
      %v2189 = vpack.c.b16 %v2173, %v2173
      %v2190 = vpack.c.b16 %v2174, %v2174
      %v2191 = vpack.c.b16 %v2175, %v2175
      %v2192 = vpack.c.b16 %v2176, %v2176
      %v2193 = vpack.c.b16 %v2177, %v2177
      %v2194 = vpack.c.b16 %v2178, %v2178
      %v2195 = vpack.c.b16 %v2179, %v2179
      %v2196 = vpack.c.b16 %v2180, %v2180
      %v2197 = vpack.c.b16 %v2181, %v2181
      %v2198 = vpack.c.b16 %v2182, %v2182
      %v2199 = vpack.c.b16 %v2183, %v2183
      %v2201 = vshrl.u32 %v2024, 16
      %v2203 = vshll.u32 %v2024, 16
      %v2205 = vrot.slane %v2203, 1
      %v2206 = vor.u32 %v2201, %v2205
      %v2208 = vshll.u32 %v2184, 16
      %v2210 = vrot.slane %v2208, 1
      %v2211 = vsel %vm493, %v2206, %v2210
      %v2213 = vshrl.u32 %v2025, 16
      %v2215 = vshll.u32 %v2025, 16
      %v2217 = vrot.slane %v2215, 1
      %v2218 = vor.u32 %v2213, %v2217
      %v2220 = vshll.u32 %v2185, 16
      %v2222 = vrot.slane %v2220, 1
      %v2223 = vsel %vm493, %v2218, %v2222
      %v2225 = vshrl.u32 %v2026, 16
      %v2227 = vshll.u32 %v2026, 16
      %v2229 = vrot.slane %v2227, 1
      %v2230 = vor.u32 %v2225, %v2229
      %v2232 = vshll.u32 %v2186, 16
      %v2234 = vrot.slane %v2232, 1
      %v2235 = vsel %vm493, %v2230, %v2234
      %v2237 = vshrl.u32 %v2027, 16
      %v2239 = vshll.u32 %v2027, 16
      %v2241 = vrot.slane %v2239, 1
      %v2242 = vor.u32 %v2237, %v2241
      %v2244 = vshll.u32 %v2187, 16
      %v2246 = vrot.slane %v2244, 1
      %v2247 = vsel %vm493, %v2242, %v2246
      %v2249 = vshrl.u32 %v2028, 16
      %v2251 = vshll.u32 %v2028, 16
      %v2253 = vrot.slane %v2251, 1
      %v2254 = vor.u32 %v2249, %v2253
      %v2256 = vshll.u32 %v2188, 16
      %v2258 = vrot.slane %v2256, 1
      %v2259 = vsel %vm493, %v2254, %v2258
      %v2261 = vshrl.u32 %v2029, 16
      %v2263 = vshll.u32 %v2029, 16
      %v2265 = vrot.slane %v2263, 1
      %v2266 = vor.u32 %v2261, %v2265
      %v2268 = vshll.u32 %v2189, 16
      %v2270 = vrot.slane %v2268, 1
      %v2271 = vsel %vm493, %v2266, %v2270
      %v2273 = vshrl.u32 %v2030, 16
      %v2275 = vshll.u32 %v2030, 16
      %v2277 = vrot.slane %v2275, 1
      %v2278 = vor.u32 %v2273, %v2277
      %v2280 = vshll.u32 %v2190, 16
      %v2282 = vrot.slane %v2280, 1
      %v2283 = vsel %vm493, %v2278, %v2282
      %v2285 = vshrl.u32 %v2031, 16
      %v2287 = vshll.u32 %v2031, 16
      %v2289 = vrot.slane %v2287, 1
      %v2290 = vor.u32 %v2285, %v2289
      %v2292 = vshll.u32 %v2191, 16
      %v2294 = vrot.slane %v2292, 1
      %v2295 = vsel %vm493, %v2290, %v2294
      %v2297 = vshrl.u32 %v2032, 16
      %v2299 = vshll.u32 %v2032, 16
      %v2301 = vrot.slane %v2299, 1
      %v2302 = vor.u32 %v2297, %v2301
      %v2304 = vshll.u32 %v2192, 16
      %v2306 = vrot.slane %v2304, 1
      %v2307 = vsel %vm493, %v2302, %v2306
      %v2309 = vshrl.u32 %v2033, 16
      %v2311 = vshll.u32 %v2033, 16
      %v2313 = vrot.slane %v2311, 1
      %v2314 = vor.u32 %v2309, %v2313
      %v2316 = vshll.u32 %v2193, 16
      %v2318 = vrot.slane %v2316, 1
      %v2319 = vsel %vm493, %v2314, %v2318
      %v2321 = vshrl.u32 %v2034, 16
      %v2323 = vshll.u32 %v2034, 16
      %v2325 = vrot.slane %v2323, 1
      %v2326 = vor.u32 %v2321, %v2325
      %v2328 = vshll.u32 %v2194, 16
      %v2330 = vrot.slane %v2328, 1
      %v2331 = vsel %vm493, %v2326, %v2330
      %v2333 = vshrl.u32 %v2035, 16
      %v2335 = vshll.u32 %v2035, 16
      %v2337 = vrot.slane %v2335, 1
      %v2338 = vor.u32 %v2333, %v2337
      %v2340 = vshll.u32 %v2195, 16
      %v2342 = vrot.slane %v2340, 1
      %v2343 = vsel %vm493, %v2338, %v2342
      %v2345 = vshrl.u32 %v2036, 16
      %v2347 = vshll.u32 %v2036, 16
      %v2349 = vrot.slane %v2347, 1
      %v2350 = vor.u32 %v2345, %v2349
      %v2352 = vshll.u32 %v2196, 16
      %v2354 = vrot.slane %v2352, 1
      %v2355 = vsel %vm493, %v2350, %v2354
      %v2357 = vshrl.u32 %v2037, 16
      %v2359 = vshll.u32 %v2037, 16
      %v2361 = vrot.slane %v2359, 1
      %v2362 = vor.u32 %v2357, %v2361
      %v2364 = vshll.u32 %v2197, 16
      %v2366 = vrot.slane %v2364, 1
      %v2367 = vsel %vm493, %v2362, %v2366
      %v2369 = vshrl.u32 %v2038, 16
      %v2371 = vshll.u32 %v2038, 16
      %v2373 = vrot.slane %v2371, 1
      %v2374 = vor.u32 %v2369, %v2373
      %v2376 = vshll.u32 %v2198, 16
      %v2378 = vrot.slane %v2376, 1
      %v2379 = vsel %vm493, %v2374, %v2378
      %v2381 = vshrl.u32 %v2039, 16
      %v2383 = vshll.u32 %v2039, 16
      %v2385 = vrot.slane %v2383, 1
      %v2386 = vor.u32 %v2381, %v2385
      %v2388 = vshll.u32 %v2199, 16
      %v2390 = vrot.slane %v2388, 1
      %v2391 = vsel %vm493, %v2386, %v2390
      %2392 = vrot.lane.b32.xlu0 %v2211, 64
      %v2393 = vpop.permute.xlu0 %2392
      %2394 = vrot.lane.b32.xlu0 %v2223, 64
      %v2395 = vpop.permute.xlu0 %2394
      %2396 = vrot.lane.b32.xlu0 %v2235, 64
      %v2397 = vpop.permute.xlu0 %2396
      %2398 = vrot.lane.b32.xlu0 %v2247, 64
      %v2399 = vpop.permute.xlu0 %2398
      %2400 = vrot.lane.b32.xlu0 %v2259, 64
      %v2401 = vpop.permute.xlu0 %2400
      %2402 = vrot.lane.b32.xlu0 %v2271, 64
      %v2403 = vpop.permute.xlu0 %2402
      %2404 = vrot.lane.b32.xlu0 %v2283, 64
      %v2405 = vpop.permute.xlu0 %2404
      %2406 = vrot.lane.b32.xlu0 %v2295, 64
      %v2407 = vpop.permute.xlu0 %2406
      %2408 = vrot.lane.b32.xlu0 %v2307, 64
      %v2409 = vpop.permute.xlu0 %2408
      %2410 = vrot.lane.b32.xlu0 %v2319, 64
      %v2411 = vpop.permute.xlu0 %2410
      %2412 = vrot.lane.b32.xlu0 %v2331, 64
      %v2413 = vpop.permute.xlu0 %2412
      %2414 = vrot.lane.b32.xlu0 %v2343, 64
      %v2415 = vpop.permute.xlu0 %2414
      %2416 = vrot.lane.b32.xlu0 %v2355, 64
      %v2417 = vpop.permute.xlu0 %2416
      %2418 = vrot.lane.b32.xlu0 %v2367, 64
      %v2419 = vpop.permute.xlu0 %2418
      %2420 = vrot.lane.b32.xlu0 %v2379, 64
      %v2421 = vpop.permute.xlu0 %2420
      %2422 = vrot.lane.b32.xlu0 %v2391, 64
      %v2423 = vpop.permute.xlu0 %2422
      %v2425 = vsel %vm718, %v2024, %v2121
      %v2427 = vsel %vm718, %v2025, %v2123
      %v2429 = vsel %vm718, %v2026, %v2125
      %v2431 = vsel %vm718, %v2027, %v2127
      %v2433 = vsel %vm718, %v2028, %v2129
      %v2435 = vsel %vm718, %v2029, %v2131
      %v2437 = vsel %vm718, %v2030, %v2133
      %v2439 = vsel %vm718, %v2031, %v2135
      %v2441 = vsel %vm718, %v2032, %v2137
      %v2443 = vsel %vm718, %v2033, %v2139
      %v2445 = vsel %vm718, %v2034, %v2141
      %v2447 = vsel %vm718, %v2035, %v2143
      %v2449 = vsel %vm718, %v2036, %v2145
      %v2451 = vsel %vm718, %v2037, %v2147
      %v2453 = vsel %vm718, %v2038, %v2149
      %v2455 = vsel %vm718, %v2039, %v2151
      %v2457 = vsel %vm751, %v2425, %v2393
      %v2459 = vsel %vm751, %v2427, %v2395
      %v2461 = vsel %vm751, %v2429, %v2397
      %v2463 = vsel %vm751, %v2431, %v2399
      %v2465 = vsel %vm751, %v2433, %v2401
      %v2467 = vsel %vm751, %v2435, %v2403
      %v2469 = vsel %vm751, %v2437, %v2405
      %v2471 = vsel %vm751, %v2439, %v2407
      %v2473 = vsel %vm751, %v2441, %v2409
      %v2475 = vsel %vm751, %v2443, %v2411
      %v2477 = vsel %vm751, %v2445, %v2413
      %v2479 = vsel %vm751, %v2447, %v2415
      %v2481 = vsel %vm751, %v2449, %v2417
      %v2483 = vsel %vm751, %v2451, %v2419
      %v2485 = vsel %vm751, %v2453, %v2421
      %v2487 = vsel %vm751, %v2455, %v2423
      %s2488 = scalar_lea.vmem %s1, 96
      %v2489 = vld [vmem:[%s2488] sm:$0xf]
      %v2490 = vld [vmem:[%s2488 + $0x4] sm:$0xf]
      %v2491 = vld [vmem:[%s2488 + $0x8] sm:$0xf]
      %v2492 = vld [vmem:[%s2488 + $0xc] sm:$0xf]
      %v2493 = vld [vmem:[%s2488 + $0x10] sm:$0xf]
      %v2494 = vld [vmem:[%s2488 + $0x14] sm:$0xf]
      %v2495 = vld [vmem:[%s2488 + $0x18] sm:$0xf]
      %v2496 = vld [vmem:[%s2488 + $0x1c] sm:$0xf]
      %v2497 = vld [vmem:[%s2488 + $0x20] sm:$0xf]
      %v2498 = vld [vmem:[%s2488 + $0x24] sm:$0xf]
      %v2499 = vld [vmem:[%s2488 + $0x28] sm:$0xf]
      %v2500 = vld [vmem:[%s2488 + $0x2c] sm:$0xf]
      %v2513 = vunpack.c.l.b16 %v2489
      %v2514 = vunpack.c.l.b16 %v2490
      %v2515 = vunpack.c.l.b16 %v2491
      %v2516 = vunpack.c.l.b16 %v2492
      %v2517 = vunpack.c.l.b16 %v2493
      %v2518 = vunpack.c.l.b16 %v2494
      %v2519 = vunpack.c.l.b16 %v2495
      %v2520 = vunpack.c.l.b16 %v2496
      %v2521 = vunpack.c.l.b16 %v2497
      %v2522 = vunpack.c.l.b16 %v2498
      %v2523 = vunpack.c.l.b16 %v2499
      %v2524 = vunpack.c.l.b16 %v2500
      %v2525 = vpack.c.b16 %v2514, %v2513
      %v2526 = vpack.c.b16 %v2516, %v2515
      %v2527 = vpack.c.b16 %v2518, %v2517
      %v2528 = vpack.c.b16 %v2520, %v2519
      %v2529 = vpack.c.b16 %v2522, %v2521
      %v2530 = vpack.c.b16 %v2524, %v2523
      %v2537 = vsel %vm1455, %v2457, 0
      %v2539 = vsel %vm1455, %v2459, 0
      %v2541 = vsel %vm1455, %v2461, 0
      %v2543 = vsel %vm1455, %v2463, 0
      %v2545 = vsel %vm1455, %v2465, 0
      %v2547 = vsel %vm1455, %v2467, 0
      %v2549 = vsel %vm1455, %v2469, 0
      %v2551 = vsel %vm1455, %v2471, 0
      %v2553 = vsel %vm1455, %v2473, 0
      %v2555 = vsel %vm1455, %v2475, 0
      %v2557 = vsel %vm1455, %v2477, 0
      %v2559 = vsel %vm1455, %v2479, 0
      %v2561 = vsel %vm1455, %v2481, 0
      %v2563 = vsel %vm1455, %v2483, 0
      %v2565 = vsel %vm1455, %v2485, 0
      %v2567 = vsel %vm1455, %v2487, 0
      %2569 = vmatprep.subr.bf16.mxu0 0
      %2570 = vmatpush1.bf16.msra.mxu0 %v2525
      %2571 = vmatprep.subr.bf16.mxu0 0
      %2572 = vmatpush1.bf16.msra.mxu0 %v2526
      %2573 = vmatprep.subr.bf16.mxu0 0
      %2574 = vmatpush1.bf16.msra.mxu0 %v2527
      %2575 = vmatprep.subr.bf16.mxu0 0
      %2576 = vmatpush1.bf16.msra.mxu0 %v2528
      %2577 = vmatprep.subr.bf16.mxu0 0
      %2578 = vmatpush1.bf16.msra.mxu0 %v2529
      %2579 = vmatprep.subr.bf16.mxu0 0
      %2580 = vmatpush1.bf16.msra.mxu0 %v2530
      %2581 = vmatprep.subr.bf16.mxu0 0
      %2582 = vmatpush1.bf16.msra.mxu0 0
      %2583 = vmatprep.subr.bf16.mxu0 0
      %2584 = vmatpush1.bf16.msra.mxu0 0
      %2585 = vmatprep.subr.bf16.mxu0 0
      %2586 = vmatpush1.bf16.msra.mxu0 0
      %2587 = vmatprep.subr.bf16.mxu0 0
      %2588 = vmatpush1.bf16.msra.mxu0 0
      %2589 = vmatprep.subr.bf16.mxu0 0
      %2590 = vmatpush1.bf16.msra.mxu0 0
      %2591 = vmatprep.subr.bf16.mxu0 0
      %2592 = vmatpush1.bf16.msra.mxu0 0
      %2593 = vmatprep.subr.bf16.mxu0 0
      %2594 = vmatpush1.bf16.msra.mxu0 0
      %2595 = vmatprep.subr.bf16.mxu0 0
      %2596 = vmatpush1.bf16.msra.mxu0 0
      %2597 = vmatprep.subr.bf16.mxu0 0
      %2598 = vmatpush1.bf16.msra.mxu0 0
      %2599 = vmatprep.subr.bf16.mxu0 0
      %2600 = vmatpush1.bf16.msra.mxu0 0
      %2601 = vmatprep.mubr.bf16.mxu0 0
      %2602 = vmatmul.mubr.bf16.gmra.mrb[0].mxu0 %v2537
      %v2603 = vpop.f32.mrb[0].mxu0
      %v2604 = vadd.f32 0.0, %v2603
      %v2605 = vpop.f32.mrb[0].mxu0
      %v2606 = vpop.f32.mrb[0].mxu0
      %v2607 = vadd.f32 0.0, %v2606
      %v2608 = vpop.f32.mrb[0].mxu0
      %2609 = vmatprep.mubr.bf16.mxu0 0
      %2610 = vmatmul.mubr.bf16.gmra.mrb[0].mxu0 %v2539
      %v2611 = vpop.f32.mrb[0].mxu0
      %v2612 = vadd.f32 0.0, %v2611
      %v2613 = vpop.f32.mrb[0].mxu0
      %v2614 = vpop.f32.mrb[0].mxu0
      %v2615 = vadd.f32 0.0, %v2614
      %v2616 = vpop.f32.mrb[0].mxu0
      %2617 = vmatprep.mubr.bf16.mxu0 0
      %2618 = vmatmul.mubr.bf16.gmra.mrb[0].mxu0 %v2541
      %v2619 = vpop.f32.mrb[0].mxu0
      %v2620 = vadd.f32 0.0, %v2619
      %v2621 = vpop.f32.mrb[0].mxu0
      %v2622 = vpop.f32.mrb[0].mxu0
      %v2623 = vadd.f32 0.0, %v2622
      %v2624 = vpop.f32.mrb[0].mxu0
      %2625 = vmatprep.mubr.bf16.mxu0 0
      %2626 = vmatmul.mubr.bf16.gmra.mrb[0].mxu0 %v2543
      %v2627 = vpop.f32.mrb[0].mxu0
      %v2628 = vadd.f32 0.0, %v2627
      %v2629 = vpop.f32.mrb[0].mxu0
      %v2630 = vpop.f32.mrb[0].mxu0
      %v2631 = vadd.f32 0.0, %v2630
      %v2632 = vpop.f32.mrb[0].mxu0
      %2633 = vmatprep.mubr.bf16.mxu0 0
      %2634 = vmatmul.mubr.bf16.gmra.mrb[0].mxu0 %v2545
      %v2635 = vpop.f32.mrb[0].mxu0
      %v2636 = vadd.f32 0.0, %v2635
      %v2637 = vpop.f32.mrb[0].mxu0
      %v2638 = vpop.f32.mrb[0].mxu0
      %v2639 = vadd.f32 0.0, %v2638
      %v2640 = vpop.f32.mrb[0].mxu0
      %2641 = vmatprep.mubr.bf16.mxu0 0
      %2642 = vmatmul.mubr.bf16.gmra.mrb[0].mxu0 %v2547
      %v2643 = vpop.f32.mrb[0].mxu0
      %v2644 = vadd.f32 0.0, %v2643
      %v2645 = vpop.f32.mrb[0].mxu0
      %v2646 = vpop.f32.mrb[0].mxu0
      %v2647 = vadd.f32 0.0, %v2646
      %v2648 = vpop.f32.mrb[0].mxu0
      %2649 = vmatprep.mubr.bf16.mxu0 0
      %2650 = vmatmul.mubr.bf16.gmra.mrb[0].mxu0 %v2549
      %v2651 = vpop.f32.mrb[0].mxu0
      %v2652 = vadd.f32 0.0, %v2651
      %v2653 = vpop.f32.mrb[0].mxu0
      %v2654 = vpop.f32.mrb[0].mxu0
      %v2655 = vadd.f32 0.0, %v2654
      %v2656 = vpop.f32.mrb[0].mxu0
      %2657 = vmatprep.mubr.bf16.mxu0 0
      %2658 = vmatmul.mubr.bf16.gmra.mrb[0].mxu0 %v2551
      %v2659 = vpop.f32.mrb[0].mxu0
      %v2660 = vadd.f32 0.0, %v2659
      %v2661 = vpop.f32.mrb[0].mxu0
      %v2662 = vpop.f32.mrb[0].mxu0
      %v2663 = vadd.f32 0.0, %v2662
      %v2664 = vpop.f32.mrb[0].mxu0
      %2665 = vmatprep.mubr.bf16.mxu0 0
      %2666 = vmatmul.mubr.bf16.gmra.mrb[0].mxu0 %v2553
      %v2667 = vpop.f32.mrb[0].mxu0
      %v2668 = vadd.f32 0.0, %v2667
      %v2669 = vpop.f32.mrb[0].mxu0
      %v2670 = vpop.f32.mrb[0].mxu0
      %v2671 = vadd.f32 0.0, %v2670
      %v2672 = vpop.f32.mrb[0].mxu0
      %2673 = vmatprep.mubr.bf16.mxu0 0
      %2674 = vmatmul.mubr.bf16.gmra.mrb[0].mxu0 %v2555
      %v2675 = vpop.f32.mrb[0].mxu0
      %v2676 = vadd.f32 0.0, %v2675
      %v2677 = vpop.f32.mrb[0].mxu0
      %v2678 = vpop.f32.mrb[0].mxu0
      %v2679 = vadd.f32 0.0, %v2678
      %v2680 = vpop.f32.mrb[0].mxu0
      %2681 = vmatprep.mubr.bf16.mxu0 0
      %2682 = vmatmul.mubr.bf16.gmra.mrb[0].mxu0 %v2557
      %v2683 = vpop.f32.mrb[0].mxu0
      %v2684 = vadd.f32 0.0, %v2683
      %v2685 = vpop.f32.mrb[0].mxu0
      %v2686 = vpop.f32.mrb[0].mxu0
      %v2687 = vadd.f32 0.0, %v2686
      %v2688 = vpop.f32.mrb[0].mxu0
      %2689 = vmatprep.mubr.bf16.mxu0 0
      %2690 = vmatmul.mubr.bf16.gmra.mrb[0].mxu0 %v2559
      %v2691 = vpop.f32.mrb[0].mxu0
      %v2692 = vadd.f32 0.0, %v2691
      %v2693 = vpop.f32.mrb[0].mxu0
      %v2694 = vpop.f32.mrb[0].mxu0
      %v2695 = vadd.f32 0.0, %v2694
      %v2696 = vpop.f32.mrb[0].mxu0
      %2697 = vmatprep.mubr.bf16.mxu0 0
      %2698 = vmatmul.mubr.bf16.gmra.mrb[0].mxu0 %v2561
      %v2699 = vpop.f32.mrb[0].mxu0
      %v2700 = vadd.f32 0.0, %v2699
      %v2701 = vpop.f32.mrb[0].mxu0
      %v2702 = vpop.f32.mrb[0].mxu0
      %v2703 = vadd.f32 0.0, %v2702
      %v2704 = vpop.f32.mrb[0].mxu0
      %2705 = vmatprep.mubr.bf16.mxu0 0
      %2706 = vmatmul.mubr.bf16.gmra.mrb[0].mxu0 %v2563
      %v2707 = vpop.f32.mrb[0].mxu0
      %v2708 = vadd.f32 0.0, %v2707
      %v2709 = vpop.f32.mrb[0].mxu0
      %v2710 = vpop.f32.mrb[0].mxu0
      %v2711 = vadd.f32 0.0, %v2710
      %v2712 = vpop.f32.mrb[0].mxu0
      %2713 = vmatprep.mubr.bf16.mxu0 0
      %2714 = vmatmul.mubr.bf16.gmra.mrb[0].mxu0 %v2565
      %v2715 = vpop.f32.mrb[0].mxu0
      %v2716 = vadd.f32 0.0, %v2715
      %v2717 = vpop.f32.mrb[0].mxu0
      %v2718 = vpop.f32.mrb[0].mxu0
      %v2719 = vadd.f32 0.0, %v2718
      %v2720 = vpop.f32.mrb[0].mxu0
      %2721 = vmatprep.mubr.bf16.mxu0 0
      %2722 = vmatmul.mubr.bf16.gmra.mrb[0].mxu0 %v2567
      %v2723 = vpop.f32.mrb[0].mxu0
      %v2724 = vadd.f32 0.0, %v2723
      %v2725 = vpop.f32.mrb[0].mxu0
      %v2726 = vpop.f32.mrb[0].mxu0
      %v2727 = vadd.f32 0.0, %v2726
      %v2728 = vpop.f32.mrb[0].mxu0
      %2729 = vdwg.mxu0
      %v2730 = vadd.f32 %v1752, %v2604
      %v2731 = vadd.f32 %v1755, %v2607
      %v2732 = vadd.f32 %v1760, %v2612
      %v2733 = vadd.f32 %v1763, %v2615
      %v2734 = vadd.f32 %v1768, %v2620
      %v2735 = vadd.f32 %v1771, %v2623
      %v2736 = vadd.f32 %v1776, %v2628
      %v2737 = vadd.f32 %v1779, %v2631
      %v2738 = vadd.f32 %v1784, %v2636
      %v2739 = vadd.f32 %v1787, %v2639
      %v2740 = vadd.f32 %v1792, %v2644
      %v2741 = vadd.f32 %v1795, %v2647
      %v2742 = vadd.f32 %v1800, %v2652
      %v2743 = vadd.f32 %v1803, %v2655
      %v2744 = vadd.f32 %v1808, %v2660
      %v2745 = vadd.f32 %v1811, %v2663
      %v2746 = vadd.f32 %v1816, %v2668
      %v2747 = vadd.f32 %v1819, %v2671
      %v2748 = vadd.f32 %v1824, %v2676
      %v2749 = vadd.f32 %v1827, %v2679
      %v2750 = vadd.f32 %v1832, %v2684
      %v2751 = vadd.f32 %v1835, %v2687
      %v2752 = vadd.f32 %v1840, %v2692
      %v2753 = vadd.f32 %v1843, %v2695
      %v2754 = vadd.f32 %v1848, %v2700
      %v2755 = vadd.f32 %v1851, %v2703
      %v2756 = vadd.f32 %v1856, %v2708
      %v2757 = vadd.f32 %v1859, %v2711
      %v2758 = vadd.f32 %v1864, %v2716
      %v2759 = vadd.f32 %v1867, %v2719
      %v2760 = vadd.f32 %v1872, %v2724
      %v2761 = vadd.f32 %v1875, %v2727
      %v2762 = vld [vmem:[%s2] sm:$0x1]
      %v2764 = vlaneseq
      %v2765 = vshrl.u32 %v2764, 7
      %v2766 = vsub.s32 0, %v2765
      %v2767 = vrot.slane %v2762, %v2766
      %v2769 = vadd.f32 %v2730, %v2767
      %v2770 = vadd.f32 %v2731, %v2767
      %v2771 = vadd.f32 %v2732, %v2767
      %v2772 = vadd.f32 %v2733, %v2767
      %v2773 = vadd.f32 %v2734, %v2767
      %v2774 = vadd.f32 %v2735, %v2767
      %v2775 = vadd.f32 %v2736, %v2767
      %v2776 = vadd.f32 %v2737, %v2767
      %v2777 = vadd.f32 %v2738, %v2767
      %v2778 = vadd.f32 %v2739, %v2767
      %v2779 = vadd.f32 %v2740, %v2767
      %v2780 = vadd.f32 %v2741, %v2767
      %v2781 = vadd.f32 %v2742, %v2767
      %v2782 = vadd.f32 %v2743, %v2767
      %v2783 = vadd.f32 %v2744, %v2767
      %v2784 = vadd.f32 %v2745, %v2767
      %v2785 = vadd.f32 %v2746, %v2767
      %v2786 = vadd.f32 %v2747, %v2767
      %v2787 = vadd.f32 %v2748, %v2767
      %v2788 = vadd.f32 %v2749, %v2767
      %v2789 = vadd.f32 %v2750, %v2767
      %v2790 = vadd.f32 %v2751, %v2767
      %v2791 = vadd.f32 %v2752, %v2767
      %v2792 = vadd.f32 %v2753, %v2767
      %v2793 = vadd.f32 %v2754, %v2767
      %v2794 = vadd.f32 %v2755, %v2767
      %v2795 = vadd.f32 %v2756, %v2767
      %v2796 = vadd.f32 %v2757, %v2767
      %v2797 = vadd.f32 %v2758, %v2767
      %v2798 = vadd.f32 %v2759, %v2767
      %v2799 = vadd.f32 %v2760, %v2767
      %v2800 = vadd.f32 %v2761, %v2767
      %v2801 = vmax.f32 %v2769, 0.0
      %v2802 = vmax.f32 %v2770, 0.0
      %v2803 = vmax.f32 %v2771, 0.0
      %v2804 = vmax.f32 %v2772, 0.0
      %v2805 = vmax.f32 %v2773, 0.0
      %v2806 = vmax.f32 %v2774, 0.0
      %v2807 = vmax.f32 %v2775, 0.0
      %v2808 = vmax.f32 %v2776, 0.0
      %v2809 = vmax.f32 %v2777, 0.0
      %v2810 = vmax.f32 %v2778, 0.0
      %v2811 = vmax.f32 %v2779, 0.0
      %v2812 = vmax.f32 %v2780, 0.0
      %v2813 = vmax.f32 %v2781, 0.0
      %v2814 = vmax.f32 %v2782, 0.0
      %v2815 = vmax.f32 %v2783, 0.0
      %v2816 = vmax.f32 %v2784, 0.0
      %v2817 = vmax.f32 %v2785, 0.0
      %v2818 = vmax.f32 %v2786, 0.0
      %v2819 = vmax.f32 %v2787, 0.0
      %v2820 = vmax.f32 %v2788, 0.0
      %v2821 = vmax.f32 %v2789, 0.0
      %v2822 = vmax.f32 %v2790, 0.0
      %v2823 = vmax.f32 %v2791, 0.0
      %v2824 = vmax.f32 %v2792, 0.0
      %v2825 = vmax.f32 %v2793, 0.0
      %v2826 = vmax.f32 %v2794, 0.0
      %v2827 = vmax.f32 %v2795, 0.0
      %v2828 = vmax.f32 %v2796, 0.0
      %v2829 = vmax.f32 %v2797, 0.0
      %v2830 = vmax.f32 %v2798, 0.0
      %v2831 = vmax.f32 %v2799, 0.0
      %v2832 = vmax.f32 %v2800, 0.0
      %v2833 = vpack.c.bf16 %v2802, %v2801
      %v2834 = vpack.c.bf16 %v2804, %v2803
      %v2835 = vpack.c.bf16 %v2806, %v2805
      %v2836 = vpack.c.bf16 %v2808, %v2807
      %v2837 = vpack.c.bf16 %v2810, %v2809
      %v2838 = vpack.c.bf16 %v2812, %v2811
      %v2839 = vpack.c.bf16 %v2814, %v2813
      %v2840 = vpack.c.bf16 %v2816, %v2815
      %v2841 = vpack.c.bf16 %v2818, %v2817
      %v2842 = vpack.c.bf16 %v2820, %v2819
      %v2843 = vpack.c.bf16 %v2822, %v2821
      %v2844 = vpack.c.bf16 %v2824, %v2823
      %v2845 = vpack.c.bf16 %v2826, %v2825
      %v2846 = vpack.c.bf16 %v2828, %v2827
      %v2847 = vpack.c.bf16 %v2830, %v2829
      %v2848 = vpack.c.bf16 %v2832, %v2831
      %v2865 = vunpack.c.l.b16 %v2833
      %v2866 = vunpack.c.h.b16 %v2833
      %v2867 = vunpack.c.l.b16 %v2834
      %v2868 = vunpack.c.h.b16 %v2834
      %v2869 = vunpack.c.l.b16 %v2835
      %v2870 = vunpack.c.h.b16 %v2835
      %v2871 = vunpack.c.l.b16 %v2836
      %v2872 = vunpack.c.h.b16 %v2836
      %v2873 = vunpack.c.l.b16 %v2837
      %v2874 = vunpack.c.h.b16 %v2837
      %v2875 = vunpack.c.l.b16 %v2838
      %v2876 = vunpack.c.h.b16 %v2838
      %v2877 = vunpack.c.l.b16 %v2839
      %v2878 = vunpack.c.h.b16 %v2839
      %v2879 = vunpack.c.l.b16 %v2840
      %v2880 = vunpack.c.h.b16 %v2840
      %v2881 = vunpack.c.l.b16 %v2841
      %v2882 = vunpack.c.h.b16 %v2841
      %v2883 = vunpack.c.l.b16 %v2842
      %v2884 = vunpack.c.h.b16 %v2842
      %v2885 = vunpack.c.l.b16 %v2843
      %v2886 = vunpack.c.h.b16 %v2843
      %v2887 = vunpack.c.l.b16 %v2844
      %v2888 = vunpack.c.h.b16 %v2844
      %v2889 = vunpack.c.l.b16 %v2845
      %v2890 = vunpack.c.h.b16 %v2845
      %v2891 = vunpack.c.l.b16 %v2846
      %v2892 = vunpack.c.h.b16 %v2846
      %v2893 = vunpack.c.l.b16 %v2847
      %v2894 = vunpack.c.h.b16 %v2847
      %v2895 = vunpack.c.l.b16 %v2848
      %v2896 = vunpack.c.h.b16 %v2848
      %v2897 = vpack.c.b16 %v2865, %v2865
      %v2898 = vpack.c.b16 %v2866, %v2866
      %v2899 = vpack.c.b16 %v2867, %v2867
      %v2900 = vpack.c.b16 %v2868, %v2868
      %v2901 = vpack.c.b16 %v2869, %v2869
      %v2902 = vpack.c.b16 %v2870, %v2870
      %v2903 = vpack.c.b16 %v2871, %v2871
      %v2904 = vpack.c.b16 %v2872, %v2872
      %v2905 = vpack.c.b16 %v2873, %v2873
      %v2906 = vpack.c.b16 %v2874, %v2874
      %v2907 = vpack.c.b16 %v2875, %v2875
      %v2908 = vpack.c.b16 %v2876, %v2876
      %v2909 = vpack.c.b16 %v2877, %v2877
      %v2910 = vpack.c.b16 %v2878, %v2878
      %v2911 = vpack.c.b16 %v2879, %v2879
      %v2912 = vpack.c.b16 %v2880, %v2880
      %v2913 = vpack.c.b16 %v2881, %v2881
      %v2914 = vpack.c.b16 %v2882, %v2882
      %v2915 = vpack.c.b16 %v2883, %v2883
      %v2916 = vpack.c.b16 %v2884, %v2884
      %v2917 = vpack.c.b16 %v2885, %v2885
      %v2918 = vpack.c.b16 %v2886, %v2886
      %v2919 = vpack.c.b16 %v2887, %v2887
      %v2920 = vpack.c.b16 %v2888, %v2888
      %v2921 = vpack.c.b16 %v2889, %v2889
      %v2922 = vpack.c.b16 %v2890, %v2890
      %v2923 = vpack.c.b16 %v2891, %v2891
      %v2924 = vpack.c.b16 %v2892, %v2892
      %v2925 = vpack.c.b16 %v2893, %v2893
      %v2926 = vpack.c.b16 %v2894, %v2894
      %v2927 = vpack.c.b16 %v2895, %v2895
      %v2928 = vpack.c.b16 %v2896, %v2896
      %vm2961 = vcmask 257024
      %2962 = vst.msk [vmem:[%s170] sm:$0xf] %vm2961, %v2897
      %2963 = vst.msk [vmem:[%s170 + $0x4] sm:$0xf] %vm2961, %v2898
      %2964 = vst.msk [vmem:[%s170 + $0x8] sm:$0xf] %vm2961, %v2899
      %2965 = vst.msk [vmem:[%s170 + $0xc] sm:$0xf] %vm2961, %v2900
      %2966 = vst.msk [vmem:[%s170 + $0x10] sm:$0xf] %vm2961, %v2901
      %2967 = vst.msk [vmem:[%s170 + $0x14] sm:$0xf] %vm2961, %v2902
      %2968 = vst.msk [vmem:[%s170 + $0x18] sm:$0xf] %vm2961, %v2903
      %2969 = vst.msk [vmem:[%s170 + $0x1c] sm:$0xf] %vm2961, %v2904
      %2970 = vst.msk [vmem:[%s170 + $0x20] sm:$0xf] %vm2961, %v2905
      %2971 = vst.msk [vmem:[%s170 + $0x24] sm:$0xf] %vm2961, %v2906
      %2972 = vst.msk [vmem:[%s170 + $0x28] sm:$0xf] %vm2961, %v2907
      %2973 = vst.msk [vmem:[%s170 + $0x2c] sm:$0xf] %vm2961, %v2908
      %2974 = vst.msk [vmem:[%s170 + $0x30] sm:$0xf] %vm2961, %v2909
      %2975 = vst.msk [vmem:[%s170 + $0x34] sm:$0xf] %vm2961, %v2910
      %2976 = vst.msk [vmem:[%s170 + $0x38] sm:$0xf] %vm2961, %v2911
      %2977 = vst.msk [vmem:[%s170 + $0x3c] sm:$0xf] %vm2961, %v2912
      %2978 = vst.msk [vmem:[%s170 + $0x40] sm:$0xf] %vm2961, %v2913
      %2979 = vst.msk [vmem:[%s170 + $0x44] sm:$0xf] %vm2961, %v2914
      %2980 = vst.msk [vmem:[%s170 + $0x48] sm:$0xf] %vm2961, %v2915
      %2981 = vst.msk [vmem:[%s170 + $0x4c] sm:$0xf] %vm2961, %v2916
      %2982 = vst.msk [vmem:[%s170 + $0x50] sm:$0xf] %vm2961, %v2917
      %2983 = vst.msk [vmem:[%s170 + $0x54] sm:$0xf] %vm2961, %v2918
      %2984 = vst.msk [vmem:[%s170 + $0x58] sm:$0xf] %vm2961, %v2919
      %2985 = vst.msk [vmem:[%s170 + $0x5c] sm:$0xf] %vm2961, %v2920
      %2986 = vst.msk [vmem:[%s170 + $0x60] sm:$0xf] %vm2961, %v2921
      %2987 = vst.msk [vmem:[%s170 + $0x64] sm:$0xf] %vm2961, %v2922
      %2988 = vst.msk [vmem:[%s170 + $0x68] sm:$0xf] %vm2961, %v2923
      %2989 = vst.msk [vmem:[%s170 + $0x6c] sm:$0xf] %vm2961, %v2924
      %2990 = vst.msk [vmem:[%s170 + $0x70] sm:$0xf] %vm2961, %v2925
      %2991 = vst.msk [vmem:[%s170 + $0x74] sm:$0xf] %vm2961, %v2926
      %2992 = vst.msk [vmem:[%s170 + $0x78] sm:$0xf] %vm2961, %v2927
      %2993 = vst.msk [vmem:[%s170 + $0x7c] sm:$0xf] %vm2961, %v2928
      %p2994 = scmp.lt.s32.totalorder %s14, 1
      %s2995 = scalar_select %p2994, %s14, 1
      %s2996 = smul.addr %s2995, 32
      %s2997 = smul.addr %s2996, 4
      %s2998 = scalar_lea.vmem %s3, %s2997
      // Predicated region
      $region33: #{second_dsa_forward.10} parent=31 // pred_check
        %p2999 = pneg %p100
      $region34: #{second_dsa_forward.10} parent=31 // pred_check_branch
        %3001 = sbr.rel (%p2999) target = $region36
      $region35: #{second_dsa_forward.10} parent=31 // pred_region
        _
      $region36: #{second_dsa_forward.10} parent=31 // pred_fallthru
        _
    $region32: #{second_dsa_forward.10} parent=5 // pred_fallthru
      _
    %p3002 = scmp.le.s32.totalorder 2, %s9
    // Predicated region
    $region37: #{second_dsa_forward.10} parent=5 // pred_check
      %p3003 = pneg %p3002
    $region38: #{second_dsa_forward.10} parent=5 // pred_check_branch
      %3005 = sbr.rel (%p3003) target = $region40
    $region39: #{second_dsa_forward.10} parent=5 // pred_region
      %s3006 = ssub.s32 %s9, 2
      // Predicated region
      $region41: #{second_dsa_forward.10} parent=39 // pred_check
        %p3007 = pneg %p106
      $region42: #{second_dsa_forward.10} parent=39 // pred_check_branch
        %3009 = sbr.rel (%p3007) target = $region44
      $region43: #{second_dsa_forward.10} parent=39 // pred_region
        %p3010 = scmp.lt.s32.totalorder %s15, 1
        %s3011 = scalar_select %p3010, %s15, 1
        %s3012 = smul.addr %s3011, 32
        %s3013 = smul.addr %s3012, 4
        %s3014 = scalar_lea.vmem %s3, %s3013
      $region44: #{second_dsa_forward.10} parent=39 // pred_fallthru
        _
    $region40: #{second_dsa_forward.10} parent=5 // pred_fallthru
      _
  $region6: #{second_dsa_forward.10} parent=0 // loop_footer
    %s13 = sadd.s32 1, %s9
  $region7: #{second_dsa_forward.10} parent=0 // loop_footer_branch
    %8 = sbr.rel target = $region3
  $region8: #{second_dsa_forward.10} parent=0 // loop_exit
    _

// kernel: second_dsa_forward.11
$region0: #{second_dsa_forward.11}
  #allocation0 [shape = 'u32[]', space=smem, size = 0x4, offset = 0x4, fixed_abs, tag = 'smem constant byte address 0x4 - core index']
  #allocation1 [shape = 'u32[144,128]{1,0:T(1,128)}', space=vmem, size = 0x12000, scoped, tag = 'internal scratch']
  %s0 = inlined_call_operand.vmem [shape: bf16[2,18,18,32], index: 0, kind: input, shape index: {}]
  %s1 = inlined_call_operand.vmem [shape: bf16[3,96,32], index: 1, kind: input, shape index: {}]
  %s2 = inlined_call_operand.vmem [shape: f32[1,32], index: 2, kind: input, shape index: {}]
  %s3 = inlined_call_operand.vmem [shape: bf16[2,16,16,32], index: 3, kind: output, shape index: {}]
  %s4 = sld [smem:[#allocation0]]
  $region45: #{second_dsa_forward.11} parent=0
    _
  %s6 = ssub.s32 1, %s4
  %s7 = scalar_select 0, %s6, %s4
  loop: start=0, step=1, limit=4
  $region2: #{second_dsa_forward.11} parent=0 // loop_pre_header
    _
  $region3: #{second_dsa_forward.11} parent=0 // loop_header
    %s9 = sphi 0, %s13
    %p10 = scmp.ge.s32.totalorder %s9, 4
    %s19 = sphi 0, %s21
    %s22 = sphi 0, %s19
    %s23 = sphi 0, %s22
    %s39 = sphi 0, %s23
    %s43 = sphi 0, %s43
    %s45 = sphi 0, %s43
    %s46 = sphi 0, %s45
    %s60 = sphi 0, %s46
    %s64 = sphi 0, %s64
    %s66 = sphi 0, %s64
    %s67 = sphi 0, %s66
    %s81 = sphi 0, %s67
    %s87 = sphi 0, %s89
    %s90 = sphi 0, %s87
    %s91 = sphi 0, %s90
    %s107 = sphi 0, %s91
  $region4: #{second_dsa_forward.11} parent=0 // loop_header_branch
    %12 = sbr.rel (%p10) target = $region8
  $region5: #{second_dsa_forward.11} parent=0 // loop_body
    %s14 = ssub.s32 %s9, 1
    %s15 = ssub.s32 %s9, 2
    %s16 = sadd.s32 %s9, 1
    %s17 = ssub.s32 %s9, %s16
    %p18 = scmp.eq.s32.totalorder %s17, 0
    %s20 = sadd.s32 %s19, 1
    %s21 = scalar_select %p18, %s19, %s20
    %p24 = pneg %p18
    %p25 = scmp.eq.s32.totalorder %s9, 1
    %p26 = por %p24, %p25
    %p27 = scmp.ne.s32.totalorder %s19, %s22
    %p28 = scmp.eq.s32.totalorder %s9, 0
    %p29 = por %p27, %p28
    %p30 = scmp.ne.s32.totalorder %s19, %s22
    %p31 = scmp.eq.s32.totalorder %s14, 1
    %p32 = por %p30, %p31
    %p33 = scmp.ne.s32.totalorder %s22, %s23
    %p34 = scmp.eq.s32.totalorder %s14, 0
    %p35 = por %p33, %p34
    %p36 = scmp.ne.s32.totalorder %s22, %s23
    %p37 = scmp.eq.s32.totalorder %s15, 1
    %p38 = por %p36, %p37
    %p40 = scmp.ne.s32.totalorder %s23, %s39
    %p41 = scmp.eq.s32.totalorder %s15, 0
    %p42 = por %p40, %p41
    %s44 = sadd.s32 %s43, 1
    %p47 = scmp.eq.s32.totalorder %s9, 1
    %p48 = scmp.ne.s32.totalorder %s43, %s45
    %p49 = scmp.eq.s32.totalorder %s9, 0
    %p50 = por %p48, %p49
    %p51 = scmp.ne.s32.totalorder %s43, %s45
    %p52 = scmp.eq.s32.totalorder %s14, 1
    %p53 = por %p51, %p52
    %p54 = scmp.ne.s32.totalorder %s45, %s46
    %p55 = scmp.eq.s32.totalorder %s14, 0
    %p56 = por %p54, %p55
    %p57 = scmp.ne.s32.totalorder %s45, %s46
    %p58 = scmp.eq.s32.totalorder %s15, 1
    %p59 = por %p57, %p58
    %p61 = scmp.ne.s32.totalorder %s46, %s60
    %p62 = scmp.eq.s32.totalorder %s15, 0
    %p63 = por %p61, %p62
    %s65 = sadd.s32 %s64, 1
    %p68 = scmp.eq.s32.totalorder %s9, 1
    %p69 = scmp.ne.s32.totalorder %s64, %s66
    %p70 = scmp.eq.s32.totalorder %s9, 0
    %p71 = por %p69, %p70
    %p72 = scmp.ne.s32.totalorder %s64, %s66
    %p73 = scmp.eq.s32.totalorder %s14, 1
    %p74 = por %p72, %p73
    %p75 = scmp.ne.s32.totalorder %s66, %s67
    %p76 = scmp.eq.s32.totalorder %s14, 0
    %p77 = por %p75, %p76
    %p78 = scmp.ne.s32.totalorder %s66, %s67
    %p79 = scmp.eq.s32.totalorder %s15, 1
    %p80 = por %p78, %p79
    %p82 = scmp.ne.s32.totalorder %s67, %s81
    %p83 = scmp.eq.s32.totalorder %s15, 0
    %p84 = por %p82, %p83
    %s85 = ssub.s32 %s9, %s16
    %p86 = scmp.eq.s32.totalorder %s85, 0
    %s88 = sadd.s32 %s87, 1
    %s89 = scalar_select %p86, %s87, %s88
    %p92 = pneg %p86
    %p93 = scmp.eq.s32.totalorder %s9, 1
    %p94 = por %p92, %p93
    %p95 = scmp.ne.s32.totalorder %s87, %s90
    %p96 = scmp.eq.s32.totalorder %s9, 0
    %p97 = por %p95, %p96
    %p98 = scmp.ne.s32.totalorder %s87, %s90
    %p99 = scmp.eq.s32.totalorder %s14, 1
    %p100 = por %p98, %p99
    %p101 = scmp.ne.s32.totalorder %s90, %s91
    %p102 = scmp.eq.s32.totalorder %s14, 0
    %p103 = por %p101, %p102
    %p104 = scmp.ne.s32.totalorder %s90, %s91
    %p105 = scmp.eq.s32.totalorder %s15, 1
    %p106 = por %p104, %p105
    %p108 = scmp.ne.s32.totalorder %s91, %s107
    %p109 = scmp.eq.s32.totalorder %s15, 0
    %p110 = por %p108, %p109
    %p111 = scmp.le.s32.totalorder 1, %s9
    %p112 = scmp.lt.s32.totalorder %s9, 3
    %p113 = pnand %p111, %p112
    %p114 = pneg %p113
    // Predicated region
    $region9: #{second_dsa_forward.11} parent=5 // pred_check
      _
    $region10: #{second_dsa_forward.11} parent=5 // pred_check_branch
      %116 = sbr.rel (%p113) target = $region12
    $region11: #{second_dsa_forward.11} parent=5 // pred_region
      %s117 = ssub.s32 %s9, 1
      // Predicated region
      $region13: #{second_dsa_forward.11} parent=11 // pred_check
        %p118 = pneg %p56
      $region14: #{second_dsa_forward.11} parent=11 // pred_check_branch
        %120 = sbr.rel (%p118) target = $region16
      $region15: #{second_dsa_forward.11} parent=11 // pred_region
        _
      $region16: #{second_dsa_forward.11} parent=11 // pred_fallthru
        _
      // Predicated region
      $region17: #{second_dsa_forward.11} parent=11 // pred_check
        %p121 = pneg %p77
      $region18: #{second_dsa_forward.11} parent=11 // pred_check_branch
        %123 = sbr.rel (%p121) target = $region20
      $region19: #{second_dsa_forward.11} parent=11 // pred_region
        _
      $region20: #{second_dsa_forward.11} parent=11 // pred_fallthru
        _
    $region12: #{second_dsa_forward.11} parent=5 // pred_fallthru
      _
    %p124 = scmp.lt.s32.totalorder %s9, 2
    // Predicated region
    $region21: #{second_dsa_forward.11} parent=5 // pred_check
      %p125 = pneg %p124
    $region22: #{second_dsa_forward.11} parent=5 // pred_check_branch
      %127 = sbr.rel (%p125) target = $region24
    $region23: #{second_dsa_forward.11} parent=5 // pred_region
      // Predicated region
      $region25: #{second_dsa_forward.11} parent=23 // pred_check
        %p128 = pneg %p29
      $region26: #{second_dsa_forward.11} parent=23 // pred_check_branch
        %130 = sbr.rel (%p128) target = $region28
      $region27: #{second_dsa_forward.11} parent=23 // pred_region
        %p131 = scmp.lt.s32.totalorder %s9, 1
        %s132 = scalar_select %p131, %s9, 1
        %s133 = smul.addr %s132, 54
        %s134 = smul.addr %s133, 4
        %s135 = scalar_lea.vmem %s0, %s134
      $region28: #{second_dsa_forward.11} parent=23 // pred_fallthru
        _
    $region24: #{second_dsa_forward.11} parent=5 // pred_fallthru
      _
    %p136 = scmp.le.s32.totalorder 1, %s9
    %p137 = scmp.lt.s32.totalorder %s9, 3
    %p138 = pnand %p136, %p137
    %p139 = pneg %p138
    // Predicated region
    $region29: #{second_dsa_forward.11} parent=5 // pred_check
      _
    $region30: #{second_dsa_forward.11} parent=5 // pred_check_branch
      %141 = sbr.rel (%p138) target = $region32
    $region31: #{second_dsa_forward.11} parent=5 // pred_region
      %s142 = ssub.s32 %s9, 1
      %p143 = scmp.lt.s32.totalorder %s14, 1
      %s144 = scalar_select %p143, %s14, 1
      %s145 = smul.addr %s144, 54
      %s146 = smul.addr %s145, 4
      %s147 = scalar_lea.vmem %s0, %s146
      %p148 = pneg %p35
      %p149 = pneg %p32
      %p150 = pneg %p56
      %p151 = pneg %p53
      %p152 = pneg %p77
      %p153 = pneg %p74
      %p154 = pneg %p103
      %p155 = pneg %p100
      %p156 = scmp.lt.s32.totalorder %s14, 1
      %s157 = scalar_select %p156, %s14, 1
      %s158 = smul.addr %s157, 32
      %s159 = smul.addr %s158, 4
      %s160 = scalar_lea.vmem %s3, %s159
      %p161 = scmp.lt.s32.totalorder %s14, 1
      %s162 = scalar_select %p161, %s14, 1
      %s163 = smul.addr %s162, 54
      %s164 = smul.addr %s163, 4
      %s165 = scalar_lea.vmem %s0, %s164
      %p166 = scmp.lt.s32.totalorder %s14, 1
      %s167 = scalar_select %p166, %s14, 1
      %s168 = smul.addr %s167, 32
      %s169 = smul.addr %s168, 4
      %s170 = scalar_lea.vmem %s3, %s169
      %v172 = vld [vmem:[%s165] sm:$0xf]
      %v173 = vld [vmem:[%s165 + $0x4] sm:$0xf]
      %v174 = vld [vmem:[%s165 + $0xc] sm:$0xf]
      %v175 = vld [vmem:[%s165 + $0x10] sm:$0xf]
      %v176 = vld [vmem:[%s165 + $0x18] sm:$0xf]
      %v177 = vld [vmem:[%s165 + $0x1c] sm:$0xf]
      %v178 = vld [vmem:[%s165 + $0x24] sm:$0xf]
      %v179 = vld [vmem:[%s165 + $0x28] sm:$0xf]
      %v180 = vld [vmem:[%s165 + $0x30] sm:$0xf]
      %v181 = vld [vmem:[%s165 + $0x34] sm:$0xf]
      %v182 = vld [vmem:[%s165 + $0x3c] sm:$0xf]
      %v183 = vld [vmem:[%s165 + $0x40] sm:$0xf]
      %v184 = vld [vmem:[%s165 + $0x48] sm:$0xf]
      %v185 = vld [vmem:[%s165 + $0x4c] sm:$0xf]
      %v186 = vld [vmem:[%s165 + $0x54] sm:$0xf]
      %v187 = vld [vmem:[%s165 + $0x58] sm:$0xf]
      %v188 = vld [vmem:[%s165 + $0x60] sm:$0xf]
      %v189 = vld [vmem:[%s165 + $0x64] sm:$0xf]
      %v190 = vld [vmem:[%s165 + $0x6c] sm:$0xf]
      %v191 = vld [vmem:[%s165 + $0x70] sm:$0xf]
      %v192 = vld [vmem:[%s165 + $0x78] sm:$0xf]
      %v193 = vld [vmem:[%s165 + $0x7c] sm:$0xf]
      %v194 = vld [vmem:[%s165 + $0x84] sm:$0xf]
      %v195 = vld [vmem:[%s165 + $0x88] sm:$0xf]
      %v196 = vld [vmem:[%s165 + $0x90] sm:$0xf]
      %v197 = vld [vmem:[%s165 + $0x94] sm:$0xf]
      %v198 = vld [vmem:[%s165 + $0x9c] sm:$0xf]
      %v199 = vld [vmem:[%s165 + $0xa0] sm:$0xf]
      %v200 = vld [vmem:[%s165 + $0xa8] sm:$0xf]
      %v201 = vld [vmem:[%s165 + $0xac] sm:$0xf]
      %v202 = vld [vmem:[%s165 + $0xb4] sm:$0xf]
      %v203 = vld [vmem:[%s165 + $0xb8] sm:$0xf]
      %v204 = vld [vmem:[%s165 + $0x8] sm:$0x1]
      %v205 = vld [vmem:[%s165 + $0x14] sm:$0x1]
      %v206 = vld [vmem:[%s165 + $0x20] sm:$0x1]
      %v207 = vld [vmem:[%s165 + $0x2c] sm:$0x1]
      %v208 = vld [vmem:[%s165 + $0x38] sm:$0x1]
      %v209 = vld [vmem:[%s165 + $0x44] sm:$0x1]
      %v210 = vld [vmem:[%s165 + $0x50] sm:$0x1]
      %v211 = vld [vmem:[%s165 + $0x5c] sm:$0x1]
      %v212 = vld [vmem:[%s165 + $0x68] sm:$0x1]
      %v213 = vld [vmem:[%s165 + $0x74] sm:$0x1]
      %v214 = vld [vmem:[%s165 + $0x80] sm:$0x1]
      %v215 = vld [vmem:[%s165 + $0x8c] sm:$0x1]
      %v216 = vld [vmem:[%s165 + $0x98] sm:$0x1]
      %v217 = vld [vmem:[%s165 + $0xa4] sm:$0x1]
      %v218 = vld [vmem:[%s165 + $0xb0] sm:$0x1]
      %v219 = vld [vmem:[%s165 + $0xbc] sm:$0x1]
      %v220 = vld [vmem:[%s165] sm:$0xe]
      %v221 = vld [vmem:[%s165 + $0xc] sm:$0xe]
      %v222 = vld [vmem:[%s165 + $0x18] sm:$0xe]
      %v223 = vld [vmem:[%s165 + $0x24] sm:$0xe]
      %v224 = vld [vmem:[%s165 + $0x30] sm:$0xe]
      %v225 = vld [vmem:[%s165 + $0x3c] sm:$0xe]
      %v226 = vld [vmem:[%s165 + $0x48] sm:$0xe]
      %v227 = vld [vmem:[%s165 + $0x54] sm:$0xe]
      %v228 = vld [vmem:[%s165 + $0x60] sm:$0xe]
      %v229 = vld [vmem:[%s165 + $0x6c] sm:$0xe]
      %v230 = vld [vmem:[%s165 + $0x78] sm:$0xe]
      %v231 = vld [vmem:[%s165 + $0x84] sm:$0xe]
      %v232 = vld [vmem:[%s165 + $0x90] sm:$0xe]
      %v233 = vld [vmem:[%s165 + $0x9c] sm:$0xe]
      %v234 = vld [vmem:[%s165 + $0xa8] sm:$0xe]
      %v235 = vld [vmem:[%s165 + $0xb4] sm:$0xe]
      %v268 = vunpack.c.l.b16 %v172
      %v269 = vunpack.c.l.b16 %v173
      %v270 = vunpack.c.l.b16 %v174
      %v271 = vunpack.c.l.b16 %v175
      %v272 = vunpack.c.l.b16 %v176
      %v273 = vunpack.c.l.b16 %v177
      %v274 = vunpack.c.l.b16 %v178
      %v275 = vunpack.c.l.b16 %v179
      %v276 = vunpack.c.l.b16 %v180
      %v277 = vunpack.c.l.b16 %v181
      %v278 = vunpack.c.l.b16 %v182
      %v279 = vunpack.c.l.b16 %v183
      %v280 = vunpack.c.l.b16 %v184
      %v281 = vunpack.c.l.b16 %v185
      %v282 = vunpack.c.l.b16 %v186
      %v283 = vunpack.c.l.b16 %v187
      %v284 = vunpack.c.l.b16 %v188
      %v285 = vunpack.c.l.b16 %v189
      %v286 = vunpack.c.l.b16 %v190
      %v287 = vunpack.c.l.b16 %v191
      %v288 = vunpack.c.l.b16 %v192
      %v289 = vunpack.c.l.b16 %v193
      %v290 = vunpack.c.l.b16 %v194
      %v291 = vunpack.c.l.b16 %v195
      %v292 = vunpack.c.l.b16 %v196
      %v293 = vunpack.c.l.b16 %v197
      %v294 = vunpack.c.l.b16 %v198
      %v295 = vunpack.c.l.b16 %v199
      %v296 = vunpack.c.l.b16 %v200
      %v297 = vunpack.c.l.b16 %v201
      %v298 = vunpack.c.l.b16 %v202
      %v299 = vunpack.c.l.b16 %v203
      %v300 = vpack.c.b16 %v269, %v268
      %v301 = vpack.c.b16 %v271, %v270
      %v302 = vpack.c.b16 %v273, %v272
      %v303 = vpack.c.b16 %v275, %v274
      %v304 = vpack.c.b16 %v277, %v276
      %v305 = vpack.c.b16 %v279, %v278
      %v306 = vpack.c.b16 %v281, %v280
      %v307 = vpack.c.b16 %v283, %v282
      %v308 = vpack.c.b16 %v285, %v284
      %v309 = vpack.c.b16 %v287, %v286
      %v310 = vpack.c.b16 %v289, %v288
      %v311 = vpack.c.b16 %v291, %v290
      %v312 = vpack.c.b16 %v293, %v292
      %v313 = vpack.c.b16 %v295, %v294
      %v314 = vpack.c.b16 %v297, %v296
      %v315 = vpack.c.b16 %v299, %v298
      %v332 = vunpack.c.l.b16 %v204
      %v333 = vunpack.c.l.b16 %v205
      %v334 = vunpack.c.l.b16 %v206
      %v335 = vunpack.c.l.b16 %v207
      %v336 = vunpack.c.l.b16 %v208
      %v337 = vunpack.c.l.b16 %v209
      %v338 = vunpack.c.l.b16 %v210
      %v339 = vunpack.c.l.b16 %v211
      %v340 = vunpack.c.l.b16 %v212
      %v341 = vunpack.c.l.b16 %v213
      %v342 = vunpack.c.l.b16 %v214
      %v343 = vunpack.c.l.b16 %v215
      %v344 = vunpack.c.l.b16 %v216
      %v345 = vunpack.c.l.b16 %v217
      %v346 = vunpack.c.l.b16 %v218
      %v347 = vunpack.c.l.b16 %v219
      %v348 = vpack.c.b16 %v332, %v332
      %v349 = vpack.c.b16 %v333, %v333
      %v350 = vpack.c.b16 %v334, %v334
      %v351 = vpack.c.b16 %v335, %v335
      %v352 = vpack.c.b16 %v336, %v336
      %v353 = vpack.c.b16 %v337, %v337
      %v354 = vpack.c.b16 %v338, %v338
      %v355 = vpack.c.b16 %v339, %v339
      %v356 = vpack.c.b16 %v340, %v340
      %v357 = vpack.c.b16 %v341, %v341
      %v358 = vpack.c.b16 %v342, %v342
      %v359 = vpack.c.b16 %v343, %v343
      %v360 = vpack.c.b16 %v344, %v344
      %v361 = vpack.c.b16 %v345, %v345
      %v362 = vpack.c.b16 %v346, %v346
      %v363 = vpack.c.b16 %v347, %v347
      %vm364 = vsmask.f32 7424
      %v366 = vshrl.u32 %v300, 16
      %v368 = vshll.u32 %v300, 16
      %v370 = vrot.slane %v368, 1
      %v371 = vor.u32 %v366, %v370
      %v373 = vshll.u32 %v348, 16
      %v375 = vrot.slane %v373, 1
      %v376 = vsel %vm364, %v371, %v375
      %v378 = vshrl.u32 %v301, 16
      %v380 = vshll.u32 %v301, 16
      %v382 = vrot.slane %v380, 1
      %v383 = vor.u32 %v378, %v382
      %v385 = vshll.u32 %v349, 16
      %v387 = vrot.slane %v385, 1
      %v388 = vsel %vm364, %v383, %v387
      %v390 = vshrl.u32 %v302, 16
      %v392 = vshll.u32 %v302, 16
      %v394 = vrot.slane %v392, 1
      %v395 = vor.u32 %v390, %v394
      %v397 = vshll.u32 %v350, 16
      %v399 = vrot.slane %v397, 1
      %v400 = vsel %vm364, %v395, %v399
      %v402 = vshrl.u32 %v303, 16
      %v404 = vshll.u32 %v303, 16
      %v406 = vrot.slane %v404, 1
      %v407 = vor.u32 %v402, %v406
      %v409 = vshll.u32 %v351, 16
      %v411 = vrot.slane %v409, 1
      %v412 = vsel %vm364, %v407, %v411
      %v414 = vshrl.u32 %v304, 16
      %v416 = vshll.u32 %v304, 16
      %v418 = vrot.slane %v416, 1
      %v419 = vor.u32 %v414, %v418
      %v421 = vshll.u32 %v352, 16
      %v423 = vrot.slane %v421, 1
      %v424 = vsel %vm364, %v419, %v423
      %v426 = vshrl.u32 %v305, 16
      %v428 = vshll.u32 %v305, 16
      %v430 = vrot.slane %v428, 1
      %v431 = vor.u32 %v426, %v430
      %v433 = vshll.u32 %v353, 16
      %v435 = vrot.slane %v433, 1
      %v436 = vsel %vm364, %v431, %v435
      %v438 = vshrl.u32 %v306, 16
      %v440 = vshll.u32 %v306, 16
      %v442 = vrot.slane %v440, 1
      %v443 = vor.u32 %v438, %v442
      %v445 = vshll.u32 %v354, 16
      %v447 = vrot.slane %v445, 1
      %v448 = vsel %vm364, %v443, %v447
      %v450 = vshrl.u32 %v307, 16
      %v452 = vshll.u32 %v307, 16
      %v454 = vrot.slane %v452, 1
      %v455 = vor.u32 %v450, %v454
      %v457 = vshll.u32 %v355, 16
      %v459 = vrot.slane %v457, 1
      %v460 = vsel %vm364, %v455, %v459
      %v462 = vshrl.u32 %v308, 16
      %v464 = vshll.u32 %v308, 16
      %v466 = vrot.slane %v464, 1
      %v467 = vor.u32 %v462, %v466
      %v469 = vshll.u32 %v356, 16
      %v471 = vrot.slane %v469, 1
      %v472 = vsel %vm364, %v467, %v471
      %v474 = vshrl.u32 %v309, 16
      %v476 = vshll.u32 %v309, 16
      %v478 = vrot.slane %v476, 1
      %v479 = vor.u32 %v474, %v478
      %v481 = vshll.u32 %v357, 16
      %v483 = vrot.slane %v481, 1
      %v484 = vsel %vm364, %v479, %v483
      %v486 = vshrl.u32 %v310, 16
      %v488 = vshll.u32 %v310, 16
      %v490 = vrot.slane %v488, 1
      %v491 = vor.u32 %v486, %v490
      %v493 = vshll.u32 %v358, 16
      %v495 = vrot.slane %v493, 1
      %v496 = vsel %vm364, %v491, %v495
      %v498 = vshrl.u32 %v311, 16
      %v500 = vshll.u32 %v311, 16
      %v502 = vrot.slane %v500, 1
      %v503 = vor.u32 %v498, %v502
      %v505 = vshll.u32 %v359, 16
      %v507 = vrot.slane %v505, 1
      %v508 = vsel %vm364, %v503, %v507
      %v510 = vshrl.u32 %v312, 16
      %v512 = vshll.u32 %v312, 16
      %v514 = vrot.slane %v512, 1
      %v515 = vor.u32 %v510, %v514
      %v517 = vshll.u32 %v360, 16
      %v519 = vrot.slane %v517, 1
      %v520 = vsel %vm364, %v515, %v519
      %v522 = vshrl.u32 %v313, 16
      %v524 = vshll.u32 %v313, 16
      %v526 = vrot.slane %v524, 1
      %v527 = vor.u32 %v522, %v526
      %v529 = vshll.u32 %v361, 16
      %v531 = vrot.slane %v529, 1
      %v532 = vsel %vm364, %v527, %v531
      %v534 = vshrl.u32 %v314, 16
      %v536 = vshll.u32 %v314, 16
      %v538 = vrot.slane %v536, 1
      %v539 = vor.u32 %v534, %v538
      %v541 = vshll.u32 %v362, 16
      %v543 = vrot.slane %v541, 1
      %v544 = vsel %vm364, %v539, %v543
      %v546 = vshrl.u32 %v315, 16
      %v548 = vshll.u32 %v315, 16
      %v550 = vrot.slane %v548, 1
      %v551 = vor.u32 %v546, %v550
      %v553 = vshll.u32 %v363, 16
      %v555 = vrot.slane %v553, 1
      %v556 = vsel %vm364, %v551, %v555
      %557 = vrot.lane.b32.xlu0 %v376, 32
      %v558 = vpop.permute.xlu0 %557
      %559 = vrot.lane.b32.xlu0 %v388, 32
      %v560 = vpop.permute.xlu0 %559
      %561 = vrot.lane.b32.xlu0 %v400, 32
      %v562 = vpop.permute.xlu0 %561
      %563 = vrot.lane.b32.xlu0 %v412, 32
      %v564 = vpop.permute.xlu0 %563
      %565 = vrot.lane.b32.xlu0 %v424, 32
      %v566 = vpop.permute.xlu0 %565
      %567 = vrot.lane.b32.xlu0 %v436, 32
      %v568 = vpop.permute.xlu0 %567
      %569 = vrot.lane.b32.xlu0 %v448, 32
      %v570 = vpop.permute.xlu0 %569
      %571 = vrot.lane.b32.xlu0 %v460, 32
      %v572 = vpop.permute.xlu0 %571
      %573 = vrot.lane.b32.xlu0 %v472, 32
      %v574 = vpop.permute.xlu0 %573
      %575 = vrot.lane.b32.xlu0 %v484, 32
      %v576 = vpop.permute.xlu0 %575
      %577 = vrot.lane.b32.xlu0 %v496, 32
      %v578 = vpop.permute.xlu0 %577
      %579 = vrot.lane.b32.xlu0 %v508, 32
      %v580 = vpop.permute.xlu0 %579
      %581 = vrot.lane.b32.xlu0 %v520, 32
      %v582 = vpop.permute.xlu0 %581
      %583 = vrot.lane.b32.xlu0 %v532, 32
      %v584 = vpop.permute.xlu0 %583
      %585 = vrot.lane.b32.xlu0 %v544, 32
      %v586 = vpop.permute.xlu0 %585
      %587 = vrot.lane.b32.xlu0 %v556, 32
      %v588 = vpop.permute.xlu0 %587
      %v605 = vunpack.c.l.b16 %v220
      %v606 = vunpack.c.l.b16 %v221
      %v607 = vunpack.c.l.b16 %v222
      %v608 = vunpack.c.l.b16 %v223
      %v609 = vunpack.c.l.b16 %v224
      %v610 = vunpack.c.l.b16 %v225
      %v611 = vunpack.c.l.b16 %v226
      %v612 = vunpack.c.l.b16 %v227
      %v613 = vunpack.c.l.b16 %v228
      %v614 = vunpack.c.l.b16 %v229
      %v615 = vunpack.c.l.b16 %v230
      %v616 = vunpack.c.l.b16 %v231
      %v617 = vunpack.c.l.b16 %v232
      %v618 = vunpack.c.l.b16 %v233
      %v619 = vunpack.c.l.b16 %v234
      %v620 = vunpack.c.l.b16 %v235
      %v621 = vpack.c.b16 %v269, %v605
      %v622 = vpack.c.b16 %v271, %v606
      %v623 = vpack.c.b16 %v273, %v607
      %v624 = vpack.c.b16 %v275, %v608
      %v625 = vpack.c.b16 %v277, %v609
      %v626 = vpack.c.b16 %v279, %v610
      %v627 = vpack.c.b16 %v281, %v611
      %v628 = vpack.c.b16 %v283, %v612
      %v629 = vpack.c.b16 %v285, %v613
      %v630 = vpack.c.b16 %v287, %v614
      %v631 = vpack.c.b16 %v289, %v615
      %v632 = vpack.c.b16 %v291, %v616
      %v633 = vpack.c.b16 %v293, %v617
      %v634 = vpack.c.b16 %v295, %v618
      %v635 = vpack.c.b16 %v297, %v619
      %v636 = vpack.c.b16 %v299, %v620
      %vm637 = vcmask 1046528
      %v638 = vrot.slane %v621, 1
      %v639 = vrot.slane %v348, 1
      %v640 = vsel %vm637, %v638, %v639
      %v641 = vrot.slane %v622, 1
      %v642 = vrot.slane %v349, 1
      %v643 = vsel %vm637, %v641, %v642
      %v644 = vrot.slane %v623, 1
      %v645 = vrot.slane %v350, 1
      %v646 = vsel %vm637, %v644, %v645
      %v647 = vrot.slane %v624, 1
      %v648 = vrot.slane %v351, 1
      %v649 = vsel %vm637, %v647, %v648
      %v650 = vrot.slane %v625, 1
      %v651 = vrot.slane %v352, 1
      %v652 = vsel %vm637, %v650, %v651
      %v653 = vrot.slane %v626, 1
      %v654 = vrot.slane %v353, 1
      %v655 = vsel %vm637, %v653, %v654
      %v656 = vrot.slane %v627, 1
      %v657 = vrot.slane %v354, 1
      %v658 = vsel %vm637, %v656, %v657
      %v659 = vrot.slane %v628, 1
      %v660 = vrot.slane %v355, 1
      %v661 = vsel %vm637, %v659, %v660
      %v662 = vrot.slane %v629, 1
      %v663 = vrot.slane %v356, 1
      %v664 = vsel %vm637, %v662, %v663
      %v665 = vrot.slane %v630, 1
      %v666 = vrot.slane %v357, 1
      %v667 = vsel %vm637, %v665, %v666
      %v668 = vrot.slane %v631, 1
      %v669 = vrot.slane %v358, 1
      %v670 = vsel %vm637, %v668, %v669
      %v671 = vrot.slane %v632, 1
      %v672 = vrot.slane %v359, 1
      %v673 = vsel %vm637, %v671, %v672
      %v674 = vrot.slane %v633, 1
      %v675 = vrot.slane %v360, 1
      %v676 = vsel %vm637, %v674, %v675
      %v677 = vrot.slane %v634, 1
      %v678 = vrot.slane %v361, 1
      %v679 = vsel %vm637, %v677, %v678
      %v680 = vrot.slane %v635, 1
      %v681 = vrot.slane %v362, 1
      %v682 = vsel %vm637, %v680, %v681
      %v683 = vrot.slane %v636, 1
      %v684 = vrot.slane %v363, 1
      %v685 = vsel %vm637, %v683, %v684
      %686 = vrot.lane.b32.xlu0 %v640, 64
      %v687 = vpop.permute.xlu0 %686
      %688 = vrot.lane.b32.xlu0 %v643, 64
      %v689 = vpop.permute.xlu0 %688
      %690 = vrot.lane.b32.xlu0 %v646, 64
      %v691 = vpop.permute.xlu0 %690
      %692 = vrot.lane.b32.xlu0 %v649, 64
      %v693 = vpop.permute.xlu0 %692
      %694 = vrot.lane.b32.xlu0 %v652, 64
      %v695 = vpop.permute.xlu0 %694
      %696 = vrot.lane.b32.xlu0 %v655, 64
      %v697 = vpop.permute.xlu0 %696
      %698 = vrot.lane.b32.xlu0 %v658, 64
      %v699 = vpop.permute.xlu0 %698
      %700 = vrot.lane.b32.xlu0 %v661, 64
      %v701 = vpop.permute.xlu0 %700
      %702 = vrot.lane.b32.xlu0 %v664, 64
      %v703 = vpop.permute.xlu0 %702
      %704 = vrot.lane.b32.xlu0 %v667, 64
      %v705 = vpop.permute.xlu0 %704
      %706 = vrot.lane.b32.xlu0 %v670, 64
      %v707 = vpop.permute.xlu0 %706
      %708 = vrot.lane.b32.xlu0 %v673, 64
      %v709 = vpop.permute.xlu0 %708
      %710 = vrot.lane.b32.xlu0 %v676, 64
      %v711 = vpop.permute.xlu0 %710
      %712 = vrot.lane.b32.xlu0 %v679, 64
      %v713 = vpop.permute.xlu0 %712
      %714 = vrot.lane.b32.xlu0 %v682, 64
      %v715 = vpop.permute.xlu0 %714
      %716 = vrot.lane.b32.xlu0 %v685, 64
      %v717 = vpop.permute.xlu0 %716
      %vm718 = vcmask 261120
      %v720 = vsel %vm718, %v300, %v558
      %v722 = vsel %vm718, %v301, %v560
      %v724 = vsel %vm718, %v302, %v562
      %v726 = vsel %vm718, %v303, %v564
      %v728 = vsel %vm718, %v304, %v566
      %v730 = vsel %vm718, %v305, %v568
      %v732 = vsel %vm718, %v306, %v570
      %v734 = vsel %vm718, %v307, %v572
      %v736 = vsel %vm718, %v308, %v574
      %v738 = vsel %vm718, %v309, %v576
      %v740 = vsel %vm718, %v310, %v578
      %v742 = vsel %vm718, %v311, %v580
      %v744 = vsel %vm718, %v312, %v582
      %v746 = vsel %vm718, %v313, %v584
      %v748 = vsel %vm718, %v314, %v586
      %v750 = vsel %vm718, %v315, %v588
      %vm751 = vcmask 523264
      %v753 = vsel %vm751, %v720, %v687
      %v755 = vsel %vm751, %v722, %v689
      %v757 = vsel %vm751, %v724, %v691
      %v759 = vsel %vm751, %v726, %v693
      %v761 = vsel %vm751, %v728, %v695
      %v763 = vsel %vm751, %v730, %v697
      %v765 = vsel %vm751, %v732, %v699
      %v767 = vsel %vm751, %v734, %v701
      %v769 = vsel %vm751, %v736, %v703
      %v771 = vsel %vm751, %v738, %v705
      %v773 = vsel %vm751, %v740, %v707
      %v775 = vsel %vm751, %v742, %v709
      %v777 = vsel %vm751, %v744, %v711
      %v779 = vsel %vm751, %v746, %v713
      %v781 = vsel %vm751, %v748, %v715
      %v783 = vsel %vm751, %v750, %v717
      %v784 = vld [vmem:[%s1] sm:$0xf]
      %v785 = vld [vmem:[%s1 + $0x4] sm:$0xf]
      %v786 = vld [vmem:[%s1 + $0x8] sm:$0xf]
      %v787 = vld [vmem:[%s1 + $0xc] sm:$0xf]
      %v788 = vld [vmem:[%s1 + $0x10] sm:$0xf]
      %v789 = vld [vmem:[%s1 + $0x14] sm:$0xf]
      %v790 = vld [vmem:[%s1 + $0x18] sm:$0xf]
      %v791 = vld [vmem:[%s1 + $0x1c] sm:$0xf]
      %v792 = vld [vmem:[%s1 + $0x20] sm:$0xf]
      %v793 = vld [vmem:[%s1 + $0x24] sm:$0xf]
      %v794 = vld [vmem:[%s1 + $0x28] sm:$0xf]
      %v795 = vld [vmem:[%s1 + $0x2c] sm:$0xf]
      %s796 = scalar_lea.vmem %s165, 12
      %v797 = vld [vmem:[%s796] sm:$0xf]
      %v798 = vld [vmem:[%s796 + $0x4] sm:$0xf]
      %v799 = vld [vmem:[%s796 + $0xc] sm:$0xf]
      %v800 = vld [vmem:[%s796 + $0x10] sm:$0xf]
      %v801 = vld [vmem:[%s796 + $0x18] sm:$0xf]
      %v802 = vld [vmem:[%s796 + $0x1c] sm:$0xf]
      %v803 = vld [vmem:[%s796 + $0x24] sm:$0xf]
      %v804 = vld [vmem:[%s796 + $0x28] sm:$0xf]
      %v805 = vld [vmem:[%s796 + $0x30] sm:$0xf]
      %v806 = vld [vmem:[%s796 + $0x34] sm:$0xf]
      %v807 = vld [vmem:[%s796 + $0x3c] sm:$0xf]
      %v808 = vld [vmem:[%s796 + $0x40] sm:$0xf]
      %v809 = vld [vmem:[%s796 + $0x48] sm:$0xf]
      %v810 = vld [vmem:[%s796 + $0x4c] sm:$0xf]
      %v811 = vld [vmem:[%s796 + $0x54] sm:$0xf]
      %v812 = vld [vmem:[%s796 + $0x58] sm:$0xf]
      %v813 = vld [vmem:[%s796 + $0x60] sm:$0xf]
      %v814 = vld [vmem:[%s796 + $0x64] sm:$0xf]
      %v815 = vld [vmem:[%s796 + $0x6c] sm:$0xf]
      %v816 = vld [vmem:[%s796 + $0x70] sm:$0xf]
      %v817 = vld [vmem:[%s796 + $0x78] sm:$0xf]
      %v818 = vld [vmem:[%s796 + $0x7c] sm:$0xf]
      %v819 = vld [vmem:[%s796 + $0x84] sm:$0xf]
      %v820 = vld [vmem:[%s796 + $0x88] sm:$0xf]
      %v821 = vld [vmem:[%s796 + $0x90] sm:$0xf]
      %v822 = vld [vmem:[%s796 + $0x94] sm:$0xf]
      %v823 = vld [vmem:[%s796 + $0x9c] sm:$0xf]
      %v824 = vld [vmem:[%s796 + $0xa0] sm:$0xf]
      %v825 = vld [vmem:[%s796 + $0xa8] sm:$0xf]
      %v826 = vld [vmem:[%s796 + $0xac] sm:$0xf]
      %v827 = vld [vmem:[%s796 + $0xb4] sm:$0xf]
      %v828 = vld [vmem:[%s796 + $0xb8] sm:$0xf]
      %v829 = vld [vmem:[%s796 + $0x8] sm:$0x1]
      %v830 = vld [vmem:[%s796 + $0x14] sm:$0x1]
      %v831 = vld [vmem:[%s796 + $0x20] sm:$0x1]
      %v832 = vld [vmem:[%s796 + $0x2c] sm:$0x1]
      %v833 = vld [vmem:[%s796 + $0x38] sm:$0x1]
      %v834 = vld [vmem:[%s796 + $0x44] sm:$0x1]
      %v835 = vld [vmem:[%s796 + $0x50] sm:$0x1]
      %v836 = vld [vmem:[%s796 + $0x5c] sm:$0x1]
      %v837 = vld [vmem:[%s796 + $0x68] sm:$0x1]
      %v838 = vld [vmem:[%s796 + $0x74] sm:$0x1]
      %v839 = vld [vmem:[%s796 + $0x80] sm:$0x1]
      %v840 = vld [vmem:[%s796 + $0x8c] sm:$0x1]
      %v841 = vld [vmem:[%s796 + $0x98] sm:$0x1]
      %v842 = vld [vmem:[%s796 + $0xa4] sm:$0x1]
      %v843 = vld [vmem:[%s796 + $0xb0] sm:$0x1]
      %v844 = vld [vmem:[%s796 + $0xbc] sm:$0x1]
      %v845 = vld [vmem:[%s796] sm:$0xe]
      %v846 = vld [vmem:[%s796 + $0xc] sm:$0xe]
      %v847 = vld [vmem:[%s796 + $0x18] sm:$0xe]
      %v848 = vld [vmem:[%s796 + $0x24] sm:$0xe]
      %v849 = vld [vmem:[%s796 + $0x30] sm:$0xe]
      %v850 = vld [vmem:[%s796 + $0x3c] sm:$0xe]
      %v851 = vld [vmem:[%s796 + $0x48] sm:$0xe]
      %v852 = vld [vmem:[%s796 + $0x54] sm:$0xe]
      %v853 = vld [vmem:[%s796 + $0x60] sm:$0xe]
      %v854 = vld [vmem:[%s796 + $0x6c] sm:$0xe]
      %v855 = vld [vmem:[%s796 + $0x78] sm:$0xe]
      %v856 = vld [vmem:[%s796 + $0x84] sm:$0xe]
      %v857 = vld [vmem:[%s796 + $0x90] sm:$0xe]
      %v858 = vld [vmem:[%s796 + $0x9c] sm:$0xe]
      %v859 = vld [vmem:[%s796 + $0xa8] sm:$0xe]
      %v860 = vld [vmem:[%s796 + $0xb4] sm:$0xe]
      %v893 = vunpack.c.l.b16 %v797
      %v894 = vunpack.c.l.b16 %v798
      %v895 = vunpack.c.l.b16 %v799
      %v896 = vunpack.c.l.b16 %v800
      %v897 = vunpack.c.l.b16 %v801
      %v898 = vunpack.c.l.b16 %v802
      %v899 = vunpack.c.l.b16 %v803
      %v900 = vunpack.c.l.b16 %v804
      %v901 = vunpack.c.l.b16 %v805
      %v902 = vunpack.c.l.b16 %v806
      %v903 = vunpack.c.l.b16 %v807
      %v904 = vunpack.c.l.b16 %v808
      %v905 = vunpack.c.l.b16 %v809
      %v906 = vunpack.c.l.b16 %v810
      %v907 = vunpack.c.l.b16 %v811
      %v908 = vunpack.c.l.b16 %v812
      %v909 = vunpack.c.l.b16 %v813
      %v910 = vunpack.c.l.b16 %v814
      %v911 = vunpack.c.l.b16 %v815
      %v912 = vunpack.c.l.b16 %v816
      %v913 = vunpack.c.l.b16 %v817
      %v914 = vunpack.c.l.b16 %v818
      %v915 = vunpack.c.l.b16 %v819
      %v916 = vunpack.c.l.b16 %v820
      %v917 = vunpack.c.l.b16 %v821
      %v918 = vunpack.c.l.b16 %v822
      %v919 = vunpack.c.l.b16 %v823
      %v920 = vunpack.c.l.b16 %v824
      %v921 = vunpack.c.l.b16 %v825
      %v922 = vunpack.c.l.b16 %v826
      %v923 = vunpack.c.l.b16 %v827
      %v924 = vunpack.c.l.b16 %v828
      %v925 = vpack.c.b16 %v894, %v893
      %v926 = vpack.c.b16 %v896, %v895
      %v927 = vpack.c.b16 %v898, %v897
      %v928 = vpack.c.b16 %v900, %v899
      %v929 = vpack.c.b16 %v902, %v901
      %v930 = vpack.c.b16 %v904, %v903
      %v931 = vpack.c.b16 %v906, %v905
      %v932 = vpack.c.b16 %v908, %v907
      %v933 = vpack.c.b16 %v910, %v909
      %v934 = vpack.c.b16 %v912, %v911
      %v935 = vpack.c.b16 %v914, %v913
      %v936 = vpack.c.b16 %v916, %v915
      %v937 = vpack.c.b16 %v918, %v917
      %v938 = vpack.c.b16 %v920, %v919
      %v939 = vpack.c.b16 %v922, %v921
      %v940 = vpack.c.b16 %v924, %v923
      %v957 = vunpack.c.l.b16 %v829
      %v958 = vunpack.c.l.b16 %v830
      %v959 = vunpack.c.l.b16 %v831
      %v960 = vunpack.c.l.b16 %v832
      %v961 = vunpack.c.l.b16 %v833
      %v962 = vunpack.c.l.b16 %v834
      %v963 = vunpack.c.l.b16 %v835
      %v964 = vunpack.c.l.b16 %v836
      %v965 = vunpack.c.l.b16 %v837
      %v966 = vunpack.c.l.b16 %v838
      %v967 = vunpack.c.l.b16 %v839
      %v968 = vunpack.c.l.b16 %v840
      %v969 = vunpack.c.l.b16 %v841
      %v970 = vunpack.c.l.b16 %v842
      %v971 = vunpack.c.l.b16 %v843
      %v972 = vunpack.c.l.b16 %v844
      %v973 = vpack.c.b16 %v957, %v957
      %v974 = vpack.c.b16 %v958, %v958
      %v975 = vpack.c.b16 %v959, %v959
      %v976 = vpack.c.b16 %v960, %v960
      %v977 = vpack.c.b16 %v961, %v961
      %v978 = vpack.c.b16 %v962, %v962
      %v979 = vpack.c.b16 %v963, %v963
      %v980 = vpack.c.b16 %v964, %v964
      %v981 = vpack.c.b16 %v965, %v965
      %v982 = vpack.c.b16 %v966, %v966
      %v983 = vpack.c.b16 %v967, %v967
      %v984 = vpack.c.b16 %v968, %v968
      %v985 = vpack.c.b16 %v969, %v969
      %v986 = vpack.c.b16 %v970, %v970
      %v987 = vpack.c.b16 %v971, %v971
      %v988 = vpack.c.b16 %v972, %v972
      %v990 = vshrl.u32 %v925, 16
      %v992 = vshll.u32 %v925, 16
      %v994 = vrot.slane %v992, 1
      %v995 = vor.u32 %v990, %v994
      %v997 = vshll.u32 %v973, 16
      %v999 = vrot.slane %v997, 1
      %v1000 = vsel %vm364, %v995, %v999
      %v1002 = vshrl.u32 %v926, 16
      %v1004 = vshll.u32 %v926, 16
      %v1006 = vrot.slane %v1004, 1
      %v1007 = vor.u32 %v1002, %v1006
      %v1009 = vshll.u32 %v974, 16
      %v1011 = vrot.slane %v1009, 1
      %v1012 = vsel %vm364, %v1007, %v1011
      %v1014 = vshrl.u32 %v927, 16
      %v1016 = vshll.u32 %v927, 16
      %v1018 = vrot.slane %v1016, 1
      %v1019 = vor.u32 %v1014, %v1018
      %v1021 = vshll.u32 %v975, 16
      %v1023 = vrot.slane %v1021, 1
      %v1024 = vsel %vm364, %v1019, %v1023
      %v1026 = vshrl.u32 %v928, 16
      %v1028 = vshll.u32 %v928, 16
      %v1030 = vrot.slane %v1028, 1
      %v1031 = vor.u32 %v1026, %v1030
      %v1033 = vshll.u32 %v976, 16
      %v1035 = vrot.slane %v1033, 1
      %v1036 = vsel %vm364, %v1031, %v1035
      %v1038 = vshrl.u32 %v929, 16
      %v1040 = vshll.u32 %v929, 16
      %v1042 = vrot.slane %v1040, 1
      %v1043 = vor.u32 %v1038, %v1042
      %v1045 = vshll.u32 %v977, 16
      %v1047 = vrot.slane %v1045, 1
      %v1048 = vsel %vm364, %v1043, %v1047
      %v1050 = vshrl.u32 %v930, 16
      %v1052 = vshll.u32 %v930, 16
      %v1054 = vrot.slane %v1052, 1
      %v1055 = vor.u32 %v1050, %v1054
      %v1057 = vshll.u32 %v978, 16
      %v1059 = vrot.slane %v1057, 1
      %v1060 = vsel %vm364, %v1055, %v1059
      %v1062 = vshrl.u32 %v931, 16
      %v1064 = vshll.u32 %v931, 16
      %v1066 = vrot.slane %v1064, 1
      %v1067 = vor.u32 %v1062, %v1066
      %v1069 = vshll.u32 %v979, 16
      %v1071 = vrot.slane %v1069, 1
      %v1072 = vsel %vm364, %v1067, %v1071
      %v1074 = vshrl.u32 %v932, 16
      %v1076 = vshll.u32 %v932, 16
      %v1078 = vrot.slane %v1076, 1
      %v1079 = vor.u32 %v1074, %v1078
      %v1081 = vshll.u32 %v980, 16
      %v1083 = vrot.slane %v1081, 1
      %v1084 = vsel %vm364, %v1079, %v1083
      %v1086 = vshrl.u32 %v933, 16
      %v1088 = vshll.u32 %v933, 16
      %v1090 = vrot.slane %v1088, 1
      %v1091 = vor.u32 %v1086, %v1090
      %v1093 = vshll.u32 %v981, 16
      %v1095 = vrot.slane %v1093, 1
      %v1096 = vsel %vm364, %v1091, %v1095
      %v1098 = vshrl.u32 %v934, 16
      %v1100 = vshll.u32 %v934, 16
      %v1102 = vrot.slane %v1100, 1
      %v1103 = vor.u32 %v1098, %v1102
      %v1105 = vshll.u32 %v982, 16
      %v1107 = vrot.slane %v1105, 1
      %v1108 = vsel %vm364, %v1103, %v1107
      %v1110 = vshrl.u32 %v935, 16
      %v1112 = vshll.u32 %v935, 16
      %v1114 = vrot.slane %v1112, 1
      %v1115 = vor.u32 %v1110, %v1114
      %v1117 = vshll.u32 %v983, 16
      %v1119 = vrot.slane %v1117, 1
      %v1120 = vsel %vm364, %v1115, %v1119
      %v1122 = vshrl.u32 %v936, 16
      %v1124 = vshll.u32 %v936, 16
      %v1126 = vrot.slane %v1124, 1
      %v1127 = vor.u32 %v1122, %v1126
      %v1129 = vshll.u32 %v984, 16
      %v1131 = vrot.slane %v1129, 1
      %v1132 = vsel %vm364, %v1127, %v1131
      %v1134 = vshrl.u32 %v937, 16
      %v1136 = vshll.u32 %v937, 16
      %v1138 = vrot.slane %v1136, 1
      %v1139 = vor.u32 %v1134, %v1138
      %v1141 = vshll.u32 %v985, 16
      %v1143 = vrot.slane %v1141, 1
      %v1144 = vsel %vm364, %v1139, %v1143
      %v1146 = vshrl.u32 %v938, 16
      %v1148 = vshll.u32 %v938, 16
      %v1150 = vrot.slane %v1148, 1
      %v1151 = vor.u32 %v1146, %v1150
      %v1153 = vshll.u32 %v986, 16
      %v1155 = vrot.slane %v1153, 1
      %v1156 = vsel %vm364, %v1151, %v1155
      %v1158 = vshrl.u32 %v939, 16
      %v1160 = vshll.u32 %v939, 16
      %v1162 = vrot.slane %v1160, 1
      %v1163 = vor.u32 %v1158, %v1162
      %v1165 = vshll.u32 %v987, 16
      %v1167 = vrot.slane %v1165, 1
      %v1168 = vsel %vm364, %v1163, %v1167
      %v1170 = vshrl.u32 %v940, 16
      %v1172 = vshll.u32 %v940, 16
      %v1174 = vrot.slane %v1172, 1
      %v1175 = vor.u32 %v1170, %v1174
      %v1177 = vshll.u32 %v988, 16
      %v1179 = vrot.slane %v1177, 1
      %v1180 = vsel %vm364, %v1175, %v1179
      %1181 = vrot.lane.b32.xlu0 %v1000, 32
      %v1182 = vpop.permute.xlu0 %1181
      %1183 = vrot.lane.b32.xlu0 %v1012, 32
      %v1184 = vpop.permute.xlu0 %1183
      %1185 = vrot.lane.b32.xlu0 %v1024, 32
      %v1186 = vpop.permute.xlu0 %1185
      %1187 = vrot.lane.b32.xlu0 %v1036, 32
      %v1188 = vpop.permute.xlu0 %1187
      %1189 = vrot.lane.b32.xlu0 %v1048, 32
      %v1190 = vpop.permute.xlu0 %1189
      %1191 = vrot.lane.b32.xlu0 %v1060, 32
      %v1192 = vpop.permute.xlu0 %1191
      %1193 = vrot.lane.b32.xlu0 %v1072, 32
      %v1194 = vpop.permute.xlu0 %1193
      %1195 = vrot.lane.b32.xlu0 %v1084, 32
      %v1196 = vpop.permute.xlu0 %1195
      %1197 = vrot.lane.b32.xlu0 %v1096, 32
      %v1198 = vpop.permute.xlu0 %1197
      %1199 = vrot.lane.b32.xlu0 %v1108, 32
      %v1200 = vpop.permute.xlu0 %1199
      %1201 = vrot.lane.b32.xlu0 %v1120, 32
      %v1202 = vpop.permute.xlu0 %1201
      %1203 = vrot.lane.b32.xlu0 %v1132, 32
      %v1204 = vpop.permute.xlu0 %1203
      %1205 = vrot.lane.b32.xlu0 %v1144, 32
      %v1206 = vpop.permute.xlu0 %1205
      %1207 = vrot.lane.b32.xlu0 %v1156, 32
      %v1208 = vpop.permute.xlu0 %1207
      %1209 = vrot.lane.b32.xlu0 %v1168, 32
      %v1210 = vpop.permute.xlu0 %1209
      %1211 = vrot.lane.b32.xlu0 %v1180, 32
      %v1212 = vpop.permute.xlu0 %1211
      %v1229 = vunpack.c.l.b16 %v845
      %v1230 = vunpack.c.l.b16 %v846
      %v1231 = vunpack.c.l.b16 %v847
      %v1232 = vunpack.c.l.b16 %v848
      %v1233 = vunpack.c.l.b16 %v849
      %v1234 = vunpack.c.l.b16 %v850
      %v1235 = vunpack.c.l.b16 %v851
      %v1236 = vunpack.c.l.b16 %v852
      %v1237 = vunpack.c.l.b16 %v853
      %v1238 = vunpack.c.l.b16 %v854
      %v1239 = vunpack.c.l.b16 %v855
      %v1240 = vunpack.c.l.b16 %v856
      %v1241 = vunpack.c.l.b16 %v857
      %v1242 = vunpack.c.l.b16 %v858
      %v1243 = vunpack.c.l.b16 %v859
      %v1244 = vunpack.c.l.b16 %v860
      %v1245 = vpack.c.b16 %v894, %v1229
      %v1246 = vpack.c.b16 %v896, %v1230
      %v1247 = vpack.c.b16 %v898, %v1231
      %v1248 = vpack.c.b16 %v900, %v1232
      %v1249 = vpack.c.b16 %v902, %v1233
      %v1250 = vpack.c.b16 %v904, %v1234
      %v1251 = vpack.c.b16 %v906, %v1235
      %v1252 = vpack.c.b16 %v908, %v1236
      %v1253 = vpack.c.b16 %v910, %v1237
      %v1254 = vpack.c.b16 %v912, %v1238
      %v1255 = vpack.c.b16 %v914, %v1239
      %v1256 = vpack.c.b16 %v916, %v1240
      %v1257 = vpack.c.b16 %v918, %v1241
      %v1258 = vpack.c.b16 %v920, %v1242
      %v1259 = vpack.c.b16 %v922, %v1243
      %v1260 = vpack.c.b16 %v924, %v1244
      %v1261 = vrot.slane %v1245, 1
      %v1262 = vrot.slane %v973, 1
      %v1263 = vsel %vm637, %v1261, %v1262
      %v1264 = vrot.slane %v1246, 1
      %v1265 = vrot.slane %v974, 1
      %v1266 = vsel %vm637, %v1264, %v1265
      %v1267 = vrot.slane %v1247, 1
      %v1268 = vrot.slane %v975, 1
      %v1269 = vsel %vm637, %v1267, %v1268
      %v1270 = vrot.slane %v1248, 1
      %v1271 = vrot.slane %v976, 1
      %v1272 = vsel %vm637, %v1270, %v1271
      %v1273 = vrot.slane %v1249, 1
      %v1274 = vrot.slane %v977, 1
      %v1275 = vsel %vm637, %v1273, %v1274
      %v1276 = vrot.slane %v1250, 1
      %v1277 = vrot.slane %v978, 1
      %v1278 = vsel %vm637, %v1276, %v1277
      %v1279 = vrot.slane %v1251, 1
      %v1280 = vrot.slane %v979, 1
      %v1281 = vsel %vm637, %v1279, %v1280
      %v1282 = vrot.slane %v1252, 1
      %v1283 = vrot.slane %v980, 1
      %v1284 = vsel %vm637, %v1282, %v1283
      %v1285 = vrot.slane %v1253, 1
      %v1286 = vrot.slane %v981, 1
      %v1287 = vsel %vm637, %v1285, %v1286
      %v1288 = vrot.slane %v1254, 1
      %v1289 = vrot.slane %v982, 1
      %v1290 = vsel %vm637, %v1288, %v1289
      %v1291 = vrot.slane %v1255, 1
      %v1292 = vrot.slane %v983, 1
      %v1293 = vsel %vm637, %v1291, %v1292
      %v1294 = vrot.slane %v1256, 1
      %v1295 = vrot.slane %v984, 1
      %v1296 = vsel %vm637, %v1294, %v1295
      %v1297 = vrot.slane %v1257, 1
      %v1298 = vrot.slane %v985, 1
      %v1299 = vsel %vm637, %v1297, %v1298
      %v1300 = vrot.slane %v1258, 1
      %v1301 = vrot.slane %v986, 1
      %v1302 = vsel %vm637, %v1300, %v1301
      %v1303 = vrot.slane %v1259, 1
      %v1304 = vrot.slane %v987, 1
      %v1305 = vsel %vm637, %v1303, %v1304
      %v1306 = vrot.slane %v1260, 1
      %v1307 = vrot.slane %v988, 1
      %v1308 = vsel %vm637, %v1306, %v1307
      %1309 = vrot.lane.b32.xlu0 %v1263, 64
      %v1310 = vpop.permute.xlu0 %1309
      %1311 = vrot.lane.b32.xlu0 %v1266, 64
      %v1312 = vpop.permute.xlu0 %1311
      %1313 = vrot.lane.b32.xlu0 %v1269, 64
      %v1314 = vpop.permute.xlu0 %1313
      %1315 = vrot.lane.b32.xlu0 %v1272, 64
      %v1316 = vpop.permute.xlu0 %1315
      %1317 = vrot.lane.b32.xlu0 %v1275, 64
      %v1318 = vpop.permute.xlu0 %1317
      %1319 = vrot.lane.b32.xlu0 %v1278, 64
      %v1320 = vpop.permute.xlu0 %1319
      %1321 = vrot.lane.b32.xlu0 %v1281, 64
      %v1322 = vpop.permute.xlu0 %1321
      %1323 = vrot.lane.b32.xlu0 %v1284, 64
      %v1324 = vpop.permute.xlu0 %1323
      %1325 = vrot.lane.b32.xlu0 %v1287, 64
      %v1326 = vpop.permute.xlu0 %1325
      %1327 = vrot.lane.b32.xlu0 %v1290, 64
      %v1328 = vpop.permute.xlu0 %1327
      %1329 = vrot.lane.b32.xlu0 %v1293, 64
      %v1330 = vpop.permute.xlu0 %1329
      %1331 = vrot.lane.b32.xlu0 %v1296, 64
      %v1332 = vpop.permute.xlu0 %1331
      %1333 = vrot.lane.b32.xlu0 %v1299, 64
      %v1334 = vpop.permute.xlu0 %1333
      %1335 = vrot.lane.b32.xlu0 %v1302, 64
      %v1336 = vpop.permute.xlu0 %1335
      %1337 = vrot.lane.b32.xlu0 %v1305, 64
      %v1338 = vpop.permute.xlu0 %1337
      %1339 = vrot.lane.b32.xlu0 %v1308, 64
      %v1340 = vpop.permute.xlu0 %1339
      %v1342 = vsel %vm718, %v925, %v1182
      %v1344 = vsel %vm718, %v926, %v1184
      %v1346 = vsel %vm718, %v927, %v1186
      %v1348 = vsel %vm718, %v928, %v1188
      %v1350 = vsel %vm718, %v929, %v1190
      %v1352 = vsel %vm718, %v930, %v1192
      %v1354 = vsel %vm718, %v931, %v1194
      %v1356 = vsel %vm718, %v932, %v1196
      %v1358 = vsel %vm718, %v933, %v1198
      %v1360 = vsel %vm718, %v934, %v1200
      %v1362 = vsel %vm718, %v935, %v1202
      %v1364 = vsel %vm718, %v936, %v1204
      %v1366 = vsel %vm718, %v937, %v1206
      %v1368 = vsel %vm718, %v938, %v1208
      %v1370 = vsel %vm718, %v939, %v1210
      %v1372 = vsel %vm718, %v940, %v1212
      %v1374 = vsel %vm751, %v1342, %v1310
      %v1376 = vsel %vm751, %v1344, %v1312
      %v1378 = vsel %vm751, %v1346, %v1314
      %v1380 = vsel %vm751, %v1348, %v1316
      %v1382 = vsel %vm751, %v1350, %v1318
      %v1384 = vsel %vm751, %v1352, %v1320
      %v1386 = vsel %vm751, %v1354, %v1322
      %v1388 = vsel %vm751, %v1356, %v1324
      %v1390 = vsel %vm751, %v1358, %v1326
      %v1392 = vsel %vm751, %v1360, %v1328
      %v1394 = vsel %vm751, %v1362, %v1330
      %v1396 = vsel %vm751, %v1364, %v1332
      %v1398 = vsel %vm751, %v1366, %v1334
      %v1400 = vsel %vm751, %v1368, %v1336
      %v1402 = vsel %vm751, %v1370, %v1338
      %v1404 = vsel %vm751, %v1372, %v1340
      %s1405 = scalar_lea.vmem %s1, 48
      %v1406 = vld [vmem:[%s1405] sm:$0xf]
      %v1407 = vld [vmem:[%s1405 + $0x4] sm:$0xf]
      %v1408 = vld [vmem:[%s1405 + $0x8] sm:$0xf]
      %v1409 = vld [vmem:[%s1405 + $0xc] sm:$0xf]
      %v1410 = vld [vmem:[%s1405 + $0x10] sm:$0xf]
      %v1411 = vld [vmem:[%s1405 + $0x14] sm:$0xf]
      %v1412 = vld [vmem:[%s1405 + $0x18] sm:$0xf]
      %v1413 = vld [vmem:[%s1405 + $0x1c] sm:$0xf]
      %v1414 = vld [vmem:[%s1405 + $0x20] sm:$0xf]
      %v1415 = vld [vmem:[%s1405 + $0x24] sm:$0xf]
      %v1416 = vld [vmem:[%s1405 + $0x28] sm:$0xf]
      %v1417 = vld [vmem:[%s1405 + $0x2c] sm:$0xf]
      %v1430 = vunpack.c.l.b16 %v1406
      %v1431 = vunpack.c.l.b16 %v1407
      %v1432 = vunpack.c.l.b16 %v1408
      %v1433 = vunpack.c.l.b16 %v1409
      %v1434 = vunpack.c.l.b16 %v1410
      %v1435 = vunpack.c.l.b16 %v1411
      %v1436 = vunpack.c.l.b16 %v1412
      %v1437 = vunpack.c.l.b16 %v1413
      %v1438 = vunpack.c.l.b16 %v1414
      %v1439 = vunpack.c.l.b16 %v1415
      %v1440 = vunpack.c.l.b16 %v1416
      %v1441 = vunpack.c.l.b16 %v1417
      %v1442 = vpack.c.b16 %v1431, %v1430
      %v1443 = vpack.c.b16 %v1433, %v1432
      %v1444 = vpack.c.b16 %v1435, %v1434
      %v1445 = vpack.c.b16 %v1437, %v1436
      %v1446 = vpack.c.b16 %v1439, %v1438
      %v1447 = vpack.c.b16 %v1441, %v1440
      %vm1454 = vcmask 785408
      %v1455 = vsel %vm1454, %v1374, 0
      %v1457 = vsel %vm1454, %v1376, 0
      %v1459 = vsel %vm1454, %v1378, 0
      %v1461 = vsel %vm1454, %v1380, 0
      %v1463 = vsel %vm1454, %v1382, 0
      %v1465 = vsel %vm1454, %v1384, 0
      %v1467 = vsel %vm1454, %v1386, 0
      %v1469 = vsel %vm1454, %v1388, 0
      %v1471 = vsel %vm1454, %v1390, 0
      %v1473 = vsel %vm1454, %v1392, 0
      %v1475 = vsel %vm1454, %v1394, 0
      %v1477 = vsel %vm1454, %v1396, 0
      %v1479 = vsel %vm1454, %v1398, 0
      %v1481 = vsel %vm1454, %v1400, 0
      %v1483 = vsel %vm1454, %v1402, 0
      %v1485 = vsel %vm1454, %v1404, 0
      %1487 = vmatprep.subr.bf16.mxu0 0
      %1488 = vmatpush1.bf16.msra.mxu0 %v1442
      %1489 = vmatprep.subr.bf16.mxu0 0
      %1490 = vmatpush1.bf16.msra.mxu0 %v1443
      %1491 = vmatprep.subr.bf16.mxu0 0
      %1492 = vmatpush1.bf16.msra.mxu0 %v1444
      %1493 = vmatprep.subr.bf16.mxu0 0
      %1494 = vmatpush1.bf16.msra.mxu0 %v1445
      %1495 = vmatprep.subr.bf16.mxu0 0
      %1496 = vmatpush1.bf16.msra.mxu0 %v1446
      %1497 = vmatprep.subr.bf16.mxu0 0
      %1498 = vmatpush1.bf16.msra.mxu0 %v1447
      %1499 = vmatprep.subr.bf16.mxu0 0
      %1500 = vmatpush1.bf16.msra.mxu0 0
      %1501 = vmatprep.subr.bf16.mxu0 0
      %1502 = vmatpush1.bf16.msra.mxu0 0
      %1503 = vmatprep.subr.bf16.mxu0 0
      %1504 = vmatpush1.bf16.msra.mxu0 0
      %1505 = vmatprep.subr.bf16.mxu0 0
      %1506 = vmatpush1.bf16.msra.mxu0 0
      %1507 = vmatprep.subr.bf16.mxu0 0
      %1508 = vmatpush1.bf16.msra.mxu0 0
      %1509 = vmatprep.subr.bf16.mxu0 0
      %1510 = vmatpush1.bf16.msra.mxu0 0
      %1511 = vmatprep.subr.bf16.mxu0 0
      %1512 = vmatpush1.bf16.msra.mxu0 0
      %1513 = vmatprep.subr.bf16.mxu0 0
      %1514 = vmatpush1.bf16.msra.mxu0 0
      %1515 = vmatprep.subr.bf16.mxu0 0
      %1516 = vmatpush1.bf16.msra.mxu0 0
      %1517 = vmatprep.subr.bf16.mxu0 0
      %1518 = vmatpush1.bf16.msra.mxu0 0
      %1519 = vmatprep.mubr.bf16.mxu0 0
      %1520 = vmatmul.mubr.bf16.gmra.mrb[0].mxu0 %v1455
      %v1521 = vpop.f32.mrb[0].mxu0
      %v1522 = vadd.f32 0.0, %v1521
      %v1523 = vpop.f32.mrb[0].mxu0
      %v1524 = vpop.f32.mrb[0].mxu0
      %v1525 = vadd.f32 0.0, %v1524
      %v1526 = vpop.f32.mrb[0].mxu0
      %1527 = vmatprep.mubr.bf16.mxu0 0
      %1528 = vmatmul.mubr.bf16.gmra.mrb[0].mxu0 %v1457
      %v1529 = vpop.f32.mrb[0].mxu0
      %v1530 = vadd.f32 0.0, %v1529
      %v1531 = vpop.f32.mrb[0].mxu0
      %v1532 = vpop.f32.mrb[0].mxu0
      %v1533 = vadd.f32 0.0, %v1532
      %v1534 = vpop.f32.mrb[0].mxu0
      %1535 = vmatprep.mubr.bf16.mxu0 0
      %1536 = vmatmul.mubr.bf16.gmra.mrb[0].mxu0 %v1459
      %v1537 = vpop.f32.mrb[0].mxu0
      %v1538 = vadd.f32 0.0, %v1537
      %v1539 = vpop.f32.mrb[0].mxu0
      %v1540 = vpop.f32.mrb[0].mxu0
      %v1541 = vadd.f32 0.0, %v1540
      %v1542 = vpop.f32.mrb[0].mxu0
      %1543 = vmatprep.mubr.bf16.mxu0 0
      %1544 = vmatmul.mubr.bf16.gmra.mrb[0].mxu0 %v1461
      %v1545 = vpop.f32.mrb[0].mxu0
      %v1546 = vadd.f32 0.0, %v1545
      %v1547 = vpop.f32.mrb[0].mxu0
      %v1548 = vpop.f32.mrb[0].mxu0
      %v1549 = vadd.f32 0.0, %v1548
      %v1550 = vpop.f32.mrb[0].mxu0
      %1551 = vmatprep.mubr.bf16.mxu0 0
      %1552 = vmatmul.mubr.bf16.gmra.mrb[0].mxu0 %v1463
      %v1553 = vpop.f32.mrb[0].mxu0
      %v1554 = vadd.f32 0.0, %v1553
      %v1555 = vpop.f32.mrb[0].mxu0
      %v1556 = vpop.f32.mrb[0].mxu0
      %v1557 = vadd.f32 0.0, %v1556
      %v1558 = vpop.f32.mrb[0].mxu0
      %1559 = vmatprep.mubr.bf16.mxu0 0
      %1560 = vmatmul.mubr.bf16.gmra.mrb[0].mxu0 %v1465
      %v1561 = vpop.f32.mrb[0].mxu0
      %v1562 = vadd.f32 0.0, %v1561
      %v1563 = vpop.f32.mrb[0].mxu0
      %v1564 = vpop.f32.mrb[0].mxu0
      %v1565 = vadd.f32 0.0, %v1564
      %v1566 = vpop.f32.mrb[0].mxu0
      %1567 = vmatprep.mubr.bf16.mxu0 0
      %1568 = vmatmul.mubr.bf16.gmra.mrb[0].mxu0 %v1467
      %v1569 = vpop.f32.mrb[0].mxu0
      %v1570 = vadd.f32 0.0, %v1569
      %v1571 = vpop.f32.mrb[0].mxu0
      %v1572 = vpop.f32.mrb[0].mxu0
      %v1573 = vadd.f32 0.0, %v1572
      %v1574 = vpop.f32.mrb[0].mxu0
      %1575 = vmatprep.mubr.bf16.mxu0 0
      %1576 = vmatmul.mubr.bf16.gmra.mrb[0].mxu0 %v1469
      %v1577 = vpop.f32.mrb[0].mxu0
      %v1578 = vadd.f32 0.0, %v1577
      %v1579 = vpop.f32.mrb[0].mxu0
      %v1580 = vpop.f32.mrb[0].mxu0
      %v1581 = vadd.f32 0.0, %v1580
      %v1582 = vpop.f32.mrb[0].mxu0
      %1583 = vmatprep.mubr.bf16.mxu0 0
      %1584 = vmatmul.mubr.bf16.gmra.mrb[0].mxu0 %v1471
      %v1585 = vpop.f32.mrb[0].mxu0
      %v1586 = vadd.f32 0.0, %v1585
      %v1587 = vpop.f32.mrb[0].mxu0
      %v1588 = vpop.f32.mrb[0].mxu0
      %v1589 = vadd.f32 0.0, %v1588
      %v1590 = vpop.f32.mrb[0].mxu0
      %1591 = vmatprep.mubr.bf16.mxu0 0
      %1592 = vmatmul.mubr.bf16.gmra.mrb[0].mxu0 %v1473
      %v1593 = vpop.f32.mrb[0].mxu0
      %v1594 = vadd.f32 0.0, %v1593
      %v1595 = vpop.f32.mrb[0].mxu0
      %v1596 = vpop.f32.mrb[0].mxu0
      %v1597 = vadd.f32 0.0, %v1596
      %v1598 = vpop.f32.mrb[0].mxu0
      %1599 = vmatprep.mubr.bf16.mxu0 0
      %1600 = vmatmul.mubr.bf16.gmra.mrb[0].mxu0 %v1475
      %v1601 = vpop.f32.mrb[0].mxu0
      %v1602 = vadd.f32 0.0, %v1601
      %v1603 = vpop.f32.mrb[0].mxu0
      %v1604 = vpop.f32.mrb[0].mxu0
      %v1605 = vadd.f32 0.0, %v1604
      %v1606 = vpop.f32.mrb[0].mxu0
      %1607 = vmatprep.mubr.bf16.mxu0 0
      %1608 = vmatmul.mubr.bf16.gmra.mrb[0].mxu0 %v1477
      %v1609 = vpop.f32.mrb[0].mxu0
      %v1610 = vadd.f32 0.0, %v1609
      %v1611 = vpop.f32.mrb[0].mxu0
      %v1612 = vpop.f32.mrb[0].mxu0
      %v1613 = vadd.f32 0.0, %v1612
      %v1614 = vpop.f32.mrb[0].mxu0
      %1615 = vmatprep.mubr.bf16.mxu0 0
      %1616 = vmatmul.mubr.bf16.gmra.mrb[0].mxu0 %v1479
      %v1617 = vpop.f32.mrb[0].mxu0
      %v1618 = vadd.f32 0.0, %v1617
      %v1619 = vpop.f32.mrb[0].mxu0
      %v1620 = vpop.f32.mrb[0].mxu0
      %v1621 = vadd.f32 0.0, %v1620
      %v1622 = vpop.f32.mrb[0].mxu0
      %1623 = vmatprep.mubr.bf16.mxu0 0
      %1624 = vmatmul.mubr.bf16.gmra.mrb[0].mxu0 %v1481
      %v1625 = vpop.f32.mrb[0].mxu0
      %v1626 = vadd.f32 0.0, %v1625
      %v1627 = vpop.f32.mrb[0].mxu0
      %v1628 = vpop.f32.mrb[0].mxu0
      %v1629 = vadd.f32 0.0, %v1628
      %v1630 = vpop.f32.mrb[0].mxu0
      %1631 = vmatprep.mubr.bf16.mxu0 0
      %1632 = vmatmul.mubr.bf16.gmra.mrb[0].mxu0 %v1483
      %v1633 = vpop.f32.mrb[0].mxu0
      %v1634 = vadd.f32 0.0, %v1633
      %v1635 = vpop.f32.mrb[0].mxu0
      %v1636 = vpop.f32.mrb[0].mxu0
      %v1637 = vadd.f32 0.0, %v1636
      %v1638 = vpop.f32.mrb[0].mxu0
      %1639 = vmatprep.mubr.bf16.mxu0 0
      %1640 = vmatmul.mubr.bf16.gmra.mrb[0].mxu0 %v1485
      %v1641 = vpop.f32.mrb[0].mxu0
      %v1642 = vadd.f32 0.0, %v1641
      %v1643 = vpop.f32.mrb[0].mxu0
      %v1644 = vpop.f32.mrb[0].mxu0
      %v1645 = vadd.f32 0.0, %v1644
      %v1646 = vpop.f32.mrb[0].mxu0
      %1647 = vdwg.mxu0
      %v1660 = vunpack.c.l.b16 %v784
      %v1661 = vunpack.c.l.b16 %v785
      %v1662 = vunpack.c.l.b16 %v786
      %v1663 = vunpack.c.l.b16 %v787
      %v1664 = vunpack.c.l.b16 %v788
      %v1665 = vunpack.c.l.b16 %v789
      %v1666 = vunpack.c.l.b16 %v790
      %v1667 = vunpack.c.l.b16 %v791
      %v1668 = vunpack.c.l.b16 %v792
      %v1669 = vunpack.c.l.b16 %v793
      %v1670 = vunpack.c.l.b16 %v794
      %v1671 = vunpack.c.l.b16 %v795
      %v1672 = vpack.c.b16 %v1661, %v1660
      %v1673 = vpack.c.b16 %v1663, %v1662
      %v1674 = vpack.c.b16 %v1665, %v1664
      %v1675 = vpack.c.b16 %v1667, %v1666
      %v1676 = vpack.c.b16 %v1669, %v1668
      %v1677 = vpack.c.b16 %v1671, %v1670
      %v1684 = vsel %vm1454, %v753, 0
      %v1686 = vsel %vm1454, %v755, 0
      %v1688 = vsel %vm1454, %v757, 0
      %v1690 = vsel %vm1454, %v759, 0
      %v1692 = vsel %vm1454, %v761, 0
      %v1694 = vsel %vm1454, %v763, 0
      %v1696 = vsel %vm1454, %v765, 0
      %v1698 = vsel %vm1454, %v767, 0
      %v1700 = vsel %vm1454, %v769, 0
      %v1702 = vsel %vm1454, %v771, 0
      %v1704 = vsel %vm1454, %v773, 0
      %v1706 = vsel %vm1454, %v775, 0
      %v1708 = vsel %vm1454, %v777, 0
      %v1710 = vsel %vm1454, %v779, 0
      %v1712 = vsel %vm1454, %v781, 0
      %v1714 = vsel %vm1454, %v783, 0
      %1716 = vmatprep.subr.bf16.mxu0 0
      %1717 = vmatpush1.bf16.msra.mxu0 %v1672
      %1718 = vmatprep.subr.bf16.mxu0 0
      %1719 = vmatpush1.bf16.msra.mxu0 %v1673
      %1720 = vmatprep.subr.bf16.mxu0 0
      %1721 = vmatpush1.bf16.msra.mxu0 %v1674
      %1722 = vmatprep.subr.bf16.mxu0 0
      %1723 = vmatpush1.bf16.msra.mxu0 %v1675
      %1724 = vmatprep.subr.bf16.mxu0 0
      %1725 = vmatpush1.bf16.msra.mxu0 %v1676
      %1726 = vmatprep.subr.bf16.mxu0 0
      %1727 = vmatpush1.bf16.msra.mxu0 %v1677
      %1728 = vmatprep.subr.bf16.mxu0 0
      %1729 = vmatpush1.bf16.msra.mxu0 0
      %1730 = vmatprep.subr.bf16.mxu0 0
      %1731 = vmatpush1.bf16.msra.mxu0 0
      %1732 = vmatprep.subr.bf16.mxu0 0
      %1733 = vmatpush1.bf16.msra.mxu0 0
      %1734 = vmatprep.subr.bf16.mxu0 0
      %1735 = vmatpush1.bf16.msra.mxu0 0
      %1736 = vmatprep.subr.bf16.mxu0 0
      %1737 = vmatpush1.bf16.msra.mxu0 0
      %1738 = vmatprep.subr.bf16.mxu0 0
      %1739 = vmatpush1.bf16.msra.mxu0 0
      %1740 = vmatprep.subr.bf16.mxu0 0
      %1741 = vmatpush1.bf16.msra.mxu0 0
      %1742 = vmatprep.subr.bf16.mxu0 0
      %1743 = vmatpush1.bf16.msra.mxu0 0
      %1744 = vmatprep.subr.bf16.mxu0 0
      %1745 = vmatpush1.bf16.msra.mxu0 0
      %1746 = vmatprep.subr.bf16.mxu0 0
      %1747 = vmatpush1.bf16.msra.mxu0 0
      %1748 = vmatprep.mubr.bf16.mxu0 0
      %1749 = vmatmul.mubr.bf16.gmra.mrb[0].mxu0 %v1684
      %v1750 = vpop.f32.mrb[0].mxu0
      %v1751 = vadd.f32 %v1522, %v1750
      %v1752 = vpop.f32.mrb[0].mxu0
      %v1753 = vpop.f32.mrb[0].mxu0
      %v1754 = vadd.f32 %v1525, %v1753
      %v1755 = vpop.f32.mrb[0].mxu0
      %1756 = vmatprep.mubr.bf16.mxu0 0
      %1757 = vmatmul.mubr.bf16.gmra.mrb[0].mxu0 %v1686
      %v1758 = vpop.f32.mrb[0].mxu0
      %v1759 = vadd.f32 %v1530, %v1758
      %v1760 = vpop.f32.mrb[0].mxu0
      %v1761 = vpop.f32.mrb[0].mxu0
      %v1762 = vadd.f32 %v1533, %v1761
      %v1763 = vpop.f32.mrb[0].mxu0
      %1764 = vmatprep.mubr.bf16.mxu0 0
      %1765 = vmatmul.mubr.bf16.gmra.mrb[0].mxu0 %v1688
      %v1766 = vpop.f32.mrb[0].mxu0
      %v1767 = vadd.f32 %v1538, %v1766
      %v1768 = vpop.f32.mrb[0].mxu0
      %v1769 = vpop.f32.mrb[0].mxu0
      %v1770 = vadd.f32 %v1541, %v1769
      %v1771 = vpop.f32.mrb[0].mxu0
      %1772 = vmatprep.mubr.bf16.mxu0 0
      %1773 = vmatmul.mubr.bf16.gmra.mrb[0].mxu0 %v1690
      %v1774 = vpop.f32.mrb[0].mxu0
      %v1775 = vadd.f32 %v1546, %v1774
      %v1776 = vpop.f32.mrb[0].mxu0
      %v1777 = vpop.f32.mrb[0].mxu0
      %v1778 = vadd.f32 %v1549, %v1777
      %v1779 = vpop.f32.mrb[0].mxu0
      %1780 = vmatprep.mubr.bf16.mxu0 0
      %1781 = vmatmul.mubr.bf16.gmra.mrb[0].mxu0 %v1692
      %v1782 = vpop.f32.mrb[0].mxu0
      %v1783 = vadd.f32 %v1554, %v1782
      %v1784 = vpop.f32.mrb[0].mxu0
      %v1785 = vpop.f32.mrb[0].mxu0
      %v1786 = vadd.f32 %v1557, %v1785
      %v1787 = vpop.f32.mrb[0].mxu0
      %1788 = vmatprep.mubr.bf16.mxu0 0
      %1789 = vmatmul.mubr.bf16.gmra.mrb[0].mxu0 %v1694
      %v1790 = vpop.f32.mrb[0].mxu0
      %v1791 = vadd.f32 %v1562, %v1790
      %v1792 = vpop.f32.mrb[0].mxu0
      %v1793 = vpop.f32.mrb[0].mxu0
      %v1794 = vadd.f32 %v1565, %v1793
      %v1795 = vpop.f32.mrb[0].mxu0
      %1796 = vmatprep.mubr.bf16.mxu0 0
      %1797 = vmatmul.mubr.bf16.gmra.mrb[0].mxu0 %v1696
      %v1798 = vpop.f32.mrb[0].mxu0
      %v1799 = vadd.f32 %v1570, %v1798
      %v1800 = vpop.f32.mrb[0].mxu0
      %v1801 = vpop.f32.mrb[0].mxu0
      %v1802 = vadd.f32 %v1573, %v1801
      %v1803 = vpop.f32.mrb[0].mxu0
      %1804 = vmatprep.mubr.bf16.mxu0 0
      %1805 = vmatmul.mubr.bf16.gmra.mrb[0].mxu0 %v1698
      %v1806 = vpop.f32.mrb[0].mxu0
      %v1807 = vadd.f32 %v1578, %v1806
      %v1808 = vpop.f32.mrb[0].mxu0
      %v1809 = vpop.f32.mrb[0].mxu0
      %v1810 = vadd.f32 %v1581, %v1809
      %v1811 = vpop.f32.mrb[0].mxu0
      %1812 = vmatprep.mubr.bf16.mxu0 0
      %1813 = vmatmul.mubr.bf16.gmra.mrb[0].mxu0 %v1700
      %v1814 = vpop.f32.mrb[0].mxu0
      %v1815 = vadd.f32 %v1586, %v1814
      %v1816 = vpop.f32.mrb[0].mxu0
      %v1817 = vpop.f32.mrb[0].mxu0
      %v1818 = vadd.f32 %v1589, %v1817
      %v1819 = vpop.f32.mrb[0].mxu0
      %1820 = vmatprep.mubr.bf16.mxu0 0
      %1821 = vmatmul.mubr.bf16.gmra.mrb[0].mxu0 %v1702
      %v1822 = vpop.f32.mrb[0].mxu0
      %v1823 = vadd.f32 %v1594, %v1822
      %v1824 = vpop.f32.mrb[0].mxu0
      %v1825 = vpop.f32.mrb[0].mxu0
      %v1826 = vadd.f32 %v1597, %v1825
      %v1827 = vpop.f32.mrb[0].mxu0
      %1828 = vmatprep.mubr.bf16.mxu0 0
      %1829 = vmatmul.mubr.bf16.gmra.mrb[0].mxu0 %v1704
      %v1830 = vpop.f32.mrb[0].mxu0
      %v1831 = vadd.f32 %v1602, %v1830
      %v1832 = vpop.f32.mrb[0].mxu0
      %v1833 = vpop.f32.mrb[0].mxu0
      %v1834 = vadd.f32 %v1605, %v1833
      %v1835 = vpop.f32.mrb[0].mxu0
      %1836 = vmatprep.mubr.bf16.mxu0 0
      %1837 = vmatmul.mubr.bf16.gmra.mrb[0].mxu0 %v1706
      %v1838 = vpop.f32.mrb[0].mxu0
      %v1839 = vadd.f32 %v1610, %v1838
      %v1840 = vpop.f32.mrb[0].mxu0
      %v1841 = vpop.f32.mrb[0].mxu0
      %v1842 = vadd.f32 %v1613, %v1841
      %v1843 = vpop.f32.mrb[0].mxu0
      %1844 = vmatprep.mubr.bf16.mxu0 0
      %1845 = vmatmul.mubr.bf16.gmra.mrb[0].mxu0 %v1708
      %v1846 = vpop.f32.mrb[0].mxu0
      %v1847 = vadd.f32 %v1618, %v1846
      %v1848 = vpop.f32.mrb[0].mxu0
      %v1849 = vpop.f32.mrb[0].mxu0
      %v1850 = vadd.f32 %v1621, %v1849
      %v1851 = vpop.f32.mrb[0].mxu0
      %1852 = vmatprep.mubr.bf16.mxu0 0
      %1853 = vmatmul.mubr.bf16.gmra.mrb[0].mxu0 %v1710
      %v1854 = vpop.f32.mrb[0].mxu0
      %v1855 = vadd.f32 %v1626, %v1854
      %v1856 = vpop.f32.mrb[0].mxu0
      %v1857 = vpop.f32.mrb[0].mxu0
      %v1858 = vadd.f32 %v1629, %v1857
      %v1859 = vpop.f32.mrb[0].mxu0
      %1860 = vmatprep.mubr.bf16.mxu0 0
      %1861 = vmatmul.mubr.bf16.gmra.mrb[0].mxu0 %v1712
      %v1862 = vpop.f32.mrb[0].mxu0
      %v1863 = vadd.f32 %v1634, %v1862
      %v1864 = vpop.f32.mrb[0].mxu0
      %v1865 = vpop.f32.mrb[0].mxu0
      %v1866 = vadd.f32 %v1637, %v1865
      %v1867 = vpop.f32.mrb[0].mxu0
      %1868 = vmatprep.mubr.bf16.mxu0 0
      %1869 = vmatmul.mubr.bf16.gmra.mrb[0].mxu0 %v1714
      %v1870 = vpop.f32.mrb[0].mxu0
      %v1871 = vadd.f32 %v1642, %v1870
      %v1872 = vpop.f32.mrb[0].mxu0
      %v1873 = vpop.f32.mrb[0].mxu0
      %v1874 = vadd.f32 %v1645, %v1873
      %v1875 = vpop.f32.mrb[0].mxu0
      %1876 = vdwg.mxu0
      %s1877 = scalar_lea.vmem %s165, 24
      %v1878 = vld [vmem:[%s1877] sm:$0xf]
      %v1879 = vld [vmem:[%s1877 + $0x4] sm:$0xf]
      %v1880 = vld [vmem:[%s1877 + $0xc] sm:$0xf]
      %v1881 = vld [vmem:[%s1877 + $0x10] sm:$0xf]
      %v1882 = vld [vmem:[%s1877 + $0x18] sm:$0xf]
      %v1883 = vld [vmem:[%s1877 + $0x1c] sm:$0xf]
      %v1884 = vld [vmem:[%s1877 + $0x24] sm:$0xf]
      %v1885 = vld [vmem:[%s1877 + $0x28] sm:$0xf]
      %v1886 = vld [vmem:[%s1877 + $0x30] sm:$0xf]
      %v1887 = vld [vmem:[%s1877 + $0x34] sm:$0xf]
      %v1888 = vld [vmem:[%s1877 + $0x3c] sm:$0xf]
      %v1889 = vld [vmem:[%s1877 + $0x40] sm:$0xf]
      %v1890 = vld [vmem:[%s1877 + $0x48] sm:$0xf]
      %v1891 = vld [vmem:[%s1877 + $0x4c] sm:$0xf]
      %v1892 = vld [vmem:[%s1877 + $0x54] sm:$0xf]
      %v1893 = vld [vmem:[%s1877 + $0x58] sm:$0xf]
      %v1894 = vld [vmem:[%s1877 + $0x60] sm:$0xf]
      %v1895 = vld [vmem:[%s1877 + $0x64] sm:$0xf]
      %v1896 = vld [vmem:[%s1877 + $0x6c] sm:$0xf]
      %v1897 = vld [vmem:[%s1877 + $0x70] sm:$0xf]
      %v1898 = vld [vmem:[%s1877 + $0x78] sm:$0xf]
      %v1899 = vld [vmem:[%s1877 + $0x7c] sm:$0xf]
      %v1900 = vld [vmem:[%s1877 + $0x84] sm:$0xf]
      %v1901 = vld [vmem:[%s1877 + $0x88] sm:$0xf]
      %v1902 = vld [vmem:[%s1877 + $0x90] sm:$0xf]
      %v1903 = vld [vmem:[%s1877 + $0x94] sm:$0xf]
      %v1904 = vld [vmem:[%s1877 + $0x9c] sm:$0xf]
      %v1905 = vld [vmem:[%s1877 + $0xa0] sm:$0xf]
      %v1906 = vld [vmem:[%s1877 + $0xa8] sm:$0xf]
      %v1907 = vld [vmem:[%s1877 + $0xac] sm:$0xf]
      %v1908 = vld [vmem:[%s1877 + $0xb4] sm:$0xf]
      %v1909 = vld [vmem:[%s1877 + $0xb8] sm:$0xf]
      %v1910 = vld [vmem:[%s1877 + $0x8] sm:$0x1]
      %v1911 = vld [vmem:[%s1877 + $0x14] sm:$0x1]
      %v1912 = vld [vmem:[%s1877 + $0x20] sm:$0x1]
      %v1913 = vld [vmem:[%s1877 + $0x2c] sm:$0x1]
      %v1914 = vld [vmem:[%s1877 + $0x38] sm:$0x1]
      %v1915 = vld [vmem:[%s1877 + $0x44] sm:$0x1]
      %v1916 = vld [vmem:[%s1877 + $0x50] sm:$0x1]
      %v1917 = vld [vmem:[%s1877 + $0x5c] sm:$0x1]
      %v1918 = vld [vmem:[%s1877 + $0x68] sm:$0x1]
      %v1919 = vld [vmem:[%s1877 + $0x74] sm:$0x1]
      %v1920 = vld [vmem:[%s1877 + $0x80] sm:$0x1]
      %v1921 = vld [vmem:[%s1877 + $0x8c] sm:$0x1]
      %v1922 = vld [vmem:[%s1877 + $0x98] sm:$0x1]
      %v1923 = vld [vmem:[%s1877 + $0xa4] sm:$0x1]
      %v1924 = vld [vmem:[%s1877 + $0xb0] sm:$0x1]
      %v1925 = vld [vmem:[%s1877 + $0xbc] sm:$0x1]
      %v1926 = vld [vmem:[%s1877] sm:$0xe]
      %v1927 = vld [vmem:[%s1877 + $0xc] sm:$0xe]
      %v1928 = vld [vmem:[%s1877 + $0x18] sm:$0xe]
      %v1929 = vld [vmem:[%s1877 + $0x24] sm:$0xe]
      %v1930 = vld [vmem:[%s1877 + $0x30] sm:$0xe]
      %v1931 = vld [vmem:[%s1877 + $0x3c] sm:$0xe]
      %v1932 = vld [vmem:[%s1877 + $0x48] sm:$0xe]
      %v1933 = vld [vmem:[%s1877 + $0x54] sm:$0xe]
      %v1934 = vld [vmem:[%s1877 + $0x60] sm:$0xe]
      %v1935 = vld [vmem:[%s1877 + $0x6c] sm:$0xe]
      %v1936 = vld [vmem:[%s1877 + $0x78] sm:$0xe]
      %v1937 = vld [vmem:[%s1877 + $0x84] sm:$0xe]
      %v1938 = vld [vmem:[%s1877 + $0x90] sm:$0xe]
      %v1939 = vld [vmem:[%s1877 + $0x9c] sm:$0xe]
      %v1940 = vld [vmem:[%s1877 + $0xa8] sm:$0xe]
      %v1941 = vld [vmem:[%s1877 + $0xb4] sm:$0xe]
      %v1974 = vunpack.c.l.b16 %v1878
      %v1975 = vunpack.c.l.b16 %v1879
      %v1976 = vunpack.c.l.b16 %v1880
      %v1977 = vunpack.c.l.b16 %v1881
      %v1978 = vunpack.c.l.b16 %v1882
      %v1979 = vunpack.c.l.b16 %v1883
      %v1980 = vunpack.c.l.b16 %v1884
      %v1981 = vunpack.c.l.b16 %v1885
      %v1982 = vunpack.c.l.b16 %v1886
      %v1983 = vunpack.c.l.b16 %v1887
      %v1984 = vunpack.c.l.b16 %v1888
      %v1985 = vunpack.c.l.b16 %v1889
      %v1986 = vunpack.c.l.b16 %v1890
      %v1987 = vunpack.c.l.b16 %v1891
      %v1988 = vunpack.c.l.b16 %v1892
      %v1989 = vunpack.c.l.b16 %v1893
      %v1990 = vunpack.c.l.b16 %v1894
      %v1991 = vunpack.c.l.b16 %v1895
      %v1992 = vunpack.c.l.b16 %v1896
      %v1993 = vunpack.c.l.b16 %v1897
      %v1994 = vunpack.c.l.b16 %v1898
      %v1995 = vunpack.c.l.b16 %v1899
      %v1996 = vunpack.c.l.b16 %v1900
      %v1997 = vunpack.c.l.b16 %v1901
      %v1998 = vunpack.c.l.b16 %v1902
      %v1999 = vunpack.c.l.b16 %v1903
      %v2000 = vunpack.c.l.b16 %v1904
      %v2001 = vunpack.c.l.b16 %v1905
      %v2002 = vunpack.c.l.b16 %v1906
      %v2003 = vunpack.c.l.b16 %v1907
      %v2004 = vunpack.c.l.b16 %v1908
      %v2005 = vunpack.c.l.b16 %v1909
      %v2006 = vpack.c.b16 %v1975, %v1974
      %v2007 = vpack.c.b16 %v1977, %v1976
      %v2008 = vpack.c.b16 %v1979, %v1978
      %v2009 = vpack.c.b16 %v1981, %v1980
      %v2010 = vpack.c.b16 %v1983, %v1982
      %v2011 = vpack.c.b16 %v1985, %v1984
      %v2012 = vpack.c.b16 %v1987, %v1986
      %v2013 = vpack.c.b16 %v1989, %v1988
      %v2014 = vpack.c.b16 %v1991, %v1990
      %v2015 = vpack.c.b16 %v1993, %v1992
      %v2016 = vpack.c.b16 %v1995, %v1994
      %v2017 = vpack.c.b16 %v1997, %v1996
      %v2018 = vpack.c.b16 %v1999, %v1998
      %v2019 = vpack.c.b16 %v2001, %v2000
      %v2020 = vpack.c.b16 %v2003, %v2002
      %v2021 = vpack.c.b16 %v2005, %v2004
      %v2038 = vunpack.c.l.b16 %v1910
      %v2039 = vunpack.c.l.b16 %v1911
      %v2040 = vunpack.c.l.b16 %v1912
      %v2041 = vunpack.c.l.b16 %v1913
      %v2042 = vunpack.c.l.b16 %v1914
      %v2043 = vunpack.c.l.b16 %v1915
      %v2044 = vunpack.c.l.b16 %v1916
      %v2045 = vunpack.c.l.b16 %v1917
      %v2046 = vunpack.c.l.b16 %v1918
      %v2047 = vunpack.c.l.b16 %v1919
      %v2048 = vunpack.c.l.b16 %v1920
      %v2049 = vunpack.c.l.b16 %v1921
      %v2050 = vunpack.c.l.b16 %v1922
      %v2051 = vunpack.c.l.b16 %v1923
      %v2052 = vunpack.c.l.b16 %v1924
      %v2053 = vunpack.c.l.b16 %v1925
      %v2054 = vpack.c.b16 %v2038, %v2038
      %v2055 = vpack.c.b16 %v2039, %v2039
      %v2056 = vpack.c.b16 %v2040, %v2040
      %v2057 = vpack.c.b16 %v2041, %v2041
      %v2058 = vpack.c.b16 %v2042, %v2042
      %v2059 = vpack.c.b16 %v2043, %v2043
      %v2060 = vpack.c.b16 %v2044, %v2044
      %v2061 = vpack.c.b16 %v2045, %v2045
      %v2062 = vpack.c.b16 %v2046, %v2046
      %v2063 = vpack.c.b16 %v2047, %v2047
      %v2064 = vpack.c.b16 %v2048, %v2048
      %v2065 = vpack.c.b16 %v2049, %v2049
      %v2066 = vpack.c.b16 %v2050, %v2050
      %v2067 = vpack.c.b16 %v2051, %v2051
      %v2068 = vpack.c.b16 %v2052, %v2052
      %v2069 = vpack.c.b16 %v2053, %v2053
      %v2071 = vshrl.u32 %v2006, 16
      %v2073 = vshll.u32 %v2006, 16
      %v2075 = vrot.slane %v2073, 1
      %v2076 = vor.u32 %v2071, %v2075
      %v2078 = vshll.u32 %v2054, 16
      %v2080 = vrot.slane %v2078, 1
      %v2081 = vsel %vm364, %v2076, %v2080
      %v2083 = vshrl.u32 %v2007, 16
      %v2085 = vshll.u32 %v2007, 16
      %v2087 = vrot.slane %v2085, 1
      %v2088 = vor.u32 %v2083, %v2087
      %v2090 = vshll.u32 %v2055, 16
      %v2092 = vrot.slane %v2090, 1
      %v2093 = vsel %vm364, %v2088, %v2092
      %v2095 = vshrl.u32 %v2008, 16
      %v2097 = vshll.u32 %v2008, 16
      %v2099 = vrot.slane %v2097, 1
      %v2100 = vor.u32 %v2095, %v2099
      %v2102 = vshll.u32 %v2056, 16
      %v2104 = vrot.slane %v2102, 1
      %v2105 = vsel %vm364, %v2100, %v2104
      %v2107 = vshrl.u32 %v2009, 16
      %v2109 = vshll.u32 %v2009, 16
      %v2111 = vrot.slane %v2109, 1
      %v2112 = vor.u32 %v2107, %v2111
      %v2114 = vshll.u32 %v2057, 16
      %v2116 = vrot.slane %v2114, 1
      %v2117 = vsel %vm364, %v2112, %v2116
      %v2119 = vshrl.u32 %v2010, 16
      %v2121 = vshll.u32 %v2010, 16
      %v2123 = vrot.slane %v2121, 1
      %v2124 = vor.u32 %v2119, %v2123
      %v2126 = vshll.u32 %v2058, 16
      %v2128 = vrot.slane %v2126, 1
      %v2129 = vsel %vm364, %v2124, %v2128
      %v2131 = vshrl.u32 %v2011, 16
      %v2133 = vshll.u32 %v2011, 16
      %v2135 = vrot.slane %v2133, 1
      %v2136 = vor.u32 %v2131, %v2135
      %v2138 = vshll.u32 %v2059, 16
      %v2140 = vrot.slane %v2138, 1
      %v2141 = vsel %vm364, %v2136, %v2140
      %v2143 = vshrl.u32 %v2012, 16
      %v2145 = vshll.u32 %v2012, 16
      %v2147 = vrot.slane %v2145, 1
      %v2148 = vor.u32 %v2143, %v2147
      %v2150 = vshll.u32 %v2060, 16
      %v2152 = vrot.slane %v2150, 1
      %v2153 = vsel %vm364, %v2148, %v2152
      %v2155 = vshrl.u32 %v2013, 16
      %v2157 = vshll.u32 %v2013, 16
      %v2159 = vrot.slane %v2157, 1
      %v2160 = vor.u32 %v2155, %v2159
      %v2162 = vshll.u32 %v2061, 16
      %v2164 = vrot.slane %v2162, 1
      %v2165 = vsel %vm364, %v2160, %v2164
      %v2167 = vshrl.u32 %v2014, 16
      %v2169 = vshll.u32 %v2014, 16
      %v2171 = vrot.slane %v2169, 1
      %v2172 = vor.u32 %v2167, %v2171
      %v2174 = vshll.u32 %v2062, 16
      %v2176 = vrot.slane %v2174, 1
      %v2177 = vsel %vm364, %v2172, %v2176
      %v2179 = vshrl.u32 %v2015, 16
      %v2181 = vshll.u32 %v2015, 16
      %v2183 = vrot.slane %v2181, 1
      %v2184 = vor.u32 %v2179, %v2183
      %v2186 = vshll.u32 %v2063, 16
      %v2188 = vrot.slane %v2186, 1
      %v2189 = vsel %vm364, %v2184, %v2188
      %v2191 = vshrl.u32 %v2016, 16
      %v2193 = vshll.u32 %v2016, 16
      %v2195 = vrot.slane %v2193, 1
      %v2196 = vor.u32 %v2191, %v2195
      %v2198 = vshll.u32 %v2064, 16
      %v2200 = vrot.slane %v2198, 1
      %v2201 = vsel %vm364, %v2196, %v2200
      %v2203 = vshrl.u32 %v2017, 16
      %v2205 = vshll.u32 %v2017, 16
      %v2207 = vrot.slane %v2205, 1
      %v2208 = vor.u32 %v2203, %v2207
      %v2210 = vshll.u32 %v2065, 16
      %v2212 = vrot.slane %v2210, 1
      %v2213 = vsel %vm364, %v2208, %v2212
      %v2215 = vshrl.u32 %v2018, 16
      %v2217 = vshll.u32 %v2018, 16
      %v2219 = vrot.slane %v2217, 1
      %v2220 = vor.u32 %v2215, %v2219
      %v2222 = vshll.u32 %v2066, 16
      %v2224 = vrot.slane %v2222, 1
      %v2225 = vsel %vm364, %v2220, %v2224
      %v2227 = vshrl.u32 %v2019, 16
      %v2229 = vshll.u32 %v2019, 16
      %v2231 = vrot.slane %v2229, 1
      %v2232 = vor.u32 %v2227, %v2231
      %v2234 = vshll.u32 %v2067, 16
      %v2236 = vrot.slane %v2234, 1
      %v2237 = vsel %vm364, %v2232, %v2236
      %v2239 = vshrl.u32 %v2020, 16
      %v2241 = vshll.u32 %v2020, 16
      %v2243 = vrot.slane %v2241, 1
      %v2244 = vor.u32 %v2239, %v2243
      %v2246 = vshll.u32 %v2068, 16
      %v2248 = vrot.slane %v2246, 1
      %v2249 = vsel %vm364, %v2244, %v2248
      %v2251 = vshrl.u32 %v2021, 16
      %v2253 = vshll.u32 %v2021, 16
      %v2255 = vrot.slane %v2253, 1
      %v2256 = vor.u32 %v2251, %v2255
      %v2258 = vshll.u32 %v2069, 16
      %v2260 = vrot.slane %v2258, 1
      %v2261 = vsel %vm364, %v2256, %v2260
      %2262 = vrot.lane.b32.xlu0 %v2081, 32
      %v2263 = vpop.permute.xlu0 %2262
      %2264 = vrot.lane.b32.xlu0 %v2093, 32
      %v2265 = vpop.permute.xlu0 %2264
      %2266 = vrot.lane.b32.xlu0 %v2105, 32
      %v2267 = vpop.permute.xlu0 %2266
      %2268 = vrot.lane.b32.xlu0 %v2117, 32
      %v2269 = vpop.permute.xlu0 %2268
      %2270 = vrot.lane.b32.xlu0 %v2129, 32
      %v2271 = vpop.permute.xlu0 %2270
      %2272 = vrot.lane.b32.xlu0 %v2141, 32
      %v2273 = vpop.permute.xlu0 %2272
      %2274 = vrot.lane.b32.xlu0 %v2153, 32
      %v2275 = vpop.permute.xlu0 %2274
      %2276 = vrot.lane.b32.xlu0 %v2165, 32
      %v2277 = vpop.permute.xlu0 %2276
      %2278 = vrot.lane.b32.xlu0 %v2177, 32
      %v2279 = vpop.permute.xlu0 %2278
      %2280 = vrot.lane.b32.xlu0 %v2189, 32
      %v2281 = vpop.permute.xlu0 %2280
      %2282 = vrot.lane.b32.xlu0 %v2201, 32
      %v2283 = vpop.permute.xlu0 %2282
      %2284 = vrot.lane.b32.xlu0 %v2213, 32
      %v2285 = vpop.permute.xlu0 %2284
      %2286 = vrot.lane.b32.xlu0 %v2225, 32
      %v2287 = vpop.permute.xlu0 %2286
      %2288 = vrot.lane.b32.xlu0 %v2237, 32
      %v2289 = vpop.permute.xlu0 %2288
      %2290 = vrot.lane.b32.xlu0 %v2249, 32
      %v2291 = vpop.permute.xlu0 %2290
      %2292 = vrot.lane.b32.xlu0 %v2261, 32
      %v2293 = vpop.permute.xlu0 %2292
      %v2310 = vunpack.c.l.b16 %v1926
      %v2311 = vunpack.c.l.b16 %v1927
      %v2312 = vunpack.c.l.b16 %v1928
      %v2313 = vunpack.c.l.b16 %v1929
      %v2314 = vunpack.c.l.b16 %v1930
      %v2315 = vunpack.c.l.b16 %v1931
      %v2316 = vunpack.c.l.b16 %v1932
      %v2317 = vunpack.c.l.b16 %v1933
      %v2318 = vunpack.c.l.b16 %v1934
      %v2319 = vunpack.c.l.b16 %v1935
      %v2320 = vunpack.c.l.b16 %v1936
      %v2321 = vunpack.c.l.b16 %v1937
      %v2322 = vunpack.c.l.b16 %v1938
      %v2323 = vunpack.c.l.b16 %v1939
      %v2324 = vunpack.c.l.b16 %v1940
      %v2325 = vunpack.c.l.b16 %v1941
      %v2326 = vpack.c.b16 %v1975, %v2310
      %v2327 = vpack.c.b16 %v1977, %v2311
      %v2328 = vpack.c.b16 %v1979, %v2312
      %v2329 = vpack.c.b16 %v1981, %v2313
      %v2330 = vpack.c.b16 %v1983, %v2314
      %v2331 = vpack.c.b16 %v1985, %v2315
      %v2332 = vpack.c.b16 %v1987, %v2316
      %v2333 = vpack.c.b16 %v1989, %v2317
      %v2334 = vpack.c.b16 %v1991, %v2318
      %v2335 = vpack.c.b16 %v1993, %v2319
      %v2336 = vpack.c.b16 %v1995, %v2320
      %v2337 = vpack.c.b16 %v1997, %v2321
      %v2338 = vpack.c.b16 %v1999, %v2322
      %v2339 = vpack.c.b16 %v2001, %v2323
      %v2340 = vpack.c.b16 %v2003, %v2324
      %v2341 = vpack.c.b16 %v2005, %v2325
      %v2342 = vrot.slane %v2326, 1
      %v2343 = vrot.slane %v2054, 1
      %v2344 = vsel %vm637, %v2342, %v2343
      %v2345 = vrot.slane %v2327, 1
      %v2346 = vrot.slane %v2055, 1
      %v2347 = vsel %vm637, %v2345, %v2346
      %v2348 = vrot.slane %v2328, 1
      %v2349 = vrot.slane %v2056, 1
      %v2350 = vsel %vm637, %v2348, %v2349
      %v2351 = vrot.slane %v2329, 1
      %v2352 = vrot.slane %v2057, 1
      %v2353 = vsel %vm637, %v2351, %v2352
      %v2354 = vrot.slane %v2330, 1
      %v2355 = vrot.slane %v2058, 1
      %v2356 = vsel %vm637, %v2354, %v2355
      %v2357 = vrot.slane %v2331, 1
      %v2358 = vrot.slane %v2059, 1
      %v2359 = vsel %vm637, %v2357, %v2358
      %v2360 = vrot.slane %v2332, 1
      %v2361 = vrot.slane %v2060, 1
      %v2362 = vsel %vm637, %v2360, %v2361
      %v2363 = vrot.slane %v2333, 1
      %v2364 = vrot.slane %v2061, 1
      %v2365 = vsel %vm637, %v2363, %v2364
      %v2366 = vrot.slane %v2334, 1
      %v2367 = vrot.slane %v2062, 1
      %v2368 = vsel %vm637, %v2366, %v2367
      %v2369 = vrot.slane %v2335, 1
      %v2370 = vrot.slane %v2063, 1
      %v2371 = vsel %vm637, %v2369, %v2370
      %v2372 = vrot.slane %v2336, 1
      %v2373 = vrot.slane %v2064, 1
      %v2374 = vsel %vm637, %v2372, %v2373
      %v2375 = vrot.slane %v2337, 1
      %v2376 = vrot.slane %v2065, 1
      %v2377 = vsel %vm637, %v2375, %v2376
      %v2378 = vrot.slane %v2338, 1
      %v2379 = vrot.slane %v2066, 1
      %v2380 = vsel %vm637, %v2378, %v2379
      %v2381 = vrot.slane %v2339, 1
      %v2382 = vrot.slane %v2067, 1
      %v2383 = vsel %vm637, %v2381, %v2382
      %v2384 = vrot.slane %v2340, 1
      %v2385 = vrot.slane %v2068, 1
      %v2386 = vsel %vm637, %v2384, %v2385
      %v2387 = vrot.slane %v2341, 1
      %v2388 = vrot.slane %v2069, 1
      %v2389 = vsel %vm637, %v2387, %v2388
      %2390 = vrot.lane.b32.xlu0 %v2344, 64
      %v2391 = vpop.permute.xlu0 %2390
      %2392 = vrot.lane.b32.xlu0 %v2347, 64
      %v2393 = vpop.permute.xlu0 %2392
      %2394 = vrot.lane.b32.xlu0 %v2350, 64
      %v2395 = vpop.permute.xlu0 %2394
      %2396 = vrot.lane.b32.xlu0 %v2353, 64
      %v2397 = vpop.permute.xlu0 %2396
      %2398 = vrot.lane.b32.xlu0 %v2356, 64
      %v2399 = vpop.permute.xlu0 %2398
      %2400 = vrot.lane.b32.xlu0 %v2359, 64
      %v2401 = vpop.permute.xlu0 %2400
      %2402 = vrot.lane.b32.xlu0 %v2362, 64
      %v2403 = vpop.permute.xlu0 %2402
      %2404 = vrot.lane.b32.xlu0 %v2365, 64
      %v2405 = vpop.permute.xlu0 %2404
      %2406 = vrot.lane.b32.xlu0 %v2368, 64
      %v2407 = vpop.permute.xlu0 %2406
      %2408 = vrot.lane.b32.xlu0 %v2371, 64
      %v2409 = vpop.permute.xlu0 %2408
      %2410 = vrot.lane.b32.xlu0 %v2374, 64
      %v2411 = vpop.permute.xlu0 %2410
      %2412 = vrot.lane.b32.xlu0 %v2377, 64
      %v2413 = vpop.permute.xlu0 %2412
      %2414 = vrot.lane.b32.xlu0 %v2380, 64
      %v2415 = vpop.permute.xlu0 %2414
      %2416 = vrot.lane.b32.xlu0 %v2383, 64
      %v2417 = vpop.permute.xlu0 %2416
      %2418 = vrot.lane.b32.xlu0 %v2386, 64
      %v2419 = vpop.permute.xlu0 %2418
      %2420 = vrot.lane.b32.xlu0 %v2389, 64
      %v2421 = vpop.permute.xlu0 %2420
      %v2423 = vsel %vm718, %v2006, %v2263
      %v2425 = vsel %vm718, %v2007, %v2265
      %v2427 = vsel %vm718, %v2008, %v2267
      %v2429 = vsel %vm718, %v2009, %v2269
      %v2431 = vsel %vm718, %v2010, %v2271
      %v2433 = vsel %vm718, %v2011, %v2273
      %v2435 = vsel %vm718, %v2012, %v2275
      %v2437 = vsel %vm718, %v2013, %v2277
      %v2439 = vsel %vm718, %v2014, %v2279
      %v2441 = vsel %vm718, %v2015, %v2281
      %v2443 = vsel %vm718, %v2016, %v2283
      %v2445 = vsel %vm718, %v2017, %v2285
      %v2447 = vsel %vm718, %v2018, %v2287
      %v2449 = vsel %vm718, %v2019, %v2289
      %v2451 = vsel %vm718, %v2020, %v2291
      %v2453 = vsel %vm718, %v2021, %v2293
      %v2455 = vsel %vm751, %v2423, %v2391
      %v2457 = vsel %vm751, %v2425, %v2393
      %v2459 = vsel %vm751, %v2427, %v2395
      %v2461 = vsel %vm751, %v2429, %v2397
      %v2463 = vsel %vm751, %v2431, %v2399
      %v2465 = vsel %vm751, %v2433, %v2401
      %v2467 = vsel %vm751, %v2435, %v2403
      %v2469 = vsel %vm751, %v2437, %v2405
      %v2471 = vsel %vm751, %v2439, %v2407
      %v2473 = vsel %vm751, %v2441, %v2409
      %v2475 = vsel %vm751, %v2443, %v2411
      %v2477 = vsel %vm751, %v2445, %v2413
      %v2479 = vsel %vm751, %v2447, %v2415
      %v2481 = vsel %vm751, %v2449, %v2417
      %v2483 = vsel %vm751, %v2451, %v2419
      %v2485 = vsel %vm751, %v2453, %v2421
      %s2486 = scalar_lea.vmem %s1, 96
      %v2487 = vld [vmem:[%s2486] sm:$0xf]
      %v2488 = vld [vmem:[%s2486 + $0x4] sm:$0xf]
      %v2489 = vld [vmem:[%s2486 + $0x8] sm:$0xf]
      %v2490 = vld [vmem:[%s2486 + $0xc] sm:$0xf]
      %v2491 = vld [vmem:[%s2486 + $0x10] sm:$0xf]
      %v2492 = vld [vmem:[%s2486 + $0x14] sm:$0xf]
      %v2493 = vld [vmem:[%s2486 + $0x18] sm:$0xf]
      %v2494 = vld [vmem:[%s2486 + $0x1c] sm:$0xf]
      %v2495 = vld [vmem:[%s2486 + $0x20] sm:$0xf]
      %v2496 = vld [vmem:[%s2486 + $0x24] sm:$0xf]
      %v2497 = vld [vmem:[%s2486 + $0x28] sm:$0xf]
      %v2498 = vld [vmem:[%s2486 + $0x2c] sm:$0xf]
      %v2511 = vunpack.c.l.b16 %v2487
      %v2512 = vunpack.c.l.b16 %v2488
      %v2513 = vunpack.c.l.b16 %v2489
      %v2514 = vunpack.c.l.b16 %v2490
      %v2515 = vunpack.c.l.b16 %v2491
      %v2516 = vunpack.c.l.b16 %v2492
      %v2517 = vunpack.c.l.b16 %v2493
      %v2518 = vunpack.c.l.b16 %v2494
      %v2519 = vunpack.c.l.b16 %v2495
      %v2520 = vunpack.c.l.b16 %v2496
      %v2521 = vunpack.c.l.b16 %v2497
      %v2522 = vunpack.c.l.b16 %v2498
      %v2523 = vpack.c.b16 %v2512, %v2511
      %v2524 = vpack.c.b16 %v2514, %v2513
      %v2525 = vpack.c.b16 %v2516, %v2515
      %v2526 = vpack.c.b16 %v2518, %v2517
      %v2527 = vpack.c.b16 %v2520, %v2519
      %v2528 = vpack.c.b16 %v2522, %v2521
      %v2535 = vsel %vm1454, %v2455, 0
      %v2537 = vsel %vm1454, %v2457, 0
      %v2539 = vsel %vm1454, %v2459, 0
      %v2541 = vsel %vm1454, %v2461, 0
      %v2543 = vsel %vm1454, %v2463, 0
      %v2545 = vsel %vm1454, %v2465, 0
      %v2547 = vsel %vm1454, %v2467, 0
      %v2549 = vsel %vm1454, %v2469, 0
      %v2551 = vsel %vm1454, %v2471, 0
      %v2553 = vsel %vm1454, %v2473, 0
      %v2555 = vsel %vm1454, %v2475, 0
      %v2557 = vsel %vm1454, %v2477, 0
      %v2559 = vsel %vm1454, %v2479, 0
      %v2561 = vsel %vm1454, %v2481, 0
      %v2563 = vsel %vm1454, %v2483, 0
      %v2565 = vsel %vm1454, %v2485, 0
      %2567 = vmatprep.subr.bf16.mxu0 0
      %2568 = vmatpush1.bf16.msra.mxu0 %v2523
      %2569 = vmatprep.subr.bf16.mxu0 0
      %2570 = vmatpush1.bf16.msra.mxu0 %v2524
      %2571 = vmatprep.subr.bf16.mxu0 0
      %2572 = vmatpush1.bf16.msra.mxu0 %v2525
      %2573 = vmatprep.subr.bf16.mxu0 0
      %2574 = vmatpush1.bf16.msra.mxu0 %v2526
      %2575 = vmatprep.subr.bf16.mxu0 0
      %2576 = vmatpush1.bf16.msra.mxu0 %v2527
      %2577 = vmatprep.subr.bf16.mxu0 0
      %2578 = vmatpush1.bf16.msra.mxu0 %v2528
      %2579 = vmatprep.subr.bf16.mxu0 0
      %2580 = vmatpush1.bf16.msra.mxu0 0
      %2581 = vmatprep.subr.bf16.mxu0 0
      %2582 = vmatpush1.bf16.msra.mxu0 0
      %2583 = vmatprep.subr.bf16.mxu0 0
      %2584 = vmatpush1.bf16.msra.mxu0 0
      %2585 = vmatprep.subr.bf16.mxu0 0
      %2586 = vmatpush1.bf16.msra.mxu0 0
      %2587 = vmatprep.subr.bf16.mxu0 0
      %2588 = vmatpush1.bf16.msra.mxu0 0
      %2589 = vmatprep.subr.bf16.mxu0 0
      %2590 = vmatpush1.bf16.msra.mxu0 0
      %2591 = vmatprep.subr.bf16.mxu0 0
      %2592 = vmatpush1.bf16.msra.mxu0 0
      %2593 = vmatprep.subr.bf16.mxu0 0
      %2594 = vmatpush1.bf16.msra.mxu0 0
      %2595 = vmatprep.subr.bf16.mxu0 0
      %2596 = vmatpush1.bf16.msra.mxu0 0
      %2597 = vmatprep.subr.bf16.mxu0 0
      %2598 = vmatpush1.bf16.msra.mxu0 0
      %2599 = vmatprep.mubr.bf16.mxu0 0
      %2600 = vmatmul.mubr.bf16.gmra.mrb[0].mxu0 %v2535
      %v2601 = vpop.f32.mrb[0].mxu0
      %v2602 = vadd.f32 0.0, %v2601
      %v2603 = vpop.f32.mrb[0].mxu0
      %v2604 = vpop.f32.mrb[0].mxu0
      %v2605 = vadd.f32 0.0, %v2604
      %v2606 = vpop.f32.mrb[0].mxu0
      %2607 = vmatprep.mubr.bf16.mxu0 0
      %2608 = vmatmul.mubr.bf16.gmra.mrb[0].mxu0 %v2537
      %v2609 = vpop.f32.mrb[0].mxu0
      %v2610 = vadd.f32 0.0, %v2609
      %v2611 = vpop.f32.mrb[0].mxu0
      %v2612 = vpop.f32.mrb[0].mxu0
      %v2613 = vadd.f32 0.0, %v2612
      %v2614 = vpop.f32.mrb[0].mxu0
      %2615 = vmatprep.mubr.bf16.mxu0 0
      %2616 = vmatmul.mubr.bf16.gmra.mrb[0].mxu0 %v2539
      %v2617 = vpop.f32.mrb[0].mxu0
      %v2618 = vadd.f32 0.0, %v2617
      %v2619 = vpop.f32.mrb[0].mxu0
      %v2620 = vpop.f32.mrb[0].mxu0
      %v2621 = vadd.f32 0.0, %v2620
      %v2622 = vpop.f32.mrb[0].mxu0
      %2623 = vmatprep.mubr.bf16.mxu0 0
      %2624 = vmatmul.mubr.bf16.gmra.mrb[0].mxu0 %v2541
      %v2625 = vpop.f32.mrb[0].mxu0
      %v2626 = vadd.f32 0.0, %v2625
      %v2627 = vpop.f32.mrb[0].mxu0
      %v2628 = vpop.f32.mrb[0].mxu0
      %v2629 = vadd.f32 0.0, %v2628
      %v2630 = vpop.f32.mrb[0].mxu0
      %2631 = vmatprep.mubr.bf16.mxu0 0
      %2632 = vmatmul.mubr.bf16.gmra.mrb[0].mxu0 %v2543
      %v2633 = vpop.f32.mrb[0].mxu0
      %v2634 = vadd.f32 0.0, %v2633
      %v2635 = vpop.f32.mrb[0].mxu0
      %v2636 = vpop.f32.mrb[0].mxu0
      %v2637 = vadd.f32 0.0, %v2636
      %v2638 = vpop.f32.mrb[0].mxu0
      %2639 = vmatprep.mubr.bf16.mxu0 0
      %2640 = vmatmul.mubr.bf16.gmra.mrb[0].mxu0 %v2545
      %v2641 = vpop.f32.mrb[0].mxu0
      %v2642 = vadd.f32 0.0, %v2641
      %v2643 = vpop.f32.mrb[0].mxu0
      %v2644 = vpop.f32.mrb[0].mxu0
      %v2645 = vadd.f32 0.0, %v2644
      %v2646 = vpop.f32.mrb[0].mxu0
      %2647 = vmatprep.mubr.bf16.mxu0 0
      %2648 = vmatmul.mubr.bf16.gmra.mrb[0].mxu0 %v2547
      %v2649 = vpop.f32.mrb[0].mxu0
      %v2650 = vadd.f32 0.0, %v2649
      %v2651 = vpop.f32.mrb[0].mxu0
      %v2652 = vpop.f32.mrb[0].mxu0
      %v2653 = vadd.f32 0.0, %v2652
      %v2654 = vpop.f32.mrb[0].mxu0
      %2655 = vmatprep.mubr.bf16.mxu0 0
      %2656 = vmatmul.mubr.bf16.gmra.mrb[0].mxu0 %v2549
      %v2657 = vpop.f32.mrb[0].mxu0
      %v2658 = vadd.f32 0.0, %v2657
      %v2659 = vpop.f32.mrb[0].mxu0
      %v2660 = vpop.f32.mrb[0].mxu0
      %v2661 = vadd.f32 0.0, %v2660
      %v2662 = vpop.f32.mrb[0].mxu0
      %2663 = vmatprep.mubr.bf16.mxu0 0
      %2664 = vmatmul.mubr.bf16.gmra.mrb[0].mxu0 %v2551
      %v2665 = vpop.f32.mrb[0].mxu0
      %v2666 = vadd.f32 0.0, %v2665
      %v2667 = vpop.f32.mrb[0].mxu0
      %v2668 = vpop.f32.mrb[0].mxu0
      %v2669 = vadd.f32 0.0, %v2668
      %v2670 = vpop.f32.mrb[0].mxu0
      %2671 = vmatprep.mubr.bf16.mxu0 0
      %2672 = vmatmul.mubr.bf16.gmra.mrb[0].mxu0 %v2553
      %v2673 = vpop.f32.mrb[0].mxu0
      %v2674 = vadd.f32 0.0, %v2673
      %v2675 = vpop.f32.mrb[0].mxu0
      %v2676 = vpop.f32.mrb[0].mxu0
      %v2677 = vadd.f32 0.0, %v2676
      %v2678 = vpop.f32.mrb[0].mxu0
      %2679 = vmatprep.mubr.bf16.mxu0 0
      %2680 = vmatmul.mubr.bf16.gmra.mrb[0].mxu0 %v2555
      %v2681 = vpop.f32.mrb[0].mxu0
      %v2682 = vadd.f32 0.0, %v2681
      %v2683 = vpop.f32.mrb[0].mxu0
      %v2684 = vpop.f32.mrb[0].mxu0
      %v2685 = vadd.f32 0.0, %v2684
      %v2686 = vpop.f32.mrb[0].mxu0
      %2687 = vmatprep.mubr.bf16.mxu0 0
      %2688 = vmatmul.mubr.bf16.gmra.mrb[0].mxu0 %v2557
      %v2689 = vpop.f32.mrb[0].mxu0
      %v2690 = vadd.f32 0.0, %v2689
      %v2691 = vpop.f32.mrb[0].mxu0
      %v2692 = vpop.f32.mrb[0].mxu0
      %v2693 = vadd.f32 0.0, %v2692
      %v2694 = vpop.f32.mrb[0].mxu0
      %2695 = vmatprep.mubr.bf16.mxu0 0
      %2696 = vmatmul.mubr.bf16.gmra.mrb[0].mxu0 %v2559
      %v2697 = vpop.f32.mrb[0].mxu0
      %v2698 = vadd.f32 0.0, %v2697
      %v2699 = vpop.f32.mrb[0].mxu0
      %v2700 = vpop.f32.mrb[0].mxu0
      %v2701 = vadd.f32 0.0, %v2700
      %v2702 = vpop.f32.mrb[0].mxu0
      %2703 = vmatprep.mubr.bf16.mxu0 0
      %2704 = vmatmul.mubr.bf16.gmra.mrb[0].mxu0 %v2561
      %v2705 = vpop.f32.mrb[0].mxu0
      %v2706 = vadd.f32 0.0, %v2705
      %v2707 = vpop.f32.mrb[0].mxu0
      %v2708 = vpop.f32.mrb[0].mxu0
      %v2709 = vadd.f32 0.0, %v2708
      %v2710 = vpop.f32.mrb[0].mxu0
      %2711 = vmatprep.mubr.bf16.mxu0 0
      %2712 = vmatmul.mubr.bf16.gmra.mrb[0].mxu0 %v2563
      %v2713 = vpop.f32.mrb[0].mxu0
      %v2714 = vadd.f32 0.0, %v2713
      %v2715 = vpop.f32.mrb[0].mxu0
      %v2716 = vpop.f32.mrb[0].mxu0
      %v2717 = vadd.f32 0.0, %v2716
      %v2718 = vpop.f32.mrb[0].mxu0
      %2719 = vmatprep.mubr.bf16.mxu0 0
      %2720 = vmatmul.mubr.bf16.gmra.mrb[0].mxu0 %v2565
      %v2721 = vpop.f32.mrb[0].mxu0
      %v2722 = vadd.f32 0.0, %v2721
      %v2723 = vpop.f32.mrb[0].mxu0
      %v2724 = vpop.f32.mrb[0].mxu0
      %v2725 = vadd.f32 0.0, %v2724
      %v2726 = vpop.f32.mrb[0].mxu0
      %2727 = vdwg.mxu0
      %v2728 = vadd.f32 %v1751, %v2602
      %v2729 = vadd.f32 %v1754, %v2605
      %v2730 = vadd.f32 %v1759, %v2610
      %v2731 = vadd.f32 %v1762, %v2613
      %v2732 = vadd.f32 %v1767, %v2618
      %v2733 = vadd.f32 %v1770, %v2621
      %v2734 = vadd.f32 %v1775, %v2626
      %v2735 = vadd.f32 %v1778, %v2629
      %v2736 = vadd.f32 %v1783, %v2634
      %v2737 = vadd.f32 %v1786, %v2637
      %v2738 = vadd.f32 %v1791, %v2642
      %v2739 = vadd.f32 %v1794, %v2645
      %v2740 = vadd.f32 %v1799, %v2650
      %v2741 = vadd.f32 %v1802, %v2653
      %v2742 = vadd.f32 %v1807, %v2658
      %v2743 = vadd.f32 %v1810, %v2661
      %v2744 = vadd.f32 %v1815, %v2666
      %v2745 = vadd.f32 %v1818, %v2669
      %v2746 = vadd.f32 %v1823, %v2674
      %v2747 = vadd.f32 %v1826, %v2677
      %v2748 = vadd.f32 %v1831, %v2682
      %v2749 = vadd.f32 %v1834, %v2685
      %v2750 = vadd.f32 %v1839, %v2690
      %v2751 = vadd.f32 %v1842, %v2693
      %v2752 = vadd.f32 %v1847, %v2698
      %v2753 = vadd.f32 %v1850, %v2701
      %v2754 = vadd.f32 %v1855, %v2706
      %v2755 = vadd.f32 %v1858, %v2709
      %v2756 = vadd.f32 %v1863, %v2714
      %v2757 = vadd.f32 %v1866, %v2717
      %v2758 = vadd.f32 %v1871, %v2722
      %v2759 = vadd.f32 %v1874, %v2725
      %v2760 = vld [vmem:[%s2] sm:$0x1]
      %v2762 = vlaneseq
      %v2763 = vshrl.u32 %v2762, 7
      %v2764 = vsub.s32 0, %v2763
      %v2765 = vrot.slane %v2760, %v2764
      %v2767 = vadd.f32 %v2728, %v2765
      %v2768 = vadd.f32 %v2729, %v2765
      %v2769 = vadd.f32 %v2730, %v2765
      %v2770 = vadd.f32 %v2731, %v2765
      %v2771 = vadd.f32 %v2732, %v2765
      %v2772 = vadd.f32 %v2733, %v2765
      %v2773 = vadd.f32 %v2734, %v2765
      %v2774 = vadd.f32 %v2735, %v2765
      %v2775 = vadd.f32 %v2736, %v2765
      %v2776 = vadd.f32 %v2737, %v2765
      %v2777 = vadd.f32 %v2738, %v2765
      %v2778 = vadd.f32 %v2739, %v2765
      %v2779 = vadd.f32 %v2740, %v2765
      %v2780 = vadd.f32 %v2741, %v2765
      %v2781 = vadd.f32 %v2742, %v2765
      %v2782 = vadd.f32 %v2743, %v2765
      %v2783 = vadd.f32 %v2744, %v2765
      %v2784 = vadd.f32 %v2745, %v2765
      %v2785 = vadd.f32 %v2746, %v2765
      %v2786 = vadd.f32 %v2747, %v2765
      %v2787 = vadd.f32 %v2748, %v2765
      %v2788 = vadd.f32 %v2749, %v2765
      %v2789 = vadd.f32 %v2750, %v2765
      %v2790 = vadd.f32 %v2751, %v2765
      %v2791 = vadd.f32 %v2752, %v2765
      %v2792 = vadd.f32 %v2753, %v2765
      %v2793 = vadd.f32 %v2754, %v2765
      %v2794 = vadd.f32 %v2755, %v2765
      %v2795 = vadd.f32 %v2756, %v2765
      %v2796 = vadd.f32 %v2757, %v2765
      %v2797 = vadd.f32 %v2758, %v2765
      %v2798 = vadd.f32 %v2759, %v2765
      %v2799 = vmax.f32 %v2767, 0.0
      %v2800 = vmax.f32 %v2768, 0.0
      %v2801 = vmax.f32 %v2769, 0.0
      %v2802 = vmax.f32 %v2770, 0.0
      %v2803 = vmax.f32 %v2771, 0.0
      %v2804 = vmax.f32 %v2772, 0.0
      %v2805 = vmax.f32 %v2773, 0.0
      %v2806 = vmax.f32 %v2774, 0.0
      %v2807 = vmax.f32 %v2775, 0.0
      %v2808 = vmax.f32 %v2776, 0.0
      %v2809 = vmax.f32 %v2777, 0.0
      %v2810 = vmax.f32 %v2778, 0.0
      %v2811 = vmax.f32 %v2779, 0.0
      %v2812 = vmax.f32 %v2780, 0.0
      %v2813 = vmax.f32 %v2781, 0.0
      %v2814 = vmax.f32 %v2782, 0.0
      %v2815 = vmax.f32 %v2783, 0.0
      %v2816 = vmax.f32 %v2784, 0.0
      %v2817 = vmax.f32 %v2785, 0.0
      %v2818 = vmax.f32 %v2786, 0.0
      %v2819 = vmax.f32 %v2787, 0.0
      %v2820 = vmax.f32 %v2788, 0.0
      %v2821 = vmax.f32 %v2789, 0.0
      %v2822 = vmax.f32 %v2790, 0.0
      %v2823 = vmax.f32 %v2791, 0.0
      %v2824 = vmax.f32 %v2792, 0.0
      %v2825 = vmax.f32 %v2793, 0.0
      %v2826 = vmax.f32 %v2794, 0.0
      %v2827 = vmax.f32 %v2795, 0.0
      %v2828 = vmax.f32 %v2796, 0.0
      %v2829 = vmax.f32 %v2797, 0.0
      %v2830 = vmax.f32 %v2798, 0.0
      %v2831 = vpack.c.bf16 %v2800, %v2799
      %v2832 = vpack.c.bf16 %v2802, %v2801
      %v2833 = vpack.c.bf16 %v2804, %v2803
      %v2834 = vpack.c.bf16 %v2806, %v2805
      %v2835 = vpack.c.bf16 %v2808, %v2807
      %v2836 = vpack.c.bf16 %v2810, %v2809
      %v2837 = vpack.c.bf16 %v2812, %v2811
      %v2838 = vpack.c.bf16 %v2814, %v2813
      %v2839 = vpack.c.bf16 %v2816, %v2815
      %v2840 = vpack.c.bf16 %v2818, %v2817
      %v2841 = vpack.c.bf16 %v2820, %v2819
      %v2842 = vpack.c.bf16 %v2822, %v2821
      %v2843 = vpack.c.bf16 %v2824, %v2823
      %v2844 = vpack.c.bf16 %v2826, %v2825
      %v2845 = vpack.c.bf16 %v2828, %v2827
      %v2846 = vpack.c.bf16 %v2830, %v2829
      %v2863 = vunpack.c.l.b16 %v2831
      %v2864 = vunpack.c.h.b16 %v2831
      %v2865 = vunpack.c.l.b16 %v2832
      %v2866 = vunpack.c.h.b16 %v2832
      %v2867 = vunpack.c.l.b16 %v2833
      %v2868 = vunpack.c.h.b16 %v2833
      %v2869 = vunpack.c.l.b16 %v2834
      %v2870 = vunpack.c.h.b16 %v2834
      %v2871 = vunpack.c.l.b16 %v2835
      %v2872 = vunpack.c.h.b16 %v2835
      %v2873 = vunpack.c.l.b16 %v2836
      %v2874 = vunpack.c.h.b16 %v2836
      %v2875 = vunpack.c.l.b16 %v2837
      %v2876 = vunpack.c.h.b16 %v2837
      %v2877 = vunpack.c.l.b16 %v2838
      %v2878 = vunpack.c.h.b16 %v2838
      %v2879 = vunpack.c.l.b16 %v2839
      %v2880 = vunpack.c.h.b16 %v2839
      %v2881 = vunpack.c.l.b16 %v2840
      %v2882 = vunpack.c.h.b16 %v2840
      %v2883 = vunpack.c.l.b16 %v2841
      %v2884 = vunpack.c.h.b16 %v2841
      %v2885 = vunpack.c.l.b16 %v2842
      %v2886 = vunpack.c.h.b16 %v2842
      %v2887 = vunpack.c.l.b16 %v2843
      %v2888 = vunpack.c.h.b16 %v2843
      %v2889 = vunpack.c.l.b16 %v2844
      %v2890 = vunpack.c.h.b16 %v2844
      %v2891 = vunpack.c.l.b16 %v2845
      %v2892 = vunpack.c.h.b16 %v2845
      %v2893 = vunpack.c.l.b16 %v2846
      %v2894 = vunpack.c.h.b16 %v2846
      %v2895 = vpack.c.b16 %v2863, %v2863
      %v2896 = vpack.c.b16 %v2864, %v2864
      %v2897 = vpack.c.b16 %v2865, %v2865
      %v2898 = vpack.c.b16 %v2866, %v2866
      %v2899 = vpack.c.b16 %v2867, %v2867
      %v2900 = vpack.c.b16 %v2868, %v2868
      %v2901 = vpack.c.b16 %v2869, %v2869
      %v2902 = vpack.c.b16 %v2870, %v2870
      %v2903 = vpack.c.b16 %v2871, %v2871
      %v2904 = vpack.c.b16 %v2872, %v2872
      %v2905 = vpack.c.b16 %v2873, %v2873
      %v2906 = vpack.c.b16 %v2874, %v2874
      %v2907 = vpack.c.b16 %v2875, %v2875
      %v2908 = vpack.c.b16 %v2876, %v2876
      %v2909 = vpack.c.b16 %v2877, %v2877
      %v2910 = vpack.c.b16 %v2878, %v2878
      %v2911 = vpack.c.b16 %v2879, %v2879
      %v2912 = vpack.c.b16 %v2880, %v2880
      %v2913 = vpack.c.b16 %v2881, %v2881
      %v2914 = vpack.c.b16 %v2882, %v2882
      %v2915 = vpack.c.b16 %v2883, %v2883
      %v2916 = vpack.c.b16 %v2884, %v2884
      %v2917 = vpack.c.b16 %v2885, %v2885
      %v2918 = vpack.c.b16 %v2886, %v2886
      %v2919 = vpack.c.b16 %v2887, %v2887
      %v2920 = vpack.c.b16 %v2888, %v2888
      %v2921 = vpack.c.b16 %v2889, %v2889
      %v2922 = vpack.c.b16 %v2890, %v2890
      %v2923 = vpack.c.b16 %v2891, %v2891
      %v2924 = vpack.c.b16 %v2892, %v2892
      %v2925 = vpack.c.b16 %v2893, %v2893
      %v2926 = vpack.c.b16 %v2894, %v2894
      %vm2959 = vcmask 257024
      %2960 = vst.msk [vmem:[%s170] sm:$0xf] %vm2959, %v2895
      %2961 = vst.msk [vmem:[%s170 + $0x4] sm:$0xf] %vm2959, %v2896
      %2962 = vst.msk [vmem:[%s170 + $0x8] sm:$0xf] %vm2959, %v2897
      %2963 = vst.msk [vmem:[%s170 + $0xc] sm:$0xf] %vm2959, %v2898
      %2964 = vst.msk [vmem:[%s170 + $0x10] sm:$0xf] %vm2959, %v2899
      %2965 = vst.msk [vmem:[%s170 + $0x14] sm:$0xf] %vm2959, %v2900
      %2966 = vst.msk [vmem:[%s170 + $0x18] sm:$0xf] %vm2959, %v2901
      %2967 = vst.msk [vmem:[%s170 + $0x1c] sm:$0xf] %vm2959, %v2902
      %2968 = vst.msk [vmem:[%s170 + $0x20] sm:$0xf] %vm2959, %v2903
      %2969 = vst.msk [vmem:[%s170 + $0x24] sm:$0xf] %vm2959, %v2904
      %2970 = vst.msk [vmem:[%s170 + $0x28] sm:$0xf] %vm2959, %v2905
      %2971 = vst.msk [vmem:[%s170 + $0x2c] sm:$0xf] %vm2959, %v2906
      %2972 = vst.msk [vmem:[%s170 + $0x30] sm:$0xf] %vm2959, %v2907
      %2973 = vst.msk [vmem:[%s170 + $0x34] sm:$0xf] %vm2959, %v2908
      %2974 = vst.msk [vmem:[%s170 + $0x38] sm:$0xf] %vm2959, %v2909
      %2975 = vst.msk [vmem:[%s170 + $0x3c] sm:$0xf] %vm2959, %v2910
      %2976 = vst.msk [vmem:[%s170 + $0x40] sm:$0xf] %vm2959, %v2911
      %2977 = vst.msk [vmem:[%s170 + $0x44] sm:$0xf] %vm2959, %v2912
      %2978 = vst.msk [vmem:[%s170 + $0x48] sm:$0xf] %vm2959, %v2913
      %2979 = vst.msk [vmem:[%s170 + $0x4c] sm:$0xf] %vm2959, %v2914
      %2980 = vst.msk [vmem:[%s170 + $0x50] sm:$0xf] %vm2959, %v2915
      %2981 = vst.msk [vmem:[%s170 + $0x54] sm:$0xf] %vm2959, %v2916
      %2982 = vst.msk [vmem:[%s170 + $0x58] sm:$0xf] %vm2959, %v2917
      %2983 = vst.msk [vmem:[%s170 + $0x5c] sm:$0xf] %vm2959, %v2918
      %2984 = vst.msk [vmem:[%s170 + $0x60] sm:$0xf] %vm2959, %v2919
      %2985 = vst.msk [vmem:[%s170 + $0x64] sm:$0xf] %vm2959, %v2920
      %2986 = vst.msk [vmem:[%s170 + $0x68] sm:$0xf] %vm2959, %v2921
      %2987 = vst.msk [vmem:[%s170 + $0x6c] sm:$0xf] %vm2959, %v2922
      %2988 = vst.msk [vmem:[%s170 + $0x70] sm:$0xf] %vm2959, %v2923
      %2989 = vst.msk [vmem:[%s170 + $0x74] sm:$0xf] %vm2959, %v2924
      %2990 = vst.msk [vmem:[%s170 + $0x78] sm:$0xf] %vm2959, %v2925
      %2991 = vst.msk [vmem:[%s170 + $0x7c] sm:$0xf] %vm2959, %v2926
      %p2992 = scmp.lt.s32.totalorder %s14, 1
      %s2993 = scalar_select %p2992, %s14, 1
      %s2994 = smul.addr %s2993, 32
      %s2995 = smul.addr %s2994, 4
      %s2996 = scalar_lea.vmem %s3, %s2995
      // Predicated region
      $region33: #{second_dsa_forward.11} parent=31 // pred_check
        %p2997 = pneg %p100
      $region34: #{second_dsa_forward.11} parent=31 // pred_check_branch
        %2999 = sbr.rel (%p2997) target = $region36
      $region35: #{second_dsa_forward.11} parent=31 // pred_region
        _
      $region36: #{second_dsa_forward.11} parent=31 // pred_fallthru
        _
    $region32: #{second_dsa_forward.11} parent=5 // pred_fallthru
      _
    %p3000 = scmp.le.s32.totalorder 2, %s9
    // Predicated region
    $region37: #{second_dsa_forward.11} parent=5 // pred_check
      %p3001 = pneg %p3000
    $region38: #{second_dsa_forward.11} parent=5 // pred_check_branch
      %3003 = sbr.rel (%p3001) target = $region40
    $region39: #{second_dsa_forward.11} parent=5 // pred_region
      %s3004 = ssub.s32 %s9, 2
      // Predicated region
      $region41: #{second_dsa_forward.11} parent=39 // pred_check
        %p3005 = pneg %p106
      $region42: #{second_dsa_forward.11} parent=39 // pred_check_branch
        %3007 = sbr.rel (%p3005) target = $region44
      $region43: #{second_dsa_forward.11} parent=39 // pred_region
        %p3008 = scmp.lt.s32.totalorder %s15, 1
        %s3009 = scalar_select %p3008, %s15, 1
        %s3010 = smul.addr %s3009, 32
        %s3011 = smul.addr %s3010, 4
        %s3012 = scalar_lea.vmem %s3, %s3011
      $region44: #{second_dsa_forward.11} parent=39 // pred_fallthru
        _
    $region40: #{second_dsa_forward.11} parent=5 // pred_fallthru
      _
  $region6: #{second_dsa_forward.11} parent=0 // loop_footer
    %s13 = sadd.s32 1, %s9
  $region7: #{second_dsa_forward.11} parent=0 // loop_footer_branch
    %8 = sbr.rel target = $region3
  $region8: #{second_dsa_forward.11} parent=0 // loop_exit
    _

// kernel: second_dsa_forward.13
$region0: #{second_dsa_forward.13}
  #allocation0 [shape = 'u32[]', space=smem, size = 0x4, offset = 0x4, fixed_abs, tag = 'smem constant byte address 0x4 - core index']
  #allocation1 [shape = 'u32[144,128]{1,0:T(1,128)}', space=vmem, size = 0x12000, scoped, tag = 'internal scratch']
  %s0 = inlined_call_operand.vmem [shape: bf16[2,4,9,9,32], index: 0, kind: input, shape index: {}]
  %s1 = inlined_call_operand.vmem [shape: bf16[3,96,32], index: 1, kind: input, shape index: {}]
  %s2 = inlined_call_operand.vmem [shape: f32[1,32], index: 2, kind: input, shape index: {}]
  %s3 = inlined_call_operand.vmem [shape: bf16[2,8,8,32], index: 3, kind: output, shape index: {}]
  %s4 = sld [smem:[#allocation0]]
  $region45: #{second_dsa_forward.13} parent=0
    _
  %s6 = ssub.s32 1, %s4
  %s7 = scalar_select 0, %s6, %s4
  loop: start=0, step=1, limit=4
  $region2: #{second_dsa_forward.13} parent=0 // loop_pre_header
    _
  $region3: #{second_dsa_forward.13} parent=0 // loop_header
    %s9 = sphi 0, %s13
    %p10 = scmp.ge.s32.totalorder %s9, 4
    %s19 = sphi 0, %s21
    %s22 = sphi 0, %s19
    %s23 = sphi 0, %s22
    %s39 = sphi 0, %s23
    %s43 = sphi 0, %s43
    %s45 = sphi 0, %s43
    %s46 = sphi 0, %s45
    %s60 = sphi 0, %s46
    %s64 = sphi 0, %s64
    %s66 = sphi 0, %s64
    %s67 = sphi 0, %s66
    %s81 = sphi 0, %s67
    %s87 = sphi 0, %s89
    %s90 = sphi 0, %s87
    %s91 = sphi 0, %s90
    %s107 = sphi 0, %s91
  $region4: #{second_dsa_forward.13} parent=0 // loop_header_branch
    %12 = sbr.rel (%p10) target = $region8
  $region5: #{second_dsa_forward.13} parent=0 // loop_body
    %s14 = ssub.s32 %s9, 1
    %s15 = ssub.s32 %s9, 2
    %s16 = sadd.s32 %s9, 1
    %s17 = ssub.s32 %s9, %s16
    %p18 = scmp.eq.s32.totalorder %s17, 0
    %s20 = sadd.s32 %s19, 1
    %s21 = scalar_select %p18, %s19, %s20
    %p24 = pneg %p18
    %p25 = scmp.eq.s32.totalorder %s9, 1
    %p26 = por %p24, %p25
    %p27 = scmp.ne.s32.totalorder %s19, %s22
    %p28 = scmp.eq.s32.totalorder %s9, 0
    %p29 = por %p27, %p28
    %p30 = scmp.ne.s32.totalorder %s19, %s22
    %p31 = scmp.eq.s32.totalorder %s14, 1
    %p32 = por %p30, %p31
    %p33 = scmp.ne.s32.totalorder %s22, %s23
    %p34 = scmp.eq.s32.totalorder %s14, 0
    %p35 = por %p33, %p34
    %p36 = scmp.ne.s32.totalorder %s22, %s23
    %p37 = scmp.eq.s32.totalorder %s15, 1
    %p38 = por %p36, %p37
    %p40 = scmp.ne.s32.totalorder %s23, %s39
    %p41 = scmp.eq.s32.totalorder %s15, 0
    %p42 = por %p40, %p41
    %s44 = sadd.s32 %s43, 1
    %p47 = scmp.eq.s32.totalorder %s9, 1
    %p48 = scmp.ne.s32.totalorder %s43, %s45
    %p49 = scmp.eq.s32.totalorder %s9, 0
    %p50 = por %p48, %p49
    %p51 = scmp.ne.s32.totalorder %s43, %s45
    %p52 = scmp.eq.s32.totalorder %s14, 1
    %p53 = por %p51, %p52
    %p54 = scmp.ne.s32.totalorder %s45, %s46
    %p55 = scmp.eq.s32.totalorder %s14, 0
    %p56 = por %p54, %p55
    %p57 = scmp.ne.s32.totalorder %s45, %s46
    %p58 = scmp.eq.s32.totalorder %s15, 1
    %p59 = por %p57, %p58
    %p61 = scmp.ne.s32.totalorder %s46, %s60
    %p62 = scmp.eq.s32.totalorder %s15, 0
    %p63 = por %p61, %p62
    %s65 = sadd.s32 %s64, 1
    %p68 = scmp.eq.s32.totalorder %s9, 1
    %p69 = scmp.ne.s32.totalorder %s64, %s66
    %p70 = scmp.eq.s32.totalorder %s9, 0
    %p71 = por %p69, %p70
    %p72 = scmp.ne.s32.totalorder %s64, %s66
    %p73 = scmp.eq.s32.totalorder %s14, 1
    %p74 = por %p72, %p73
    %p75 = scmp.ne.s32.totalorder %s66, %s67
    %p76 = scmp.eq.s32.totalorder %s14, 0
    %p77 = por %p75, %p76
    %p78 = scmp.ne.s32.totalorder %s66, %s67
    %p79 = scmp.eq.s32.totalorder %s15, 1
    %p80 = por %p78, %p79
    %p82 = scmp.ne.s32.totalorder %s67, %s81
    %p83 = scmp.eq.s32.totalorder %s15, 0
    %p84 = por %p82, %p83
    %s85 = ssub.s32 %s9, %s16
    %p86 = scmp.eq.s32.totalorder %s85, 0
    %s88 = sadd.s32 %s87, 1
    %s89 = scalar_select %p86, %s87, %s88
    %p92 = pneg %p86
    %p93 = scmp.eq.s32.totalorder %s9, 1
    %p94 = por %p92, %p93
    %p95 = scmp.ne.s32.totalorder %s87, %s90
    %p96 = scmp.eq.s32.totalorder %s9, 0
    %p97 = por %p95, %p96
    %p98 = scmp.ne.s32.totalorder %s87, %s90
    %p99 = scmp.eq.s32.totalorder %s14, 1
    %p100 = por %p98, %p99
    %p101 = scmp.ne.s32.totalorder %s90, %s91
    %p102 = scmp.eq.s32.totalorder %s14, 0
    %p103 = por %p101, %p102
    %p104 = scmp.ne.s32.totalorder %s90, %s91
    %p105 = scmp.eq.s32.totalorder %s15, 1
    %p106 = por %p104, %p105
    %p108 = scmp.ne.s32.totalorder %s91, %s107
    %p109 = scmp.eq.s32.totalorder %s15, 0
    %p110 = por %p108, %p109
    %p111 = scmp.le.s32.totalorder 1, %s9
    %p112 = scmp.lt.s32.totalorder %s9, 3
    %p113 = pnand %p111, %p112
    %p114 = pneg %p113
    // Predicated region
    $region9: #{second_dsa_forward.13} parent=5 // pred_check
      _
    $region10: #{second_dsa_forward.13} parent=5 // pred_check_branch
      %116 = sbr.rel (%p113) target = $region12
    $region11: #{second_dsa_forward.13} parent=5 // pred_region
      %s117 = ssub.s32 %s9, 1
      // Predicated region
      $region13: #{second_dsa_forward.13} parent=11 // pred_check
        %p118 = pneg %p56
      $region14: #{second_dsa_forward.13} parent=11 // pred_check_branch
        %120 = sbr.rel (%p118) target = $region16
      $region15: #{second_dsa_forward.13} parent=11 // pred_region
        _
      $region16: #{second_dsa_forward.13} parent=11 // pred_fallthru
        _
      // Predicated region
      $region17: #{second_dsa_forward.13} parent=11 // pred_check
        %p121 = pneg %p77
      $region18: #{second_dsa_forward.13} parent=11 // pred_check_branch
        %123 = sbr.rel (%p121) target = $region20
      $region19: #{second_dsa_forward.13} parent=11 // pred_region
        _
      $region20: #{second_dsa_forward.13} parent=11 // pred_fallthru
        _
    $region12: #{second_dsa_forward.13} parent=5 // pred_fallthru
      _
    %p124 = scmp.lt.s32.totalorder %s9, 2
    // Predicated region
    $region21: #{second_dsa_forward.13} parent=5 // pred_check
      %p125 = pneg %p124
    $region22: #{second_dsa_forward.13} parent=5 // pred_check_branch
      %127 = sbr.rel (%p125) target = $region24
    $region23: #{second_dsa_forward.13} parent=5 // pred_region
      // Predicated region
      $region25: #{second_dsa_forward.13} parent=23 // pred_check
        %p128 = pneg %p29
      $region26: #{second_dsa_forward.13} parent=23 // pred_check_branch
        %130 = sbr.rel (%p128) target = $region28
      $region27: #{second_dsa_forward.13} parent=23 // pred_region
        %p131 = scmp.lt.s32.totalorder %s9, 1
        %s132 = scalar_select %p131, %s9, 1
        %s133 = smul.addr %s132, 72
        %s134 = smul.addr %s133, 4
        %s135 = scalar_lea.vmem %s0, %s134
      $region28: #{second_dsa_forward.13} parent=23 // pred_fallthru
        _
    $region24: #{second_dsa_forward.13} parent=5 // pred_fallthru
      _
    %p136 = scmp.le.s32.totalorder 1, %s9
    %p137 = scmp.lt.s32.totalorder %s9, 3
    %p138 = pnand %p136, %p137
    %p139 = pneg %p138
    // Predicated region
    $region29: #{second_dsa_forward.13} parent=5 // pred_check
      _
    $region30: #{second_dsa_forward.13} parent=5 // pred_check_branch
      %141 = sbr.rel (%p138) target = $region32
    $region31: #{second_dsa_forward.13} parent=5 // pred_region
      %s142 = ssub.s32 %s9, 1
      %p143 = scmp.lt.s32.totalorder %s14, 1
      %s144 = scalar_select %p143, %s14, 1
      %s145 = smul.addr %s144, 72
      %s146 = smul.addr %s145, 4
      %s147 = scalar_lea.vmem %s0, %s146
      %p148 = pneg %p35
      %p149 = pneg %p32
      %p150 = pneg %p56
      %p151 = pneg %p53
      %p152 = pneg %p77
      %p153 = pneg %p74
      %p154 = pneg %p103
      %p155 = pneg %p100
      %p156 = scmp.lt.s32.totalorder %s14, 1
      %s157 = scalar_select %p156, %s14, 1
      %s158 = smul.addr %s157, 8
      %s159 = smul.addr %s158, 4
      %s160 = scalar_lea.vmem %s3, %s159
      %p161 = scmp.lt.s32.totalorder %s14, 1
      %s162 = scalar_select %p161, %s14, 1
      %s163 = smul.addr %s162, 72
      %s164 = smul.addr %s163, 4
      %s165 = scalar_lea.vmem %s0, %s164
      %p166 = scmp.lt.s32.totalorder %s14, 1
      %s167 = scalar_select %p166, %s14, 1
      %s168 = smul.addr %s167, 8
      %s169 = smul.addr %s168, 4
      %s170 = scalar_lea.vmem %s3, %s169
      %v172 = vld [vmem:[%s165] sm:$0xf]
      %v173 = vld [vmem:[%s165 + $0x8] sm:$0xf]
      %v174 = vld [vmem:[%s165 + $0x10] sm:$0xf]
      %v175 = vld [vmem:[%s165 + $0x18] sm:$0xf]
      %v176 = vld [vmem:[%s165 + $0x20] sm:$0xf]
      %v177 = vld [vmem:[%s165 + $0x28] sm:$0xf]
      %v178 = vld [vmem:[%s165 + $0x30] sm:$0xf]
      %v179 = vld [vmem:[%s165 + $0x38] sm:$0xf]
      %s180 = scalar_lea.vmem %s165, 72
      %v181 = vld [vmem:[%s180] sm:$0xf]
      %v182 = vld [vmem:[%s180 + $0x8] sm:$0xf]
      %v183 = vld [vmem:[%s180 + $0x10] sm:$0xf]
      %v184 = vld [vmem:[%s180 + $0x18] sm:$0xf]
      %v185 = vld [vmem:[%s180 + $0x20] sm:$0xf]
      %v186 = vld [vmem:[%s180 + $0x28] sm:$0xf]
      %v187 = vld [vmem:[%s180 + $0x30] sm:$0xf]
      %v188 = vld [vmem:[%s180 + $0x38] sm:$0xf]
      %v189 = vld [vmem:[%s165 + $0x4] sm:$0x1]
      %v190 = vld [vmem:[%s165 + $0xc] sm:$0x1]
      %v191 = vld [vmem:[%s165 + $0x14] sm:$0x1]
      %v192 = vld [vmem:[%s165 + $0x1c] sm:$0x1]
      %v193 = vld [vmem:[%s165 + $0x24] sm:$0x1]
      %v194 = vld [vmem:[%s165 + $0x2c] sm:$0x1]
      %v195 = vld [vmem:[%s165 + $0x34] sm:$0x1]
      %v196 = vld [vmem:[%s165 + $0x3c] sm:$0x1]
      %v205 = vunpack.c.l.b16 %v181
      %v206 = vunpack.c.l.b16 %v182
      %v207 = vunpack.c.l.b16 %v183
      %v208 = vunpack.c.l.b16 %v184
      %v209 = vunpack.c.l.b16 %v185
      %v210 = vunpack.c.l.b16 %v186
      %v211 = vunpack.c.l.b16 %v187
      %v212 = vunpack.c.l.b16 %v188
      %v213 = vpack.c.b16 %v205, %v205
      %v214 = vpack.c.b16 %v206, %v206
      %v215 = vpack.c.b16 %v207, %v207
      %v216 = vpack.c.b16 %v208, %v208
      %v217 = vpack.c.b16 %v209, %v209
      %v218 = vpack.c.b16 %v210, %v210
      %v219 = vpack.c.b16 %v211, %v211
      %v220 = vpack.c.b16 %v212, %v212
      %221 = vrot.lane.b32.xlu0 %v213, 32
      %v222 = vpop.permute.xlu0 %221
      %223 = vrot.lane.b32.xlu0 %v214, 32
      %v224 = vpop.permute.xlu0 %223
      %225 = vrot.lane.b32.xlu0 %v215, 32
      %v226 = vpop.permute.xlu0 %225
      %227 = vrot.lane.b32.xlu0 %v216, 32
      %v228 = vpop.permute.xlu0 %227
      %229 = vrot.lane.b32.xlu0 %v217, 32
      %v230 = vpop.permute.xlu0 %229
      %231 = vrot.lane.b32.xlu0 %v218, 32
      %v232 = vpop.permute.xlu0 %231
      %233 = vrot.lane.b32.xlu0 %v219, 32
      %v234 = vpop.permute.xlu0 %233
      %235 = vrot.lane.b32.xlu0 %v220, 32
      %v236 = vpop.permute.xlu0 %235
      %v253 = vunpack.c.l.b16 %v172
      %v254 = vunpack.c.l.b16 %v189
      %v255 = vunpack.c.l.b16 %v173
      %v256 = vunpack.c.l.b16 %v190
      %v257 = vunpack.c.l.b16 %v174
      %v258 = vunpack.c.l.b16 %v191
      %v259 = vunpack.c.l.b16 %v175
      %v260 = vunpack.c.l.b16 %v192
      %v261 = vunpack.c.l.b16 %v176
      %v262 = vunpack.c.l.b16 %v193
      %v263 = vunpack.c.l.b16 %v177
      %v264 = vunpack.c.l.b16 %v194
      %v265 = vunpack.c.l.b16 %v178
      %v266 = vunpack.c.l.b16 %v195
      %v267 = vunpack.c.l.b16 %v179
      %v268 = vunpack.c.l.b16 %v196
      %v269 = vpack.c.b16 %v254, %v253
      %v270 = vpack.c.b16 %v256, %v255
      %v271 = vpack.c.b16 %v258, %v257
      %v272 = vpack.c.b16 %v260, %v259
      %v273 = vpack.c.b16 %v262, %v261
      %v274 = vpack.c.b16 %v264, %v263
      %v275 = vpack.c.b16 %v266, %v265
      %v276 = vpack.c.b16 %v268, %v267
      %v278 = vshrl.u32 %v269, 16
      %v280 = vshll.u32 %v269, 16
      %v282 = vrot.slane %v280, 1
      %v283 = vor.u32 %v278, %v282
      %v285 = vshrl.u32 %v270, 16
      %v287 = vshll.u32 %v270, 16
      %v289 = vrot.slane %v287, 1
      %v290 = vor.u32 %v285, %v289
      %v292 = vshrl.u32 %v271, 16
      %v294 = vshll.u32 %v271, 16
      %v296 = vrot.slane %v294, 1
      %v297 = vor.u32 %v292, %v296
      %v299 = vshrl.u32 %v272, 16
      %v301 = vshll.u32 %v272, 16
      %v303 = vrot.slane %v301, 1
      %v304 = vor.u32 %v299, %v303
      %v306 = vshrl.u32 %v273, 16
      %v308 = vshll.u32 %v273, 16
      %v310 = vrot.slane %v308, 1
      %v311 = vor.u32 %v306, %v310
      %v313 = vshrl.u32 %v274, 16
      %v315 = vshll.u32 %v274, 16
      %v317 = vrot.slane %v315, 1
      %v318 = vor.u32 %v313, %v317
      %v320 = vshrl.u32 %v275, 16
      %v322 = vshll.u32 %v275, 16
      %v324 = vrot.slane %v322, 1
      %v325 = vor.u32 %v320, %v324
      %v327 = vshrl.u32 %v276, 16
      %v329 = vshll.u32 %v276, 16
      %v331 = vrot.slane %v329, 1
      %v332 = vor.u32 %v327, %v331
      %333 = vrot.lane.b32.xlu0 %v283, 64
      %v334 = vpop.permute.xlu0 %333
      %335 = vrot.lane.b32.xlu0 %v290, 64
      %v336 = vpop.permute.xlu0 %335
      %337 = vrot.lane.b32.xlu0 %v297, 64
      %v338 = vpop.permute.xlu0 %337
      %339 = vrot.lane.b32.xlu0 %v304, 64
      %v340 = vpop.permute.xlu0 %339
      %341 = vrot.lane.b32.xlu0 %v311, 64
      %v342 = vpop.permute.xlu0 %341
      %343 = vrot.lane.b32.xlu0 %v318, 64
      %v344 = vpop.permute.xlu0 %343
      %345 = vrot.lane.b32.xlu0 %v325, 64
      %v346 = vpop.permute.xlu0 %345
      %347 = vrot.lane.b32.xlu0 %v332, 64
      %v348 = vpop.permute.xlu0 %347
      %vm349 = vcmask 261120
      %v352 = vsel %vm349, %v172, %v222
      %v355 = vsel %vm349, %v173, %v224
      %v358 = vsel %vm349, %v174, %v226
      %v361 = vsel %vm349, %v175, %v228
      %v364 = vsel %vm349, %v176, %v230
      %v367 = vsel %vm349, %v177, %v232
      %v370 = vsel %vm349, %v178, %v234
      %v373 = vsel %vm349, %v179, %v236
      %vm374 = vcmask 523264
      %v376 = vsel %vm374, %v352, %v334
      %v378 = vsel %vm374, %v355, %v336
      %v380 = vsel %vm374, %v358, %v338
      %v382 = vsel %vm374, %v361, %v340
      %v384 = vsel %vm374, %v364, %v342
      %v386 = vsel %vm374, %v367, %v344
      %v388 = vsel %vm374, %v370, %v346
      %v390 = vsel %vm374, %v373, %v348
      %v391 = vld [vmem:[%s1] sm:$0xf]
      %v392 = vld [vmem:[%s1 + $0x4] sm:$0xf]
      %v393 = vld [vmem:[%s1 + $0x8] sm:$0xf]
      %v394 = vld [vmem:[%s1 + $0xc] sm:$0xf]
      %v395 = vld [vmem:[%s1 + $0x10] sm:$0xf]
      %v396 = vld [vmem:[%s1 + $0x14] sm:$0xf]
      %v397 = vld [vmem:[%s1 + $0x18] sm:$0xf]
      %v398 = vld [vmem:[%s1 + $0x1c] sm:$0xf]
      %v399 = vld [vmem:[%s1 + $0x20] sm:$0xf]
      %v400 = vld [vmem:[%s1 + $0x24] sm:$0xf]
      %v401 = vld [vmem:[%s1 + $0x28] sm:$0xf]
      %v402 = vld [vmem:[%s1 + $0x2c] sm:$0xf]
      %s403 = scalar_lea.vmem %s165, 144
      %v404 = vld [vmem:[%s403] sm:$0xf]
      %v405 = vld [vmem:[%s403 + $0x8] sm:$0xf]
      %v406 = vld [vmem:[%s403 + $0x10] sm:$0xf]
      %v407 = vld [vmem:[%s403 + $0x18] sm:$0xf]
      %v408 = vld [vmem:[%s403 + $0x20] sm:$0xf]
      %v409 = vld [vmem:[%s403 + $0x28] sm:$0xf]
      %v410 = vld [vmem:[%s403 + $0x30] sm:$0xf]
      %v411 = vld [vmem:[%s403 + $0x38] sm:$0xf]
      %s412 = scalar_lea.vmem %s165, 216
      %v413 = vld [vmem:[%s412] sm:$0xf]
      %v414 = vld [vmem:[%s412 + $0x8] sm:$0xf]
      %v415 = vld [vmem:[%s412 + $0x10] sm:$0xf]
      %v416 = vld [vmem:[%s412 + $0x18] sm:$0xf]
      %v417 = vld [vmem:[%s412 + $0x20] sm:$0xf]
      %v418 = vld [vmem:[%s412 + $0x28] sm:$0xf]
      %v419 = vld [vmem:[%s412 + $0x30] sm:$0xf]
      %v420 = vld [vmem:[%s412 + $0x38] sm:$0xf]
      %v421 = vld [vmem:[%s403 + $0x4] sm:$0x1]
      %v422 = vld [vmem:[%s403 + $0xc] sm:$0x1]
      %v423 = vld [vmem:[%s403 + $0x14] sm:$0x1]
      %v424 = vld [vmem:[%s403 + $0x1c] sm:$0x1]
      %v425 = vld [vmem:[%s403 + $0x24] sm:$0x1]
      %v426 = vld [vmem:[%s403 + $0x2c] sm:$0x1]
      %v427 = vld [vmem:[%s403 + $0x34] sm:$0x1]
      %v428 = vld [vmem:[%s403 + $0x3c] sm:$0x1]
      %v437 = vunpack.c.l.b16 %v413
      %v438 = vunpack.c.l.b16 %v414
      %v439 = vunpack.c.l.b16 %v415
      %v440 = vunpack.c.l.b16 %v416
      %v441 = vunpack.c.l.b16 %v417
      %v442 = vunpack.c.l.b16 %v418
      %v443 = vunpack.c.l.b16 %v419
      %v444 = vunpack.c.l.b16 %v420
      %v445 = vpack.c.b16 %v437, %v437
      %v446 = vpack.c.b16 %v438, %v438
      %v447 = vpack.c.b16 %v439, %v439
      %v448 = vpack.c.b16 %v440, %v440
      %v449 = vpack.c.b16 %v441, %v441
      %v450 = vpack.c.b16 %v442, %v442
      %v451 = vpack.c.b16 %v443, %v443
      %v452 = vpack.c.b16 %v444, %v444
      %453 = vrot.lane.b32.xlu0 %v445, 32
      %v454 = vpop.permute.xlu0 %453
      %455 = vrot.lane.b32.xlu0 %v446, 32
      %v456 = vpop.permute.xlu0 %455
      %457 = vrot.lane.b32.xlu0 %v447, 32
      %v458 = vpop.permute.xlu0 %457
      %459 = vrot.lane.b32.xlu0 %v448, 32
      %v460 = vpop.permute.xlu0 %459
      %461 = vrot.lane.b32.xlu0 %v449, 32
      %v462 = vpop.permute.xlu0 %461
      %463 = vrot.lane.b32.xlu0 %v450, 32
      %v464 = vpop.permute.xlu0 %463
      %465 = vrot.lane.b32.xlu0 %v451, 32
      %v466 = vpop.permute.xlu0 %465
      %467 = vrot.lane.b32.xlu0 %v452, 32
      %v468 = vpop.permute.xlu0 %467
      %v485 = vunpack.c.l.b16 %v404
      %v486 = vunpack.c.l.b16 %v421
      %v487 = vunpack.c.l.b16 %v405
      %v488 = vunpack.c.l.b16 %v422
      %v489 = vunpack.c.l.b16 %v406
      %v490 = vunpack.c.l.b16 %v423
      %v491 = vunpack.c.l.b16 %v407
      %v492 = vunpack.c.l.b16 %v424
      %v493 = vunpack.c.l.b16 %v408
      %v494 = vunpack.c.l.b16 %v425
      %v495 = vunpack.c.l.b16 %v409
      %v496 = vunpack.c.l.b16 %v426
      %v497 = vunpack.c.l.b16 %v410
      %v498 = vunpack.c.l.b16 %v427
      %v499 = vunpack.c.l.b16 %v411
      %v500 = vunpack.c.l.b16 %v428
      %v501 = vpack.c.b16 %v486, %v485
      %v502 = vpack.c.b16 %v488, %v487
      %v503 = vpack.c.b16 %v490, %v489
      %v504 = vpack.c.b16 %v492, %v491
      %v505 = vpack.c.b16 %v494, %v493
      %v506 = vpack.c.b16 %v496, %v495
      %v507 = vpack.c.b16 %v498, %v497
      %v508 = vpack.c.b16 %v500, %v499
      %v510 = vshrl.u32 %v501, 16
      %v512 = vshll.u32 %v501, 16
      %v514 = vrot.slane %v512, 1
      %v515 = vor.u32 %v510, %v514
      %v517 = vshrl.u32 %v502, 16
      %v519 = vshll.u32 %v502, 16
      %v521 = vrot.slane %v519, 1
      %v522 = vor.u32 %v517, %v521
      %v524 = vshrl.u32 %v503, 16
      %v526 = vshll.u32 %v503, 16
      %v528 = vrot.slane %v526, 1
      %v529 = vor.u32 %v524, %v528
      %v531 = vshrl.u32 %v504, 16
      %v533 = vshll.u32 %v504, 16
      %v535 = vrot.slane %v533, 1
      %v536 = vor.u32 %v531, %v535
      %v538 = vshrl.u32 %v505, 16
      %v540 = vshll.u32 %v505, 16
      %v542 = vrot.slane %v540, 1
      %v543 = vor.u32 %v538, %v542
      %v545 = vshrl.u32 %v506, 16
      %v547 = vshll.u32 %v506, 16
      %v549 = vrot.slane %v547, 1
      %v550 = vor.u32 %v545, %v549
      %v552 = vshrl.u32 %v507, 16
      %v554 = vshll.u32 %v507, 16
      %v556 = vrot.slane %v554, 1
      %v557 = vor.u32 %v552, %v556
      %v559 = vshrl.u32 %v508, 16
      %v561 = vshll.u32 %v508, 16
      %v563 = vrot.slane %v561, 1
      %v564 = vor.u32 %v559, %v563
      %565 = vrot.lane.b32.xlu0 %v515, 64
      %v566 = vpop.permute.xlu0 %565
      %567 = vrot.lane.b32.xlu0 %v522, 64
      %v568 = vpop.permute.xlu0 %567
      %569 = vrot.lane.b32.xlu0 %v529, 64
      %v570 = vpop.permute.xlu0 %569
      %571 = vrot.lane.b32.xlu0 %v536, 64
      %v572 = vpop.permute.xlu0 %571
      %573 = vrot.lane.b32.xlu0 %v543, 64
      %v574 = vpop.permute.xlu0 %573
      %575 = vrot.lane.b32.xlu0 %v550, 64
      %v576 = vpop.permute.xlu0 %575
      %577 = vrot.lane.b32.xlu0 %v557, 64
      %v578 = vpop.permute.xlu0 %577
      %579 = vrot.lane.b32.xlu0 %v564, 64
      %v580 = vpop.permute.xlu0 %579
      %v583 = vsel %vm349, %v404, %v454
      %v586 = vsel %vm349, %v405, %v456
      %v589 = vsel %vm349, %v406, %v458
      %v592 = vsel %vm349, %v407, %v460
      %v595 = vsel %vm349, %v408, %v462
      %v598 = vsel %vm349, %v409, %v464
      %v601 = vsel %vm349, %v410, %v466
      %v604 = vsel %vm349, %v411, %v468
      %v606 = vsel %vm374, %v583, %v566
      %v608 = vsel %vm374, %v586, %v568
      %v610 = vsel %vm374, %v589, %v570
      %v612 = vsel %vm374, %v592, %v572
      %v614 = vsel %vm374, %v595, %v574
      %v616 = vsel %vm374, %v598, %v576
      %v618 = vsel %vm374, %v601, %v578
      %v620 = vsel %vm374, %v604, %v580
      %s621 = scalar_lea.vmem %s1, 48
      %v622 = vld [vmem:[%s621] sm:$0xf]
      %v623 = vld [vmem:[%s621 + $0x4] sm:$0xf]
      %v624 = vld [vmem:[%s621 + $0x8] sm:$0xf]
      %v625 = vld [vmem:[%s621 + $0xc] sm:$0xf]
      %v626 = vld [vmem:[%s621 + $0x10] sm:$0xf]
      %v627 = vld [vmem:[%s621 + $0x14] sm:$0xf]
      %v628 = vld [vmem:[%s621 + $0x18] sm:$0xf]
      %v629 = vld [vmem:[%s621 + $0x1c] sm:$0xf]
      %v630 = vld [vmem:[%s621 + $0x20] sm:$0xf]
      %v631 = vld [vmem:[%s621 + $0x24] sm:$0xf]
      %v632 = vld [vmem:[%s621 + $0x28] sm:$0xf]
      %v633 = vld [vmem:[%s621 + $0x2c] sm:$0xf]
      %v642 = vunpack.c.l.b16 %v606
      %v643 = vunpack.c.l.b16 %v608
      %v644 = vunpack.c.l.b16 %v610
      %v645 = vunpack.c.l.b16 %v612
      %v646 = vunpack.c.l.b16 %v614
      %v647 = vunpack.c.l.b16 %v616
      %v648 = vunpack.c.l.b16 %v618
      %v649 = vunpack.c.l.b16 %v620
      %v650 = vpack.c.b16 %v643, %v642
      %v651 = vpack.c.b16 %v645, %v644
      %v652 = vpack.c.b16 %v647, %v646
      %v653 = vpack.c.b16 %v649, %v648
      %v666 = vunpack.c.l.b16 %v622
      %v667 = vunpack.c.l.b16 %v623
      %v668 = vunpack.c.l.b16 %v624
      %v669 = vunpack.c.l.b16 %v625
      %v670 = vunpack.c.l.b16 %v626
      %v671 = vunpack.c.l.b16 %v627
      %v672 = vunpack.c.l.b16 %v628
      %v673 = vunpack.c.l.b16 %v629
      %v674 = vunpack.c.l.b16 %v630
      %v675 = vunpack.c.l.b16 %v631
      %v676 = vunpack.c.l.b16 %v632
      %v677 = vunpack.c.l.b16 %v633
      %v678 = vpack.c.b16 %v667, %v666
      %v679 = vpack.c.b16 %v669, %v668
      %v680 = vpack.c.b16 %v671, %v670
      %v681 = vpack.c.b16 %v673, %v672
      %v682 = vpack.c.b16 %v675, %v674
      %v683 = vpack.c.b16 %v677, %v676
      %vm690 = vcmask 785408
      %v692 = vsel %vm690, %v650, 0
      %v695 = vsel %vm690, %v651, 0
      %v698 = vsel %vm690, %v652, 0
      %v701 = vsel %vm690, %v653, 0
      %703 = vmatprep.subr.bf16.mxu0 0
      %704 = vmatpush1.bf16.msra.mxu0 %v678
      %705 = vmatprep.subr.bf16.mxu0 0
      %706 = vmatpush1.bf16.msra.mxu0 %v679
      %707 = vmatprep.subr.bf16.mxu0 0
      %708 = vmatpush1.bf16.msra.mxu0 %v680
      %709 = vmatprep.subr.bf16.mxu0 0
      %710 = vmatpush1.bf16.msra.mxu0 %v681
      %711 = vmatprep.subr.bf16.mxu0 0
      %712 = vmatpush1.bf16.msra.mxu0 %v682
      %713 = vmatprep.subr.bf16.mxu0 0
      %714 = vmatpush1.bf16.msra.mxu0 %v683
      %715 = vmatprep.subr.bf16.mxu0 0
      %716 = vmatpush1.bf16.msra.mxu0 0
      %717 = vmatprep.subr.bf16.mxu0 0
      %718 = vmatpush1.bf16.msra.mxu0 0
      %719 = vmatprep.subr.bf16.mxu0 0
      %720 = vmatpush1.bf16.msra.mxu0 0
      %721 = vmatprep.subr.bf16.mxu0 0
      %722 = vmatpush1.bf16.msra.mxu0 0
      %723 = vmatprep.subr.bf16.mxu0 0
      %724 = vmatpush1.bf16.msra.mxu0 0
      %725 = vmatprep.subr.bf16.mxu0 0
      %726 = vmatpush1.bf16.msra.mxu0 0
      %727 = vmatprep.subr.bf16.mxu0 0
      %728 = vmatpush1.bf16.msra.mxu0 0
      %729 = vmatprep.subr.bf16.mxu0 0
      %730 = vmatpush1.bf16.msra.mxu0 0
      %731 = vmatprep.subr.bf16.mxu0 0
      %732 = vmatpush1.bf16.msra.mxu0 0
      %733 = vmatprep.subr.bf16.mxu0 0
      %734 = vmatpush1.bf16.msra.mxu0 0
      %735 = vmatprep.mubr.bf16.mxu0 0
      %736 = vmatmul.mubr.bf16.gmra.mrb[0].mxu0 %v692
      %v737 = vpop.f32.mrb[0].mxu0
      %v738 = vadd.f32 0.0, %v737
      %v739 = vpop.f32.mrb[0].mxu0
      %v740 = vpop.f32.mrb[0].mxu0
      %v741 = vadd.f32 0.0, %v740
      %v742 = vpop.f32.mrb[0].mxu0
      %743 = vmatprep.mubr.bf16.mxu0 0
      %744 = vmatmul.mubr.bf16.gmra.mrb[0].mxu0 %v695
      %v745 = vpop.f32.mrb[0].mxu0
      %v746 = vadd.f32 0.0, %v745
      %v747 = vpop.f32.mrb[0].mxu0
      %v748 = vpop.f32.mrb[0].mxu0
      %v749 = vadd.f32 0.0, %v748
      %v750 = vpop.f32.mrb[0].mxu0
      %751 = vmatprep.mubr.bf16.mxu0 0
      %752 = vmatmul.mubr.bf16.gmra.mrb[0].mxu0 %v698
      %v753 = vpop.f32.mrb[0].mxu0
      %v754 = vadd.f32 0.0, %v753
      %v755 = vpop.f32.mrb[0].mxu0
      %v756 = vpop.f32.mrb[0].mxu0
      %v757 = vadd.f32 0.0, %v756
      %v758 = vpop.f32.mrb[0].mxu0
      %759 = vmatprep.mubr.bf16.mxu0 0
      %760 = vmatmul.mubr.bf16.gmra.mrb[0].mxu0 %v701
      %v761 = vpop.f32.mrb[0].mxu0
      %v762 = vadd.f32 0.0, %v761
      %v763 = vpop.f32.mrb[0].mxu0
      %v764 = vpop.f32.mrb[0].mxu0
      %v765 = vadd.f32 0.0, %v764
      %v766 = vpop.f32.mrb[0].mxu0
      %767 = vdwg.mxu0
      %v776 = vunpack.c.l.b16 %v376
      %v777 = vunpack.c.l.b16 %v378
      %v778 = vunpack.c.l.b16 %v380
      %v779 = vunpack.c.l.b16 %v382
      %v780 = vunpack.c.l.b16 %v384
      %v781 = vunpack.c.l.b16 %v386
      %v782 = vunpack.c.l.b16 %v388
      %v783 = vunpack.c.l.b16 %v390
      %v784 = vpack.c.b16 %v777, %v776
      %v785 = vpack.c.b16 %v779, %v778
      %v786 = vpack.c.b16 %v781, %v780
      %v787 = vpack.c.b16 %v783, %v782
      %v800 = vunpack.c.l.b16 %v391
      %v801 = vunpack.c.l.b16 %v392
      %v802 = vunpack.c.l.b16 %v393
      %v803 = vunpack.c.l.b16 %v394
      %v804 = vunpack.c.l.b16 %v395
      %v805 = vunpack.c.l.b16 %v396
      %v806 = vunpack.c.l.b16 %v397
      %v807 = vunpack.c.l.b16 %v398
      %v808 = vunpack.c.l.b16 %v399
      %v809 = vunpack.c.l.b16 %v400
      %v810 = vunpack.c.l.b16 %v401
      %v811 = vunpack.c.l.b16 %v402
      %v812 = vpack.c.b16 %v801, %v800
      %v813 = vpack.c.b16 %v803, %v802
      %v814 = vpack.c.b16 %v805, %v804
      %v815 = vpack.c.b16 %v807, %v806
      %v816 = vpack.c.b16 %v809, %v808
      %v817 = vpack.c.b16 %v811, %v810
      %v825 = vsel %vm690, %v784, 0
      %v828 = vsel %vm690, %v785, 0
      %v831 = vsel %vm690, %v786, 0
      %v834 = vsel %vm690, %v787, 0
      %836 = vmatprep.subr.bf16.mxu0 0
      %837 = vmatpush1.bf16.msra.mxu0 %v812
      %838 = vmatprep.subr.bf16.mxu0 0
      %839 = vmatpush1.bf16.msra.mxu0 %v813
      %840 = vmatprep.subr.bf16.mxu0 0
      %841 = vmatpush1.bf16.msra.mxu0 %v814
      %842 = vmatprep.subr.bf16.mxu0 0
      %843 = vmatpush1.bf16.msra.mxu0 %v815
      %844 = vmatprep.subr.bf16.mxu0 0
      %845 = vmatpush1.bf16.msra.mxu0 %v816
      %846 = vmatprep.subr.bf16.mxu0 0
      %847 = vmatpush1.bf16.msra.mxu0 %v817
      %848 = vmatprep.subr.bf16.mxu0 0
      %849 = vmatpush1.bf16.msra.mxu0 0
      %850 = vmatprep.subr.bf16.mxu0 0
      %851 = vmatpush1.bf16.msra.mxu0 0
      %852 = vmatprep.subr.bf16.mxu0 0
      %853 = vmatpush1.bf16.msra.mxu0 0
      %854 = vmatprep.subr.bf16.mxu0 0
      %855 = vmatpush1.bf16.msra.mxu0 0
      %856 = vmatprep.subr.bf16.mxu0 0
      %857 = vmatpush1.bf16.msra.mxu0 0
      %858 = vmatprep.subr.bf16.mxu0 0
      %859 = vmatpush1.bf16.msra.mxu0 0
      %860 = vmatprep.subr.bf16.mxu0 0
      %861 = vmatpush1.bf16.msra.mxu0 0
      %862 = vmatprep.subr.bf16.mxu0 0
      %863 = vmatpush1.bf16.msra.mxu0 0
      %864 = vmatprep.subr.bf16.mxu0 0
      %865 = vmatpush1.bf16.msra.mxu0 0
      %866 = vmatprep.subr.bf16.mxu0 0
      %867 = vmatpush1.bf16.msra.mxu0 0
      %868 = vmatprep.mubr.bf16.mxu0 0
      %869 = vmatmul.mubr.bf16.gmra.mrb[0].mxu0 %v825
      %v870 = vpop.f32.mrb[0].mxu0
      %v871 = vadd.f32 %v738, %v870
      %v872 = vpop.f32.mrb[0].mxu0
      %v873 = vpop.f32.mrb[0].mxu0
      %v874 = vadd.f32 %v741, %v873
      %v875 = vpop.f32.mrb[0].mxu0
      %876 = vmatprep.mubr.bf16.mxu0 0
      %877 = vmatmul.mubr.bf16.gmra.mrb[0].mxu0 %v828
      %v878 = vpop.f32.mrb[0].mxu0
      %v879 = vadd.f32 %v746, %v878
      %v880 = vpop.f32.mrb[0].mxu0
      %v881 = vpop.f32.mrb[0].mxu0
      %v882 = vadd.f32 %v749, %v881
      %v883 = vpop.f32.mrb[0].mxu0
      %884 = vmatprep.mubr.bf16.mxu0 0
      %885 = vmatmul.mubr.bf16.gmra.mrb[0].mxu0 %v831
      %v886 = vpop.f32.mrb[0].mxu0
      %v887 = vadd.f32 %v754, %v886
      %v888 = vpop.f32.mrb[0].mxu0
      %v889 = vpop.f32.mrb[0].mxu0
      %v890 = vadd.f32 %v757, %v889
      %v891 = vpop.f32.mrb[0].mxu0
      %892 = vmatprep.mubr.bf16.mxu0 0
      %893 = vmatmul.mubr.bf16.gmra.mrb[0].mxu0 %v834
      %v894 = vpop.f32.mrb[0].mxu0
      %v895 = vadd.f32 %v762, %v894
      %v896 = vpop.f32.mrb[0].mxu0
      %v897 = vpop.f32.mrb[0].mxu0
      %v898 = vadd.f32 %v765, %v897
      %v899 = vpop.f32.mrb[0].mxu0
      %900 = vdwg.mxu0
      %s901 = scalar_lea.vmem %s165, 8
      %v902 = vld [vmem:[%s901] sm:$0xf]
      %v903 = vld [vmem:[%s901 + $0x8] sm:$0xf]
      %v904 = vld [vmem:[%s901 + $0x10] sm:$0xf]
      %v905 = vld [vmem:[%s901 + $0x18] sm:$0xf]
      %v906 = vld [vmem:[%s901 + $0x20] sm:$0xf]
      %v907 = vld [vmem:[%s901 + $0x28] sm:$0xf]
      %v908 = vld [vmem:[%s901 + $0x30] sm:$0xf]
      %v909 = vld [vmem:[%s901 + $0x38] sm:$0xf]
      %s910 = scalar_lea.vmem %s165, 80
      %v911 = vld [vmem:[%s910] sm:$0xf]
      %v912 = vld [vmem:[%s910 + $0x8] sm:$0xf]
      %v913 = vld [vmem:[%s910 + $0x10] sm:$0xf]
      %v914 = vld [vmem:[%s910 + $0x18] sm:$0xf]
      %v915 = vld [vmem:[%s910 + $0x20] sm:$0xf]
      %v916 = vld [vmem:[%s910 + $0x28] sm:$0xf]
      %v917 = vld [vmem:[%s910 + $0x30] sm:$0xf]
      %v918 = vld [vmem:[%s910 + $0x38] sm:$0xf]
      %v919 = vld [vmem:[%s901 + $0x4] sm:$0x1]
      %v920 = vld [vmem:[%s901 + $0xc] sm:$0x1]
      %v921 = vld [vmem:[%s901 + $0x14] sm:$0x1]
      %v922 = vld [vmem:[%s901 + $0x1c] sm:$0x1]
      %v923 = vld [vmem:[%s901 + $0x24] sm:$0x1]
      %v924 = vld [vmem:[%s901 + $0x2c] sm:$0x1]
      %v925 = vld [vmem:[%s901 + $0x34] sm:$0x1]
      %v926 = vld [vmem:[%s901 + $0x3c] sm:$0x1]
      %v935 = vunpack.c.l.b16 %v911
      %v936 = vunpack.c.l.b16 %v912
      %v937 = vunpack.c.l.b16 %v913
      %v938 = vunpack.c.l.b16 %v914
      %v939 = vunpack.c.l.b16 %v915
      %v940 = vunpack.c.l.b16 %v916
      %v941 = vunpack.c.l.b16 %v917
      %v942 = vunpack.c.l.b16 %v918
      %v943 = vpack.c.b16 %v935, %v935
      %v944 = vpack.c.b16 %v936, %v936
      %v945 = vpack.c.b16 %v937, %v937
      %v946 = vpack.c.b16 %v938, %v938
      %v947 = vpack.c.b16 %v939, %v939
      %v948 = vpack.c.b16 %v940, %v940
      %v949 = vpack.c.b16 %v941, %v941
      %v950 = vpack.c.b16 %v942, %v942
      %951 = vrot.lane.b32.xlu0 %v943, 32
      %v952 = vpop.permute.xlu0 %951
      %953 = vrot.lane.b32.xlu0 %v944, 32
      %v954 = vpop.permute.xlu0 %953
      %955 = vrot.lane.b32.xlu0 %v945, 32
      %v956 = vpop.permute.xlu0 %955
      %957 = vrot.lane.b32.xlu0 %v946, 32
      %v958 = vpop.permute.xlu0 %957
      %959 = vrot.lane.b32.xlu0 %v947, 32
      %v960 = vpop.permute.xlu0 %959
      %961 = vrot.lane.b32.xlu0 %v948, 32
      %v962 = vpop.permute.xlu0 %961
      %963 = vrot.lane.b32.xlu0 %v949, 32
      %v964 = vpop.permute.xlu0 %963
      %965 = vrot.lane.b32.xlu0 %v950, 32
      %v966 = vpop.permute.xlu0 %965
      %v983 = vunpack.c.l.b16 %v902
      %v984 = vunpack.c.l.b16 %v919
      %v985 = vunpack.c.l.b16 %v903
      %v986 = vunpack.c.l.b16 %v920
      %v987 = vunpack.c.l.b16 %v904
      %v988 = vunpack.c.l.b16 %v921
      %v989 = vunpack.c.l.b16 %v905
      %v990 = vunpack.c.l.b16 %v922
      %v991 = vunpack.c.l.b16 %v906
      %v992 = vunpack.c.l.b16 %v923
      %v993 = vunpack.c.l.b16 %v907
      %v994 = vunpack.c.l.b16 %v924
      %v995 = vunpack.c.l.b16 %v908
      %v996 = vunpack.c.l.b16 %v925
      %v997 = vunpack.c.l.b16 %v909
      %v998 = vunpack.c.l.b16 %v926
      %v999 = vpack.c.b16 %v984, %v983
      %v1000 = vpack.c.b16 %v986, %v985
      %v1001 = vpack.c.b16 %v988, %v987
      %v1002 = vpack.c.b16 %v990, %v989
      %v1003 = vpack.c.b16 %v992, %v991
      %v1004 = vpack.c.b16 %v994, %v993
      %v1005 = vpack.c.b16 %v996, %v995
      %v1006 = vpack.c.b16 %v998, %v997
      %v1008 = vshrl.u32 %v999, 16
      %v1010 = vshll.u32 %v999, 16
      %v1012 = vrot.slane %v1010, 1
      %v1013 = vor.u32 %v1008, %v1012
      %v1015 = vshrl.u32 %v1000, 16
      %v1017 = vshll.u32 %v1000, 16
      %v1019 = vrot.slane %v1017, 1
      %v1020 = vor.u32 %v1015, %v1019
      %v1022 = vshrl.u32 %v1001, 16
      %v1024 = vshll.u32 %v1001, 16
      %v1026 = vrot.slane %v1024, 1
      %v1027 = vor.u32 %v1022, %v1026
      %v1029 = vshrl.u32 %v1002, 16
      %v1031 = vshll.u32 %v1002, 16
      %v1033 = vrot.slane %v1031, 1
      %v1034 = vor.u32 %v1029, %v1033
      %v1036 = vshrl.u32 %v1003, 16
      %v1038 = vshll.u32 %v1003, 16
      %v1040 = vrot.slane %v1038, 1
      %v1041 = vor.u32 %v1036, %v1040
      %v1043 = vshrl.u32 %v1004, 16
      %v1045 = vshll.u32 %v1004, 16
      %v1047 = vrot.slane %v1045, 1
      %v1048 = vor.u32 %v1043, %v1047
      %v1050 = vshrl.u32 %v1005, 16
      %v1052 = vshll.u32 %v1005, 16
      %v1054 = vrot.slane %v1052, 1
      %v1055 = vor.u32 %v1050, %v1054
      %v1057 = vshrl.u32 %v1006, 16
      %v1059 = vshll.u32 %v1006, 16
      %v1061 = vrot.slane %v1059, 1
      %v1062 = vor.u32 %v1057, %v1061
      %1063 = vrot.lane.b32.xlu0 %v1013, 64
      %v1064 = vpop.permute.xlu0 %1063
      %1065 = vrot.lane.b32.xlu0 %v1020, 64
      %v1066 = vpop.permute.xlu0 %1065
      %1067 = vrot.lane.b32.xlu0 %v1027, 64
      %v1068 = vpop.permute.xlu0 %1067
      %1069 = vrot.lane.b32.xlu0 %v1034, 64
      %v1070 = vpop.permute.xlu0 %1069
      %1071 = vrot.lane.b32.xlu0 %v1041, 64
      %v1072 = vpop.permute.xlu0 %1071
      %1073 = vrot.lane.b32.xlu0 %v1048, 64
      %v1074 = vpop.permute.xlu0 %1073
      %1075 = vrot.lane.b32.xlu0 %v1055, 64
      %v1076 = vpop.permute.xlu0 %1075
      %1077 = vrot.lane.b32.xlu0 %v1062, 64
      %v1078 = vpop.permute.xlu0 %1077
      %v1081 = vsel %vm349, %v902, %v952
      %v1084 = vsel %vm349, %v903, %v954
      %v1087 = vsel %vm349, %v904, %v956
      %v1090 = vsel %vm349, %v905, %v958
      %v1093 = vsel %vm349, %v906, %v960
      %v1096 = vsel %vm349, %v907, %v962
      %v1099 = vsel %vm349, %v908, %v964
      %v1102 = vsel %vm349, %v909, %v966
      %v1104 = vsel %vm374, %v1081, %v1064
      %v1106 = vsel %vm374, %v1084, %v1066
      %v1108 = vsel %vm374, %v1087, %v1068
      %v1110 = vsel %vm374, %v1090, %v1070
      %v1112 = vsel %vm374, %v1093, %v1072
      %v1114 = vsel %vm374, %v1096, %v1074
      %v1116 = vsel %vm374, %v1099, %v1076
      %v1118 = vsel %vm374, %v1102, %v1078
      %s1119 = scalar_lea.vmem %s1, 96
      %v1120 = vld [vmem:[%s1119] sm:$0xf]
      %v1121 = vld [vmem:[%s1119 + $0x4] sm:$0xf]
      %v1122 = vld [vmem:[%s1119 + $0x8] sm:$0xf]
      %v1123 = vld [vmem:[%s1119 + $0xc] sm:$0xf]
      %v1124 = vld [vmem:[%s1119 + $0x10] sm:$0xf]
      %v1125 = vld [vmem:[%s1119 + $0x14] sm:$0xf]
      %v1126 = vld [vmem:[%s1119 + $0x18] sm:$0xf]
      %v1127 = vld [vmem:[%s1119 + $0x1c] sm:$0xf]
      %v1128 = vld [vmem:[%s1119 + $0x20] sm:$0xf]
      %v1129 = vld [vmem:[%s1119 + $0x24] sm:$0xf]
      %v1130 = vld [vmem:[%s1119 + $0x28] sm:$0xf]
      %v1131 = vld [vmem:[%s1119 + $0x2c] sm:$0xf]
      %v1140 = vunpack.c.l.b16 %v1104
      %v1141 = vunpack.c.l.b16 %v1106
      %v1142 = vunpack.c.l.b16 %v1108
      %v1143 = vunpack.c.l.b16 %v1110
      %v1144 = vunpack.c.l.b16 %v1112
      %v1145 = vunpack.c.l.b16 %v1114
      %v1146 = vunpack.c.l.b16 %v1116
      %v1147 = vunpack.c.l.b16 %v1118
      %v1148 = vpack.c.b16 %v1141, %v1140
      %v1149 = vpack.c.b16 %v1143, %v1142
      %v1150 = vpack.c.b16 %v1145, %v1144
      %v1151 = vpack.c.b16 %v1147, %v1146
      %v1164 = vunpack.c.l.b16 %v1120
      %v1165 = vunpack.c.l.b16 %v1121
      %v1166 = vunpack.c.l.b16 %v1122
      %v1167 = vunpack.c.l.b16 %v1123
      %v1168 = vunpack.c.l.b16 %v1124
      %v1169 = vunpack.c.l.b16 %v1125
      %v1170 = vunpack.c.l.b16 %v1126
      %v1171 = vunpack.c.l.b16 %v1127
      %v1172 = vunpack.c.l.b16 %v1128
      %v1173 = vunpack.c.l.b16 %v1129
      %v1174 = vunpack.c.l.b16 %v1130
      %v1175 = vunpack.c.l.b16 %v1131
      %v1176 = vpack.c.b16 %v1165, %v1164
      %v1177 = vpack.c.b16 %v1167, %v1166
      %v1178 = vpack.c.b16 %v1169, %v1168
      %v1179 = vpack.c.b16 %v1171, %v1170
      %v1180 = vpack.c.b16 %v1173, %v1172
      %v1181 = vpack.c.b16 %v1175, %v1174
      %v1189 = vsel %vm690, %v1148, 0
      %v1192 = vsel %vm690, %v1149, 0
      %v1195 = vsel %vm690, %v1150, 0
      %v1198 = vsel %vm690, %v1151, 0
      %1200 = vmatprep.subr.bf16.mxu0 0
      %1201 = vmatpush1.bf16.msra.mxu0 %v1176
      %1202 = vmatprep.subr.bf16.mxu0 0
      %1203 = vmatpush1.bf16.msra.mxu0 %v1177
      %1204 = vmatprep.subr.bf16.mxu0 0
      %1205 = vmatpush1.bf16.msra.mxu0 %v1178
      %1206 = vmatprep.subr.bf16.mxu0 0
      %1207 = vmatpush1.bf16.msra.mxu0 %v1179
      %1208 = vmatprep.subr.bf16.mxu0 0
      %1209 = vmatpush1.bf16.msra.mxu0 %v1180
      %1210 = vmatprep.subr.bf16.mxu0 0
      %1211 = vmatpush1.bf16.msra.mxu0 %v1181
      %1212 = vmatprep.subr.bf16.mxu0 0
      %1213 = vmatpush1.bf16.msra.mxu0 0
      %1214 = vmatprep.subr.bf16.mxu0 0
      %1215 = vmatpush1.bf16.msra.mxu0 0
      %1216 = vmatprep.subr.bf16.mxu0 0
      %1217 = vmatpush1.bf16.msra.mxu0 0
      %1218 = vmatprep.subr.bf16.mxu0 0
      %1219 = vmatpush1.bf16.msra.mxu0 0
      %1220 = vmatprep.subr.bf16.mxu0 0
      %1221 = vmatpush1.bf16.msra.mxu0 0
      %1222 = vmatprep.subr.bf16.mxu0 0
      %1223 = vmatpush1.bf16.msra.mxu0 0
      %1224 = vmatprep.subr.bf16.mxu0 0
      %1225 = vmatpush1.bf16.msra.mxu0 0
      %1226 = vmatprep.subr.bf16.mxu0 0
      %1227 = vmatpush1.bf16.msra.mxu0 0
      %1228 = vmatprep.subr.bf16.mxu0 0
      %1229 = vmatpush1.bf16.msra.mxu0 0
      %1230 = vmatprep.subr.bf16.mxu0 0
      %1231 = vmatpush1.bf16.msra.mxu0 0
      %1232 = vmatprep.mubr.bf16.mxu0 0
      %1233 = vmatmul.mubr.bf16.gmra.mrb[0].mxu0 %v1189
      %v1234 = vpop.f32.mrb[0].mxu0
      %v1235 = vadd.f32 0.0, %v1234
      %v1236 = vpop.f32.mrb[0].mxu0
      %v1237 = vpop.f32.mrb[0].mxu0
      %v1238 = vadd.f32 0.0, %v1237
      %v1239 = vpop.f32.mrb[0].mxu0
      %1240 = vmatprep.mubr.bf16.mxu0 0
      %1241 = vmatmul.mubr.bf16.gmra.mrb[0].mxu0 %v1192
      %v1242 = vpop.f32.mrb[0].mxu0
      %v1243 = vadd.f32 0.0, %v1242
      %v1244 = vpop.f32.mrb[0].mxu0
      %v1245 = vpop.f32.mrb[0].mxu0
      %v1246 = vadd.f32 0.0, %v1245
      %v1247 = vpop.f32.mrb[0].mxu0
      %1248 = vmatprep.mubr.bf16.mxu0 0
      %1249 = vmatmul.mubr.bf16.gmra.mrb[0].mxu0 %v1195
      %v1250 = vpop.f32.mrb[0].mxu0
      %v1251 = vadd.f32 0.0, %v1250
      %v1252 = vpop.f32.mrb[0].mxu0
      %v1253 = vpop.f32.mrb[0].mxu0
      %v1254 = vadd.f32 0.0, %v1253
      %v1255 = vpop.f32.mrb[0].mxu0
      %1256 = vmatprep.mubr.bf16.mxu0 0
      %1257 = vmatmul.mubr.bf16.gmra.mrb[0].mxu0 %v1198
      %v1258 = vpop.f32.mrb[0].mxu0
      %v1259 = vadd.f32 0.0, %v1258
      %v1260 = vpop.f32.mrb[0].mxu0
      %v1261 = vpop.f32.mrb[0].mxu0
      %v1262 = vadd.f32 0.0, %v1261
      %v1263 = vpop.f32.mrb[0].mxu0
      %1264 = vdwg.mxu0
      %v1265 = vadd.f32 %v871, %v1235
      %v1266 = vadd.f32 %v874, %v1238
      %v1267 = vadd.f32 %v879, %v1243
      %v1268 = vadd.f32 %v882, %v1246
      %v1269 = vadd.f32 %v887, %v1251
      %v1270 = vadd.f32 %v890, %v1254
      %v1271 = vadd.f32 %v895, %v1259
      %v1272 = vadd.f32 %v898, %v1262
      %v1273 = vld [vmem:[%s2] sm:$0x1]
      %v1275 = vlaneseq
      %v1276 = vshrl.u32 %v1275, 7
      %v1277 = vsub.s32 0, %v1276
      %v1278 = vrot.slane %v1273, %v1277
      %v1280 = vadd.f32 %v1265, %v1278
      %v1281 = vadd.f32 %v1266, %v1278
      %v1282 = vadd.f32 %v1267, %v1278
      %v1283 = vadd.f32 %v1268, %v1278
      %v1284 = vadd.f32 %v1269, %v1278
      %v1285 = vadd.f32 %v1270, %v1278
      %v1286 = vadd.f32 %v1271, %v1278
      %v1287 = vadd.f32 %v1272, %v1278
      %v1288 = vmax.f32 %v1280, 0.0
      %v1289 = vmax.f32 %v1281, 0.0
      %v1290 = vmax.f32 %v1282, 0.0
      %v1291 = vmax.f32 %v1283, 0.0
      %v1292 = vmax.f32 %v1284, 0.0
      %v1293 = vmax.f32 %v1285, 0.0
      %v1294 = vmax.f32 %v1286, 0.0
      %v1295 = vmax.f32 %v1287, 0.0
      %v1296 = vpack.c.bf16 %v1288, %v1288
      %v1297 = vpack.c.bf16 %v1289, %v1289
      %v1298 = vpack.c.bf16 %v1290, %v1290
      %v1299 = vpack.c.bf16 %v1291, %v1291
      %v1300 = vpack.c.bf16 %v1292, %v1292
      %v1301 = vpack.c.bf16 %v1293, %v1293
      %v1302 = vpack.c.bf16 %v1294, %v1294
      %v1303 = vpack.c.bf16 %v1295, %v1295
      %vm1304 = vcmask 257024
      %1305 = vst.msk [vmem:[%s170] sm:$0xf] %vm1304, %v1296
      %1306 = vst.msk [vmem:[%s170 + $0x4] sm:$0xf] %vm1304, %v1297
      %1307 = vst.msk [vmem:[%s170 + $0x8] sm:$0xf] %vm1304, %v1298
      %1308 = vst.msk [vmem:[%s170 + $0xc] sm:$0xf] %vm1304, %v1299
      %1309 = vst.msk [vmem:[%s170 + $0x10] sm:$0xf] %vm1304, %v1300
      %1310 = vst.msk [vmem:[%s170 + $0x14] sm:$0xf] %vm1304, %v1301
      %1311 = vst.msk [vmem:[%s170 + $0x18] sm:$0xf] %vm1304, %v1302
      %1312 = vst.msk [vmem:[%s170 + $0x1c] sm:$0xf] %vm1304, %v1303
      %p1313 = scmp.lt.s32.totalorder %s14, 1
      %s1314 = scalar_select %p1313, %s14, 1
      %s1315 = smul.addr %s1314, 8
      %s1316 = smul.addr %s1315, 4
      %s1317 = scalar_lea.vmem %s3, %s1316
      // Predicated region
      $region33: #{second_dsa_forward.13} parent=31 // pred_check
        %p1318 = pneg %p100
      $region34: #{second_dsa_forward.13} parent=31 // pred_check_branch
        %1320 = sbr.rel (%p1318) target = $region36
      $region35: #{second_dsa_forward.13} parent=31 // pred_region
        _
      $region36: #{second_dsa_forward.13} parent=31 // pred_fallthru
        _
    $region32: #{second_dsa_forward.13} parent=5 // pred_fallthru
      _
    %p1321 = scmp.le.s32.totalorder 2, %s9
    // Predicated region
    $region37: #{second_dsa_forward.13} parent=5 // pred_check
      %p1322 = pneg %p1321
    $region38: #{second_dsa_forward.13} parent=5 // pred_check_branch
      %1324 = sbr.rel (%p1322) target = $region40
    $region39: #{second_dsa_forward.13} parent=5 // pred_region
      %s1325 = ssub.s32 %s9, 2
      // Predicated region
      $region41: #{second_dsa_forward.13} parent=39 // pred_check
        %p1326 = pneg %p106
      $region42: #{second_dsa_forward.13} parent=39 // pred_check_branch
        %1328 = sbr.rel (%p1326) target = $region44
      $region43: #{second_dsa_forward.13} parent=39 // pred_region
        %p1329 = scmp.lt.s32.totalorder %s15, 1
        %s1330 = scalar_select %p1329, %s15, 1
        %s1331 = smul.addr %s1330, 8
        %s1332 = smul.addr %s1331, 4
        %s1333 = scalar_lea.vmem %s3, %s1332
      $region44: #{second_dsa_forward.13} parent=39 // pred_fallthru
        _
    $region40: #{second_dsa_forward.13} parent=5 // pred_fallthru
      _
  $region6: #{second_dsa_forward.13} parent=0 // loop_footer
    %s13 = sadd.s32 1, %s9
  $region7: #{second_dsa_forward.13} parent=0 // loop_footer_branch
    %8 = sbr.rel target = $region3
  $region8: #{second_dsa_forward.13} parent=0 // loop_exit
    _

// kernel: second_dsa_forward.14
$region0: #{second_dsa_forward.14}
  #allocation0 [shape = 'u32[]', space=smem, size = 0x4, offset = 0x4, fixed_abs, tag = 'smem constant byte address 0x4 - core index']
  #allocation1 [shape = 'u32[144,128]{1,0:T(1,128)}', space=vmem, size = 0x12000, scoped, tag = 'internal scratch']
  %s0 = inlined_call_operand.vmem [shape: bf16[2,10,10,32], index: 0, kind: input, shape index: {}]
  %s1 = inlined_call_operand.vmem [shape: bf16[3,96,32], index: 1, kind: input, shape index: {}]
  %s2 = inlined_call_operand.vmem [shape: f32[1,32], index: 2, kind: input, shape index: {}]
  %s3 = inlined_call_operand.vmem [shape: bf16[2,8,8,32], index: 3, kind: output, shape index: {}]
  %s4 = sld [smem:[#allocation0]]
  $region45: #{second_dsa_forward.14} parent=0
    _
  %s6 = ssub.s32 1, %s4
  %s7 = scalar_select 0, %s6, %s4
  loop: start=0, step=1, limit=4
  $region2: #{second_dsa_forward.14} parent=0 // loop_pre_header
    _
  $region3: #{second_dsa_forward.14} parent=0 // loop_header
    %s9 = sphi 0, %s13
    %p10 = scmp.ge.s32.totalorder %s9, 4
    %s19 = sphi 0, %s21
    %s22 = sphi 0, %s19
    %s23 = sphi 0, %s22
    %s39 = sphi 0, %s23
    %s43 = sphi 0, %s43
    %s45 = sphi 0, %s43
    %s46 = sphi 0, %s45
    %s60 = sphi 0, %s46
    %s64 = sphi 0, %s64
    %s66 = sphi 0, %s64
    %s67 = sphi 0, %s66
    %s81 = sphi 0, %s67
    %s87 = sphi 0, %s89
    %s90 = sphi 0, %s87
    %s91 = sphi 0, %s90
    %s107 = sphi 0, %s91
  $region4: #{second_dsa_forward.14} parent=0 // loop_header_branch
    %12 = sbr.rel (%p10) target = $region8
  $region5: #{second_dsa_forward.14} parent=0 // loop_body
    %s14 = ssub.s32 %s9, 1
    %s15 = ssub.s32 %s9, 2
    %s16 = sadd.s32 %s9, 1
    %s17 = ssub.s32 %s9, %s16
    %p18 = scmp.eq.s32.totalorder %s17, 0
    %s20 = sadd.s32 %s19, 1
    %s21 = scalar_select %p18, %s19, %s20
    %p24 = pneg %p18
    %p25 = scmp.eq.s32.totalorder %s9, 1
    %p26 = por %p24, %p25
    %p27 = scmp.ne.s32.totalorder %s19, %s22
    %p28 = scmp.eq.s32.totalorder %s9, 0
    %p29 = por %p27, %p28
    %p30 = scmp.ne.s32.totalorder %s19, %s22
    %p31 = scmp.eq.s32.totalorder %s14, 1
    %p32 = por %p30, %p31
    %p33 = scmp.ne.s32.totalorder %s22, %s23
    %p34 = scmp.eq.s32.totalorder %s14, 0
    %p35 = por %p33, %p34
    %p36 = scmp.ne.s32.totalorder %s22, %s23
    %p37 = scmp.eq.s32.totalorder %s15, 1
    %p38 = por %p36, %p37
    %p40 = scmp.ne.s32.totalorder %s23, %s39
    %p41 = scmp.eq.s32.totalorder %s15, 0
    %p42 = por %p40, %p41
    %s44 = sadd.s32 %s43, 1
    %p47 = scmp.eq.s32.totalorder %s9, 1
    %p48 = scmp.ne.s32.totalorder %s43, %s45
    %p49 = scmp.eq.s32.totalorder %s9, 0
    %p50 = por %p48, %p49
    %p51 = scmp.ne.s32.totalorder %s43, %s45
    %p52 = scmp.eq.s32.totalorder %s14, 1
    %p53 = por %p51, %p52
    %p54 = scmp.ne.s32.totalorder %s45, %s46
    %p55 = scmp.eq.s32.totalorder %s14, 0
    %p56 = por %p54, %p55
    %p57 = scmp.ne.s32.totalorder %s45, %s46
    %p58 = scmp.eq.s32.totalorder %s15, 1
    %p59 = por %p57, %p58
    %p61 = scmp.ne.s32.totalorder %s46, %s60
    %p62 = scmp.eq.s32.totalorder %s15, 0
    %p63 = por %p61, %p62
    %s65 = sadd.s32 %s64, 1
    %p68 = scmp.eq.s32.totalorder %s9, 1
    %p69 = scmp.ne.s32.totalorder %s64, %s66
    %p70 = scmp.eq.s32.totalorder %s9, 0
    %p71 = por %p69, %p70
    %p72 = scmp.ne.s32.totalorder %s64, %s66
    %p73 = scmp.eq.s32.totalorder %s14, 1
    %p74 = por %p72, %p73
    %p75 = scmp.ne.s32.totalorder %s66, %s67
    %p76 = scmp.eq.s32.totalorder %s14, 0
    %p77 = por %p75, %p76
    %p78 = scmp.ne.s32.totalorder %s66, %s67
    %p79 = scmp.eq.s32.totalorder %s15, 1
    %p80 = por %p78, %p79
    %p82 = scmp.ne.s32.totalorder %s67, %s81
    %p83 = scmp.eq.s32.totalorder %s15, 0
    %p84 = por %p82, %p83
    %s85 = ssub.s32 %s9, %s16
    %p86 = scmp.eq.s32.totalorder %s85, 0
    %s88 = sadd.s32 %s87, 1
    %s89 = scalar_select %p86, %s87, %s88
    %p92 = pneg %p86
    %p93 = scmp.eq.s32.totalorder %s9, 1
    %p94 = por %p92, %p93
    %p95 = scmp.ne.s32.totalorder %s87, %s90
    %p96 = scmp.eq.s32.totalorder %s9, 0
    %p97 = por %p95, %p96
    %p98 = scmp.ne.s32.totalorder %s87, %s90
    %p99 = scmp.eq.s32.totalorder %s14, 1
    %p100 = por %p98, %p99
    %p101 = scmp.ne.s32.totalorder %s90, %s91
    %p102 = scmp.eq.s32.totalorder %s14, 0
    %p103 = por %p101, %p102
    %p104 = scmp.ne.s32.totalorder %s90, %s91
    %p105 = scmp.eq.s32.totalorder %s15, 1
    %p106 = por %p104, %p105
    %p108 = scmp.ne.s32.totalorder %s91, %s107
    %p109 = scmp.eq.s32.totalorder %s15, 0
    %p110 = por %p108, %p109
    %p111 = scmp.le.s32.totalorder 1, %s9
    %p112 = scmp.lt.s32.totalorder %s9, 3
    %p113 = pnand %p111, %p112
    %p114 = pneg %p113
    // Predicated region
    $region9: #{second_dsa_forward.14} parent=5 // pred_check
      _
    $region10: #{second_dsa_forward.14} parent=5 // pred_check_branch
      %116 = sbr.rel (%p113) target = $region12
    $region11: #{second_dsa_forward.14} parent=5 // pred_region
      %s117 = ssub.s32 %s9, 1
      // Predicated region
      $region13: #{second_dsa_forward.14} parent=11 // pred_check
        %p118 = pneg %p56
      $region14: #{second_dsa_forward.14} parent=11 // pred_check_branch
        %120 = sbr.rel (%p118) target = $region16
      $region15: #{second_dsa_forward.14} parent=11 // pred_region
        _
      $region16: #{second_dsa_forward.14} parent=11 // pred_fallthru
        _
      // Predicated region
      $region17: #{second_dsa_forward.14} parent=11 // pred_check
        %p121 = pneg %p77
      $region18: #{second_dsa_forward.14} parent=11 // pred_check_branch
        %123 = sbr.rel (%p121) target = $region20
      $region19: #{second_dsa_forward.14} parent=11 // pred_region
        _
      $region20: #{second_dsa_forward.14} parent=11 // pred_fallthru
        _
    $region12: #{second_dsa_forward.14} parent=5 // pred_fallthru
      _
    %p124 = scmp.lt.s32.totalorder %s9, 2
    // Predicated region
    $region21: #{second_dsa_forward.14} parent=5 // pred_check
      %p125 = pneg %p124
    $region22: #{second_dsa_forward.14} parent=5 // pred_check_branch
      %127 = sbr.rel (%p125) target = $region24
    $region23: #{second_dsa_forward.14} parent=5 // pred_region
      // Predicated region
      $region25: #{second_dsa_forward.14} parent=23 // pred_check
        %p128 = pneg %p29
      $region26: #{second_dsa_forward.14} parent=23 // pred_check_branch
        %130 = sbr.rel (%p128) target = $region28
      $region27: #{second_dsa_forward.14} parent=23 // pred_region
        %p131 = scmp.lt.s32.totalorder %s9, 1
        %s132 = scalar_select %p131, %s9, 1
        %s133 = smul.addr %s132, 20
        %s134 = smul.addr %s133, 4
        %s135 = scalar_lea.vmem %s0, %s134
      $region28: #{second_dsa_forward.14} parent=23 // pred_fallthru
        _
    $region24: #{second_dsa_forward.14} parent=5 // pred_fallthru
      _
    %p136 = scmp.le.s32.totalorder 1, %s9
    %p137 = scmp.lt.s32.totalorder %s9, 3
    %p138 = pnand %p136, %p137
    %p139 = pneg %p138
    // Predicated region
    $region29: #{second_dsa_forward.14} parent=5 // pred_check
      _
    $region30: #{second_dsa_forward.14} parent=5 // pred_check_branch
      %141 = sbr.rel (%p138) target = $region32
    $region31: #{second_dsa_forward.14} parent=5 // pred_region
      %s142 = ssub.s32 %s9, 1
      %p143 = scmp.lt.s32.totalorder %s14, 1
      %s144 = scalar_select %p143, %s14, 1
      %s145 = smul.addr %s144, 20
      %s146 = smul.addr %s145, 4
      %s147 = scalar_lea.vmem %s0, %s146
      %p148 = pneg %p35
      %p149 = pneg %p32
      %p150 = pneg %p56
      %p151 = pneg %p53
      %p152 = pneg %p77
      %p153 = pneg %p74
      %p154 = pneg %p103
      %p155 = pneg %p100
      %p156 = scmp.lt.s32.totalorder %s14, 1
      %s157 = scalar_select %p156, %s14, 1
      %s158 = smul.addr %s157, 8
      %s159 = smul.addr %s158, 4
      %s160 = scalar_lea.vmem %s3, %s159
      %p161 = scmp.lt.s32.totalorder %s14, 1
      %s162 = scalar_select %p161, %s14, 1
      %s163 = smul.addr %s162, 20
      %s164 = smul.addr %s163, 4
      %s165 = scalar_lea.vmem %s0, %s164
      %p166 = scmp.lt.s32.totalorder %s14, 1
      %s167 = scalar_select %p166, %s14, 1
      %s168 = smul.addr %s167, 8
      %s169 = smul.addr %s168, 4
      %s170 = scalar_lea.vmem %s3, %s169
      %v172 = vld [vmem:[%s165] sm:$0xf]
      %v173 = vld [vmem:[%s165 + $0x8] sm:$0xf]
      %v174 = vld [vmem:[%s165 + $0x10] sm:$0xf]
      %v175 = vld [vmem:[%s165 + $0x18] sm:$0xf]
      %v176 = vld [vmem:[%s165 + $0x20] sm:$0xf]
      %v177 = vld [vmem:[%s165 + $0x28] sm:$0xf]
      %v178 = vld [vmem:[%s165 + $0x30] sm:$0xf]
      %v179 = vld [vmem:[%s165 + $0x38] sm:$0xf]
      %v180 = vld [vmem:[%s165 + $0x4] sm:$0x1]
      %v181 = vld [vmem:[%s165 + $0xc] sm:$0x1]
      %v182 = vld [vmem:[%s165 + $0x14] sm:$0x1]
      %v183 = vld [vmem:[%s165 + $0x1c] sm:$0x1]
      %v184 = vld [vmem:[%s165 + $0x24] sm:$0x1]
      %v185 = vld [vmem:[%s165 + $0x2c] sm:$0x1]
      %v186 = vld [vmem:[%s165 + $0x34] sm:$0x1]
      %v187 = vld [vmem:[%s165 + $0x3c] sm:$0x1]
      %v188 = vld [vmem:[%s165] sm:$0xe]
      %v189 = vld [vmem:[%s165 + $0x8] sm:$0xe]
      %v190 = vld [vmem:[%s165 + $0x10] sm:$0xe]
      %v191 = vld [vmem:[%s165 + $0x18] sm:$0xe]
      %v192 = vld [vmem:[%s165 + $0x20] sm:$0xe]
      %v193 = vld [vmem:[%s165 + $0x28] sm:$0xe]
      %v194 = vld [vmem:[%s165 + $0x30] sm:$0xe]
      %v195 = vld [vmem:[%s165 + $0x38] sm:$0xe]
      %v212 = vunpack.c.l.b16 %v172
      %v213 = vunpack.c.l.b16 %v180
      %v214 = vunpack.c.l.b16 %v173
      %v215 = vunpack.c.l.b16 %v181
      %v216 = vunpack.c.l.b16 %v174
      %v217 = vunpack.c.l.b16 %v182
      %v218 = vunpack.c.l.b16 %v175
      %v219 = vunpack.c.l.b16 %v183
      %v220 = vunpack.c.l.b16 %v176
      %v221 = vunpack.c.l.b16 %v184
      %v222 = vunpack.c.l.b16 %v177
      %v223 = vunpack.c.l.b16 %v185
      %v224 = vunpack.c.l.b16 %v178
      %v225 = vunpack.c.l.b16 %v186
      %v226 = vunpack.c.l.b16 %v179
      %v227 = vunpack.c.l.b16 %v187
      %v228 = vpack.c.b16 %v213, %v212
      %v229 = vpack.c.b16 %v215, %v214
      %v230 = vpack.c.b16 %v217, %v216
      %v231 = vpack.c.b16 %v219, %v218
      %v232 = vpack.c.b16 %v221, %v220
      %v233 = vpack.c.b16 %v223, %v222
      %v234 = vpack.c.b16 %v225, %v224
      %v235 = vpack.c.b16 %v227, %v226
      %v237 = vshrl.u32 %v228, 16
      %v239 = vshll.u32 %v228, 16
      %v241 = vrot.slane %v239, 1
      %v242 = vor.u32 %v237, %v241
      %v244 = vshrl.u32 %v229, 16
      %v246 = vshll.u32 %v229, 16
      %v248 = vrot.slane %v246, 1
      %v249 = vor.u32 %v244, %v248
      %v251 = vshrl.u32 %v230, 16
      %v253 = vshll.u32 %v230, 16
      %v255 = vrot.slane %v253, 1
      %v256 = vor.u32 %v251, %v255
      %v258 = vshrl.u32 %v231, 16
      %v260 = vshll.u32 %v231, 16
      %v262 = vrot.slane %v260, 1
      %v263 = vor.u32 %v258, %v262
      %v265 = vshrl.u32 %v232, 16
      %v267 = vshll.u32 %v232, 16
      %v269 = vrot.slane %v267, 1
      %v270 = vor.u32 %v265, %v269
      %v272 = vshrl.u32 %v233, 16
      %v274 = vshll.u32 %v233, 16
      %v276 = vrot.slane %v274, 1
      %v277 = vor.u32 %v272, %v276
      %v279 = vshrl.u32 %v234, 16
      %v281 = vshll.u32 %v234, 16
      %v283 = vrot.slane %v281, 1
      %v284 = vor.u32 %v279, %v283
      %v286 = vshrl.u32 %v235, 16
      %v288 = vshll.u32 %v235, 16
      %v290 = vrot.slane %v288, 1
      %v291 = vor.u32 %v286, %v290
      %292 = vrot.lane.b32.xlu0 %v242, 32
      %v293 = vpop.permute.xlu0 %292
      %294 = vrot.lane.b32.xlu0 %v249, 32
      %v295 = vpop.permute.xlu0 %294
      %296 = vrot.lane.b32.xlu0 %v256, 32
      %v297 = vpop.permute.xlu0 %296
      %298 = vrot.lane.b32.xlu0 %v263, 32
      %v299 = vpop.permute.xlu0 %298
      %300 = vrot.lane.b32.xlu0 %v270, 32
      %v301 = vpop.permute.xlu0 %300
      %302 = vrot.lane.b32.xlu0 %v277, 32
      %v303 = vpop.permute.xlu0 %302
      %304 = vrot.lane.b32.xlu0 %v284, 32
      %v305 = vpop.permute.xlu0 %304
      %306 = vrot.lane.b32.xlu0 %v291, 32
      %v307 = vpop.permute.xlu0 %306
      %v316 = vunpack.c.l.b16 %v188
      %v317 = vunpack.c.l.b16 %v189
      %v318 = vunpack.c.l.b16 %v190
      %v319 = vunpack.c.l.b16 %v191
      %v320 = vunpack.c.l.b16 %v192
      %v321 = vunpack.c.l.b16 %v193
      %v322 = vunpack.c.l.b16 %v194
      %v323 = vunpack.c.l.b16 %v195
      %v324 = vpack.c.b16 %v213, %v316
      %v325 = vpack.c.b16 %v215, %v317
      %v326 = vpack.c.b16 %v217, %v318
      %v327 = vpack.c.b16 %v219, %v319
      %v328 = vpack.c.b16 %v221, %v320
      %v329 = vpack.c.b16 %v223, %v321
      %v330 = vpack.c.b16 %v225, %v322
      %v331 = vpack.c.b16 %v227, %v323
      %v332 = vrot.slane %v324, 1
      %v333 = vrot.slane %v325, 1
      %v334 = vrot.slane %v326, 1
      %v335 = vrot.slane %v327, 1
      %v336 = vrot.slane %v328, 1
      %v337 = vrot.slane %v329, 1
      %v338 = vrot.slane %v330, 1
      %v339 = vrot.slane %v331, 1
      %340 = vrot.lane.b32.xlu0 %v332, 64
      %v341 = vpop.permute.xlu0 %340
      %342 = vrot.lane.b32.xlu0 %v333, 64
      %v343 = vpop.permute.xlu0 %342
      %344 = vrot.lane.b32.xlu0 %v334, 64
      %v345 = vpop.permute.xlu0 %344
      %346 = vrot.lane.b32.xlu0 %v335, 64
      %v347 = vpop.permute.xlu0 %346
      %348 = vrot.lane.b32.xlu0 %v336, 64
      %v349 = vpop.permute.xlu0 %348
      %350 = vrot.lane.b32.xlu0 %v337, 64
      %v351 = vpop.permute.xlu0 %350
      %352 = vrot.lane.b32.xlu0 %v338, 64
      %v353 = vpop.permute.xlu0 %352
      %354 = vrot.lane.b32.xlu0 %v339, 64
      %v355 = vpop.permute.xlu0 %354
      %vm356 = vcmask 261120
      %v359 = vsel %vm356, %v172, %v293
      %v362 = vsel %vm356, %v173, %v295
      %v365 = vsel %vm356, %v174, %v297
      %v368 = vsel %vm356, %v175, %v299
      %v371 = vsel %vm356, %v176, %v301
      %v374 = vsel %vm356, %v177, %v303
      %v377 = vsel %vm356, %v178, %v305
      %v380 = vsel %vm356, %v179, %v307
      %vm381 = vcmask 523264
      %v383 = vsel %vm381, %v359, %v341
      %v385 = vsel %vm381, %v362, %v343
      %v387 = vsel %vm381, %v365, %v345
      %v389 = vsel %vm381, %v368, %v347
      %v391 = vsel %vm381, %v371, %v349
      %v393 = vsel %vm381, %v374, %v351
      %v395 = vsel %vm381, %v377, %v353
      %v397 = vsel %vm381, %v380, %v355
      %v398 = vld [vmem:[%s1] sm:$0xf]
      %v399 = vld [vmem:[%s1 + $0x4] sm:$0xf]
      %v400 = vld [vmem:[%s1 + $0x8] sm:$0xf]
      %v401 = vld [vmem:[%s1 + $0xc] sm:$0xf]
      %v402 = vld [vmem:[%s1 + $0x10] sm:$0xf]
      %v403 = vld [vmem:[%s1 + $0x14] sm:$0xf]
      %v404 = vld [vmem:[%s1 + $0x18] sm:$0xf]
      %v405 = vld [vmem:[%s1 + $0x1c] sm:$0xf]
      %v406 = vld [vmem:[%s1 + $0x20] sm:$0xf]
      %v407 = vld [vmem:[%s1 + $0x24] sm:$0xf]
      %v408 = vld [vmem:[%s1 + $0x28] sm:$0xf]
      %v409 = vld [vmem:[%s1 + $0x2c] sm:$0xf]
      %s410 = scalar_lea.vmem %s165, 8
      %v411 = vld [vmem:[%s410] sm:$0xf]
      %v412 = vld [vmem:[%s410 + $0x8] sm:$0xf]
      %v413 = vld [vmem:[%s410 + $0x10] sm:$0xf]
      %v414 = vld [vmem:[%s410 + $0x18] sm:$0xf]
      %v415 = vld [vmem:[%s410 + $0x20] sm:$0xf]
      %v416 = vld [vmem:[%s410 + $0x28] sm:$0xf]
      %v417 = vld [vmem:[%s410 + $0x30] sm:$0xf]
      %v418 = vld [vmem:[%s410 + $0x38] sm:$0xf]
      %v419 = vld [vmem:[%s410 + $0x4] sm:$0x1]
      %v420 = vld [vmem:[%s410 + $0xc] sm:$0x1]
      %v421 = vld [vmem:[%s410 + $0x14] sm:$0x1]
      %v422 = vld [vmem:[%s410 + $0x1c] sm:$0x1]
      %v423 = vld [vmem:[%s410 + $0x24] sm:$0x1]
      %v424 = vld [vmem:[%s410 + $0x2c] sm:$0x1]
      %v425 = vld [vmem:[%s410 + $0x34] sm:$0x1]
      %v426 = vld [vmem:[%s410 + $0x3c] sm:$0x1]
      %v427 = vld [vmem:[%s410] sm:$0xe]
      %v428 = vld [vmem:[%s410 + $0x8] sm:$0xe]
      %v429 = vld [vmem:[%s410 + $0x10] sm:$0xe]
      %v430 = vld [vmem:[%s410 + $0x18] sm:$0xe]
      %v431 = vld [vmem:[%s410 + $0x20] sm:$0xe]
      %v432 = vld [vmem:[%s410 + $0x28] sm:$0xe]
      %v433 = vld [vmem:[%s410 + $0x30] sm:$0xe]
      %v434 = vld [vmem:[%s410 + $0x38] sm:$0xe]
      %v451 = vunpack.c.l.b16 %v411
      %v452 = vunpack.c.l.b16 %v419
      %v453 = vunpack.c.l.b16 %v412
      %v454 = vunpack.c.l.b16 %v420
      %v455 = vunpack.c.l.b16 %v413
      %v456 = vunpack.c.l.b16 %v421
      %v457 = vunpack.c.l.b16 %v414
      %v458 = vunpack.c.l.b16 %v422
      %v459 = vunpack.c.l.b16 %v415
      %v460 = vunpack.c.l.b16 %v423
      %v461 = vunpack.c.l.b16 %v416
      %v462 = vunpack.c.l.b16 %v424
      %v463 = vunpack.c.l.b16 %v417
      %v464 = vunpack.c.l.b16 %v425
      %v465 = vunpack.c.l.b16 %v418
      %v466 = vunpack.c.l.b16 %v426
      %v467 = vpack.c.b16 %v452, %v451
      %v468 = vpack.c.b16 %v454, %v453
      %v469 = vpack.c.b16 %v456, %v455
      %v470 = vpack.c.b16 %v458, %v457
      %v471 = vpack.c.b16 %v460, %v459
      %v472 = vpack.c.b16 %v462, %v461
      %v473 = vpack.c.b16 %v464, %v463
      %v474 = vpack.c.b16 %v466, %v465
      %v476 = vshrl.u32 %v467, 16
      %v478 = vshll.u32 %v467, 16
      %v480 = vrot.slane %v478, 1
      %v481 = vor.u32 %v476, %v480
      %v483 = vshrl.u32 %v468, 16
      %v485 = vshll.u32 %v468, 16
      %v487 = vrot.slane %v485, 1
      %v488 = vor.u32 %v483, %v487
      %v490 = vshrl.u32 %v469, 16
      %v492 = vshll.u32 %v469, 16
      %v494 = vrot.slane %v492, 1
      %v495 = vor.u32 %v490, %v494
      %v497 = vshrl.u32 %v470, 16
      %v499 = vshll.u32 %v470, 16
      %v501 = vrot.slane %v499, 1
      %v502 = vor.u32 %v497, %v501
      %v504 = vshrl.u32 %v471, 16
      %v506 = vshll.u32 %v471, 16
      %v508 = vrot.slane %v506, 1
      %v509 = vor.u32 %v504, %v508
      %v511 = vshrl.u32 %v472, 16
      %v513 = vshll.u32 %v472, 16
      %v515 = vrot.slane %v513, 1
      %v516 = vor.u32 %v511, %v515
      %v518 = vshrl.u32 %v473, 16
      %v520 = vshll.u32 %v473, 16
      %v522 = vrot.slane %v520, 1
      %v523 = vor.u32 %v518, %v522
      %v525 = vshrl.u32 %v474, 16
      %v527 = vshll.u32 %v474, 16
      %v529 = vrot.slane %v527, 1
      %v530 = vor.u32 %v525, %v529
      %531 = vrot.lane.b32.xlu0 %v481, 32
      %v532 = vpop.permute.xlu0 %531
      %533 = vrot.lane.b32.xlu0 %v488, 32
      %v534 = vpop.permute.xlu0 %533
      %535 = vrot.lane.b32.xlu0 %v495, 32
      %v536 = vpop.permute.xlu0 %535
      %537 = vrot.lane.b32.xlu0 %v502, 32
      %v538 = vpop.permute.xlu0 %537
      %539 = vrot.lane.b32.xlu0 %v509, 32
      %v540 = vpop.permute.xlu0 %539
      %541 = vrot.lane.b32.xlu0 %v516, 32
      %v542 = vpop.permute.xlu0 %541
      %543 = vrot.lane.b32.xlu0 %v523, 32
      %v544 = vpop.permute.xlu0 %543
      %545 = vrot.lane.b32.xlu0 %v530, 32
      %v546 = vpop.permute.xlu0 %545
      %v555 = vunpack.c.l.b16 %v427
      %v556 = vunpack.c.l.b16 %v428
      %v557 = vunpack.c.l.b16 %v429
      %v558 = vunpack.c.l.b16 %v430
      %v559 = vunpack.c.l.b16 %v431
      %v560 = vunpack.c.l.b16 %v432
      %v561 = vunpack.c.l.b16 %v433
      %v562 = vunpack.c.l.b16 %v434
      %v563 = vpack.c.b16 %v452, %v555
      %v564 = vpack.c.b16 %v454, %v556
      %v565 = vpack.c.b16 %v456, %v557
      %v566 = vpack.c.b16 %v458, %v558
      %v567 = vpack.c.b16 %v460, %v559
      %v568 = vpack.c.b16 %v462, %v560
      %v569 = vpack.c.b16 %v464, %v561
      %v570 = vpack.c.b16 %v466, %v562
      %v571 = vrot.slane %v563, 1
      %v572 = vrot.slane %v564, 1
      %v573 = vrot.slane %v565, 1
      %v574 = vrot.slane %v566, 1
      %v575 = vrot.slane %v567, 1
      %v576 = vrot.slane %v568, 1
      %v577 = vrot.slane %v569, 1
      %v578 = vrot.slane %v570, 1
      %579 = vrot.lane.b32.xlu0 %v571, 64
      %v580 = vpop.permute.xlu0 %579
      %581 = vrot.lane.b32.xlu0 %v572, 64
      %v582 = vpop.permute.xlu0 %581
      %583 = vrot.lane.b32.xlu0 %v573, 64
      %v584 = vpop.permute.xlu0 %583
      %585 = vrot.lane.b32.xlu0 %v574, 64
      %v586 = vpop.permute.xlu0 %585
      %587 = vrot.lane.b32.xlu0 %v575, 64
      %v588 = vpop.permute.xlu0 %587
      %589 = vrot.lane.b32.xlu0 %v576, 64
      %v590 = vpop.permute.xlu0 %589
      %591 = vrot.lane.b32.xlu0 %v577, 64
      %v592 = vpop.permute.xlu0 %591
      %593 = vrot.lane.b32.xlu0 %v578, 64
      %v594 = vpop.permute.xlu0 %593
      %v597 = vsel %vm356, %v411, %v532
      %v600 = vsel %vm356, %v412, %v534
      %v603 = vsel %vm356, %v413, %v536
      %v606 = vsel %vm356, %v414, %v538
      %v609 = vsel %vm356, %v415, %v540
      %v612 = vsel %vm356, %v416, %v542
      %v615 = vsel %vm356, %v417, %v544
      %v618 = vsel %vm356, %v418, %v546
      %v620 = vsel %vm381, %v597, %v580
      %v622 = vsel %vm381, %v600, %v582
      %v624 = vsel %vm381, %v603, %v584
      %v626 = vsel %vm381, %v606, %v586
      %v628 = vsel %vm381, %v609, %v588
      %v630 = vsel %vm381, %v612, %v590
      %v632 = vsel %vm381, %v615, %v592
      %v634 = vsel %vm381, %v618, %v594
      %s635 = scalar_lea.vmem %s1, 48
      %v636 = vld [vmem:[%s635] sm:$0xf]
      %v637 = vld [vmem:[%s635 + $0x4] sm:$0xf]
      %v638 = vld [vmem:[%s635 + $0x8] sm:$0xf]
      %v639 = vld [vmem:[%s635 + $0xc] sm:$0xf]
      %v640 = vld [vmem:[%s635 + $0x10] sm:$0xf]
      %v641 = vld [vmem:[%s635 + $0x14] sm:$0xf]
      %v642 = vld [vmem:[%s635 + $0x18] sm:$0xf]
      %v643 = vld [vmem:[%s635 + $0x1c] sm:$0xf]
      %v644 = vld [vmem:[%s635 + $0x20] sm:$0xf]
      %v645 = vld [vmem:[%s635 + $0x24] sm:$0xf]
      %v646 = vld [vmem:[%s635 + $0x28] sm:$0xf]
      %v647 = vld [vmem:[%s635 + $0x2c] sm:$0xf]
      %v656 = vunpack.c.l.b16 %v620
      %v657 = vunpack.c.l.b16 %v622
      %v658 = vunpack.c.l.b16 %v624
      %v659 = vunpack.c.l.b16 %v626
      %v660 = vunpack.c.l.b16 %v628
      %v661 = vunpack.c.l.b16 %v630
      %v662 = vunpack.c.l.b16 %v632
      %v663 = vunpack.c.l.b16 %v634
      %v664 = vpack.c.b16 %v657, %v656
      %v665 = vpack.c.b16 %v659, %v658
      %v666 = vpack.c.b16 %v661, %v660
      %v667 = vpack.c.b16 %v663, %v662
      %v680 = vunpack.c.l.b16 %v636
      %v681 = vunpack.c.l.b16 %v637
      %v682 = vunpack.c.l.b16 %v638
      %v683 = vunpack.c.l.b16 %v639
      %v684 = vunpack.c.l.b16 %v640
      %v685 = vunpack.c.l.b16 %v641
      %v686 = vunpack.c.l.b16 %v642
      %v687 = vunpack.c.l.b16 %v643
      %v688 = vunpack.c.l.b16 %v644
      %v689 = vunpack.c.l.b16 %v645
      %v690 = vunpack.c.l.b16 %v646
      %v691 = vunpack.c.l.b16 %v647
      %v692 = vpack.c.b16 %v681, %v680
      %v693 = vpack.c.b16 %v683, %v682
      %v694 = vpack.c.b16 %v685, %v684
      %v695 = vpack.c.b16 %v687, %v686
      %v696 = vpack.c.b16 %v689, %v688
      %v697 = vpack.c.b16 %v691, %v690
      %vm704 = vcmask 785408
      %v706 = vsel %vm704, %v664, 0
      %v709 = vsel %vm704, %v665, 0
      %v712 = vsel %vm704, %v666, 0
      %v715 = vsel %vm704, %v667, 0
      %717 = vmatprep.subr.bf16.mxu0 0
      %718 = vmatpush1.bf16.msra.mxu0 %v692
      %719 = vmatprep.subr.bf16.mxu0 0
      %720 = vmatpush1.bf16.msra.mxu0 %v693
      %721 = vmatprep.subr.bf16.mxu0 0
      %722 = vmatpush1.bf16.msra.mxu0 %v694
      %723 = vmatprep.subr.bf16.mxu0 0
      %724 = vmatpush1.bf16.msra.mxu0 %v695
      %725 = vmatprep.subr.bf16.mxu0 0
      %726 = vmatpush1.bf16.msra.mxu0 %v696
      %727 = vmatprep.subr.bf16.mxu0 0
      %728 = vmatpush1.bf16.msra.mxu0 %v697
      %729 = vmatprep.subr.bf16.mxu0 0
      %730 = vmatpush1.bf16.msra.mxu0 0
      %731 = vmatprep.subr.bf16.mxu0 0
      %732 = vmatpush1.bf16.msra.mxu0 0
      %733 = vmatprep.subr.bf16.mxu0 0
      %734 = vmatpush1.bf16.msra.mxu0 0
      %735 = vmatprep.subr.bf16.mxu0 0
      %736 = vmatpush1.bf16.msra.mxu0 0
      %737 = vmatprep.subr.bf16.mxu0 0
      %738 = vmatpush1.bf16.msra.mxu0 0
      %739 = vmatprep.subr.bf16.mxu0 0
      %740 = vmatpush1.bf16.msra.mxu0 0
      %741 = vmatprep.subr.bf16.mxu0 0
      %742 = vmatpush1.bf16.msra.mxu0 0
      %743 = vmatprep.subr.bf16.mxu0 0
      %744 = vmatpush1.bf16.msra.mxu0 0
      %745 = vmatprep.subr.bf16.mxu0 0
      %746 = vmatpush1.bf16.msra.mxu0 0
      %747 = vmatprep.subr.bf16.mxu0 0
      %748 = vmatpush1.bf16.msra.mxu0 0
      %749 = vmatprep.mubr.bf16.mxu0 0
      %750 = vmatmul.mubr.bf16.gmra.mrb[0].mxu0 %v706
      %v751 = vpop.f32.mrb[0].mxu0
      %v752 = vadd.f32 0.0, %v751
      %v753 = vpop.f32.mrb[0].mxu0
      %v754 = vpop.f32.mrb[0].mxu0
      %v755 = vadd.f32 0.0, %v754
      %v756 = vpop.f32.mrb[0].mxu0
      %757 = vmatprep.mubr.bf16.mxu0 0
      %758 = vmatmul.mubr.bf16.gmra.mrb[0].mxu0 %v709
      %v759 = vpop.f32.mrb[0].mxu0
      %v760 = vadd.f32 0.0, %v759
      %v761 = vpop.f32.mrb[0].mxu0
      %v762 = vpop.f32.mrb[0].mxu0
      %v763 = vadd.f32 0.0, %v762
      %v764 = vpop.f32.mrb[0].mxu0
      %765 = vmatprep.mubr.bf16.mxu0 0
      %766 = vmatmul.mubr.bf16.gmra.mrb[0].mxu0 %v712
      %v767 = vpop.f32.mrb[0].mxu0
      %v768 = vadd.f32 0.0, %v767
      %v769 = vpop.f32.mrb[0].mxu0
      %v770 = vpop.f32.mrb[0].mxu0
      %v771 = vadd.f32 0.0, %v770
      %v772 = vpop.f32.mrb[0].mxu0
      %773 = vmatprep.mubr.bf16.mxu0 0
      %774 = vmatmul.mubr.bf16.gmra.mrb[0].mxu0 %v715
      %v775 = vpop.f32.mrb[0].mxu0
      %v776 = vadd.f32 0.0, %v775
      %v777 = vpop.f32.mrb[0].mxu0
      %v778 = vpop.f32.mrb[0].mxu0
      %v779 = vadd.f32 0.0, %v778
      %v780 = vpop.f32.mrb[0].mxu0
      %781 = vdwg.mxu0
      %v790 = vunpack.c.l.b16 %v383
      %v791 = vunpack.c.l.b16 %v385
      %v792 = vunpack.c.l.b16 %v387
      %v793 = vunpack.c.l.b16 %v389
      %v794 = vunpack.c.l.b16 %v391
      %v795 = vunpack.c.l.b16 %v393
      %v796 = vunpack.c.l.b16 %v395
      %v797 = vunpack.c.l.b16 %v397
      %v798 = vpack.c.b16 %v791, %v790
      %v799 = vpack.c.b16 %v793, %v792
      %v800 = vpack.c.b16 %v795, %v794
      %v801 = vpack.c.b16 %v797, %v796
      %v814 = vunpack.c.l.b16 %v398
      %v815 = vunpack.c.l.b16 %v399
      %v816 = vunpack.c.l.b16 %v400
      %v817 = vunpack.c.l.b16 %v401
      %v818 = vunpack.c.l.b16 %v402
      %v819 = vunpack.c.l.b16 %v403
      %v820 = vunpack.c.l.b16 %v404
      %v821 = vunpack.c.l.b16 %v405
      %v822 = vunpack.c.l.b16 %v406
      %v823 = vunpack.c.l.b16 %v407
      %v824 = vunpack.c.l.b16 %v408
      %v825 = vunpack.c.l.b16 %v409
      %v826 = vpack.c.b16 %v815, %v814
      %v827 = vpack.c.b16 %v817, %v816
      %v828 = vpack.c.b16 %v819, %v818
      %v829 = vpack.c.b16 %v821, %v820
      %v830 = vpack.c.b16 %v823, %v822
      %v831 = vpack.c.b16 %v825, %v824
      %v839 = vsel %vm704, %v798, 0
      %v842 = vsel %vm704, %v799, 0
      %v845 = vsel %vm704, %v800, 0
      %v848 = vsel %vm704, %v801, 0
      %850 = vmatprep.subr.bf16.mxu0 0
      %851 = vmatpush1.bf16.msra.mxu0 %v826
      %852 = vmatprep.subr.bf16.mxu0 0
      %853 = vmatpush1.bf16.msra.mxu0 %v827
      %854 = vmatprep.subr.bf16.mxu0 0
      %855 = vmatpush1.bf16.msra.mxu0 %v828
      %856 = vmatprep.subr.bf16.mxu0 0
      %857 = vmatpush1.bf16.msra.mxu0 %v829
      %858 = vmatprep.subr.bf16.mxu0 0
      %859 = vmatpush1.bf16.msra.mxu0 %v830
      %860 = vmatprep.subr.bf16.mxu0 0
      %861 = vmatpush1.bf16.msra.mxu0 %v831
      %862 = vmatprep.subr.bf16.mxu0 0
      %863 = vmatpush1.bf16.msra.mxu0 0
      %864 = vmatprep.subr.bf16.mxu0 0
      %865 = vmatpush1.bf16.msra.mxu0 0
      %866 = vmatprep.subr.bf16.mxu0 0
      %867 = vmatpush1.bf16.msra.mxu0 0
      %868 = vmatprep.subr.bf16.mxu0 0
      %869 = vmatpush1.bf16.msra.mxu0 0
      %870 = vmatprep.subr.bf16.mxu0 0
      %871 = vmatpush1.bf16.msra.mxu0 0
      %872 = vmatprep.subr.bf16.mxu0 0
      %873 = vmatpush1.bf16.msra.mxu0 0
      %874 = vmatprep.subr.bf16.mxu0 0
      %875 = vmatpush1.bf16.msra.mxu0 0
      %876 = vmatprep.subr.bf16.mxu0 0
      %877 = vmatpush1.bf16.msra.mxu0 0
      %878 = vmatprep.subr.bf16.mxu0 0
      %879 = vmatpush1.bf16.msra.mxu0 0
      %880 = vmatprep.subr.bf16.mxu0 0
      %881 = vmatpush1.bf16.msra.mxu0 0
      %882 = vmatprep.mubr.bf16.mxu0 0
      %883 = vmatmul.mubr.bf16.gmra.mrb[0].mxu0 %v839
      %v884 = vpop.f32.mrb[0].mxu0
      %v885 = vadd.f32 %v752, %v884
      %v886 = vpop.f32.mrb[0].mxu0
      %v887 = vpop.f32.mrb[0].mxu0
      %v888 = vadd.f32 %v755, %v887
      %v889 = vpop.f32.mrb[0].mxu0
      %890 = vmatprep.mubr.bf16.mxu0 0
      %891 = vmatmul.mubr.bf16.gmra.mrb[0].mxu0 %v842
      %v892 = vpop.f32.mrb[0].mxu0
      %v893 = vadd.f32 %v760, %v892
      %v894 = vpop.f32.mrb[0].mxu0
      %v895 = vpop.f32.mrb[0].mxu0
      %v896 = vadd.f32 %v763, %v895
      %v897 = vpop.f32.mrb[0].mxu0
      %898 = vmatprep.mubr.bf16.mxu0 0
      %899 = vmatmul.mubr.bf16.gmra.mrb[0].mxu0 %v845
      %v900 = vpop.f32.mrb[0].mxu0
      %v901 = vadd.f32 %v768, %v900
      %v902 = vpop.f32.mrb[0].mxu0
      %v903 = vpop.f32.mrb[0].mxu0
      %v904 = vadd.f32 %v771, %v903
      %v905 = vpop.f32.mrb[0].mxu0
      %906 = vmatprep.mubr.bf16.mxu0 0
      %907 = vmatmul.mubr.bf16.gmra.mrb[0].mxu0 %v848
      %v908 = vpop.f32.mrb[0].mxu0
      %v909 = vadd.f32 %v776, %v908
      %v910 = vpop.f32.mrb[0].mxu0
      %v911 = vpop.f32.mrb[0].mxu0
      %v912 = vadd.f32 %v779, %v911
      %v913 = vpop.f32.mrb[0].mxu0
      %914 = vdwg.mxu0
      %s915 = scalar_lea.vmem %s165, 16
      %v916 = vld [vmem:[%s915] sm:$0xf]
      %v917 = vld [vmem:[%s915 + $0x8] sm:$0xf]
      %v918 = vld [vmem:[%s915 + $0x10] sm:$0xf]
      %v919 = vld [vmem:[%s915 + $0x18] sm:$0xf]
      %v920 = vld [vmem:[%s915 + $0x20] sm:$0xf]
      %v921 = vld [vmem:[%s915 + $0x28] sm:$0xf]
      %v922 = vld [vmem:[%s915 + $0x30] sm:$0xf]
      %v923 = vld [vmem:[%s915 + $0x38] sm:$0xf]
      %v924 = vld [vmem:[%s915 + $0x4] sm:$0x1]
      %v925 = vld [vmem:[%s915 + $0xc] sm:$0x1]
      %v926 = vld [vmem:[%s915 + $0x14] sm:$0x1]
      %v927 = vld [vmem:[%s915 + $0x1c] sm:$0x1]
      %v928 = vld [vmem:[%s915 + $0x24] sm:$0x1]
      %v929 = vld [vmem:[%s915 + $0x2c] sm:$0x1]
      %v930 = vld [vmem:[%s915 + $0x34] sm:$0x1]
      %v931 = vld [vmem:[%s915 + $0x3c] sm:$0x1]
      %v932 = vld [vmem:[%s915] sm:$0xe]
      %v933 = vld [vmem:[%s915 + $0x8] sm:$0xe]
      %v934 = vld [vmem:[%s915 + $0x10] sm:$0xe]
      %v935 = vld [vmem:[%s915 + $0x18] sm:$0xe]
      %v936 = vld [vmem:[%s915 + $0x20] sm:$0xe]
      %v937 = vld [vmem:[%s915 + $0x28] sm:$0xe]
      %v938 = vld [vmem:[%s915 + $0x30] sm:$0xe]
      %v939 = vld [vmem:[%s915 + $0x38] sm:$0xe]
      %v956 = vunpack.c.l.b16 %v916
      %v957 = vunpack.c.l.b16 %v924
      %v958 = vunpack.c.l.b16 %v917
      %v959 = vunpack.c.l.b16 %v925
      %v960 = vunpack.c.l.b16 %v918
      %v961 = vunpack.c.l.b16 %v926
      %v962 = vunpack.c.l.b16 %v919
      %v963 = vunpack.c.l.b16 %v927
      %v964 = vunpack.c.l.b16 %v920
      %v965 = vunpack.c.l.b16 %v928
      %v966 = vunpack.c.l.b16 %v921
      %v967 = vunpack.c.l.b16 %v929
      %v968 = vunpack.c.l.b16 %v922
      %v969 = vunpack.c.l.b16 %v930
      %v970 = vunpack.c.l.b16 %v923
      %v971 = vunpack.c.l.b16 %v931
      %v972 = vpack.c.b16 %v957, %v956
      %v973 = vpack.c.b16 %v959, %v958
      %v974 = vpack.c.b16 %v961, %v960
      %v975 = vpack.c.b16 %v963, %v962
      %v976 = vpack.c.b16 %v965, %v964
      %v977 = vpack.c.b16 %v967, %v966
      %v978 = vpack.c.b16 %v969, %v968
      %v979 = vpack.c.b16 %v971, %v970
      %v981 = vshrl.u32 %v972, 16
      %v983 = vshll.u32 %v972, 16
      %v985 = vrot.slane %v983, 1
      %v986 = vor.u32 %v981, %v985
      %v988 = vshrl.u32 %v973, 16
      %v990 = vshll.u32 %v973, 16
      %v992 = vrot.slane %v990, 1
      %v993 = vor.u32 %v988, %v992
      %v995 = vshrl.u32 %v974, 16
      %v997 = vshll.u32 %v974, 16
      %v999 = vrot.slane %v997, 1
      %v1000 = vor.u32 %v995, %v999
      %v1002 = vshrl.u32 %v975, 16
      %v1004 = vshll.u32 %v975, 16
      %v1006 = vrot.slane %v1004, 1
      %v1007 = vor.u32 %v1002, %v1006
      %v1009 = vshrl.u32 %v976, 16
      %v1011 = vshll.u32 %v976, 16
      %v1013 = vrot.slane %v1011, 1
      %v1014 = vor.u32 %v1009, %v1013
      %v1016 = vshrl.u32 %v977, 16
      %v1018 = vshll.u32 %v977, 16
      %v1020 = vrot.slane %v1018, 1
      %v1021 = vor.u32 %v1016, %v1020
      %v1023 = vshrl.u32 %v978, 16
      %v1025 = vshll.u32 %v978, 16
      %v1027 = vrot.slane %v1025, 1
      %v1028 = vor.u32 %v1023, %v1027
      %v1030 = vshrl.u32 %v979, 16
      %v1032 = vshll.u32 %v979, 16
      %v1034 = vrot.slane %v1032, 1
      %v1035 = vor.u32 %v1030, %v1034
      %1036 = vrot.lane.b32.xlu0 %v986, 32
      %v1037 = vpop.permute.xlu0 %1036
      %1038 = vrot.lane.b32.xlu0 %v993, 32
      %v1039 = vpop.permute.xlu0 %1038
      %1040 = vrot.lane.b32.xlu0 %v1000, 32
      %v1041 = vpop.permute.xlu0 %1040
      %1042 = vrot.lane.b32.xlu0 %v1007, 32
      %v1043 = vpop.permute.xlu0 %1042
      %1044 = vrot.lane.b32.xlu0 %v1014, 32
      %v1045 = vpop.permute.xlu0 %1044
      %1046 = vrot.lane.b32.xlu0 %v1021, 32
      %v1047 = vpop.permute.xlu0 %1046
      %1048 = vrot.lane.b32.xlu0 %v1028, 32
      %v1049 = vpop.permute.xlu0 %1048
      %1050 = vrot.lane.b32.xlu0 %v1035, 32
      %v1051 = vpop.permute.xlu0 %1050
      %v1060 = vunpack.c.l.b16 %v932
      %v1061 = vunpack.c.l.b16 %v933
      %v1062 = vunpack.c.l.b16 %v934
      %v1063 = vunpack.c.l.b16 %v935
      %v1064 = vunpack.c.l.b16 %v936
      %v1065 = vunpack.c.l.b16 %v937
      %v1066 = vunpack.c.l.b16 %v938
      %v1067 = vunpack.c.l.b16 %v939
      %v1068 = vpack.c.b16 %v957, %v1060
      %v1069 = vpack.c.b16 %v959, %v1061
      %v1070 = vpack.c.b16 %v961, %v1062
      %v1071 = vpack.c.b16 %v963, %v1063
      %v1072 = vpack.c.b16 %v965, %v1064
      %v1073 = vpack.c.b16 %v967, %v1065
      %v1074 = vpack.c.b16 %v969, %v1066
      %v1075 = vpack.c.b16 %v971, %v1067
      %v1076 = vrot.slane %v1068, 1
      %v1077 = vrot.slane %v1069, 1
      %v1078 = vrot.slane %v1070, 1
      %v1079 = vrot.slane %v1071, 1
      %v1080 = vrot.slane %v1072, 1
      %v1081 = vrot.slane %v1073, 1
      %v1082 = vrot.slane %v1074, 1
      %v1083 = vrot.slane %v1075, 1
      %1084 = vrot.lane.b32.xlu0 %v1076, 64
      %v1085 = vpop.permute.xlu0 %1084
      %1086 = vrot.lane.b32.xlu0 %v1077, 64
      %v1087 = vpop.permute.xlu0 %1086
      %1088 = vrot.lane.b32.xlu0 %v1078, 64
      %v1089 = vpop.permute.xlu0 %1088
      %1090 = vrot.lane.b32.xlu0 %v1079, 64
      %v1091 = vpop.permute.xlu0 %1090
      %1092 = vrot.lane.b32.xlu0 %v1080, 64
      %v1093 = vpop.permute.xlu0 %1092
      %1094 = vrot.lane.b32.xlu0 %v1081, 64
      %v1095 = vpop.permute.xlu0 %1094
      %1096 = vrot.lane.b32.xlu0 %v1082, 64
      %v1097 = vpop.permute.xlu0 %1096
      %1098 = vrot.lane.b32.xlu0 %v1083, 64
      %v1099 = vpop.permute.xlu0 %1098
      %v1102 = vsel %vm356, %v916, %v1037
      %v1105 = vsel %vm356, %v917, %v1039
      %v1108 = vsel %vm356, %v918, %v1041
      %v1111 = vsel %vm356, %v919, %v1043
      %v1114 = vsel %vm356, %v920, %v1045
      %v1117 = vsel %vm356, %v921, %v1047
      %v1120 = vsel %vm356, %v922, %v1049
      %v1123 = vsel %vm356, %v923, %v1051
      %v1125 = vsel %vm381, %v1102, %v1085
      %v1127 = vsel %vm381, %v1105, %v1087
      %v1129 = vsel %vm381, %v1108, %v1089
      %v1131 = vsel %vm381, %v1111, %v1091
      %v1133 = vsel %vm381, %v1114, %v1093
      %v1135 = vsel %vm381, %v1117, %v1095
      %v1137 = vsel %vm381, %v1120, %v1097
      %v1139 = vsel %vm381, %v1123, %v1099
      %s1140 = scalar_lea.vmem %s1, 96
      %v1141 = vld [vmem:[%s1140] sm:$0xf]
      %v1142 = vld [vmem:[%s1140 + $0x4] sm:$0xf]
      %v1143 = vld [vmem:[%s1140 + $0x8] sm:$0xf]
      %v1144 = vld [vmem:[%s1140 + $0xc] sm:$0xf]
      %v1145 = vld [vmem:[%s1140 + $0x10] sm:$0xf]
      %v1146 = vld [vmem:[%s1140 + $0x14] sm:$0xf]
      %v1147 = vld [vmem:[%s1140 + $0x18] sm:$0xf]
      %v1148 = vld [vmem:[%s1140 + $0x1c] sm:$0xf]
      %v1149 = vld [vmem:[%s1140 + $0x20] sm:$0xf]
      %v1150 = vld [vmem:[%s1140 + $0x24] sm:$0xf]
      %v1151 = vld [vmem:[%s1140 + $0x28] sm:$0xf]
      %v1152 = vld [vmem:[%s1140 + $0x2c] sm:$0xf]
      %v1161 = vunpack.c.l.b16 %v1125
      %v1162 = vunpack.c.l.b16 %v1127
      %v1163 = vunpack.c.l.b16 %v1129
      %v1164 = vunpack.c.l.b16 %v1131
      %v1165 = vunpack.c.l.b16 %v1133
      %v1166 = vunpack.c.l.b16 %v1135
      %v1167 = vunpack.c.l.b16 %v1137
      %v1168 = vunpack.c.l.b16 %v1139
      %v1169 = vpack.c.b16 %v1162, %v1161
      %v1170 = vpack.c.b16 %v1164, %v1163
      %v1171 = vpack.c.b16 %v1166, %v1165
      %v1172 = vpack.c.b16 %v1168, %v1167
      %v1185 = vunpack.c.l.b16 %v1141
      %v1186 = vunpack.c.l.b16 %v1142
      %v1187 = vunpack.c.l.b16 %v1143
      %v1188 = vunpack.c.l.b16 %v1144
      %v1189 = vunpack.c.l.b16 %v1145
      %v1190 = vunpack.c.l.b16 %v1146
      %v1191 = vunpack.c.l.b16 %v1147
      %v1192 = vunpack.c.l.b16 %v1148
      %v1193 = vunpack.c.l.b16 %v1149
      %v1194 = vunpack.c.l.b16 %v1150
      %v1195 = vunpack.c.l.b16 %v1151
      %v1196 = vunpack.c.l.b16 %v1152
      %v1197 = vpack.c.b16 %v1186, %v1185
      %v1198 = vpack.c.b16 %v1188, %v1187
      %v1199 = vpack.c.b16 %v1190, %v1189
      %v1200 = vpack.c.b16 %v1192, %v1191
      %v1201 = vpack.c.b16 %v1194, %v1193
      %v1202 = vpack.c.b16 %v1196, %v1195
      %v1210 = vsel %vm704, %v1169, 0
      %v1213 = vsel %vm704, %v1170, 0
      %v1216 = vsel %vm704, %v1171, 0
      %v1219 = vsel %vm704, %v1172, 0
      %1221 = vmatprep.subr.bf16.mxu0 0
      %1222 = vmatpush1.bf16.msra.mxu0 %v1197
      %1223 = vmatprep.subr.bf16.mxu0 0
      %1224 = vmatpush1.bf16.msra.mxu0 %v1198
      %1225 = vmatprep.subr.bf16.mxu0 0
      %1226 = vmatpush1.bf16.msra.mxu0 %v1199
      %1227 = vmatprep.subr.bf16.mxu0 0
      %1228 = vmatpush1.bf16.msra.mxu0 %v1200
      %1229 = vmatprep.subr.bf16.mxu0 0
      %1230 = vmatpush1.bf16.msra.mxu0 %v1201
      %1231 = vmatprep.subr.bf16.mxu0 0
      %1232 = vmatpush1.bf16.msra.mxu0 %v1202
      %1233 = vmatprep.subr.bf16.mxu0 0
      %1234 = vmatpush1.bf16.msra.mxu0 0
      %1235 = vmatprep.subr.bf16.mxu0 0
      %1236 = vmatpush1.bf16.msra.mxu0 0
      %1237 = vmatprep.subr.bf16.mxu0 0
      %1238 = vmatpush1.bf16.msra.mxu0 0
      %1239 = vmatprep.subr.bf16.mxu0 0
      %1240 = vmatpush1.bf16.msra.mxu0 0
      %1241 = vmatprep.subr.bf16.mxu0 0
      %1242 = vmatpush1.bf16.msra.mxu0 0
      %1243 = vmatprep.subr.bf16.mxu0 0
      %1244 = vmatpush1.bf16.msra.mxu0 0
      %1245 = vmatprep.subr.bf16.mxu0 0
      %1246 = vmatpush1.bf16.msra.mxu0 0
      %1247 = vmatprep.subr.bf16.mxu0 0
      %1248 = vmatpush1.bf16.msra.mxu0 0
      %1249 = vmatprep.subr.bf16.mxu0 0
      %1250 = vmatpush1.bf16.msra.mxu0 0
      %1251 = vmatprep.subr.bf16.mxu0 0
      %1252 = vmatpush1.bf16.msra.mxu0 0
      %1253 = vmatprep.mubr.bf16.mxu0 0
      %1254 = vmatmul.mubr.bf16.gmra.mrb[0].mxu0 %v1210
      %v1255 = vpop.f32.mrb[0].mxu0
      %v1256 = vadd.f32 0.0, %v1255
      %v1257 = vpop.f32.mrb[0].mxu0
      %v1258 = vpop.f32.mrb[0].mxu0
      %v1259 = vadd.f32 0.0, %v1258
      %v1260 = vpop.f32.mrb[0].mxu0
      %1261 = vmatprep.mubr.bf16.mxu0 0
      %1262 = vmatmul.mubr.bf16.gmra.mrb[0].mxu0 %v1213
      %v1263 = vpop.f32.mrb[0].mxu0
      %v1264 = vadd.f32 0.0, %v1263
      %v1265 = vpop.f32.mrb[0].mxu0
      %v1266 = vpop.f32.mrb[0].mxu0
      %v1267 = vadd.f32 0.0, %v1266
      %v1268 = vpop.f32.mrb[0].mxu0
      %1269 = vmatprep.mubr.bf16.mxu0 0
      %1270 = vmatmul.mubr.bf16.gmra.mrb[0].mxu0 %v1216
      %v1271 = vpop.f32.mrb[0].mxu0
      %v1272 = vadd.f32 0.0, %v1271
      %v1273 = vpop.f32.mrb[0].mxu0
      %v1274 = vpop.f32.mrb[0].mxu0
      %v1275 = vadd.f32 0.0, %v1274
      %v1276 = vpop.f32.mrb[0].mxu0
      %1277 = vmatprep.mubr.bf16.mxu0 0
      %1278 = vmatmul.mubr.bf16.gmra.mrb[0].mxu0 %v1219
      %v1279 = vpop.f32.mrb[0].mxu0
      %v1280 = vadd.f32 0.0, %v1279
      %v1281 = vpop.f32.mrb[0].mxu0
      %v1282 = vpop.f32.mrb[0].mxu0
      %v1283 = vadd.f32 0.0, %v1282
      %v1284 = vpop.f32.mrb[0].mxu0
      %1285 = vdwg.mxu0
      %v1286 = vadd.f32 %v885, %v1256
      %v1287 = vadd.f32 %v888, %v1259
      %v1288 = vadd.f32 %v893, %v1264
      %v1289 = vadd.f32 %v896, %v1267
      %v1290 = vadd.f32 %v901, %v1272
      %v1291 = vadd.f32 %v904, %v1275
      %v1292 = vadd.f32 %v909, %v1280
      %v1293 = vadd.f32 %v912, %v1283
      %v1294 = vld [vmem:[%s2] sm:$0x1]
      %v1296 = vlaneseq
      %v1297 = vshrl.u32 %v1296, 7
      %v1298 = vsub.s32 0, %v1297
      %v1299 = vrot.slane %v1294, %v1298
      %v1301 = vadd.f32 %v1286, %v1299
      %v1302 = vadd.f32 %v1287, %v1299
      %v1303 = vadd.f32 %v1288, %v1299
      %v1304 = vadd.f32 %v1289, %v1299
      %v1305 = vadd.f32 %v1290, %v1299
      %v1306 = vadd.f32 %v1291, %v1299
      %v1307 = vadd.f32 %v1292, %v1299
      %v1308 = vadd.f32 %v1293, %v1299
      %v1309 = vmax.f32 %v1301, 0.0
      %v1310 = vmax.f32 %v1302, 0.0
      %v1311 = vmax.f32 %v1303, 0.0
      %v1312 = vmax.f32 %v1304, 0.0
      %v1313 = vmax.f32 %v1305, 0.0
      %v1314 = vmax.f32 %v1306, 0.0
      %v1315 = vmax.f32 %v1307, 0.0
      %v1316 = vmax.f32 %v1308, 0.0
      %v1317 = vpack.c.bf16 %v1309, %v1309
      %v1318 = vpack.c.bf16 %v1310, %v1310
      %v1319 = vpack.c.bf16 %v1311, %v1311
      %v1320 = vpack.c.bf16 %v1312, %v1312
      %v1321 = vpack.c.bf16 %v1313, %v1313
      %v1322 = vpack.c.bf16 %v1314, %v1314
      %v1323 = vpack.c.bf16 %v1315, %v1315
      %v1324 = vpack.c.bf16 %v1316, %v1316
      %vm1325 = vcmask 257024
      %1326 = vst.msk [vmem:[%s170] sm:$0xf] %vm1325, %v1317
      %1327 = vst.msk [vmem:[%s170 + $0x4] sm:$0xf] %vm1325, %v1318
      %1328 = vst.msk [vmem:[%s170 + $0x8] sm:$0xf] %vm1325, %v1319
      %1329 = vst.msk [vmem:[%s170 + $0xc] sm:$0xf] %vm1325, %v1320
      %1330 = vst.msk [vmem:[%s170 + $0x10] sm:$0xf] %vm1325, %v1321
      %1331 = vst.msk [vmem:[%s170 + $0x14] sm:$0xf] %vm1325, %v1322
      %1332 = vst.msk [vmem:[%s170 + $0x18] sm:$0xf] %vm1325, %v1323
      %1333 = vst.msk [vmem:[%s170 + $0x1c] sm:$0xf] %vm1325, %v1324
      %p1334 = scmp.lt.s32.totalorder %s14, 1
      %s1335 = scalar_select %p1334, %s14, 1
      %s1336 = smul.addr %s1335, 8
      %s1337 = smul.addr %s1336, 4
      %s1338 = scalar_lea.vmem %s3, %s1337
      // Predicated region
      $region33: #{second_dsa_forward.14} parent=31 // pred_check
        %p1339 = pneg %p100
      $region34: #{second_dsa_forward.14} parent=31 // pred_check_branch
        %1341 = sbr.rel (%p1339) target = $region36
      $region35: #{second_dsa_forward.14} parent=31 // pred_region
        _
      $region36: #{second_dsa_forward.14} parent=31 // pred_fallthru
        _
    $region32: #{second_dsa_forward.14} parent=5 // pred_fallthru
      _
    %p1342 = scmp.le.s32.totalorder 2, %s9
    // Predicated region
    $region37: #{second_dsa_forward.14} parent=5 // pred_check
      %p1343 = pneg %p1342
    $region38: #{second_dsa_forward.14} parent=5 // pred_check_branch
      %1345 = sbr.rel (%p1343) target = $region40
    $region39: #{second_dsa_forward.14} parent=5 // pred_region
      %s1346 = ssub.s32 %s9, 2
      // Predicated region
      $region41: #{second_dsa_forward.14} parent=39 // pred_check
        %p1347 = pneg %p106
      $region42: #{second_dsa_forward.14} parent=39 // pred_check_branch
        %1349 = sbr.rel (%p1347) target = $region44
      $region43: #{second_dsa_forward.14} parent=39 // pred_region
        %p1350 = scmp.lt.s32.totalorder %s15, 1
        %s1351 = scalar_select %p1350, %s15, 1
        %s1352 = smul.addr %s1351, 8
        %s1353 = smul.addr %s1352, 4
        %s1354 = scalar_lea.vmem %s3, %s1353
      $region44: #{second_dsa_forward.14} parent=39 // pred_fallthru
        _
    $region40: #{second_dsa_forward.14} parent=5 // pred_fallthru
      _
  $region6: #{second_dsa_forward.14} parent=0 // loop_footer
    %s13 = sadd.s32 1, %s9
  $region7: #{second_dsa_forward.14} parent=0 // loop_footer_branch
    %8 = sbr.rel target = $region3
  $region8: #{second_dsa_forward.14} parent=0 // loop_exit
    _

// kernel: second_dsa_forward.16
$region0: #{second_dsa_forward.16}
  #allocation0 [shape = 'u32[]', space=smem, size = 0x4, offset = 0x4, fixed_abs, tag = 'smem constant byte address 0x4 - core index']
  #allocation1 [shape = 'u32[144,128]{1,0:T(1,128)}', space=vmem, size = 0x12000, scoped, tag = 'internal scratch']
  %s0 = inlined_call_operand.vmem [shape: bf16[2,4,5,5,32], index: 0, kind: input, shape index: {}]
  %s1 = inlined_call_operand.vmem [shape: bf16[3,96,64], index: 1, kind: input, shape index: {}]
  %s2 = inlined_call_operand.vmem [shape: f32[1,64], index: 2, kind: input, shape index: {}]
  %s3 = inlined_call_operand.vmem [shape: bf16[2,4,4,64], index: 3, kind: output, shape index: {}]
  %s4 = sld [smem:[#allocation0]]
  $region45: #{second_dsa_forward.16} parent=0
    _
  %s6 = ssub.s32 1, %s4
  %s7 = scalar_select 0, %s6, %s4
  loop: start=0, step=1, limit=4
  $region2: #{second_dsa_forward.16} parent=0 // loop_pre_header
    _
  $region3: #{second_dsa_forward.16} parent=0 // loop_header
    %s9 = sphi 0, %s13
    %p10 = scmp.ge.s32.totalorder %s9, 4
    %s19 = sphi 0, %s21
    %s22 = sphi 0, %s19
    %s23 = sphi 0, %s22
    %s39 = sphi 0, %s23
    %s43 = sphi 0, %s43
    %s45 = sphi 0, %s43
    %s46 = sphi 0, %s45
    %s60 = sphi 0, %s46
    %s64 = sphi 0, %s64
    %s66 = sphi 0, %s64
    %s67 = sphi 0, %s66
    %s81 = sphi 0, %s67
    %s87 = sphi 0, %s89
    %s90 = sphi 0, %s87
    %s91 = sphi 0, %s90
    %s107 = sphi 0, %s91
  $region4: #{second_dsa_forward.16} parent=0 // loop_header_branch
    %12 = sbr.rel (%p10) target = $region8
  $region5: #{second_dsa_forward.16} parent=0 // loop_body
    %s14 = ssub.s32 %s9, 1
    %s15 = ssub.s32 %s9, 2
    %s16 = sadd.s32 %s9, 1
    %s17 = ssub.s32 %s9, %s16
    %p18 = scmp.eq.s32.totalorder %s17, 0
    %s20 = sadd.s32 %s19, 1
    %s21 = scalar_select %p18, %s19, %s20
    %p24 = pneg %p18
    %p25 = scmp.eq.s32.totalorder %s9, 1
    %p26 = por %p24, %p25
    %p27 = scmp.ne.s32.totalorder %s19, %s22
    %p28 = scmp.eq.s32.totalorder %s9, 0
    %p29 = por %p27, %p28
    %p30 = scmp.ne.s32.totalorder %s19, %s22
    %p31 = scmp.eq.s32.totalorder %s14, 1
    %p32 = por %p30, %p31
    %p33 = scmp.ne.s32.totalorder %s22, %s23
    %p34 = scmp.eq.s32.totalorder %s14, 0
    %p35 = por %p33, %p34
    %p36 = scmp.ne.s32.totalorder %s22, %s23
    %p37 = scmp.eq.s32.totalorder %s15, 1
    %p38 = por %p36, %p37
    %p40 = scmp.ne.s32.totalorder %s23, %s39
    %p41 = scmp.eq.s32.totalorder %s15, 0
    %p42 = por %p40, %p41
    %s44 = sadd.s32 %s43, 1
    %p47 = scmp.eq.s32.totalorder %s9, 1
    %p48 = scmp.ne.s32.totalorder %s43, %s45
    %p49 = scmp.eq.s32.totalorder %s9, 0
    %p50 = por %p48, %p49
    %p51 = scmp.ne.s32.totalorder %s43, %s45
    %p52 = scmp.eq.s32.totalorder %s14, 1
    %p53 = por %p51, %p52
    %p54 = scmp.ne.s32.totalorder %s45, %s46
    %p55 = scmp.eq.s32.totalorder %s14, 0
    %p56 = por %p54, %p55
    %p57 = scmp.ne.s32.totalorder %s45, %s46
    %p58 = scmp.eq.s32.totalorder %s15, 1
    %p59 = por %p57, %p58
    %p61 = scmp.ne.s32.totalorder %s46, %s60
    %p62 = scmp.eq.s32.totalorder %s15, 0
    %p63 = por %p61, %p62
    %s65 = sadd.s32 %s64, 1
    %p68 = scmp.eq.s32.totalorder %s9, 1
    %p69 = scmp.ne.s32.totalorder %s64, %s66
    %p70 = scmp.eq.s32.totalorder %s9, 0
    %p71 = por %p69, %p70
    %p72 = scmp.ne.s32.totalorder %s64, %s66
    %p73 = scmp.eq.s32.totalorder %s14, 1
    %p74 = por %p72, %p73
    %p75 = scmp.ne.s32.totalorder %s66, %s67
    %p76 = scmp.eq.s32.totalorder %s14, 0
    %p77 = por %p75, %p76
    %p78 = scmp.ne.s32.totalorder %s66, %s67
    %p79 = scmp.eq.s32.totalorder %s15, 1
    %p80 = por %p78, %p79
    %p82 = scmp.ne.s32.totalorder %s67, %s81
    %p83 = scmp.eq.s32.totalorder %s15, 0
    %p84 = por %p82, %p83
    %s85 = ssub.s32 %s9, %s16
    %p86 = scmp.eq.s32.totalorder %s85, 0
    %s88 = sadd.s32 %s87, 1
    %s89 = scalar_select %p86, %s87, %s88
    %p92 = pneg %p86
    %p93 = scmp.eq.s32.totalorder %s9, 1
    %p94 = por %p92, %p93
    %p95 = scmp.ne.s32.totalorder %s87, %s90
    %p96 = scmp.eq.s32.totalorder %s9, 0
    %p97 = por %p95, %p96
    %p98 = scmp.ne.s32.totalorder %s87, %s90
    %p99 = scmp.eq.s32.totalorder %s14, 1
    %p100 = por %p98, %p99
    %p101 = scmp.ne.s32.totalorder %s90, %s91
    %p102 = scmp.eq.s32.totalorder %s14, 0
    %p103 = por %p101, %p102
    %p104 = scmp.ne.s32.totalorder %s90, %s91
    %p105 = scmp.eq.s32.totalorder %s15, 1
    %p106 = por %p104, %p105
    %p108 = scmp.ne.s32.totalorder %s91, %s107
    %p109 = scmp.eq.s32.totalorder %s15, 0
    %p110 = por %p108, %p109
    %p111 = scmp.le.s32.totalorder 1, %s9
    %p112 = scmp.lt.s32.totalorder %s9, 3
    %p113 = pnand %p111, %p112
    %p114 = pneg %p113
    // Predicated region
    $region9: #{second_dsa_forward.16} parent=5 // pred_check
      _
    $region10: #{second_dsa_forward.16} parent=5 // pred_check_branch
      %116 = sbr.rel (%p113) target = $region12
    $region11: #{second_dsa_forward.16} parent=5 // pred_region
      %s117 = ssub.s32 %s9, 1
      // Predicated region
      $region13: #{second_dsa_forward.16} parent=11 // pred_check
        %p118 = pneg %p56
      $region14: #{second_dsa_forward.16} parent=11 // pred_check_branch
        %120 = sbr.rel (%p118) target = $region16
      $region15: #{second_dsa_forward.16} parent=11 // pred_region
        _
      $region16: #{second_dsa_forward.16} parent=11 // pred_fallthru
        _
      // Predicated region
      $region17: #{second_dsa_forward.16} parent=11 // pred_check
        %p121 = pneg %p77
      $region18: #{second_dsa_forward.16} parent=11 // pred_check_branch
        %123 = sbr.rel (%p121) target = $region20
      $region19: #{second_dsa_forward.16} parent=11 // pred_region
        _
      $region20: #{second_dsa_forward.16} parent=11 // pred_fallthru
        _
    $region12: #{second_dsa_forward.16} parent=5 // pred_fallthru
      _
    %p124 = scmp.lt.s32.totalorder %s9, 2
    // Predicated region
    $region21: #{second_dsa_forward.16} parent=5 // pred_check
      %p125 = pneg %p124
    $region22: #{second_dsa_forward.16} parent=5 // pred_check_branch
      %127 = sbr.rel (%p125) target = $region24
    $region23: #{second_dsa_forward.16} parent=5 // pred_region
      // Predicated region
      $region25: #{second_dsa_forward.16} parent=23 // pred_check
        %p128 = pneg %p29
      $region26: #{second_dsa_forward.16} parent=23 // pred_check_branch
        %130 = sbr.rel (%p128) target = $region28
      $region27: #{second_dsa_forward.16} parent=23 // pred_region
        %p131 = scmp.lt.s32.totalorder %s9, 1
        %s132 = scalar_select %p131, %s9, 1
        %s133 = smul.addr %s132, 20
        %s134 = smul.addr %s133, 4
        %s135 = scalar_lea.vmem %s0, %s134
      $region28: #{second_dsa_forward.16} parent=23 // pred_fallthru
        _
    $region24: #{second_dsa_forward.16} parent=5 // pred_fallthru
      _
    %p136 = scmp.le.s32.totalorder 1, %s9
    %p137 = scmp.lt.s32.totalorder %s9, 3
    %p138 = pnand %p136, %p137
    %p139 = pneg %p138
    // Predicated region
    $region29: #{second_dsa_forward.16} parent=5 // pred_check
      _
    $region30: #{second_dsa_forward.16} parent=5 // pred_check_branch
      %141 = sbr.rel (%p138) target = $region32
    $region31: #{second_dsa_forward.16} parent=5 // pred_region
      %s142 = ssub.s32 %s9, 1
      %p143 = scmp.lt.s32.totalorder %s14, 1
      %s144 = scalar_select %p143, %s14, 1
      %s145 = smul.addr %s144, 20
      %s146 = smul.addr %s145, 4
      %s147 = scalar_lea.vmem %s0, %s146
      %p148 = pneg %p35
      %p149 = pneg %p32
      %p150 = pneg %p56
      %p151 = pneg %p53
      %p152 = pneg %p77
      %p153 = pneg %p74
      %p154 = pneg %p103
      %p155 = pneg %p100
      %p156 = scmp.lt.s32.totalorder %s14, 1
      %s157 = scalar_select %p156, %s14, 1
      %s158 = smul.addr %s157, 4
      %s159 = smul.addr %s158, 2
      %s160 = scalar_lea.vmem %s3, %s159
      %p161 = scmp.lt.s32.totalorder %s14, 1
      %s162 = scalar_select %p161, %s14, 1
      %s163 = smul.addr %s162, 20
      %s164 = smul.addr %s163, 4
      %s165 = scalar_lea.vmem %s0, %s164
      %p166 = scmp.lt.s32.totalorder %s14, 1
      %s167 = scalar_select %p166, %s14, 1
      %s168 = smul.addr %s167, 4
      %s169 = smul.addr %s168, 2
      %s170 = scalar_lea.vmem %s3, %s169
      %v172 = vld [vmem:[%s165] sm:$0x3]
      %v173 = vld [vmem:[%s165 + $0x4] sm:$0x3]
      %v174 = vld [vmem:[%s165 + $0x8] sm:$0x3]
      %v175 = vld [vmem:[%s165 + $0xc] sm:$0x3]
      %s176 = scalar_lea.vmem %s165, 20
      %v177 = vld [vmem:[%s176] sm:$0x3]
      %v178 = vld [vmem:[%s176 + $0x4] sm:$0x3]
      %v179 = vld [vmem:[%s176 + $0x8] sm:$0x3]
      %v180 = vld [vmem:[%s176 + $0xc] sm:$0x3]
      %v181 = vld [vmem:[%s165] sm:$0x7]
      %v182 = vld [vmem:[%s165 + $0x4] sm:$0x7]
      %v183 = vld [vmem:[%s165 + $0x8] sm:$0x7]
      %v184 = vld [vmem:[%s165 + $0xc] sm:$0x7]
      %v189 = vunpack.c.l.b16 %v177
      %v190 = vunpack.c.l.b16 %v178
      %v191 = vunpack.c.l.b16 %v179
      %v192 = vunpack.c.l.b16 %v180
      %v193 = vpack.c.b16 %v189, %v189
      %v194 = vpack.c.b16 %v190, %v190
      %v195 = vpack.c.b16 %v191, %v191
      %v196 = vpack.c.b16 %v192, %v192
      %197 = vrot.lane.b32.xlu0 %v193, 32
      %v198 = vpop.permute.xlu0 %197
      %199 = vrot.lane.b32.xlu0 %v194, 32
      %v200 = vpop.permute.xlu0 %199
      %201 = vrot.lane.b32.xlu0 %v195, 32
      %v202 = vpop.permute.xlu0 %201
      %203 = vrot.lane.b32.xlu0 %v196, 32
      %v204 = vpop.permute.xlu0 %203
      %v209 = vunpack.c.l.b16 %v181
      %v210 = vunpack.c.l.b16 %v182
      %v211 = vunpack.c.l.b16 %v183
      %v212 = vunpack.c.l.b16 %v184
      %v213 = vpack.c.b16 %v209, %v209
      %v214 = vpack.c.b16 %v210, %v210
      %v215 = vpack.c.b16 %v211, %v211
      %v216 = vpack.c.b16 %v212, %v212
      %v218 = vshrl.u32 %v213, 16
      %v220 = vshll.u32 %v213, 16
      %v222 = vrot.slane %v220, 1
      %v223 = vor.u32 %v218, %v222
      %v225 = vshrl.u32 %v214, 16
      %v227 = vshll.u32 %v214, 16
      %v229 = vrot.slane %v227, 1
      %v230 = vor.u32 %v225, %v229
      %v232 = vshrl.u32 %v215, 16
      %v234 = vshll.u32 %v215, 16
      %v236 = vrot.slane %v234, 1
      %v237 = vor.u32 %v232, %v236
      %v239 = vshrl.u32 %v216, 16
      %v241 = vshll.u32 %v216, 16
      %v243 = vrot.slane %v241, 1
      %v244 = vor.u32 %v239, %v243
      %245 = vrot.lane.b32.xlu0 %v223, 64
      %v246 = vpop.permute.xlu0 %245
      %247 = vrot.lane.b32.xlu0 %v230, 64
      %v248 = vpop.permute.xlu0 %247
      %249 = vrot.lane.b32.xlu0 %v237, 64
      %v250 = vpop.permute.xlu0 %249
      %251 = vrot.lane.b32.xlu0 %v244, 64
      %v252 = vpop.permute.xlu0 %251
      %vm253 = vcmask 261120
      %v256 = vsel %vm253, %v172, %v198
      %v259 = vsel %vm253, %v173, %v200
      %v262 = vsel %vm253, %v174, %v202
      %v265 = vsel %vm253, %v175, %v204
      %vm266 = vcmask 523264
      %v268 = vsel %vm266, %v256, %v246
      %v270 = vsel %vm266, %v259, %v248
      %v272 = vsel %vm266, %v262, %v250
      %v274 = vsel %vm266, %v265, %v252
      %v275 = vld [vmem:[%s1] sm:$0xf]
      %v276 = vld [vmem:[%s1 + $0x4] sm:$0xf]
      %v277 = vld [vmem:[%s1 + $0x8] sm:$0xf]
      %v278 = vld [vmem:[%s1 + $0xc] sm:$0xf]
      %v279 = vld [vmem:[%s1 + $0x10] sm:$0xf]
      %v280 = vld [vmem:[%s1 + $0x14] sm:$0xf]
      %v281 = vld [vmem:[%s1 + $0x18] sm:$0xf]
      %v282 = vld [vmem:[%s1 + $0x1c] sm:$0xf]
      %v283 = vld [vmem:[%s1 + $0x20] sm:$0xf]
      %v284 = vld [vmem:[%s1 + $0x24] sm:$0xf]
      %v285 = vld [vmem:[%s1 + $0x28] sm:$0xf]
      %v286 = vld [vmem:[%s1 + $0x2c] sm:$0xf]
      %s287 = scalar_lea.vmem %s165, 40
      %v288 = vld [vmem:[%s287] sm:$0x3]
      %v289 = vld [vmem:[%s287 + $0x4] sm:$0x3]
      %v290 = vld [vmem:[%s287 + $0x8] sm:$0x3]
      %v291 = vld [vmem:[%s287 + $0xc] sm:$0x3]
      %s292 = scalar_lea.vmem %s165, 60
      %v293 = vld [vmem:[%s292] sm:$0x3]
      %v294 = vld [vmem:[%s292 + $0x4] sm:$0x3]
      %v295 = vld [vmem:[%s292 + $0x8] sm:$0x3]
      %v296 = vld [vmem:[%s292 + $0xc] sm:$0x3]
      %v297 = vld [vmem:[%s287] sm:$0x7]
      %v298 = vld [vmem:[%s287 + $0x4] sm:$0x7]
      %v299 = vld [vmem:[%s287 + $0x8] sm:$0x7]
      %v300 = vld [vmem:[%s287 + $0xc] sm:$0x7]
      %v305 = vunpack.c.l.b16 %v293
      %v306 = vunpack.c.l.b16 %v294
      %v307 = vunpack.c.l.b16 %v295
      %v308 = vunpack.c.l.b16 %v296
      %v309 = vpack.c.b16 %v305, %v305
      %v310 = vpack.c.b16 %v306, %v306
      %v311 = vpack.c.b16 %v307, %v307
      %v312 = vpack.c.b16 %v308, %v308
      %313 = vrot.lane.b32.xlu0 %v309, 32
      %v314 = vpop.permute.xlu0 %313
      %315 = vrot.lane.b32.xlu0 %v310, 32
      %v316 = vpop.permute.xlu0 %315
      %317 = vrot.lane.b32.xlu0 %v311, 32
      %v318 = vpop.permute.xlu0 %317
      %319 = vrot.lane.b32.xlu0 %v312, 32
      %v320 = vpop.permute.xlu0 %319
      %v325 = vunpack.c.l.b16 %v297
      %v326 = vunpack.c.l.b16 %v298
      %v327 = vunpack.c.l.b16 %v299
      %v328 = vunpack.c.l.b16 %v300
      %v329 = vpack.c.b16 %v325, %v325
      %v330 = vpack.c.b16 %v326, %v326
      %v331 = vpack.c.b16 %v327, %v327
      %v332 = vpack.c.b16 %v328, %v328
      %v334 = vshrl.u32 %v329, 16
      %v336 = vshll.u32 %v329, 16
      %v338 = vrot.slane %v336, 1
      %v339 = vor.u32 %v334, %v338
      %v341 = vshrl.u32 %v330, 16
      %v343 = vshll.u32 %v330, 16
      %v345 = vrot.slane %v343, 1
      %v346 = vor.u32 %v341, %v345
      %v348 = vshrl.u32 %v331, 16
      %v350 = vshll.u32 %v331, 16
      %v352 = vrot.slane %v350, 1
      %v353 = vor.u32 %v348, %v352
      %v355 = vshrl.u32 %v332, 16
      %v357 = vshll.u32 %v332, 16
      %v359 = vrot.slane %v357, 1
      %v360 = vor.u32 %v355, %v359
      %361 = vrot.lane.b32.xlu0 %v339, 64
      %v362 = vpop.permute.xlu0 %361
      %363 = vrot.lane.b32.xlu0 %v346, 64
      %v364 = vpop.permute.xlu0 %363
      %365 = vrot.lane.b32.xlu0 %v353, 64
      %v366 = vpop.permute.xlu0 %365
      %367 = vrot.lane.b32.xlu0 %v360, 64
      %v368 = vpop.permute.xlu0 %367
      %v371 = vsel %vm253, %v288, %v314
      %v374 = vsel %vm253, %v289, %v316
      %v377 = vsel %vm253, %v290, %v318
      %v380 = vsel %vm253, %v291, %v320
      %v382 = vsel %vm266, %v371, %v362
      %v384 = vsel %vm266, %v374, %v364
      %v386 = vsel %vm266, %v377, %v366
      %v388 = vsel %vm266, %v380, %v368
      %s389 = scalar_lea.vmem %s1, 48
      %v390 = vld [vmem:[%s389] sm:$0xf]
      %v391 = vld [vmem:[%s389 + $0x4] sm:$0xf]
      %v392 = vld [vmem:[%s389 + $0x8] sm:$0xf]
      %v393 = vld [vmem:[%s389 + $0xc] sm:$0xf]
      %v394 = vld [vmem:[%s389 + $0x10] sm:$0xf]
      %v395 = vld [vmem:[%s389 + $0x14] sm:$0xf]
      %v396 = vld [vmem:[%s389 + $0x18] sm:$0xf]
      %v397 = vld [vmem:[%s389 + $0x1c] sm:$0xf]
      %v398 = vld [vmem:[%s389 + $0x20] sm:$0xf]
      %v399 = vld [vmem:[%s389 + $0x24] sm:$0xf]
      %v400 = vld [vmem:[%s389 + $0x28] sm:$0xf]
      %v401 = vld [vmem:[%s389 + $0x2c] sm:$0xf]
      %v406 = vcombine.low %v382, %v384
      %v407 = vcombine.low %v386, %v388
      %v409 = vunpack.c.l.s4 1983009808
      %v410 = vunpack.c.0.s8 %v409
      %v411 = vlaneseq
      %v412 = vshrl.u32 %v411, 7
      %v413 = vsub.s32 %v410, %v412
      %v414 = vrot.slane %v406, %v413
      %v416 = vunpack.c.l.s4 1983009808
      %v417 = vunpack.c.0.s8 %v416
      %v418 = vlaneseq
      %v419 = vshrl.u32 %v418, 7
      %v420 = vsub.s32 %v417, %v419
      %v421 = vrot.slane %v407, %v420
      %v422 = vcombine.low %v414, %v421
      %v435 = vunpack.c.l.b16 %v390
      %v436 = vunpack.c.l.b16 %v391
      %v437 = vunpack.c.l.b16 %v392
      %v438 = vunpack.c.l.b16 %v393
      %v439 = vunpack.c.l.b16 %v394
      %v440 = vunpack.c.l.b16 %v395
      %v441 = vunpack.c.l.b16 %v396
      %v442 = vunpack.c.l.b16 %v397
      %v443 = vunpack.c.l.b16 %v398
      %v444 = vunpack.c.l.b16 %v399
      %v445 = vunpack.c.l.b16 %v400
      %v446 = vunpack.c.l.b16 %v401
      %v447 = vpack.c.b16 %v436, %v435
      %v448 = vpack.c.b16 %v438, %v437
      %v449 = vpack.c.b16 %v440, %v439
      %v450 = vpack.c.b16 %v442, %v441
      %v451 = vpack.c.b16 %v444, %v443
      %v452 = vpack.c.b16 %v446, %v445
      %vm459 = vcmask 785408
      %v461 = vsel %vm459, %v422, 0
      %463 = vmatprep.subr.bf16.mxu0 0
      %464 = vmatpush1.bf16.msra.mxu0 %v447
      %465 = vmatprep.subr.bf16.mxu0 0
      %466 = vmatpush1.bf16.msra.mxu0 %v448
      %467 = vmatprep.subr.bf16.mxu0 0
      %468 = vmatpush1.bf16.msra.mxu0 %v449
      %469 = vmatprep.subr.bf16.mxu0 0
      %470 = vmatpush1.bf16.msra.mxu0 %v450
      %471 = vmatprep.subr.bf16.mxu0 0
      %472 = vmatpush1.bf16.msra.mxu0 %v451
      %473 = vmatprep.subr.bf16.mxu0 0
      %474 = vmatpush1.bf16.msra.mxu0 %v452
      %475 = vmatprep.subr.bf16.mxu0 0
      %476 = vmatpush1.bf16.msra.mxu0 0
      %477 = vmatprep.subr.bf16.mxu0 0
      %478 = vmatpush1.bf16.msra.mxu0 0
      %479 = vmatprep.subr.bf16.mxu0 0
      %480 = vmatpush1.bf16.msra.mxu0 0
      %481 = vmatprep.subr.bf16.mxu0 0
      %482 = vmatpush1.bf16.msra.mxu0 0
      %483 = vmatprep.subr.bf16.mxu0 0
      %484 = vmatpush1.bf16.msra.mxu0 0
      %485 = vmatprep.subr.bf16.mxu0 0
      %486 = vmatpush1.bf16.msra.mxu0 0
      %487 = vmatprep.subr.bf16.mxu0 0
      %488 = vmatpush1.bf16.msra.mxu0 0
      %489 = vmatprep.subr.bf16.mxu0 0
      %490 = vmatpush1.bf16.msra.mxu0 0
      %491 = vmatprep.subr.bf16.mxu0 0
      %492 = vmatpush1.bf16.msra.mxu0 0
      %493 = vmatprep.subr.bf16.mxu0 0
      %494 = vmatpush1.bf16.msra.mxu0 0
      %495 = vmatprep.mubr.bf16.mxu0 0
      %496 = vmatmul.mubr.bf16.gmra.mrb[0].mxu0 %v461
      %v497 = vpop.f32.mrb[0].mxu0
      %v498 = vadd.f32 0.0, %v497
      %v499 = vpop.f32.mrb[0].mxu0
      %v500 = vpop.f32.mrb[0].mxu0
      %v501 = vadd.f32 0.0, %v500
      %v502 = vpop.f32.mrb[0].mxu0
      %503 = vdwg.mxu0
      %v508 = vcombine.low %v268, %v270
      %v509 = vcombine.low %v272, %v274
      %v511 = vunpack.c.l.s4 1983009808
      %v512 = vunpack.c.0.s8 %v511
      %v513 = vlaneseq
      %v514 = vshrl.u32 %v513, 7
      %v515 = vsub.s32 %v512, %v514
      %v516 = vrot.slane %v508, %v515
      %v518 = vunpack.c.l.s4 1983009808
      %v519 = vunpack.c.0.s8 %v518
      %v520 = vlaneseq
      %v521 = vshrl.u32 %v520, 7
      %v522 = vsub.s32 %v519, %v521
      %v523 = vrot.slane %v509, %v522
      %v524 = vcombine.low %v516, %v523
      %v537 = vunpack.c.l.b16 %v275
      %v538 = vunpack.c.l.b16 %v276
      %v539 = vunpack.c.l.b16 %v277
      %v540 = vunpack.c.l.b16 %v278
      %v541 = vunpack.c.l.b16 %v279
      %v542 = vunpack.c.l.b16 %v280
      %v543 = vunpack.c.l.b16 %v281
      %v544 = vunpack.c.l.b16 %v282
      %v545 = vunpack.c.l.b16 %v283
      %v546 = vunpack.c.l.b16 %v284
      %v547 = vunpack.c.l.b16 %v285
      %v548 = vunpack.c.l.b16 %v286
      %v549 = vpack.c.b16 %v538, %v537
      %v550 = vpack.c.b16 %v540, %v539
      %v551 = vpack.c.b16 %v542, %v541
      %v552 = vpack.c.b16 %v544, %v543
      %v553 = vpack.c.b16 %v546, %v545
      %v554 = vpack.c.b16 %v548, %v547
      %v562 = vsel %vm459, %v524, 0
      %564 = vmatprep.subr.bf16.mxu0 0
      %565 = vmatpush1.bf16.msra.mxu0 %v549
      %566 = vmatprep.subr.bf16.mxu0 0
      %567 = vmatpush1.bf16.msra.mxu0 %v550
      %568 = vmatprep.subr.bf16.mxu0 0
      %569 = vmatpush1.bf16.msra.mxu0 %v551
      %570 = vmatprep.subr.bf16.mxu0 0
      %571 = vmatpush1.bf16.msra.mxu0 %v552
      %572 = vmatprep.subr.bf16.mxu0 0
      %573 = vmatpush1.bf16.msra.mxu0 %v553
      %574 = vmatprep.subr.bf16.mxu0 0
      %575 = vmatpush1.bf16.msra.mxu0 %v554
      %576 = vmatprep.subr.bf16.mxu0 0
      %577 = vmatpush1.bf16.msra.mxu0 0
      %578 = vmatprep.subr.bf16.mxu0 0
      %579 = vmatpush1.bf16.msra.mxu0 0
      %580 = vmatprep.subr.bf16.mxu0 0
      %581 = vmatpush1.bf16.msra.mxu0 0
      %582 = vmatprep.subr.bf16.mxu0 0
      %583 = vmatpush1.bf16.msra.mxu0 0
      %584 = vmatprep.subr.bf16.mxu0 0
      %585 = vmatpush1.bf16.msra.mxu0 0
      %586 = vmatprep.subr.bf16.mxu0 0
      %587 = vmatpush1.bf16.msra.mxu0 0
      %588 = vmatprep.subr.bf16.mxu0 0
      %589 = vmatpush1.bf16.msra.mxu0 0
      %590 = vmatprep.subr.bf16.mxu0 0
      %591 = vmatpush1.bf16.msra.mxu0 0
      %592 = vmatprep.subr.bf16.mxu0 0
      %593 = vmatpush1.bf16.msra.mxu0 0
      %594 = vmatprep.subr.bf16.mxu0 0
      %595 = vmatpush1.bf16.msra.mxu0 0
      %596 = vmatprep.mubr.bf16.mxu0 0
      %597 = vmatmul.mubr.bf16.gmra.mrb[0].mxu0 %v562
      %v598 = vpop.f32.mrb[0].mxu0
      %v599 = vadd.f32 %v498, %v598
      %v600 = vpop.f32.mrb[0].mxu0
      %v601 = vpop.f32.mrb[0].mxu0
      %v602 = vadd.f32 %v501, %v601
      %v603 = vpop.f32.mrb[0].mxu0
      %604 = vdwg.mxu0
      %s605 = scalar_lea.vmem %s165, 4
      %v606 = vld [vmem:[%s605] sm:$0x3]
      %v607 = vld [vmem:[%s605 + $0x4] sm:$0x3]
      %v608 = vld [vmem:[%s605 + $0x8] sm:$0x3]
      %v609 = vld [vmem:[%s605 + $0xc] sm:$0x3]
      %s610 = scalar_lea.vmem %s165, 24
      %v611 = vld [vmem:[%s610] sm:$0x3]
      %v612 = vld [vmem:[%s610 + $0x4] sm:$0x3]
      %v613 = vld [vmem:[%s610 + $0x8] sm:$0x3]
      %v614 = vld [vmem:[%s610 + $0xc] sm:$0x3]
      %v615 = vld [vmem:[%s605] sm:$0x7]
      %v616 = vld [vmem:[%s605 + $0x4] sm:$0x7]
      %v617 = vld [vmem:[%s605 + $0x8] sm:$0x7]
      %v618 = vld [vmem:[%s605 + $0xc] sm:$0x7]
      %v623 = vunpack.c.l.b16 %v611
      %v624 = vunpack.c.l.b16 %v612
      %v625 = vunpack.c.l.b16 %v613
      %v626 = vunpack.c.l.b16 %v614
      %v627 = vpack.c.b16 %v623, %v623
      %v628 = vpack.c.b16 %v624, %v624
      %v629 = vpack.c.b16 %v625, %v625
      %v630 = vpack.c.b16 %v626, %v626
      %631 = vrot.lane.b32.xlu0 %v627, 32
      %v632 = vpop.permute.xlu0 %631
      %633 = vrot.lane.b32.xlu0 %v628, 32
      %v634 = vpop.permute.xlu0 %633
      %635 = vrot.lane.b32.xlu0 %v629, 32
      %v636 = vpop.permute.xlu0 %635
      %637 = vrot.lane.b32.xlu0 %v630, 32
      %v638 = vpop.permute.xlu0 %637
      %v643 = vunpack.c.l.b16 %v615
      %v644 = vunpack.c.l.b16 %v616
      %v645 = vunpack.c.l.b16 %v617
      %v646 = vunpack.c.l.b16 %v618
      %v647 = vpack.c.b16 %v643, %v643
      %v648 = vpack.c.b16 %v644, %v644
      %v649 = vpack.c.b16 %v645, %v645
      %v650 = vpack.c.b16 %v646, %v646
      %v652 = vshrl.u32 %v647, 16
      %v654 = vshll.u32 %v647, 16
      %v656 = vrot.slane %v654, 1
      %v657 = vor.u32 %v652, %v656
      %v659 = vshrl.u32 %v648, 16
      %v661 = vshll.u32 %v648, 16
      %v663 = vrot.slane %v661, 1
      %v664 = vor.u32 %v659, %v663
      %v666 = vshrl.u32 %v649, 16
      %v668 = vshll.u32 %v649, 16
      %v670 = vrot.slane %v668, 1
      %v671 = vor.u32 %v666, %v670
      %v673 = vshrl.u32 %v650, 16
      %v675 = vshll.u32 %v650, 16
      %v677 = vrot.slane %v675, 1
      %v678 = vor.u32 %v673, %v677
      %679 = vrot.lane.b32.xlu0 %v657, 64
      %v680 = vpop.permute.xlu0 %679
      %681 = vrot.lane.b32.xlu0 %v664, 64
      %v682 = vpop.permute.xlu0 %681
      %683 = vrot.lane.b32.xlu0 %v671, 64
      %v684 = vpop.permute.xlu0 %683
      %685 = vrot.lane.b32.xlu0 %v678, 64
      %v686 = vpop.permute.xlu0 %685
      %v689 = vsel %vm253, %v606, %v632
      %v692 = vsel %vm253, %v607, %v634
      %v695 = vsel %vm253, %v608, %v636
      %v698 = vsel %vm253, %v609, %v638
      %v700 = vsel %vm266, %v689, %v680
      %v702 = vsel %vm266, %v692, %v682
      %v704 = vsel %vm266, %v695, %v684
      %v706 = vsel %vm266, %v698, %v686
      %s707 = scalar_lea.vmem %s1, 96
      %v708 = vld [vmem:[%s707] sm:$0xf]
      %v709 = vld [vmem:[%s707 + $0x4] sm:$0xf]
      %v710 = vld [vmem:[%s707 + $0x8] sm:$0xf]
      %v711 = vld [vmem:[%s707 + $0xc] sm:$0xf]
      %v712 = vld [vmem:[%s707 + $0x10] sm:$0xf]
      %v713 = vld [vmem:[%s707 + $0x14] sm:$0xf]
      %v714 = vld [vmem:[%s707 + $0x18] sm:$0xf]
      %v715 = vld [vmem:[%s707 + $0x1c] sm:$0xf]
      %v716 = vld [vmem:[%s707 + $0x20] sm:$0xf]
      %v717 = vld [vmem:[%s707 + $0x24] sm:$0xf]
      %v718 = vld [vmem:[%s707 + $0x28] sm:$0xf]
      %v719 = vld [vmem:[%s707 + $0x2c] sm:$0xf]
      %v724 = vcombine.low %v700, %v702
      %v725 = vcombine.low %v704, %v706
      %v727 = vunpack.c.l.s4 1983009808
      %v728 = vunpack.c.0.s8 %v727
      %v729 = vlaneseq
      %v730 = vshrl.u32 %v729, 7
      %v731 = vsub.s32 %v728, %v730
      %v732 = vrot.slane %v724, %v731
      %v734 = vunpack.c.l.s4 1983009808
      %v735 = vunpack.c.0.s8 %v734
      %v736 = vlaneseq
      %v737 = vshrl.u32 %v736, 7
      %v738 = vsub.s32 %v735, %v737
      %v739 = vrot.slane %v725, %v738
      %v740 = vcombine.low %v732, %v739
      %v753 = vunpack.c.l.b16 %v708
      %v754 = vunpack.c.l.b16 %v709
      %v755 = vunpack.c.l.b16 %v710
      %v756 = vunpack.c.l.b16 %v711
      %v757 = vunpack.c.l.b16 %v712
      %v758 = vunpack.c.l.b16 %v713
      %v759 = vunpack.c.l.b16 %v714
      %v760 = vunpack.c.l.b16 %v715
      %v761 = vunpack.c.l.b16 %v716
      %v762 = vunpack.c.l.b16 %v717
      %v763 = vunpack.c.l.b16 %v718
      %v764 = vunpack.c.l.b16 %v719
      %v765 = vpack.c.b16 %v754, %v753
      %v766 = vpack.c.b16 %v756, %v755
      %v767 = vpack.c.b16 %v758, %v757
      %v768 = vpack.c.b16 %v760, %v759
      %v769 = vpack.c.b16 %v762, %v761
      %v770 = vpack.c.b16 %v764, %v763
      %v778 = vsel %vm459, %v740, 0
      %780 = vmatprep.subr.bf16.mxu0 0
      %781 = vmatpush1.bf16.msra.mxu0 %v765
      %782 = vmatprep.subr.bf16.mxu0 0
      %783 = vmatpush1.bf16.msra.mxu0 %v766
      %784 = vmatprep.subr.bf16.mxu0 0
      %785 = vmatpush1.bf16.msra.mxu0 %v767
      %786 = vmatprep.subr.bf16.mxu0 0
      %787 = vmatpush1.bf16.msra.mxu0 %v768
      %788 = vmatprep.subr.bf16.mxu0 0
      %789 = vmatpush1.bf16.msra.mxu0 %v769
      %790 = vmatprep.subr.bf16.mxu0 0
      %791 = vmatpush1.bf16.msra.mxu0 %v770
      %792 = vmatprep.subr.bf16.mxu0 0
      %793 = vmatpush1.bf16.msra.mxu0 0
      %794 = vmatprep.subr.bf16.mxu0 0
      %795 = vmatpush1.bf16.msra.mxu0 0
      %796 = vmatprep.subr.bf16.mxu0 0
      %797 = vmatpush1.bf16.msra.mxu0 0
      %798 = vmatprep.subr.bf16.mxu0 0
      %799 = vmatpush1.bf16.msra.mxu0 0
      %800 = vmatprep.subr.bf16.mxu0 0
      %801 = vmatpush1.bf16.msra.mxu0 0
      %802 = vmatprep.subr.bf16.mxu0 0
      %803 = vmatpush1.bf16.msra.mxu0 0
      %804 = vmatprep.subr.bf16.mxu0 0
      %805 = vmatpush1.bf16.msra.mxu0 0
      %806 = vmatprep.subr.bf16.mxu0 0
      %807 = vmatpush1.bf16.msra.mxu0 0
      %808 = vmatprep.subr.bf16.mxu0 0
      %809 = vmatpush1.bf16.msra.mxu0 0
      %810 = vmatprep.subr.bf16.mxu0 0
      %811 = vmatpush1.bf16.msra.mxu0 0
      %812 = vmatprep.mubr.bf16.mxu0 0
      %813 = vmatmul.mubr.bf16.gmra.mrb[0].mxu0 %v778
      %v814 = vpop.f32.mrb[0].mxu0
      %v815 = vadd.f32 0.0, %v814
      %v816 = vpop.f32.mrb[0].mxu0
      %v817 = vpop.f32.mrb[0].mxu0
      %v818 = vadd.f32 0.0, %v817
      %v819 = vpop.f32.mrb[0].mxu0
      %820 = vdwg.mxu0
      %v821 = vadd.f32 %v599, %v815
      %v822 = vadd.f32 %v602, %v818
      %v823 = vld [vmem:[%s2] sm:$0x1]
      %v825 = vlaneseq
      %v826 = vshrl.u32 %v825, 7
      %v827 = vsub.s32 0, %v826
      %v828 = vrot.slane %v823, %v827
      %v830 = vadd.f32 %v821, %v828
      %v831 = vadd.f32 %v822, %v828
      %v832 = vmax.f32 %v830, 0.0
      %v833 = vmax.f32 %v831, 0.0
      %v836 = vcombine.high %v832, %v832
      %v837 = vcombine.high %v833, %v833
      %v840 = vpack.c.bf16 %v832, %v832
      %v841 = vpack.c.bf16 %v836, %v836
      %v842 = vpack.c.bf16 %v833, %v833
      %v843 = vpack.c.bf16 %v837, %v837
      %vm844 = vcmask 517120
      %845 = vst.msk [vmem:[%s170] sm:$0x3] %vm844, %v840
      %846 = vst.msk [vmem:[%s170 + $0x2] sm:$0x3] %vm844, %v841
      %847 = vst.msk [vmem:[%s170 + $0x4] sm:$0x3] %vm844, %v842
      %848 = vst.msk [vmem:[%s170 + $0x6] sm:$0x3] %vm844, %v843
      %p849 = scmp.lt.s32.totalorder %s14, 1
      %s850 = scalar_select %p849, %s14, 1
      %s851 = smul.addr %s850, 4
      %s852 = smul.addr %s851, 2
      %s853 = scalar_lea.vmem %s3, %s852
      // Predicated region
      $region33: #{second_dsa_forward.16} parent=31 // pred_check
        %p854 = pneg %p100
      $region34: #{second_dsa_forward.16} parent=31 // pred_check_branch
        %856 = sbr.rel (%p854) target = $region36
      $region35: #{second_dsa_forward.16} parent=31 // pred_region
        _
      $region36: #{second_dsa_forward.16} parent=31 // pred_fallthru
        _
    $region32: #{second_dsa_forward.16} parent=5 // pred_fallthru
      _
    %p857 = scmp.le.s32.totalorder 2, %s9
    // Predicated region
    $region37: #{second_dsa_forward.16} parent=5 // pred_check
      %p858 = pneg %p857
    $region38: #{second_dsa_forward.16} parent=5 // pred_check_branch
      %860 = sbr.rel (%p858) target = $region40
    $region39: #{second_dsa_forward.16} parent=5 // pred_region
      %s861 = ssub.s32 %s9, 2
      // Predicated region
      $region41: #{second_dsa_forward.16} parent=39 // pred_check
        %p862 = pneg %p106
      $region42: #{second_dsa_forward.16} parent=39 // pred_check_branch
        %864 = sbr.rel (%p862) target = $region44
      $region43: #{second_dsa_forward.16} parent=39 // pred_region
        %p865 = scmp.lt.s32.totalorder %s15, 1
        %s866 = scalar_select %p865, %s15, 1
        %s867 = smul.addr %s866, 4
        %s868 = smul.addr %s867, 2
        %s869 = scalar_lea.vmem %s3, %s868
      $region44: #{second_dsa_forward.16} parent=39 // pred_fallthru
        _
    $region40: #{second_dsa_forward.16} parent=5 // pred_fallthru
      _
  $region6: #{second_dsa_forward.16} parent=0 // loop_footer
    %s13 = sadd.s32 1, %s9
  $region7: #{second_dsa_forward.16} parent=0 // loop_footer_branch
    %8 = sbr.rel target = $region3
  $region8: #{second_dsa_forward.16} parent=0 // loop_exit
    _

// kernel: second_dsa_forward.17
$region0: #{second_dsa_forward.17}
  #allocation0 [shape = 'u32[]', space=smem, size = 0x4, offset = 0x4, fixed_abs, tag = 'smem constant byte address 0x4 - core index']
  #allocation1 [shape = 'u32[144,128]{1,0:T(1,128)}', space=vmem, size = 0x12000, scoped, tag = 'internal scratch']
  %s0 = inlined_call_operand.vmem [shape: bf16[2,6,6,64], index: 0, kind: input, shape index: {}]
  %s1 = inlined_call_operand.vmem [shape: bf16[3,192,64], index: 1, kind: input, shape index: {}]
  %s2 = inlined_call_operand.vmem [shape: f32[1,64], index: 2, kind: input, shape index: {}]
  %s3 = inlined_call_operand.vmem [shape: bf16[2,4,4,64], index: 3, kind: output, shape index: {}]
  %s4 = sld [smem:[#allocation0]]
  $region45: #{second_dsa_forward.17} parent=0
    _
  %s6 = ssub.s32 1, %s4
  %s7 = scalar_select 0, %s6, %s4
  loop: start=0, step=1, limit=4
  $region2: #{second_dsa_forward.17} parent=0 // loop_pre_header
    _
  $region3: #{second_dsa_forward.17} parent=0 // loop_header
    %s9 = sphi 0, %s13
    %p10 = scmp.ge.s32.totalorder %s9, 4
    %s19 = sphi 0, %s21
    %s22 = sphi 0, %s19
    %s23 = sphi 0, %s22
    %s39 = sphi 0, %s23
    %s43 = sphi 0, %s43
    %s45 = sphi 0, %s43
    %s46 = sphi 0, %s45
    %s60 = sphi 0, %s46
    %s64 = sphi 0, %s64
    %s66 = sphi 0, %s64
    %s67 = sphi 0, %s66
    %s81 = sphi 0, %s67
    %s87 = sphi 0, %s89
    %s90 = sphi 0, %s87
    %s91 = sphi 0, %s90
    %s107 = sphi 0, %s91
  $region4: #{second_dsa_forward.17} parent=0 // loop_header_branch
    %12 = sbr.rel (%p10) target = $region8
  $region5: #{second_dsa_forward.17} parent=0 // loop_body
    %s14 = ssub.s32 %s9, 1
    %s15 = ssub.s32 %s9, 2
    %s16 = sadd.s32 %s9, 1
    %s17 = ssub.s32 %s9, %s16
    %p18 = scmp.eq.s32.totalorder %s17, 0
    %s20 = sadd.s32 %s19, 1
    %s21 = scalar_select %p18, %s19, %s20
    %p24 = pneg %p18
    %p25 = scmp.eq.s32.totalorder %s9, 1
    %p26 = por %p24, %p25
    %p27 = scmp.ne.s32.totalorder %s19, %s22
    %p28 = scmp.eq.s32.totalorder %s9, 0
    %p29 = por %p27, %p28
    %p30 = scmp.ne.s32.totalorder %s19, %s22
    %p31 = scmp.eq.s32.totalorder %s14, 1
    %p32 = por %p30, %p31
    %p33 = scmp.ne.s32.totalorder %s22, %s23
    %p34 = scmp.eq.s32.totalorder %s14, 0
    %p35 = por %p33, %p34
    %p36 = scmp.ne.s32.totalorder %s22, %s23
    %p37 = scmp.eq.s32.totalorder %s15, 1
    %p38 = por %p36, %p37
    %p40 = scmp.ne.s32.totalorder %s23, %s39
    %p41 = scmp.eq.s32.totalorder %s15, 0
    %p42 = por %p40, %p41
    %s44 = sadd.s32 %s43, 1
    %p47 = scmp.eq.s32.totalorder %s9, 1
    %p48 = scmp.ne.s32.totalorder %s43, %s45
    %p49 = scmp.eq.s32.totalorder %s9, 0
    %p50 = por %p48, %p49
    %p51 = scmp.ne.s32.totalorder %s43, %s45
    %p52 = scmp.eq.s32.totalorder %s14, 1
    %p53 = por %p51, %p52
    %p54 = scmp.ne.s32.totalorder %s45, %s46
    %p55 = scmp.eq.s32.totalorder %s14, 0
    %p56 = por %p54, %p55
    %p57 = scmp.ne.s32.totalorder %s45, %s46
    %p58 = scmp.eq.s32.totalorder %s15, 1
    %p59 = por %p57, %p58
    %p61 = scmp.ne.s32.totalorder %s46, %s60
    %p62 = scmp.eq.s32.totalorder %s15, 0
    %p63 = por %p61, %p62
    %s65 = sadd.s32 %s64, 1
    %p68 = scmp.eq.s32.totalorder %s9, 1
    %p69 = scmp.ne.s32.totalorder %s64, %s66
    %p70 = scmp.eq.s32.totalorder %s9, 0
    %p71 = por %p69, %p70
    %p72 = scmp.ne.s32.totalorder %s64, %s66
    %p73 = scmp.eq.s32.totalorder %s14, 1
    %p74 = por %p72, %p73
    %p75 = scmp.ne.s32.totalorder %s66, %s67
    %p76 = scmp.eq.s32.totalorder %s14, 0
    %p77 = por %p75, %p76
    %p78 = scmp.ne.s32.totalorder %s66, %s67
    %p79 = scmp.eq.s32.totalorder %s15, 1
    %p80 = por %p78, %p79
    %p82 = scmp.ne.s32.totalorder %s67, %s81
    %p83 = scmp.eq.s32.totalorder %s15, 0
    %p84 = por %p82, %p83
    %s85 = ssub.s32 %s9, %s16
    %p86 = scmp.eq.s32.totalorder %s85, 0
    %s88 = sadd.s32 %s87, 1
    %s89 = scalar_select %p86, %s87, %s88
    %p92 = pneg %p86
    %p93 = scmp.eq.s32.totalorder %s9, 1
    %p94 = por %p92, %p93
    %p95 = scmp.ne.s32.totalorder %s87, %s90
    %p96 = scmp.eq.s32.totalorder %s9, 0
    %p97 = por %p95, %p96
    %p98 = scmp.ne.s32.totalorder %s87, %s90
    %p99 = scmp.eq.s32.totalorder %s14, 1
    %p100 = por %p98, %p99
    %p101 = scmp.ne.s32.totalorder %s90, %s91
    %p102 = scmp.eq.s32.totalorder %s14, 0
    %p103 = por %p101, %p102
    %p104 = scmp.ne.s32.totalorder %s90, %s91
    %p105 = scmp.eq.s32.totalorder %s15, 1
    %p106 = por %p104, %p105
    %p108 = scmp.ne.s32.totalorder %s91, %s107
    %p109 = scmp.eq.s32.totalorder %s15, 0
    %p110 = por %p108, %p109
    %p111 = scmp.le.s32.totalorder 1, %s9
    %p112 = scmp.lt.s32.totalorder %s9, 3
    %p113 = pnand %p111, %p112
    %p114 = pneg %p113
    // Predicated region
    $region9: #{second_dsa_forward.17} parent=5 // pred_check
      _
    $region10: #{second_dsa_forward.17} parent=5 // pred_check_branch
      %116 = sbr.rel (%p113) target = $region12
    $region11: #{second_dsa_forward.17} parent=5 // pred_region
      %s117 = ssub.s32 %s9, 1
      // Predicated region
      $region13: #{second_dsa_forward.17} parent=11 // pred_check
        %p118 = pneg %p56
      $region14: #{second_dsa_forward.17} parent=11 // pred_check_branch
        %120 = sbr.rel (%p118) target = $region16
      $region15: #{second_dsa_forward.17} parent=11 // pred_region
        _
      $region16: #{second_dsa_forward.17} parent=11 // pred_fallthru
        _
      // Predicated region
      $region17: #{second_dsa_forward.17} parent=11 // pred_check
        %p121 = pneg %p77
      $region18: #{second_dsa_forward.17} parent=11 // pred_check_branch
        %123 = sbr.rel (%p121) target = $region20
      $region19: #{second_dsa_forward.17} parent=11 // pred_region
        _
      $region20: #{second_dsa_forward.17} parent=11 // pred_fallthru
        _
    $region12: #{second_dsa_forward.17} parent=5 // pred_fallthru
      _
    %p124 = scmp.lt.s32.totalorder %s9, 2
    // Predicated region
    $region21: #{second_dsa_forward.17} parent=5 // pred_check
      %p125 = pneg %p124
    $region22: #{second_dsa_forward.17} parent=5 // pred_check_branch
      %127 = sbr.rel (%p125) target = $region24
    $region23: #{second_dsa_forward.17} parent=5 // pred_region
      // Predicated region
      $region25: #{second_dsa_forward.17} parent=23 // pred_check
        %p128 = pneg %p29
      $region26: #{second_dsa_forward.17} parent=23 // pred_check_branch
        %130 = sbr.rel (%p128) target = $region28
      $region27: #{second_dsa_forward.17} parent=23 // pred_region
        %p131 = scmp.lt.s32.totalorder %s9, 1
        %s132 = scalar_select %p131, %s9, 1
        %s133 = smul.addr %s132, 6
        %s134 = smul.addr %s133, 4
        %s135 = scalar_lea.vmem %s0, %s134
      $region28: #{second_dsa_forward.17} parent=23 // pred_fallthru
        _
    $region24: #{second_dsa_forward.17} parent=5 // pred_fallthru
      _
    %p136 = scmp.le.s32.totalorder 1, %s9
    %p137 = scmp.lt.s32.totalorder %s9, 3
    %p138 = pnand %p136, %p137
    %p139 = pneg %p138
    // Predicated region
    $region29: #{second_dsa_forward.17} parent=5 // pred_check
      _
    $region30: #{second_dsa_forward.17} parent=5 // pred_check_branch
      %141 = sbr.rel (%p138) target = $region32
    $region31: #{second_dsa_forward.17} parent=5 // pred_region
      %s142 = ssub.s32 %s9, 1
      %p143 = scmp.lt.s32.totalorder %s14, 1
      %s144 = scalar_select %p143, %s14, 1
      %s145 = smul.addr %s144, 6
      %s146 = smul.addr %s145, 4
      %s147 = scalar_lea.vmem %s0, %s146
      %p148 = pneg %p35
      %p149 = pneg %p32
      %p150 = pneg %p56
      %p151 = pneg %p53
      %p152 = pneg %p77
      %p153 = pneg %p74
      %p154 = pneg %p103
      %p155 = pneg %p100
      %p156 = scmp.lt.s32.totalorder %s14, 1
      %s157 = scalar_select %p156, %s14, 1
      %s158 = smul.addr %s157, 4
      %s159 = smul.addr %s158, 2
      %s160 = scalar_lea.vmem %s3, %s159
      %p161 = scmp.lt.s32.totalorder %s14, 1
      %s162 = scalar_select %p161, %s14, 1
      %s163 = smul.addr %s162, 6
      %s164 = smul.addr %s163, 4
      %s165 = scalar_lea.vmem %s0, %s164
      %p166 = scmp.lt.s32.totalorder %s14, 1
      %s167 = scalar_select %p166, %s14, 1
      %s168 = smul.addr %s167, 4
      %s169 = smul.addr %s168, 2
      %s170 = scalar_lea.vmem %s3, %s169
      %v172 = vld [vmem:[%s165] sm:$0x3]
      %v173 = vld [vmem:[%s165 + $0x4] sm:$0x3]
      %v174 = vld [vmem:[%s165 + $0x8] sm:$0x3]
      %v175 = vld [vmem:[%s165 + $0xc] sm:$0x3]
      %v176 = vld [vmem:[%s165] sm:$0x7]
      %v177 = vld [vmem:[%s165 + $0x4] sm:$0x7]
      %v178 = vld [vmem:[%s165 + $0x8] sm:$0x7]
      %v179 = vld [vmem:[%s165 + $0xc] sm:$0x7]
      %v180 = vld [vmem:[%s165] sm:$0x6]
      %v181 = vld [vmem:[%s165 + $0x4] sm:$0x6]
      %v182 = vld [vmem:[%s165 + $0x8] sm:$0x6]
      %v183 = vld [vmem:[%s165 + $0xc] sm:$0x6]
      %v188 = vunpack.c.l.b16 %v176
      %v189 = vunpack.c.l.b16 %v177
      %v190 = vunpack.c.l.b16 %v178
      %v191 = vunpack.c.l.b16 %v179
      %v192 = vpack.c.b16 %v188, %v188
      %v193 = vpack.c.b16 %v189, %v189
      %v194 = vpack.c.b16 %v190, %v190
      %v195 = vpack.c.b16 %v191, %v191
      %v197 = vshrl.u32 %v192, 16
      %v199 = vshll.u32 %v192, 16
      %v201 = vrot.slane %v199, 1
      %v202 = vor.u32 %v197, %v201
      %v204 = vshrl.u32 %v193, 16
      %v206 = vshll.u32 %v193, 16
      %v208 = vrot.slane %v206, 1
      %v209 = vor.u32 %v204, %v208
      %v211 = vshrl.u32 %v194, 16
      %v213 = vshll.u32 %v194, 16
      %v215 = vrot.slane %v213, 1
      %v216 = vor.u32 %v211, %v215
      %v218 = vshrl.u32 %v195, 16
      %v220 = vshll.u32 %v195, 16
      %v222 = vrot.slane %v220, 1
      %v223 = vor.u32 %v218, %v222
      %224 = vrot.lane.b32.xlu0 %v202, 64
      %v225 = vpop.permute.xlu0 %224
      %226 = vrot.lane.b32.xlu0 %v209, 64
      %v227 = vpop.permute.xlu0 %226
      %228 = vrot.lane.b32.xlu0 %v216, 64
      %v229 = vpop.permute.xlu0 %228
      %230 = vrot.lane.b32.xlu0 %v223, 64
      %v231 = vpop.permute.xlu0 %230
      %v236 = vunpack.c.l.b16 %v180
      %v237 = vunpack.c.l.b16 %v181
      %v238 = vunpack.c.l.b16 %v182
      %v239 = vunpack.c.l.b16 %v183
      %v240 = vpack.c.b16 %v236, %v236
      %v241 = vpack.c.b16 %v237, %v237
      %v242 = vpack.c.b16 %v238, %v238
      %v243 = vpack.c.b16 %v239, %v239
      %v244 = vrot.slane %v240, 1
      %v245 = vrot.slane %v241, 1
      %v246 = vrot.slane %v242, 1
      %v247 = vrot.slane %v243, 1
      %vm248 = vcmask 523264
      %v251 = vsel %vm248, %v172, %v225
      %v254 = vsel %vm248, %v173, %v227
      %v257 = vsel %vm248, %v174, %v229
      %v260 = vsel %vm248, %v175, %v231
      %v265 = vcombine.low %v251, %v244
      %v267 = vunpack.c.l.s4 1983009808
      %v268 = vunpack.c.0.s8 %v267
      %v269 = vlaneseq
      %v270 = vshrl.u32 %v269, 7
      %v271 = vsub.s32 %v268, %v270
      %v272 = vrot.slane %v265, %v271
      %v273 = vcombine.low %v254, %v245
      %v275 = vunpack.c.l.s4 1983009808
      %v276 = vunpack.c.0.s8 %v275
      %v277 = vlaneseq
      %v278 = vshrl.u32 %v277, 7
      %v279 = vsub.s32 %v276, %v278
      %v280 = vrot.slane %v273, %v279
      %v281 = vcombine.low %v257, %v246
      %v283 = vunpack.c.l.s4 1983009808
      %v284 = vunpack.c.0.s8 %v283
      %v285 = vlaneseq
      %v286 = vshrl.u32 %v285, 7
      %v287 = vsub.s32 %v284, %v286
      %v288 = vrot.slane %v281, %v287
      %v289 = vcombine.low %v260, %v247
      %v291 = vunpack.c.l.s4 1983009808
      %v292 = vunpack.c.0.s8 %v291
      %v293 = vlaneseq
      %v294 = vshrl.u32 %v293, 7
      %v295 = vsub.s32 %v292, %v294
      %v296 = vrot.slane %v289, %v295
      %v297 = vld [vmem:[%s1] sm:$0xf]
      %v298 = vld [vmem:[%s1 + $0x4] sm:$0xf]
      %v299 = vld [vmem:[%s1 + $0x8] sm:$0xf]
      %v300 = vld [vmem:[%s1 + $0xc] sm:$0xf]
      %v301 = vld [vmem:[%s1 + $0x10] sm:$0xf]
      %v302 = vld [vmem:[%s1 + $0x14] sm:$0xf]
      %v303 = vld [vmem:[%s1 + $0x18] sm:$0xf]
      %v304 = vld [vmem:[%s1 + $0x1c] sm:$0xf]
      %v305 = vld [vmem:[%s1 + $0x20] sm:$0xf]
      %v306 = vld [vmem:[%s1 + $0x24] sm:$0xf]
      %v307 = vld [vmem:[%s1 + $0x28] sm:$0xf]
      %v308 = vld [vmem:[%s1 + $0x2c] sm:$0xf]
      %v309 = vld [vmem:[%s1 + $0x30] sm:$0xf]
      %v310 = vld [vmem:[%s1 + $0x34] sm:$0xf]
      %v311 = vld [vmem:[%s1 + $0x38] sm:$0xf]
      %v312 = vld [vmem:[%s1 + $0x3c] sm:$0xf]
      %v313 = vld [vmem:[%s1 + $0x40] sm:$0xf]
      %v314 = vld [vmem:[%s1 + $0x44] sm:$0xf]
      %v315 = vld [vmem:[%s1 + $0x48] sm:$0xf]
      %v316 = vld [vmem:[%s1 + $0x4c] sm:$0xf]
      %v317 = vld [vmem:[%s1 + $0x50] sm:$0xf]
      %v318 = vld [vmem:[%s1 + $0x54] sm:$0xf]
      %v319 = vld [vmem:[%s1 + $0x58] sm:$0xf]
      %v320 = vld [vmem:[%s1 + $0x5c] sm:$0xf]
      %s321 = scalar_lea.vmem %s165, 4
      %v322 = vld [vmem:[%s321] sm:$0x3]
      %v323 = vld [vmem:[%s321 + $0x4] sm:$0x3]
      %v324 = vld [vmem:[%s321 + $0x8] sm:$0x3]
      %v325 = vld [vmem:[%s321 + $0xc] sm:$0x3]
      %v326 = vld [vmem:[%s321] sm:$0x7]
      %v327 = vld [vmem:[%s321 + $0x4] sm:$0x7]
      %v328 = vld [vmem:[%s321 + $0x8] sm:$0x7]
      %v329 = vld [vmem:[%s321 + $0xc] sm:$0x7]
      %v330 = vld [vmem:[%s321] sm:$0x6]
      %v331 = vld [vmem:[%s321 + $0x4] sm:$0x6]
      %v332 = vld [vmem:[%s321 + $0x8] sm:$0x6]
      %v333 = vld [vmem:[%s321 + $0xc] sm:$0x6]
      %v338 = vunpack.c.l.b16 %v326
      %v339 = vunpack.c.l.b16 %v327
      %v340 = vunpack.c.l.b16 %v328
      %v341 = vunpack.c.l.b16 %v329
      %v342 = vpack.c.b16 %v338, %v338
      %v343 = vpack.c.b16 %v339, %v339
      %v344 = vpack.c.b16 %v340, %v340
      %v345 = vpack.c.b16 %v341, %v341
      %v347 = vshrl.u32 %v342, 16
      %v349 = vshll.u32 %v342, 16
      %v351 = vrot.slane %v349, 1
      %v352 = vor.u32 %v347, %v351
      %v354 = vshrl.u32 %v343, 16
      %v356 = vshll.u32 %v343, 16
      %v358 = vrot.slane %v356, 1
      %v359 = vor.u32 %v354, %v358
      %v361 = vshrl.u32 %v344, 16
      %v363 = vshll.u32 %v344, 16
      %v365 = vrot.slane %v363, 1
      %v366 = vor.u32 %v361, %v365
      %v368 = vshrl.u32 %v345, 16
      %v370 = vshll.u32 %v345, 16
      %v372 = vrot.slane %v370, 1
      %v373 = vor.u32 %v368, %v372
      %374 = vrot.lane.b32.xlu0 %v352, 64
      %v375 = vpop.permute.xlu0 %374
      %376 = vrot.lane.b32.xlu0 %v359, 64
      %v377 = vpop.permute.xlu0 %376
      %378 = vrot.lane.b32.xlu0 %v366, 64
      %v379 = vpop.permute.xlu0 %378
      %380 = vrot.lane.b32.xlu0 %v373, 64
      %v381 = vpop.permute.xlu0 %380
      %v386 = vunpack.c.l.b16 %v330
      %v387 = vunpack.c.l.b16 %v331
      %v388 = vunpack.c.l.b16 %v332
      %v389 = vunpack.c.l.b16 %v333
      %v390 = vpack.c.b16 %v386, %v386
      %v391 = vpack.c.b16 %v387, %v387
      %v392 = vpack.c.b16 %v388, %v388
      %v393 = vpack.c.b16 %v389, %v389
      %v394 = vrot.slane %v390, 1
      %v395 = vrot.slane %v391, 1
      %v396 = vrot.slane %v392, 1
      %v397 = vrot.slane %v393, 1
      %v400 = vsel %vm248, %v322, %v375
      %v403 = vsel %vm248, %v323, %v377
      %v406 = vsel %vm248, %v324, %v379
      %v409 = vsel %vm248, %v325, %v381
      %v414 = vcombine.low %v400, %v394
      %v416 = vunpack.c.l.s4 1983009808
      %v417 = vunpack.c.0.s8 %v416
      %v418 = vlaneseq
      %v419 = vshrl.u32 %v418, 7
      %v420 = vsub.s32 %v417, %v419
      %v421 = vrot.slane %v414, %v420
      %v422 = vcombine.low %v403, %v395
      %v424 = vunpack.c.l.s4 1983009808
      %v425 = vunpack.c.0.s8 %v424
      %v426 = vlaneseq
      %v427 = vshrl.u32 %v426, 7
      %v428 = vsub.s32 %v425, %v427
      %v429 = vrot.slane %v422, %v428
      %v430 = vcombine.low %v406, %v396
      %v432 = vunpack.c.l.s4 1983009808
      %v433 = vunpack.c.0.s8 %v432
      %v434 = vlaneseq
      %v435 = vshrl.u32 %v434, 7
      %v436 = vsub.s32 %v433, %v435
      %v437 = vrot.slane %v430, %v436
      %v438 = vcombine.low %v409, %v397
      %v440 = vunpack.c.l.s4 1983009808
      %v441 = vunpack.c.0.s8 %v440
      %v442 = vlaneseq
      %v443 = vshrl.u32 %v442, 7
      %v444 = vsub.s32 %v441, %v443
      %v445 = vrot.slane %v438, %v444
      %s446 = scalar_lea.vmem %s1, 96
      %v447 = vld [vmem:[%s446] sm:$0xf]
      %v448 = vld [vmem:[%s446 + $0x4] sm:$0xf]
      %v449 = vld [vmem:[%s446 + $0x8] sm:$0xf]
      %v450 = vld [vmem:[%s446 + $0xc] sm:$0xf]
      %v451 = vld [vmem:[%s446 + $0x10] sm:$0xf]
      %v452 = vld [vmem:[%s446 + $0x14] sm:$0xf]
      %v453 = vld [vmem:[%s446 + $0x18] sm:$0xf]
      %v454 = vld [vmem:[%s446 + $0x1c] sm:$0xf]
      %v455 = vld [vmem:[%s446 + $0x20] sm:$0xf]
      %v456 = vld [vmem:[%s446 + $0x24] sm:$0xf]
      %v457 = vld [vmem:[%s446 + $0x28] sm:$0xf]
      %v458 = vld [vmem:[%s446 + $0x2c] sm:$0xf]
      %v459 = vld [vmem:[%s446 + $0x30] sm:$0xf]
      %v460 = vld [vmem:[%s446 + $0x34] sm:$0xf]
      %v461 = vld [vmem:[%s446 + $0x38] sm:$0xf]
      %v462 = vld [vmem:[%s446 + $0x3c] sm:$0xf]
      %v463 = vld [vmem:[%s446 + $0x40] sm:$0xf]
      %v464 = vld [vmem:[%s446 + $0x44] sm:$0xf]
      %v465 = vld [vmem:[%s446 + $0x48] sm:$0xf]
      %v466 = vld [vmem:[%s446 + $0x4c] sm:$0xf]
      %v467 = vld [vmem:[%s446 + $0x50] sm:$0xf]
      %v468 = vld [vmem:[%s446 + $0x54] sm:$0xf]
      %v469 = vld [vmem:[%s446 + $0x58] sm:$0xf]
      %v470 = vld [vmem:[%s446 + $0x5c] sm:$0xf]
      %v471 = vcombine.low %v421, %v429
      %v472 = vcombine.low %v437, %v445
      %v474 = vunpack.c.l.s4 1983009808
      %v475 = vunpack.c.0.s8 %v474
      %v476 = vlaneseq
      %v477 = vshrl.u32 %v476, 7
      %v478 = vsub.s32 %v475, %v477
      %v479 = vrot.slane %v471, %v478
      %v481 = vunpack.c.l.s4 1983009808
      %v482 = vunpack.c.0.s8 %v481
      %v483 = vlaneseq
      %v484 = vshrl.u32 %v483, 7
      %v485 = vsub.s32 %v482, %v484
      %v486 = vrot.slane %v472, %v485
      %v487 = vcombine.low %v479, %v486
      %v488 = vcombine.high %v479, %v486
      %v514 = vunpack.c.l.b16 %v447
      %v515 = vunpack.c.l.b16 %v448
      %v516 = vunpack.c.l.b16 %v449
      %v517 = vunpack.c.l.b16 %v450
      %v518 = vunpack.c.l.b16 %v451
      %v519 = vunpack.c.l.b16 %v452
      %v520 = vunpack.c.l.b16 %v453
      %v521 = vunpack.c.l.b16 %v454
      %v522 = vunpack.c.l.b16 %v455
      %v523 = vunpack.c.l.b16 %v456
      %v524 = vunpack.c.l.b16 %v457
      %v525 = vunpack.c.l.b16 %v458
      %v526 = vunpack.c.l.b16 %v459
      %v527 = vunpack.c.l.b16 %v460
      %v528 = vunpack.c.l.b16 %v461
      %v529 = vunpack.c.l.b16 %v462
      %v530 = vunpack.c.l.b16 %v463
      %v531 = vunpack.c.l.b16 %v464
      %v532 = vunpack.c.l.b16 %v465
      %v533 = vunpack.c.l.b16 %v466
      %v534 = vunpack.c.l.b16 %v467
      %v535 = vunpack.c.l.b16 %v468
      %v536 = vunpack.c.l.b16 %v469
      %v537 = vunpack.c.l.b16 %v470
      %v538 = vpack.c.b16 %v515, %v514
      %v539 = vpack.c.b16 %v517, %v516
      %v540 = vpack.c.b16 %v519, %v518
      %v541 = vpack.c.b16 %v521, %v520
      %v542 = vpack.c.b16 %v523, %v522
      %v543 = vpack.c.b16 %v525, %v524
      %v544 = vpack.c.b16 %v527, %v526
      %v545 = vpack.c.b16 %v529, %v528
      %v546 = vpack.c.b16 %v531, %v530
      %v547 = vpack.c.b16 %v533, %v532
      %v548 = vpack.c.b16 %v535, %v534
      %v549 = vpack.c.b16 %v537, %v536
      %v563 = vsel %vm248, %v488, 0
      %565 = vmatprep.subr.bf16.mxu0 0
      %566 = vmatpush1.bf16.msra.mxu0 %v538
      %567 = vmatprep.subr.bf16.mxu0 0
      %568 = vmatpush1.bf16.msra.mxu0 %v539
      %569 = vmatprep.subr.bf16.mxu0 0
      %570 = vmatpush1.bf16.msra.mxu0 %v540
      %571 = vmatprep.subr.bf16.mxu0 0
      %572 = vmatpush1.bf16.msra.mxu0 %v541
      %573 = vmatprep.subr.bf16.mxu0 0
      %574 = vmatpush1.bf16.msra.mxu0 %v542
      %575 = vmatprep.subr.bf16.mxu0 0
      %576 = vmatpush1.bf16.msra.mxu0 %v543
      %577 = vmatprep.subr.bf16.mxu0 0
      %578 = vmatpush1.bf16.msra.mxu0 %v544
      %579 = vmatprep.subr.bf16.mxu0 0
      %580 = vmatpush1.bf16.msra.mxu0 %v545
      %581 = vmatprep.subr.bf16.mxu0 0
      %582 = vmatpush1.bf16.msra.mxu0 %v546
      %583 = vmatprep.subr.bf16.mxu0 0
      %584 = vmatpush1.bf16.msra.mxu0 %v547
      %585 = vmatprep.subr.bf16.mxu0 0
      %586 = vmatpush1.bf16.msra.mxu0 %v548
      %587 = vmatprep.subr.bf16.mxu0 0
      %588 = vmatpush1.bf16.msra.mxu0 %v549
      %589 = vmatprep.subr.bf16.mxu0 0
      %590 = vmatpush1.bf16.msra.mxu0 0
      %591 = vmatprep.subr.bf16.mxu0 0
      %592 = vmatpush1.bf16.msra.mxu0 0
      %593 = vmatprep.subr.bf16.mxu0 0
      %594 = vmatpush1.bf16.msra.mxu0 0
      %595 = vmatprep.subr.bf16.mxu0 0
      %596 = vmatpush1.bf16.msra.mxu0 0
      %597 = vmatprep.mubr.bf16.mxu0 %v563
      %598 = vmatmul.mubr.bf16.gmra.mrb[0].mxu0 %v487
      %v599 = vpop.f32.mrb[0].mxu0
      %v600 = vadd.f32 0.0, %v599
      %v601 = vpop.f32.mrb[0].mxu0
      %v602 = vpop.f32.mrb[0].mxu0
      %v603 = vadd.f32 0.0, %v602
      %v604 = vpop.f32.mrb[0].mxu0
      %605 = vdwg.mxu0
      %v606 = vcombine.low %v272, %v280
      %v607 = vcombine.low %v288, %v296
      %v609 = vunpack.c.l.s4 1983009808
      %v610 = vunpack.c.0.s8 %v609
      %v611 = vlaneseq
      %v612 = vshrl.u32 %v611, 7
      %v613 = vsub.s32 %v610, %v612
      %v614 = vrot.slane %v606, %v613
      %v616 = vunpack.c.l.s4 1983009808
      %v617 = vunpack.c.0.s8 %v616
      %v618 = vlaneseq
      %v619 = vshrl.u32 %v618, 7
      %v620 = vsub.s32 %v617, %v619
      %v621 = vrot.slane %v607, %v620
      %v622 = vcombine.low %v614, %v621
      %v623 = vcombine.high %v614, %v621
      %v649 = vunpack.c.l.b16 %v297
      %v650 = vunpack.c.l.b16 %v298
      %v651 = vunpack.c.l.b16 %v299
      %v652 = vunpack.c.l.b16 %v300
      %v653 = vunpack.c.l.b16 %v301
      %v654 = vunpack.c.l.b16 %v302
      %v655 = vunpack.c.l.b16 %v303
      %v656 = vunpack.c.l.b16 %v304
      %v657 = vunpack.c.l.b16 %v305
      %v658 = vunpack.c.l.b16 %v306
      %v659 = vunpack.c.l.b16 %v307
      %v660 = vunpack.c.l.b16 %v308
      %v661 = vunpack.c.l.b16 %v309
      %v662 = vunpack.c.l.b16 %v310
      %v663 = vunpack.c.l.b16 %v311
      %v664 = vunpack.c.l.b16 %v312
      %v665 = vunpack.c.l.b16 %v313
      %v666 = vunpack.c.l.b16 %v314
      %v667 = vunpack.c.l.b16 %v315
      %v668 = vunpack.c.l.b16 %v316
      %v669 = vunpack.c.l.b16 %v317
      %v670 = vunpack.c.l.b16 %v318
      %v671 = vunpack.c.l.b16 %v319
      %v672 = vunpack.c.l.b16 %v320
      %v673 = vpack.c.b16 %v650, %v649
      %v674 = vpack.c.b16 %v652, %v651
      %v675 = vpack.c.b16 %v654, %v653
      %v676 = vpack.c.b16 %v656, %v655
      %v677 = vpack.c.b16 %v658, %v657
      %v678 = vpack.c.b16 %v660, %v659
      %v679 = vpack.c.b16 %v662, %v661
      %v680 = vpack.c.b16 %v664, %v663
      %v681 = vpack.c.b16 %v666, %v665
      %v682 = vpack.c.b16 %v668, %v667
      %v683 = vpack.c.b16 %v670, %v669
      %v684 = vpack.c.b16 %v672, %v671
      %v698 = vsel %vm248, %v623, 0
      %700 = vmatprep.subr.bf16.mxu0 0
      %701 = vmatpush1.bf16.msra.mxu0 %v673
      %702 = vmatprep.subr.bf16.mxu0 0
      %703 = vmatpush1.bf16.msra.mxu0 %v674
      %704 = vmatprep.subr.bf16.mxu0 0
      %705 = vmatpush1.bf16.msra.mxu0 %v675
      %706 = vmatprep.subr.bf16.mxu0 0
      %707 = vmatpush1.bf16.msra.mxu0 %v676
      %708 = vmatprep.subr.bf16.mxu0 0
      %709 = vmatpush1.bf16.msra.mxu0 %v677
      %710 = vmatprep.subr.bf16.mxu0 0
      %711 = vmatpush1.bf16.msra.mxu0 %v678
      %712 = vmatprep.subr.bf16.mxu0 0
      %713 = vmatpush1.bf16.msra.mxu0 %v679
      %714 = vmatprep.subr.bf16.mxu0 0
      %715 = vmatpush1.bf16.msra.mxu0 %v680
      %716 = vmatprep.subr.bf16.mxu0 0
      %717 = vmatpush1.bf16.msra.mxu0 %v681
      %718 = vmatprep.subr.bf16.mxu0 0
      %719 = vmatpush1.bf16.msra.mxu0 %v682
      %720 = vmatprep.subr.bf16.mxu0 0
      %721 = vmatpush1.bf16.msra.mxu0 %v683
      %722 = vmatprep.subr.bf16.mxu0 0
      %723 = vmatpush1.bf16.msra.mxu0 %v684
      %724 = vmatprep.subr.bf16.mxu0 0
      %725 = vmatpush1.bf16.msra.mxu0 0
      %726 = vmatprep.subr.bf16.mxu0 0
      %727 = vmatpush1.bf16.msra.mxu0 0
      %728 = vmatprep.subr.bf16.mxu0 0
      %729 = vmatpush1.bf16.msra.mxu0 0
      %730 = vmatprep.subr.bf16.mxu0 0
      %731 = vmatpush1.bf16.msra.mxu0 0
      %732 = vmatprep.mubr.bf16.mxu0 %v698
      %733 = vmatmul.mubr.bf16.gmra.mrb[0].mxu0 %v622
      %v734 = vpop.f32.mrb[0].mxu0
      %v735 = vadd.f32 %v600, %v734
      %v736 = vpop.f32.mrb[0].mxu0
      %v737 = vpop.f32.mrb[0].mxu0
      %v738 = vadd.f32 %v603, %v737
      %v739 = vpop.f32.mrb[0].mxu0
      %740 = vdwg.mxu0
      %s741 = scalar_lea.vmem %s165, 8
      %v742 = vld [vmem:[%s741] sm:$0x3]
      %v743 = vld [vmem:[%s741 + $0x4] sm:$0x3]
      %v744 = vld [vmem:[%s741 + $0x8] sm:$0x3]
      %v745 = vld [vmem:[%s741 + $0xc] sm:$0x3]
      %v746 = vld [vmem:[%s741] sm:$0x7]
      %v747 = vld [vmem:[%s741 + $0x4] sm:$0x7]
      %v748 = vld [vmem:[%s741 + $0x8] sm:$0x7]
      %v749 = vld [vmem:[%s741 + $0xc] sm:$0x7]
      %v750 = vld [vmem:[%s741] sm:$0x6]
      %v751 = vld [vmem:[%s741 + $0x4] sm:$0x6]
      %v752 = vld [vmem:[%s741 + $0x8] sm:$0x6]
      %v753 = vld [vmem:[%s741 + $0xc] sm:$0x6]
      %v758 = vunpack.c.l.b16 %v746
      %v759 = vunpack.c.l.b16 %v747
      %v760 = vunpack.c.l.b16 %v748
      %v761 = vunpack.c.l.b16 %v749
      %v762 = vpack.c.b16 %v758, %v758
      %v763 = vpack.c.b16 %v759, %v759
      %v764 = vpack.c.b16 %v760, %v760
      %v765 = vpack.c.b16 %v761, %v761
      %v767 = vshrl.u32 %v762, 16
      %v769 = vshll.u32 %v762, 16
      %v771 = vrot.slane %v769, 1
      %v772 = vor.u32 %v767, %v771
      %v774 = vshrl.u32 %v763, 16
      %v776 = vshll.u32 %v763, 16
      %v778 = vrot.slane %v776, 1
      %v779 = vor.u32 %v774, %v778
      %v781 = vshrl.u32 %v764, 16
      %v783 = vshll.u32 %v764, 16
      %v785 = vrot.slane %v783, 1
      %v786 = vor.u32 %v781, %v785
      %v788 = vshrl.u32 %v765, 16
      %v790 = vshll.u32 %v765, 16
      %v792 = vrot.slane %v790, 1
      %v793 = vor.u32 %v788, %v792
      %794 = vrot.lane.b32.xlu0 %v772, 64
      %v795 = vpop.permute.xlu0 %794
      %796 = vrot.lane.b32.xlu0 %v779, 64
      %v797 = vpop.permute.xlu0 %796
      %798 = vrot.lane.b32.xlu0 %v786, 64
      %v799 = vpop.permute.xlu0 %798
      %800 = vrot.lane.b32.xlu0 %v793, 64
      %v801 = vpop.permute.xlu0 %800
      %v806 = vunpack.c.l.b16 %v750
      %v807 = vunpack.c.l.b16 %v751
      %v808 = vunpack.c.l.b16 %v752
      %v809 = vunpack.c.l.b16 %v753
      %v810 = vpack.c.b16 %v806, %v806
      %v811 = vpack.c.b16 %v807, %v807
      %v812 = vpack.c.b16 %v808, %v808
      %v813 = vpack.c.b16 %v809, %v809
      %v814 = vrot.slane %v810, 1
      %v815 = vrot.slane %v811, 1
      %v816 = vrot.slane %v812, 1
      %v817 = vrot.slane %v813, 1
      %v820 = vsel %vm248, %v742, %v795
      %v823 = vsel %vm248, %v743, %v797
      %v826 = vsel %vm248, %v744, %v799
      %v829 = vsel %vm248, %v745, %v801
      %v834 = vcombine.low %v820, %v814
      %v836 = vunpack.c.l.s4 1983009808
      %v837 = vunpack.c.0.s8 %v836
      %v838 = vlaneseq
      %v839 = vshrl.u32 %v838, 7
      %v840 = vsub.s32 %v837, %v839
      %v841 = vrot.slane %v834, %v840
      %v842 = vcombine.low %v823, %v815
      %v844 = vunpack.c.l.s4 1983009808
      %v845 = vunpack.c.0.s8 %v844
      %v846 = vlaneseq
      %v847 = vshrl.u32 %v846, 7
      %v848 = vsub.s32 %v845, %v847
      %v849 = vrot.slane %v842, %v848
      %v850 = vcombine.low %v826, %v816
      %v852 = vunpack.c.l.s4 1983009808
      %v853 = vunpack.c.0.s8 %v852
      %v854 = vlaneseq
      %v855 = vshrl.u32 %v854, 7
      %v856 = vsub.s32 %v853, %v855
      %v857 = vrot.slane %v850, %v856
      %v858 = vcombine.low %v829, %v817
      %v860 = vunpack.c.l.s4 1983009808
      %v861 = vunpack.c.0.s8 %v860
      %v862 = vlaneseq
      %v863 = vshrl.u32 %v862, 7
      %v864 = vsub.s32 %v861, %v863
      %v865 = vrot.slane %v858, %v864
      %s866 = scalar_lea.vmem %s1, 192
      %v867 = vld [vmem:[%s866] sm:$0xf]
      %v868 = vld [vmem:[%s866 + $0x4] sm:$0xf]
      %v869 = vld [vmem:[%s866 + $0x8] sm:$0xf]
      %v870 = vld [vmem:[%s866 + $0xc] sm:$0xf]
      %v871 = vld [vmem:[%s866 + $0x10] sm:$0xf]
      %v872 = vld [vmem:[%s866 + $0x14] sm:$0xf]
      %v873 = vld [vmem:[%s866 + $0x18] sm:$0xf]
      %v874 = vld [vmem:[%s866 + $0x1c] sm:$0xf]
      %v875 = vld [vmem:[%s866 + $0x20] sm:$0xf]
      %v876 = vld [vmem:[%s866 + $0x24] sm:$0xf]
      %v877 = vld [vmem:[%s866 + $0x28] sm:$0xf]
      %v878 = vld [vmem:[%s866 + $0x2c] sm:$0xf]
      %v879 = vld [vmem:[%s866 + $0x30] sm:$0xf]
      %v880 = vld [vmem:[%s866 + $0x34] sm:$0xf]
      %v881 = vld [vmem:[%s866 + $0x38] sm:$0xf]
      %v882 = vld [vmem:[%s866 + $0x3c] sm:$0xf]
      %v883 = vld [vmem:[%s866 + $0x40] sm:$0xf]
      %v884 = vld [vmem:[%s866 + $0x44] sm:$0xf]
      %v885 = vld [vmem:[%s866 + $0x48] sm:$0xf]
      %v886 = vld [vmem:[%s866 + $0x4c] sm:$0xf]
      %v887 = vld [vmem:[%s866 + $0x50] sm:$0xf]
      %v888 = vld [vmem:[%s866 + $0x54] sm:$0xf]
      %v889 = vld [vmem:[%s866 + $0x58] sm:$0xf]
      %v890 = vld [vmem:[%s866 + $0x5c] sm:$0xf]
      %v891 = vcombine.low %v841, %v849
      %v892 = vcombine.low %v857, %v865
      %v894 = vunpack.c.l.s4 1983009808
      %v895 = vunpack.c.0.s8 %v894
      %v896 = vlaneseq
      %v897 = vshrl.u32 %v896, 7
      %v898 = vsub.s32 %v895, %v897
      %v899 = vrot.slane %v891, %v898
      %v901 = vunpack.c.l.s4 1983009808
      %v902 = vunpack.c.0.s8 %v901
      %v903 = vlaneseq
      %v904 = vshrl.u32 %v903, 7
      %v905 = vsub.s32 %v902, %v904
      %v906 = vrot.slane %v892, %v905
      %v907 = vcombine.low %v899, %v906
      %v908 = vcombine.high %v899, %v906
      %v934 = vunpack.c.l.b16 %v867
      %v935 = vunpack.c.l.b16 %v868
      %v936 = vunpack.c.l.b16 %v869
      %v937 = vunpack.c.l.b16 %v870
      %v938 = vunpack.c.l.b16 %v871
      %v939 = vunpack.c.l.b16 %v872
      %v940 = vunpack.c.l.b16 %v873
      %v941 = vunpack.c.l.b16 %v874
      %v942 = vunpack.c.l.b16 %v875
      %v943 = vunpack.c.l.b16 %v876
      %v944 = vunpack.c.l.b16 %v877
      %v945 = vunpack.c.l.b16 %v878
      %v946 = vunpack.c.l.b16 %v879
      %v947 = vunpack.c.l.b16 %v880
      %v948 = vunpack.c.l.b16 %v881
      %v949 = vunpack.c.l.b16 %v882
      %v950 = vunpack.c.l.b16 %v883
      %v951 = vunpack.c.l.b16 %v884
      %v952 = vunpack.c.l.b16 %v885
      %v953 = vunpack.c.l.b16 %v886
      %v954 = vunpack.c.l.b16 %v887
      %v955 = vunpack.c.l.b16 %v888
      %v956 = vunpack.c.l.b16 %v889
      %v957 = vunpack.c.l.b16 %v890
      %v958 = vpack.c.b16 %v935, %v934
      %v959 = vpack.c.b16 %v937, %v936
      %v960 = vpack.c.b16 %v939, %v938
      %v961 = vpack.c.b16 %v941, %v940
      %v962 = vpack.c.b16 %v943, %v942
      %v963 = vpack.c.b16 %v945, %v944
      %v964 = vpack.c.b16 %v947, %v946
      %v965 = vpack.c.b16 %v949, %v948
      %v966 = vpack.c.b16 %v951, %v950
      %v967 = vpack.c.b16 %v953, %v952
      %v968 = vpack.c.b16 %v955, %v954
      %v969 = vpack.c.b16 %v957, %v956
      %v983 = vsel %vm248, %v908, 0
      %985 = vmatprep.subr.bf16.mxu0 0
      %986 = vmatpush1.bf16.msra.mxu0 %v958
      %987 = vmatprep.subr.bf16.mxu0 0
      %988 = vmatpush1.bf16.msra.mxu0 %v959
      %989 = vmatprep.subr.bf16.mxu0 0
      %990 = vmatpush1.bf16.msra.mxu0 %v960
      %991 = vmatprep.subr.bf16.mxu0 0
      %992 = vmatpush1.bf16.msra.mxu0 %v961
      %993 = vmatprep.subr.bf16.mxu0 0
      %994 = vmatpush1.bf16.msra.mxu0 %v962
      %995 = vmatprep.subr.bf16.mxu0 0
      %996 = vmatpush1.bf16.msra.mxu0 %v963
      %997 = vmatprep.subr.bf16.mxu0 0
      %998 = vmatpush1.bf16.msra.mxu0 %v964
      %999 = vmatprep.subr.bf16.mxu0 0
      %1000 = vmatpush1.bf16.msra.mxu0 %v965
      %1001 = vmatprep.subr.bf16.mxu0 0
      %1002 = vmatpush1.bf16.msra.mxu0 %v966
      %1003 = vmatprep.subr.bf16.mxu0 0
      %1004 = vmatpush1.bf16.msra.mxu0 %v967
      %1005 = vmatprep.subr.bf16.mxu0 0
      %1006 = vmatpush1.bf16.msra.mxu0 %v968
      %1007 = vmatprep.subr.bf16.mxu0 0
      %1008 = vmatpush1.bf16.msra.mxu0 %v969
      %1009 = vmatprep.subr.bf16.mxu0 0
      %1010 = vmatpush1.bf16.msra.mxu0 0
      %1011 = vmatprep.subr.bf16.mxu0 0
      %1012 = vmatpush1.bf16.msra.mxu0 0
      %1013 = vmatprep.subr.bf16.mxu0 0
      %1014 = vmatpush1.bf16.msra.mxu0 0
      %1015 = vmatprep.subr.bf16.mxu0 0
      %1016 = vmatpush1.bf16.msra.mxu0 0
      %1017 = vmatprep.mubr.bf16.mxu0 %v983
      %1018 = vmatmul.mubr.bf16.gmra.mrb[0].mxu0 %v907
      %v1019 = vpop.f32.mrb[0].mxu0
      %v1020 = vadd.f32 0.0, %v1019
      %v1021 = vpop.f32.mrb[0].mxu0
      %v1022 = vpop.f32.mrb[0].mxu0
      %v1023 = vadd.f32 0.0, %v1022
      %v1024 = vpop.f32.mrb[0].mxu0
      %1025 = vdwg.mxu0
      %v1026 = vadd.f32 %v735, %v1020
      %v1027 = vadd.f32 %v738, %v1023
      %v1028 = vld [vmem:[%s2] sm:$0x1]
      %v1030 = vlaneseq
      %v1031 = vshrl.u32 %v1030, 7
      %v1032 = vsub.s32 0, %v1031
      %v1033 = vrot.slane %v1028, %v1032
      %v1035 = vadd.f32 %v1026, %v1033
      %v1036 = vadd.f32 %v1027, %v1033
      %v1037 = vmax.f32 %v1035, 0.0
      %v1038 = vmax.f32 %v1036, 0.0
      %v1041 = vcombine.high %v1037, %v1037
      %v1042 = vcombine.high %v1038, %v1038
      %v1045 = vpack.c.bf16 %v1037, %v1037
      %v1046 = vpack.c.bf16 %v1041, %v1041
      %v1047 = vpack.c.bf16 %v1038, %v1038
      %v1048 = vpack.c.bf16 %v1042, %v1042
      %vm1049 = vcmask 517120
      %1050 = vst.msk [vmem:[%s170] sm:$0x3] %vm1049, %v1045
      %1051 = vst.msk [vmem:[%s170 + $0x2] sm:$0x3] %vm1049, %v1046
      %1052 = vst.msk [vmem:[%s170 + $0x4] sm:$0x3] %vm1049, %v1047
      %1053 = vst.msk [vmem:[%s170 + $0x6] sm:$0x3] %vm1049, %v1048
      %p1054 = scmp.lt.s32.totalorder %s14, 1
      %s1055 = scalar_select %p1054, %s14, 1
      %s1056 = smul.addr %s1055, 4
      %s1057 = smul.addr %s1056, 2
      %s1058 = scalar_lea.vmem %s3, %s1057
      // Predicated region
      $region33: #{second_dsa_forward.17} parent=31 // pred_check
        %p1059 = pneg %p100
      $region34: #{second_dsa_forward.17} parent=31 // pred_check_branch
        %1061 = sbr.rel (%p1059) target = $region36
      $region35: #{second_dsa_forward.17} parent=31 // pred_region
        _
      $region36: #{second_dsa_forward.17} parent=31 // pred_fallthru
        _
    $region32: #{second_dsa_forward.17} parent=5 // pred_fallthru
      _
    %p1062 = scmp.le.s32.totalorder 2, %s9
    // Predicated region
    $region37: #{second_dsa_forward.17} parent=5 // pred_check
      %p1063 = pneg %p1062
    $region38: #{second_dsa_forward.17} parent=5 // pred_check_branch
      %1065 = sbr.rel (%p1063) target = $region40
    $region39: #{second_dsa_forward.17} parent=5 // pred_region
      %s1066 = ssub.s32 %s9, 2
      // Predicated region
      $region41: #{second_dsa_forward.17} parent=39 // pred_check
        %p1067 = pneg %p106
      $region42: #{second_dsa_forward.17} parent=39 // pred_check_branch
        %1069 = sbr.rel (%p1067) target = $region44
      $region43: #{second_dsa_forward.17} parent=39 // pred_region
        %p1070 = scmp.lt.s32.totalorder %s15, 1
        %s1071 = scalar_select %p1070, %s15, 1
        %s1072 = smul.addr %s1071, 4
        %s1073 = smul.addr %s1072, 2
        %s1074 = scalar_lea.vmem %s3, %s1073
      $region44: #{second_dsa_forward.17} parent=39 // pred_fallthru
        _
    $region40: #{second_dsa_forward.17} parent=5 // pred_fallthru
      _
  $region6: #{second_dsa_forward.17} parent=0 // loop_footer
    %s13 = sadd.s32 1, %s9
  $region7: #{second_dsa_forward.17} parent=0 // loop_footer_branch
    %8 = sbr.rel target = $region3
  $region8: #{second_dsa_forward.17} parent=0 // loop_exit
    _

// kernel: second_dsa_forward.19
$region0: #{second_dsa_forward.19}
  #allocation0 [shape = 'u32[]', space=smem, size = 0x4, offset = 0x4, fixed_abs, tag = 'smem constant byte address 0x4 - core index']
  #allocation1 [shape = 'u32[144,128]{1,0:T(1,128)}', space=vmem, size = 0x12000, scoped, tag = 'internal scratch']
  %s0 = inlined_call_operand.vmem [shape: bf16[256,48], index: 0, kind: input, shape index: {}]
  %s1 = inlined_call_operand.vmem [shape: bf16[48,32], index: 1, kind: input, shape index: {}]
  %s2 = inlined_call_operand.vmem [shape: f32[1,32], index: 2, kind: input, shape index: {}]
  %s3 = inlined_call_operand.vmem [shape: f32[1,32], index: 3, kind: input, shape index: {}]
  %s4 = inlined_call_operand.vmem [shape: f32[1,32], index: 4, kind: input, shape index: {}]
  %s5 = inlined_call_operand.vmem [shape: bf16[256,32], index: 5, kind: output, shape index: {}]
  %s6 = sld [smem:[#allocation0]]
  $region30: #{second_dsa_forward.19} parent=0
    _
  %s8 = ssub.s32 1, %s6
  %s9 = scalar_select 0, %s8, %s6
  // Predicated region
  $region2: #{second_dsa_forward.19} parent=0 // pred_check
    _
  $region3: #{second_dsa_forward.19} parent=0 // pred_check_branch
    %11 = sbr.rel (0) target = $region5
  $region4: #{second_dsa_forward.19} parent=0 // pred_region
    _
  $region5: #{second_dsa_forward.19} parent=0 // pred_fallthru
    _
  // Predicated region
  $region6: #{second_dsa_forward.19} parent=0 // pred_check
    _
  $region7: #{second_dsa_forward.19} parent=0 // pred_check_branch
    %13 = sbr.rel (0) target = $region9
  $region8: #{second_dsa_forward.19} parent=0 // pred_region
    _
  $region9: #{second_dsa_forward.19} parent=0 // pred_fallthru
    _
  // Predicated region
  $region10: #{second_dsa_forward.19} parent=0 // pred_check
    _
  $region11: #{second_dsa_forward.19} parent=0 // pred_check_branch
    %15 = sbr.rel (0) target = $region13
  $region12: #{second_dsa_forward.19} parent=0 // pred_region
    _
  $region13: #{second_dsa_forward.19} parent=0 // pred_fallthru
    _
  // Predicated region
  $region14: #{second_dsa_forward.19} parent=0 // pred_check
    _
  $region15: #{second_dsa_forward.19} parent=0 // pred_check_branch
    %17 = sbr.rel (0) target = $region17
  $region16: #{second_dsa_forward.19} parent=0 // pred_region
    _
  $region17: #{second_dsa_forward.19} parent=0 // pred_fallthru
    _
  // Predicated region
  $region18: #{second_dsa_forward.19} parent=0 // pred_check
    _
  $region19: #{second_dsa_forward.19} parent=0 // pred_check_branch
    %19 = sbr.rel (0) target = $region21
  $region20: #{second_dsa_forward.19} parent=0 // pred_region
    _
  $region21: #{second_dsa_forward.19} parent=0 // pred_fallthru
    _
  %v21 = vld [vmem:[%s0] sm:$0xf]
  %v22 = vld [vmem:[%s0 + $0x4] sm:$0xf]
  %v23 = vld [vmem:[%s0 + $0x8] sm:$0xf]
  %v24 = vld [vmem:[%s0 + $0xc] sm:$0xf]
  %v25 = vld [vmem:[%s0 + $0x10] sm:$0xf]
  %v26 = vld [vmem:[%s0 + $0x14] sm:$0xf]
  %v27 = vld [vmem:[%s0 + $0x18] sm:$0xf]
  %v28 = vld [vmem:[%s0 + $0x1c] sm:$0xf]
  %v29 = vld [vmem:[%s0 + $0x20] sm:$0xf]
  %v30 = vld [vmem:[%s0 + $0x24] sm:$0xf]
  %v31 = vld [vmem:[%s0 + $0x28] sm:$0xf]
  %v32 = vld [vmem:[%s0 + $0x2c] sm:$0xf]
  %v33 = vld [vmem:[%s0 + $0x30] sm:$0xf]
  %v34 = vld [vmem:[%s0 + $0x34] sm:$0xf]
  %v35 = vld [vmem:[%s0 + $0x38] sm:$0xf]
  %v36 = vld [vmem:[%s0 + $0x3c] sm:$0xf]
  %v37 = vld [vmem:[%s0 + $0x40] sm:$0xf]
  %v38 = vld [vmem:[%s0 + $0x44] sm:$0xf]
  %v39 = vld [vmem:[%s0 + $0x48] sm:$0xf]
  %v40 = vld [vmem:[%s0 + $0x4c] sm:$0xf]
  %v41 = vld [vmem:[%s0 + $0x50] sm:$0xf]
  %v42 = vld [vmem:[%s0 + $0x54] sm:$0xf]
  %v43 = vld [vmem:[%s0 + $0x58] sm:$0xf]
  %v44 = vld [vmem:[%s0 + $0x5c] sm:$0xf]
  %v45 = vld [vmem:[%s0 + $0x60] sm:$0xf]
  %v46 = vld [vmem:[%s0 + $0x64] sm:$0xf]
  %v47 = vld [vmem:[%s0 + $0x68] sm:$0xf]
  %v48 = vld [vmem:[%s0 + $0x6c] sm:$0xf]
  %v49 = vld [vmem:[%s0 + $0x70] sm:$0xf]
  %v50 = vld [vmem:[%s0 + $0x74] sm:$0xf]
  %v51 = vld [vmem:[%s0 + $0x78] sm:$0xf]
  %v52 = vld [vmem:[%s0 + $0x7c] sm:$0xf]
  %v53 = vld [vmem:[%s1] sm:$0xf]
  %v54 = vld [vmem:[%s1 + $0x4] sm:$0xf]
  %v55 = vld [vmem:[%s1 + $0x8] sm:$0xf]
  %v56 = vld [vmem:[%s1 + $0xc] sm:$0xf]
  %v57 = vld [vmem:[%s1 + $0x10] sm:$0xf]
  %v58 = vld [vmem:[%s1 + $0x14] sm:$0xf]
  %v59 = vld [vmem:[%s2] sm:$0x1]
  %v61 = vlaneseq
  %v62 = vshrl.u32 %v61, 7
  %v63 = vsub.s32 0, %v62
  %v64 = vrot.slane %v59, %v63
  %v98 = vunpack.c.l.b16 %v21
  %v99 = vunpack.c.l.b16 %v22
  %v100 = vunpack.c.l.b16 %v23
  %v101 = vunpack.c.l.b16 %v24
  %v102 = vunpack.c.l.b16 %v25
  %v103 = vunpack.c.l.b16 %v26
  %v104 = vunpack.c.l.b16 %v27
  %v105 = vunpack.c.l.b16 %v28
  %v106 = vunpack.c.l.b16 %v29
  %v107 = vunpack.c.l.b16 %v30
  %v108 = vunpack.c.l.b16 %v31
  %v109 = vunpack.c.l.b16 %v32
  %v110 = vunpack.c.l.b16 %v33
  %v111 = vunpack.c.l.b16 %v34
  %v112 = vunpack.c.l.b16 %v35
  %v113 = vunpack.c.l.b16 %v36
  %v114 = vunpack.c.l.b16 %v37
  %v115 = vunpack.c.l.b16 %v38
  %v116 = vunpack.c.l.b16 %v39
  %v117 = vunpack.c.l.b16 %v40
  %v118 = vunpack.c.l.b16 %v41
  %v119 = vunpack.c.l.b16 %v42
  %v120 = vunpack.c.l.b16 %v43
  %v121 = vunpack.c.l.b16 %v44
  %v122 = vunpack.c.l.b16 %v45
  %v123 = vunpack.c.l.b16 %v46
  %v124 = vunpack.c.l.b16 %v47
  %v125 = vunpack.c.l.b16 %v48
  %v126 = vunpack.c.l.b16 %v49
  %v127 = vunpack.c.l.b16 %v50
  %v128 = vunpack.c.l.b16 %v51
  %v129 = vunpack.c.l.b16 %v52
  %v130 = vpack.c.b16 %v99, %v98
  %v131 = vpack.c.b16 %v101, %v100
  %v132 = vpack.c.b16 %v103, %v102
  %v133 = vpack.c.b16 %v105, %v104
  %v134 = vpack.c.b16 %v107, %v106
  %v135 = vpack.c.b16 %v109, %v108
  %v136 = vpack.c.b16 %v111, %v110
  %v137 = vpack.c.b16 %v113, %v112
  %v138 = vpack.c.b16 %v115, %v114
  %v139 = vpack.c.b16 %v117, %v116
  %v140 = vpack.c.b16 %v119, %v118
  %v141 = vpack.c.b16 %v121, %v120
  %v142 = vpack.c.b16 %v123, %v122
  %v143 = vpack.c.b16 %v125, %v124
  %v144 = vpack.c.b16 %v127, %v126
  %v145 = vpack.c.b16 %v129, %v128
  %v152 = vunpack.c.l.b16 %v53
  %v153 = vunpack.c.l.b16 %v54
  %v154 = vunpack.c.l.b16 %v55
  %v155 = vunpack.c.l.b16 %v56
  %v156 = vunpack.c.l.b16 %v57
  %v157 = vunpack.c.l.b16 %v58
  %v158 = vpack.c.b16 %v153, %v152
  %v159 = vpack.c.b16 %v155, %v154
  %v160 = vpack.c.b16 %v157, %v156
  %vm164 = vcmask 392192
  %v166 = vsel %vm164, %v130, 0
  %v169 = vsel %vm164, %v131, 0
  %v172 = vsel %vm164, %v132, 0
  %v175 = vsel %vm164, %v133, 0
  %v178 = vsel %vm164, %v134, 0
  %v181 = vsel %vm164, %v135, 0
  %v184 = vsel %vm164, %v136, 0
  %v187 = vsel %vm164, %v137, 0
  %v190 = vsel %vm164, %v138, 0
  %v193 = vsel %vm164, %v139, 0
  %v196 = vsel %vm164, %v140, 0
  %v199 = vsel %vm164, %v141, 0
  %v202 = vsel %vm164, %v142, 0
  %v205 = vsel %vm164, %v143, 0
  %v208 = vsel %vm164, %v144, 0
  %v211 = vsel %vm164, %v145, 0
  %213 = vmatprep.subr.bf16.mxu0 0
  %214 = vmatpush1.bf16.msra.mxu0 %v158
  %215 = vmatprep.subr.bf16.mxu0 0
  %216 = vmatpush1.bf16.msra.mxu0 %v159
  %217 = vmatprep.subr.bf16.mxu0 0
  %218 = vmatpush1.bf16.msra.mxu0 %v160
  %219 = vmatprep.subr.bf16.mxu0 0
  %220 = vmatpush1.bf16.msra.mxu0 0
  %221 = vmatprep.subr.bf16.mxu0 0
  %222 = vmatpush1.bf16.msra.mxu0 0
  %223 = vmatprep.subr.bf16.mxu0 0
  %224 = vmatpush1.bf16.msra.mxu0 0
  %225 = vmatprep.subr.bf16.mxu0 0
  %226 = vmatpush1.bf16.msra.mxu0 0
  %227 = vmatprep.subr.bf16.mxu0 0
  %228 = vmatpush1.bf16.msra.mxu0 0
  %229 = vmatprep.subr.bf16.mxu0 0
  %230 = vmatpush1.bf16.msra.mxu0 0
  %231 = vmatprep.subr.bf16.mxu0 0
  %232 = vmatpush1.bf16.msra.mxu0 0
  %233 = vmatprep.subr.bf16.mxu0 0
  %234 = vmatpush1.bf16.msra.mxu0 0
  %235 = vmatprep.subr.bf16.mxu0 0
  %236 = vmatpush1.bf16.msra.mxu0 0
  %237 = vmatprep.subr.bf16.mxu0 0
  %238 = vmatpush1.bf16.msra.mxu0 0
  %239 = vmatprep.subr.bf16.mxu0 0
  %240 = vmatpush1.bf16.msra.mxu0 0
  %241 = vmatprep.subr.bf16.mxu0 0
  %242 = vmatpush1.bf16.msra.mxu0 0
  %243 = vmatprep.subr.bf16.mxu0 0
  %244 = vmatpush1.bf16.msra.mxu0 0
  %245 = vmatprep.mubr.bf16.mxu0 0
  %246 = vmatmul.mubr.bf16.gmra.mrb[0].mxu0 %v166
  %v247 = vpop.f32.mrb[0].mxu0
  %v248 = vadd.f32 %v64, %v247
  %v249 = vpop.f32.mrb[0].mxu0
  %v250 = vpop.f32.mrb[0].mxu0
  %v251 = vadd.f32 %v64, %v250
  %v252 = vpop.f32.mrb[0].mxu0
  %253 = vmatprep.mubr.bf16.mxu0 0
  %254 = vmatmul.mubr.bf16.gmra.mrb[0].mxu0 %v169
  %v255 = vpop.f32.mrb[0].mxu0
  %v256 = vadd.f32 %v64, %v255
  %v257 = vpop.f32.mrb[0].mxu0
  %v258 = vpop.f32.mrb[0].mxu0
  %v259 = vadd.f32 %v64, %v258
  %v260 = vpop.f32.mrb[0].mxu0
  %261 = vmatprep.mubr.bf16.mxu0 0
  %262 = vmatmul.mubr.bf16.gmra.mrb[0].mxu0 %v172
  %v263 = vpop.f32.mrb[0].mxu0
  %v264 = vadd.f32 %v64, %v263
  %v265 = vpop.f32.mrb[0].mxu0
  %v266 = vpop.f32.mrb[0].mxu0
  %v267 = vadd.f32 %v64, %v266
  %v268 = vpop.f32.mrb[0].mxu0
  %269 = vmatprep.mubr.bf16.mxu0 0
  %270 = vmatmul.mubr.bf16.gmra.mrb[0].mxu0 %v175
  %v271 = vpop.f32.mrb[0].mxu0
  %v272 = vadd.f32 %v64, %v271
  %v273 = vpop.f32.mrb[0].mxu0
  %v274 = vpop.f32.mrb[0].mxu0
  %v275 = vadd.f32 %v64, %v274
  %v276 = vpop.f32.mrb[0].mxu0
  %277 = vmatprep.mubr.bf16.mxu0 0
  %278 = vmatmul.mubr.bf16.gmra.mrb[0].mxu0 %v178
  %v279 = vpop.f32.mrb[0].mxu0
  %v280 = vadd.f32 %v64, %v279
  %v281 = vpop.f32.mrb[0].mxu0
  %v282 = vpop.f32.mrb[0].mxu0
  %v283 = vadd.f32 %v64, %v282
  %v284 = vpop.f32.mrb[0].mxu0
  %285 = vmatprep.mubr.bf16.mxu0 0
  %286 = vmatmul.mubr.bf16.gmra.mrb[0].mxu0 %v181
  %v287 = vpop.f32.mrb[0].mxu0
  %v288 = vadd.f32 %v64, %v287
  %v289 = vpop.f32.mrb[0].mxu0
  %v290 = vpop.f32.mrb[0].mxu0
  %v291 = vadd.f32 %v64, %v290
  %v292 = vpop.f32.mrb[0].mxu0
  %293 = vmatprep.mubr.bf16.mxu0 0
  %294 = vmatmul.mubr.bf16.gmra.mrb[0].mxu0 %v184
  %v295 = vpop.f32.mrb[0].mxu0
  %v296 = vadd.f32 %v64, %v295
  %v297 = vpop.f32.mrb[0].mxu0
  %v298 = vpop.f32.mrb[0].mxu0
  %v299 = vadd.f32 %v64, %v298
  %v300 = vpop.f32.mrb[0].mxu0
  %301 = vmatprep.mubr.bf16.mxu0 0
  %302 = vmatmul.mubr.bf16.gmra.mrb[0].mxu0 %v187
  %v303 = vpop.f32.mrb[0].mxu0
  %v304 = vadd.f32 %v64, %v303
  %v305 = vpop.f32.mrb[0].mxu0
  %v306 = vpop.f32.mrb[0].mxu0
  %v307 = vadd.f32 %v64, %v306
  %v308 = vpop.f32.mrb[0].mxu0
  %309 = vmatprep.mubr.bf16.mxu0 0
  %310 = vmatmul.mubr.bf16.gmra.mrb[0].mxu0 %v190
  %v311 = vpop.f32.mrb[0].mxu0
  %v312 = vadd.f32 %v64, %v311
  %v313 = vpop.f32.mrb[0].mxu0
  %v314 = vpop.f32.mrb[0].mxu0
  %v315 = vadd.f32 %v64, %v314
  %v316 = vpop.f32.mrb[0].mxu0
  %317 = vmatprep.mubr.bf16.mxu0 0
  %318 = vmatmul.mubr.bf16.gmra.mrb[0].mxu0 %v193
  %v319 = vpop.f32.mrb[0].mxu0
  %v320 = vadd.f32 %v64, %v319
  %v321 = vpop.f32.mrb[0].mxu0
  %v322 = vpop.f32.mrb[0].mxu0
  %v323 = vadd.f32 %v64, %v322
  %v324 = vpop.f32.mrb[0].mxu0
  %325 = vmatprep.mubr.bf16.mxu0 0
  %326 = vmatmul.mubr.bf16.gmra.mrb[0].mxu0 %v196
  %v327 = vpop.f32.mrb[0].mxu0
  %v328 = vadd.f32 %v64, %v327
  %v329 = vpop.f32.mrb[0].mxu0
  %v330 = vpop.f32.mrb[0].mxu0
  %v331 = vadd.f32 %v64, %v330
  %v332 = vpop.f32.mrb[0].mxu0
  %333 = vmatprep.mubr.bf16.mxu0 0
  %334 = vmatmul.mubr.bf16.gmra.mrb[0].mxu0 %v199
  %v335 = vpop.f32.mrb[0].mxu0
  %v336 = vadd.f32 %v64, %v335
  %v337 = vpop.f32.mrb[0].mxu0
  %v338 = vpop.f32.mrb[0].mxu0
  %v339 = vadd.f32 %v64, %v338
  %v340 = vpop.f32.mrb[0].mxu0
  %341 = vmatprep.mubr.bf16.mxu0 0
  %342 = vmatmul.mubr.bf16.gmra.mrb[0].mxu0 %v202
  %v343 = vpop.f32.mrb[0].mxu0
  %v344 = vadd.f32 %v64, %v343
  %v345 = vpop.f32.mrb[0].mxu0
  %v346 = vpop.f32.mrb[0].mxu0
  %v347 = vadd.f32 %v64, %v346
  %v348 = vpop.f32.mrb[0].mxu0
  %349 = vmatprep.mubr.bf16.mxu0 0
  %350 = vmatmul.mubr.bf16.gmra.mrb[0].mxu0 %v205
  %v351 = vpop.f32.mrb[0].mxu0
  %v352 = vadd.f32 %v64, %v351
  %v353 = vpop.f32.mrb[0].mxu0
  %v354 = vpop.f32.mrb[0].mxu0
  %v355 = vadd.f32 %v64, %v354
  %v356 = vpop.f32.mrb[0].mxu0
  %357 = vmatprep.mubr.bf16.mxu0 0
  %358 = vmatmul.mubr.bf16.gmra.mrb[0].mxu0 %v208
  %v359 = vpop.f32.mrb[0].mxu0
  %v360 = vadd.f32 %v64, %v359
  %v361 = vpop.f32.mrb[0].mxu0
  %v362 = vpop.f32.mrb[0].mxu0
  %v363 = vadd.f32 %v64, %v362
  %v364 = vpop.f32.mrb[0].mxu0
  %365 = vmatprep.mubr.bf16.mxu0 0
  %366 = vmatmul.mubr.bf16.gmra.mrb[0].mxu0 %v211
  %v367 = vpop.f32.mrb[0].mxu0
  %v368 = vadd.f32 %v64, %v367
  %v369 = vpop.f32.mrb[0].mxu0
  %v370 = vpop.f32.mrb[0].mxu0
  %v371 = vadd.f32 %v64, %v370
  %v372 = vpop.f32.mrb[0].mxu0
  %373 = vdwg.mxu0
  %vm374 = vcmask 261120
  %v375 = vsel %vm374, %v248, 0.0
  %376 = vadd.xlane.f32.xlu0 %v375
  %v377 = vpop.xlane.xlu0 %376
  %v378 = vsel %vm374, %v251, 0.0
  %379 = vadd.xlane.f32.xlu0 %v378
  %v380 = vpop.xlane.xlu0 %379
  %v381 = vsel %vm374, %v256, 0.0
  %382 = vadd.xlane.f32.xlu0 %v381
  %v383 = vpop.xlane.xlu0 %382
  %v384 = vsel %vm374, %v259, 0.0
  %385 = vadd.xlane.f32.xlu0 %v384
  %v386 = vpop.xlane.xlu0 %385
  %v387 = vsel %vm374, %v264, 0.0
  %388 = vadd.xlane.f32.xlu0 %v387
  %v389 = vpop.xlane.xlu0 %388
  %v390 = vsel %vm374, %v267, 0.0
  %391 = vadd.xlane.f32.xlu0 %v390
  %v392 = vpop.xlane.xlu0 %391
  %v393 = vsel %vm374, %v272, 0.0
  %394 = vadd.xlane.f32.xlu0 %v393
  %v395 = vpop.xlane.xlu0 %394
  %v396 = vsel %vm374, %v275, 0.0
  %397 = vadd.xlane.f32.xlu0 %v396
  %v398 = vpop.xlane.xlu0 %397
  %v399 = vsel %vm374, %v280, 0.0
  %400 = vadd.xlane.f32.xlu0 %v399
  %v401 = vpop.xlane.xlu0 %400
  %v402 = vsel %vm374, %v283, 0.0
  %403 = vadd.xlane.f32.xlu0 %v402
  %v404 = vpop.xlane.xlu0 %403
  %v405 = vsel %vm374, %v288, 0.0
  %406 = vadd.xlane.f32.xlu0 %v405
  %v407 = vpop.xlane.xlu0 %406
  %v408 = vsel %vm374, %v291, 0.0
  %409 = vadd.xlane.f32.xlu0 %v408
  %v410 = vpop.xlane.xlu0 %409
  %v411 = vsel %vm374, %v296, 0.0
  %412 = vadd.xlane.f32.xlu0 %v411
  %v413 = vpop.xlane.xlu0 %412
  %v414 = vsel %vm374, %v299, 0.0
  %415 = vadd.xlane.f32.xlu0 %v414
  %v416 = vpop.xlane.xlu0 %415
  %v417 = vsel %vm374, %v304, 0.0
  %418 = vadd.xlane.f32.xlu0 %v417
  %v419 = vpop.xlane.xlu0 %418
  %v420 = vsel %vm374, %v307, 0.0
  %421 = vadd.xlane.f32.xlu0 %v420
  %v422 = vpop.xlane.xlu0 %421
  %v423 = vsel %vm374, %v312, 0.0
  %424 = vadd.xlane.f32.xlu0 %v423
  %v425 = vpop.xlane.xlu0 %424
  %v426 = vsel %vm374, %v315, 0.0
  %427 = vadd.xlane.f32.xlu0 %v426
  %v428 = vpop.xlane.xlu0 %427
  %v429 = vsel %vm374, %v320, 0.0
  %430 = vadd.xlane.f32.xlu0 %v429
  %v431 = vpop.xlane.xlu0 %430
  %v432 = vsel %vm374, %v323, 0.0
  %433 = vadd.xlane.f32.xlu0 %v432
  %v434 = vpop.xlane.xlu0 %433
  %v435 = vsel %vm374, %v328, 0.0
  %436 = vadd.xlane.f32.xlu0 %v435
  %v437 = vpop.xlane.xlu0 %436
  %v438 = vsel %vm374, %v331, 0.0
  %439 = vadd.xlane.f32.xlu0 %v438
  %v440 = vpop.xlane.xlu0 %439
  %v441 = vsel %vm374, %v336, 0.0
  %442 = vadd.xlane.f32.xlu0 %v441
  %v443 = vpop.xlane.xlu0 %442
  %v444 = vsel %vm374, %v339, 0.0
  %445 = vadd.xlane.f32.xlu0 %v444
  %v446 = vpop.xlane.xlu0 %445
  %v447 = vsel %vm374, %v344, 0.0
  %448 = vadd.xlane.f32.xlu0 %v447
  %v449 = vpop.xlane.xlu0 %448
  %v450 = vsel %vm374, %v347, 0.0
  %451 = vadd.xlane.f32.xlu0 %v450
  %v452 = vpop.xlane.xlu0 %451
  %v453 = vsel %vm374, %v352, 0.0
  %454 = vadd.xlane.f32.xlu0 %v453
  %v455 = vpop.xlane.xlu0 %454
  %v456 = vsel %vm374, %v355, 0.0
  %457 = vadd.xlane.f32.xlu0 %v456
  %v458 = vpop.xlane.xlu0 %457
  %v459 = vsel %vm374, %v360, 0.0
  %460 = vadd.xlane.f32.xlu0 %v459
  %v461 = vpop.xlane.xlu0 %460
  %v462 = vsel %vm374, %v363, 0.0
  %463 = vadd.xlane.f32.xlu0 %v462
  %v464 = vpop.xlane.xlu0 %463
  %v465 = vsel %vm374, %v368, 0.0
  %466 = vadd.xlane.f32.xlu0 %v465
  %v467 = vpop.xlane.xlu0 %466
  %v468 = vsel %vm374, %v371, 0.0
  %469 = vadd.xlane.f32.xlu0 %v468
  %v470 = vpop.xlane.xlu0 %469
  %v471 = vrcp.pop 32.0
  %v472 = vmul.f32 %v377, %v471
  %v473 = vmul.f32 %v380, %v471
  %v474 = vmul.f32 %v383, %v471
  %v475 = vmul.f32 %v386, %v471
  %v476 = vmul.f32 %v389, %v471
  %v477 = vmul.f32 %v392, %v471
  %v478 = vmul.f32 %v395, %v471
  %v479 = vmul.f32 %v398, %v471
  %v480 = vmul.f32 %v401, %v471
  %v481 = vmul.f32 %v404, %v471
  %v482 = vmul.f32 %v407, %v471
  %v483 = vmul.f32 %v410, %v471
  %v484 = vmul.f32 %v413, %v471
  %v485 = vmul.f32 %v416, %v471
  %v486 = vmul.f32 %v419, %v471
  %v487 = vmul.f32 %v422, %v471
  %v488 = vmul.f32 %v425, %v471
  %v489 = vmul.f32 %v428, %v471
  %v490 = vmul.f32 %v431, %v471
  %v491 = vmul.f32 %v434, %v471
  %v492 = vmul.f32 %v437, %v471
  %v493 = vmul.f32 %v440, %v471
  %v494 = vmul.f32 %v443, %v471
  %v495 = vmul.f32 %v446, %v471
  %v496 = vmul.f32 %v449, %v471
  %v497 = vmul.f32 %v452, %v471
  %v498 = vmul.f32 %v455, %v471
  %v499 = vmul.f32 %v458, %v471
  %v500 = vmul.f32 %v461, %v471
  %v501 = vmul.f32 %v464, %v471
  %v502 = vmul.f32 %v467, %v471
  %v503 = vmul.f32 %v470, %v471
  %v504 = vsub.f32 %v248, %v472
  %v505 = vsub.f32 %v251, %v473
  %v506 = vsub.f32 %v256, %v474
  %v507 = vsub.f32 %v259, %v475
  %v508 = vsub.f32 %v264, %v476
  %v509 = vsub.f32 %v267, %v477
  %v510 = vsub.f32 %v272, %v478
  %v511 = vsub.f32 %v275, %v479
  %v512 = vsub.f32 %v280, %v480
  %v513 = vsub.f32 %v283, %v481
  %v514 = vsub.f32 %v288, %v482
  %v515 = vsub.f32 %v291, %v483
  %v516 = vsub.f32 %v296, %v484
  %v517 = vsub.f32 %v299, %v485
  %v518 = vsub.f32 %v304, %v486
  %v519 = vsub.f32 %v307, %v487
  %v520 = vsub.f32 %v312, %v488
  %v521 = vsub.f32 %v315, %v489
  %v522 = vsub.f32 %v320, %v490
  %v523 = vsub.f32 %v323, %v491
  %v524 = vsub.f32 %v328, %v492
  %v525 = vsub.f32 %v331, %v493
  %v526 = vsub.f32 %v336, %v494
  %v527 = vsub.f32 %v339, %v495
  %v528 = vsub.f32 %v344, %v496
  %v529 = vsub.f32 %v347, %v497
  %v530 = vsub.f32 %v352, %v498
  %v531 = vsub.f32 %v355, %v499
  %v532 = vsub.f32 %v360, %v500
  %v533 = vsub.f32 %v363, %v501
  %v534 = vsub.f32 %v368, %v502
  %v535 = vsub.f32 %v371, %v503
  %v536 = vmul.f32 %v504, %v504
  %v537 = vmul.f32 %v505, %v505
  %v538 = vmul.f32 %v506, %v506
  %v539 = vmul.f32 %v507, %v507
  %v540 = vmul.f32 %v508, %v508
  %v541 = vmul.f32 %v509, %v509
  %v542 = vmul.f32 %v510, %v510
  %v543 = vmul.f32 %v511, %v511
  %v544 = vmul.f32 %v512, %v512
  %v545 = vmul.f32 %v513, %v513
  %v546 = vmul.f32 %v514, %v514
  %v547 = vmul.f32 %v515, %v515
  %v548 = vmul.f32 %v516, %v516
  %v549 = vmul.f32 %v517, %v517
  %v550 = vmul.f32 %v518, %v518
  %v551 = vmul.f32 %v519, %v519
  %v552 = vmul.f32 %v520, %v520
  %v553 = vmul.f32 %v521, %v521
  %v554 = vmul.f32 %v522, %v522
  %v555 = vmul.f32 %v523, %v523
  %v556 = vmul.f32 %v524, %v524
  %v557 = vmul.f32 %v525, %v525
  %v558 = vmul.f32 %v526, %v526
  %v559 = vmul.f32 %v527, %v527
  %v560 = vmul.f32 %v528, %v528
  %v561 = vmul.f32 %v529, %v529
  %v562 = vmul.f32 %v530, %v530
  %v563 = vmul.f32 %v531, %v531
  %v564 = vmul.f32 %v532, %v532
  %v565 = vmul.f32 %v533, %v533
  %v566 = vmul.f32 %v534, %v534
  %v567 = vmul.f32 %v535, %v535
  %v568 = vsel %vm374, %v536, 0.0
  %569 = vadd.xlane.f32.xlu0 %v568
  %v570 = vpop.xlane.xlu0 %569
  %v571 = vsel %vm374, %v537, 0.0
  %572 = vadd.xlane.f32.xlu0 %v571
  %v573 = vpop.xlane.xlu0 %572
  %v574 = vsel %vm374, %v538, 0.0
  %575 = vadd.xlane.f32.xlu0 %v574
  %v576 = vpop.xlane.xlu0 %575
  %v577 = vsel %vm374, %v539, 0.0
  %578 = vadd.xlane.f32.xlu0 %v577
  %v579 = vpop.xlane.xlu0 %578
  %v580 = vsel %vm374, %v540, 0.0
  %581 = vadd.xlane.f32.xlu0 %v580
  %v582 = vpop.xlane.xlu0 %581
  %v583 = vsel %vm374, %v541, 0.0
  %584 = vadd.xlane.f32.xlu0 %v583
  %v585 = vpop.xlane.xlu0 %584
  %v586 = vsel %vm374, %v542, 0.0
  %587 = vadd.xlane.f32.xlu0 %v586
  %v588 = vpop.xlane.xlu0 %587
  %v589 = vsel %vm374, %v543, 0.0
  %590 = vadd.xlane.f32.xlu0 %v589
  %v591 = vpop.xlane.xlu0 %590
  %v592 = vsel %vm374, %v544, 0.0
  %593 = vadd.xlane.f32.xlu0 %v592
  %v594 = vpop.xlane.xlu0 %593
  %v595 = vsel %vm374, %v545, 0.0
  %596 = vadd.xlane.f32.xlu0 %v595
  %v597 = vpop.xlane.xlu0 %596
  %v598 = vsel %vm374, %v546, 0.0
  %599 = vadd.xlane.f32.xlu0 %v598
  %v600 = vpop.xlane.xlu0 %599
  %v601 = vsel %vm374, %v547, 0.0
  %602 = vadd.xlane.f32.xlu0 %v601
  %v603 = vpop.xlane.xlu0 %602
  %v604 = vsel %vm374, %v548, 0.0
  %605 = vadd.xlane.f32.xlu0 %v604
  %v606 = vpop.xlane.xlu0 %605
  %v607 = vsel %vm374, %v549, 0.0
  %608 = vadd.xlane.f32.xlu0 %v607
  %v609 = vpop.xlane.xlu0 %608
  %v610 = vsel %vm374, %v550, 0.0
  %611 = vadd.xlane.f32.xlu0 %v610
  %v612 = vpop.xlane.xlu0 %611
  %v613 = vsel %vm374, %v551, 0.0
  %614 = vadd.xlane.f32.xlu0 %v613
  %v615 = vpop.xlane.xlu0 %614
  %v616 = vsel %vm374, %v552, 0.0
  %617 = vadd.xlane.f32.xlu0 %v616
  %v618 = vpop.xlane.xlu0 %617
  %v619 = vsel %vm374, %v553, 0.0
  %620 = vadd.xlane.f32.xlu0 %v619
  %v621 = vpop.xlane.xlu0 %620
  %v622 = vsel %vm374, %v554, 0.0
  %623 = vadd.xlane.f32.xlu0 %v622
  %v624 = vpop.xlane.xlu0 %623
  %v625 = vsel %vm374, %v555, 0.0
  %626 = vadd.xlane.f32.xlu0 %v625
  %v627 = vpop.xlane.xlu0 %626
  %v628 = vsel %vm374, %v556, 0.0
  %629 = vadd.xlane.f32.xlu0 %v628
  %v630 = vpop.xlane.xlu0 %629
  %v631 = vsel %vm374, %v557, 0.0
  %632 = vadd.xlane.f32.xlu0 %v631
  %v633 = vpop.xlane.xlu0 %632
  %v634 = vsel %vm374, %v558, 0.0
  %635 = vadd.xlane.f32.xlu0 %v634
  %v636 = vpop.xlane.xlu0 %635
  %v637 = vsel %vm374, %v559, 0.0
  %638 = vadd.xlane.f32.xlu0 %v637
  %v639 = vpop.xlane.xlu0 %638
  %v640 = vsel %vm374, %v560, 0.0
  %641 = vadd.xlane.f32.xlu0 %v640
  %v642 = vpop.xlane.xlu0 %641
  %v643 = vsel %vm374, %v561, 0.0
  %644 = vadd.xlane.f32.xlu0 %v643
  %v645 = vpop.xlane.xlu0 %644
  %v646 = vsel %vm374, %v562, 0.0
  %647 = vadd.xlane.f32.xlu0 %v646
  %v648 = vpop.xlane.xlu0 %647
  %v649 = vsel %vm374, %v563, 0.0
  %650 = vadd.xlane.f32.xlu0 %v649
  %v651 = vpop.xlane.xlu0 %650
  %v652 = vsel %vm374, %v564, 0.0
  %653 = vadd.xlane.f32.xlu0 %v652
  %v654 = vpop.xlane.xlu0 %653
  %v655 = vsel %vm374, %v565, 0.0
  %656 = vadd.xlane.f32.xlu0 %v655
  %v657 = vpop.xlane.xlu0 %656
  %v658 = vsel %vm374, %v566, 0.0
  %659 = vadd.xlane.f32.xlu0 %v658
  %v660 = vpop.xlane.xlu0 %659
  %v661 = vsel %vm374, %v567, 0.0
  %662 = vadd.xlane.f32.xlu0 %v661
  %v663 = vpop.xlane.xlu0 %662
  %v664 = vmul.f32 %v570, %v471
  %v665 = vmul.f32 %v573, %v471
  %v666 = vmul.f32 %v576, %v471
  %v667 = vmul.f32 %v579, %v471
  %v668 = vmul.f32 %v582, %v471
  %v669 = vmul.f32 %v585, %v471
  %v670 = vmul.f32 %v588, %v471
  %v671 = vmul.f32 %v591, %v471
  %v672 = vmul.f32 %v594, %v471
  %v673 = vmul.f32 %v597, %v471
  %v674 = vmul.f32 %v600, %v471
  %v675 = vmul.f32 %v603, %v471
  %v676 = vmul.f32 %v606, %v471
  %v677 = vmul.f32 %v609, %v471
  %v678 = vmul.f32 %v612, %v471
  %v679 = vmul.f32 %v615, %v471
  %v680 = vmul.f32 %v618, %v471
  %v681 = vmul.f32 %v621, %v471
  %v682 = vmul.f32 %v624, %v471
  %v683 = vmul.f32 %v627, %v471
  %v684 = vmul.f32 %v630, %v471
  %v685 = vmul.f32 %v633, %v471
  %v686 = vmul.f32 %v636, %v471
  %v687 = vmul.f32 %v639, %v471
  %v688 = vmul.f32 %v642, %v471
  %v689 = vmul.f32 %v645, %v471
  %v690 = vmul.f32 %v648, %v471
  %v691 = vmul.f32 %v651, %v471
  %v692 = vmul.f32 %v654, %v471
  %v693 = vmul.f32 %v657, %v471
  %v694 = vmul.f32 %v660, %v471
  %v695 = vmul.f32 %v663, %v471
  %v696 = vadd.f32 %v664, 1e-05
  %v697 = vadd.f32 %v665, 1e-05
  %v698 = vadd.f32 %v666, 1e-05
  %v699 = vadd.f32 %v667, 1e-05
  %v700 = vadd.f32 %v668, 1e-05
  %v701 = vadd.f32 %v669, 1e-05
  %v702 = vadd.f32 %v670, 1e-05
  %v703 = vadd.f32 %v671, 1e-05
  %v704 = vadd.f32 %v672, 1e-05
  %v705 = vadd.f32 %v673, 1e-05
  %v706 = vadd.f32 %v674, 1e-05
  %v707 = vadd.f32 %v675, 1e-05
  %v708 = vadd.f32 %v676, 1e-05
  %v709 = vadd.f32 %v677, 1e-05
  %v710 = vadd.f32 %v678, 1e-05
  %v711 = vadd.f32 %v679, 1e-05
  %v712 = vadd.f32 %v680, 1e-05
  %v713 = vadd.f32 %v681, 1e-05
  %v714 = vadd.f32 %v682, 1e-05
  %v715 = vadd.f32 %v683, 1e-05
  %v716 = vadd.f32 %v684, 1e-05
  %v717 = vadd.f32 %v685, 1e-05
  %v718 = vadd.f32 %v686, 1e-05
  %v719 = vadd.f32 %v687, 1e-05
  %v720 = vadd.f32 %v688, 1e-05
  %v721 = vadd.f32 %v689, 1e-05
  %v722 = vadd.f32 %v690, 1e-05
  %v723 = vadd.f32 %v691, 1e-05
  %v724 = vadd.f32 %v692, 1e-05
  %v725 = vadd.f32 %v693, 1e-05
  %v726 = vadd.f32 %v694, 1e-05
  %v727 = vadd.f32 %v695, 1e-05
  %v728 = vrsqrt.pop %v696
  %v729 = vrsqrt.pop %v697
  %v730 = vrsqrt.pop %v698
  %v731 = vrsqrt.pop %v699
  %v732 = vrsqrt.pop %v700
  %v733 = vrsqrt.pop %v701
  %v734 = vrsqrt.pop %v702
  %v735 = vrsqrt.pop %v703
  %v736 = vrsqrt.pop %v704
  %v737 = vrsqrt.pop %v705
  %v738 = vrsqrt.pop %v706
  %v739 = vrsqrt.pop %v707
  %v740 = vrsqrt.pop %v708
  %v741 = vrsqrt.pop %v709
  %v742 = vrsqrt.pop %v710
  %v743 = vrsqrt.pop %v711
  %v744 = vrsqrt.pop %v712
  %v745 = vrsqrt.pop %v713
  %v746 = vrsqrt.pop %v714
  %v747 = vrsqrt.pop %v715
  %v748 = vrsqrt.pop %v716
  %v749 = vrsqrt.pop %v717
  %v750 = vrsqrt.pop %v718
  %v751 = vrsqrt.pop %v719
  %v752 = vrsqrt.pop %v720
  %v753 = vrsqrt.pop %v721
  %v754 = vrsqrt.pop %v722
  %v755 = vrsqrt.pop %v723
  %v756 = vrsqrt.pop %v724
  %v757 = vrsqrt.pop %v725
  %v758 = vrsqrt.pop %v726
  %v759 = vrsqrt.pop %v727
  %v760 = vmul.f32 %v504, %v728
  %v761 = vmul.f32 %v505, %v729
  %v762 = vmul.f32 %v506, %v730
  %v763 = vmul.f32 %v507, %v731
  %v764 = vmul.f32 %v508, %v732
  %v765 = vmul.f32 %v509, %v733
  %v766 = vmul.f32 %v510, %v734
  %v767 = vmul.f32 %v511, %v735
  %v768 = vmul.f32 %v512, %v736
  %v769 = vmul.f32 %v513, %v737
  %v770 = vmul.f32 %v514, %v738
  %v771 = vmul.f32 %v515, %v739
  %v772 = vmul.f32 %v516, %v740
  %v773 = vmul.f32 %v517, %v741
  %v774 = vmul.f32 %v518, %v742
  %v775 = vmul.f32 %v519, %v743
  %v776 = vmul.f32 %v520, %v744
  %v777 = vmul.f32 %v521, %v745
  %v778 = vmul.f32 %v522, %v746
  %v779 = vmul.f32 %v523, %v747
  %v780 = vmul.f32 %v524, %v748
  %v781 = vmul.f32 %v525, %v749
  %v782 = vmul.f32 %v526, %v750
  %v783 = vmul.f32 %v527, %v751
  %v784 = vmul.f32 %v528, %v752
  %v785 = vmul.f32 %v529, %v753
  %v786 = vmul.f32 %v530, %v754
  %v787 = vmul.f32 %v531, %v755
  %v788 = vmul.f32 %v532, %v756
  %v789 = vmul.f32 %v533, %v757
  %v790 = vmul.f32 %v534, %v758
  %v791 = vmul.f32 %v535, %v759
  %v792 = vld [vmem:[%s3] sm:$0x1]
  %v794 = vlaneseq
  %v795 = vshrl.u32 %v794, 7
  %v796 = vsub.s32 0, %v795
  %v797 = vrot.slane %v792, %v796
  %v799 = vmul.f32 %v760, %v797
  %v800 = vmul.f32 %v761, %v797
  %v801 = vmul.f32 %v762, %v797
  %v802 = vmul.f32 %v763, %v797
  %v803 = vmul.f32 %v764, %v797
  %v804 = vmul.f32 %v765, %v797
  %v805 = vmul.f32 %v766, %v797
  %v806 = vmul.f32 %v767, %v797
  %v807 = vmul.f32 %v768, %v797
  %v808 = vmul.f32 %v769, %v797
  %v809 = vmul.f32 %v770, %v797
  %v810 = vmul.f32 %v771, %v797
  %v811 = vmul.f32 %v772, %v797
  %v812 = vmul.f32 %v773, %v797
  %v813 = vmul.f32 %v774, %v797
  %v814 = vmul.f32 %v775, %v797
  %v815 = vmul.f32 %v776, %v797
  %v816 = vmul.f32 %v777, %v797
  %v817 = vmul.f32 %v778, %v797
  %v818 = vmul.f32 %v779, %v797
  %v819 = vmul.f32 %v780, %v797
  %v820 = vmul.f32 %v781, %v797
  %v821 = vmul.f32 %v782, %v797
  %v822 = vmul.f32 %v783, %v797
  %v823 = vmul.f32 %v784, %v797
  %v824 = vmul.f32 %v785, %v797
  %v825 = vmul.f32 %v786, %v797
  %v826 = vmul.f32 %v787, %v797
  %v827 = vmul.f32 %v788, %v797
  %v828 = vmul.f32 %v789, %v797
  %v829 = vmul.f32 %v790, %v797
  %v830 = vmul.f32 %v791, %v797
  %v831 = vld [vmem:[%s4] sm:$0x1]
  %v833 = vlaneseq
  %v834 = vshrl.u32 %v833, 7
  %v835 = vsub.s32 0, %v834
  %v836 = vrot.slane %v831, %v835
  %v838 = vadd.f32 %v799, %v836
  %v839 = vadd.f32 %v800, %v836
  %v840 = vadd.f32 %v801, %v836
  %v841 = vadd.f32 %v802, %v836
  %v842 = vadd.f32 %v803, %v836
  %v843 = vadd.f32 %v804, %v836
  %v844 = vadd.f32 %v805, %v836
  %v845 = vadd.f32 %v806, %v836
  %v846 = vadd.f32 %v807, %v836
  %v847 = vadd.f32 %v808, %v836
  %v848 = vadd.f32 %v809, %v836
  %v849 = vadd.f32 %v810, %v836
  %v850 = vadd.f32 %v811, %v836
  %v851 = vadd.f32 %v812, %v836
  %v852 = vadd.f32 %v813, %v836
  %v853 = vadd.f32 %v814, %v836
  %v854 = vadd.f32 %v815, %v836
  %v855 = vadd.f32 %v816, %v836
  %v856 = vadd.f32 %v817, %v836
  %v857 = vadd.f32 %v818, %v836
  %v858 = vadd.f32 %v819, %v836
  %v859 = vadd.f32 %v820, %v836
  %v860 = vadd.f32 %v821, %v836
  %v861 = vadd.f32 %v822, %v836
  %v862 = vadd.f32 %v823, %v836
  %v863 = vadd.f32 %v824, %v836
  %v864 = vadd.f32 %v825, %v836
  %v865 = vadd.f32 %v826, %v836
  %v866 = vadd.f32 %v827, %v836
  %v867 = vadd.f32 %v828, %v836
  %v868 = vadd.f32 %v829, %v836
  %v869 = vadd.f32 %v830, %v836
  %v870 = vpack.c.bf16 %v839, %v838
  %v871 = vpack.c.bf16 %v841, %v840
  %v872 = vpack.c.bf16 %v843, %v842
  %v873 = vpack.c.bf16 %v845, %v844
  %v874 = vpack.c.bf16 %v847, %v846
  %v875 = vpack.c.bf16 %v849, %v848
  %v876 = vpack.c.bf16 %v851, %v850
  %v877 = vpack.c.bf16 %v853, %v852
  %v878 = vpack.c.bf16 %v855, %v854
  %v879 = vpack.c.bf16 %v857, %v856
  %v880 = vpack.c.bf16 %v859, %v858
  %v881 = vpack.c.bf16 %v861, %v860
  %v882 = vpack.c.bf16 %v863, %v862
  %v883 = vpack.c.bf16 %v865, %v864
  %v884 = vpack.c.bf16 %v867, %v866
  %v885 = vpack.c.bf16 %v869, %v868
  %v902 = vunpack.c.l.b16 %v870
  %v903 = vunpack.c.h.b16 %v870
  %v904 = vunpack.c.l.b16 %v871
  %v905 = vunpack.c.h.b16 %v871
  %v906 = vunpack.c.l.b16 %v872
  %v907 = vunpack.c.h.b16 %v872
  %v908 = vunpack.c.l.b16 %v873
  %v909 = vunpack.c.h.b16 %v873
  %v910 = vunpack.c.l.b16 %v874
  %v911 = vunpack.c.h.b16 %v874
  %v912 = vunpack.c.l.b16 %v875
  %v913 = vunpack.c.h.b16 %v875
  %v914 = vunpack.c.l.b16 %v876
  %v915 = vunpack.c.h.b16 %v876
  %v916 = vunpack.c.l.b16 %v877
  %v917 = vunpack.c.h.b16 %v877
  %v918 = vunpack.c.l.b16 %v878
  %v919 = vunpack.c.h.b16 %v878
  %v920 = vunpack.c.l.b16 %v879
  %v921 = vunpack.c.h.b16 %v879
  %v922 = vunpack.c.l.b16 %v880
  %v923 = vunpack.c.h.b16 %v880
  %v924 = vunpack.c.l.b16 %v881
  %v925 = vunpack.c.h.b16 %v881
  %v926 = vunpack.c.l.b16 %v882
  %v927 = vunpack.c.h.b16 %v882
  %v928 = vunpack.c.l.b16 %v883
  %v929 = vunpack.c.h.b16 %v883
  %v930 = vunpack.c.l.b16 %v884
  %v931 = vunpack.c.h.b16 %v884
  %v932 = vunpack.c.l.b16 %v885
  %v933 = vunpack.c.h.b16 %v885
  %v934 = vpack.c.b16 %v902, %v902
  %v935 = vpack.c.b16 %v903, %v903
  %v936 = vpack.c.b16 %v904, %v904
  %v937 = vpack.c.b16 %v905, %v905
  %v938 = vpack.c.b16 %v906, %v906
  %v939 = vpack.c.b16 %v907, %v907
  %v940 = vpack.c.b16 %v908, %v908
  %v941 = vpack.c.b16 %v909, %v909
  %v942 = vpack.c.b16 %v910, %v910
  %v943 = vpack.c.b16 %v911, %v911
  %v944 = vpack.c.b16 %v912, %v912
  %v945 = vpack.c.b16 %v913, %v913
  %v946 = vpack.c.b16 %v914, %v914
  %v947 = vpack.c.b16 %v915, %v915
  %v948 = vpack.c.b16 %v916, %v916
  %v949 = vpack.c.b16 %v917, %v917
  %v950 = vpack.c.b16 %v918, %v918
  %v951 = vpack.c.b16 %v919, %v919
  %v952 = vpack.c.b16 %v920, %v920
  %v953 = vpack.c.b16 %v921, %v921
  %v954 = vpack.c.b16 %v922, %v922
  %v955 = vpack.c.b16 %v923, %v923
  %v956 = vpack.c.b16 %v924, %v924
  %v957 = vpack.c.b16 %v925, %v925
  %v958 = vpack.c.b16 %v926, %v926
  %v959 = vpack.c.b16 %v927, %v927
  %v960 = vpack.c.b16 %v928, %v928
  %v961 = vpack.c.b16 %v929, %v929
  %v962 = vpack.c.b16 %v930, %v930
  %v963 = vpack.c.b16 %v931, %v931
  %v964 = vpack.c.b16 %v932, %v932
  %v965 = vpack.c.b16 %v933, %v933
  %vm998 = vcmask 257024
  %999 = vst.msk [vmem:[%s5] sm:$0xf] %vm998, %v934
  %1000 = vst.msk [vmem:[%s5 + $0x4] sm:$0xf] %vm998, %v935
  %1001 = vst.msk [vmem:[%s5 + $0x8] sm:$0xf] %vm998, %v936
  %1002 = vst.msk [vmem:[%s5 + $0xc] sm:$0xf] %vm998, %v937
  %1003 = vst.msk [vmem:[%s5 + $0x10] sm:$0xf] %vm998, %v938
  %1004 = vst.msk [vmem:[%s5 + $0x14] sm:$0xf] %vm998, %v939
  %1005 = vst.msk [vmem:[%s5 + $0x18] sm:$0xf] %vm998, %v940
  %1006 = vst.msk [vmem:[%s5 + $0x1c] sm:$0xf] %vm998, %v941
  %1007 = vst.msk [vmem:[%s5 + $0x20] sm:$0xf] %vm998, %v942
  %1008 = vst.msk [vmem:[%s5 + $0x24] sm:$0xf] %vm998, %v943
  %1009 = vst.msk [vmem:[%s5 + $0x28] sm:$0xf] %vm998, %v944
  %1010 = vst.msk [vmem:[%s5 + $0x2c] sm:$0xf] %vm998, %v945
  %1011 = vst.msk [vmem:[%s5 + $0x30] sm:$0xf] %vm998, %v946
  %1012 = vst.msk [vmem:[%s5 + $0x34] sm:$0xf] %vm998, %v947
  %1013 = vst.msk [vmem:[%s5 + $0x38] sm:$0xf] %vm998, %v948
  %1014 = vst.msk [vmem:[%s5 + $0x3c] sm:$0xf] %vm998, %v949
  %1015 = vst.msk [vmem:[%s5 + $0x40] sm:$0xf] %vm998, %v950
  %1016 = vst.msk [vmem:[%s5 + $0x44] sm:$0xf] %vm998, %v951
  %1017 = vst.msk [vmem:[%s5 + $0x48] sm:$0xf] %vm998, %v952
  %1018 = vst.msk [vmem:[%s5 + $0x4c] sm:$0xf] %vm998, %v953
  %1019 = vst.msk [vmem:[%s5 + $0x50] sm:$0xf] %vm998, %v954
  %1020 = vst.msk [vmem:[%s5 + $0x54] sm:$0xf] %vm998, %v955
  %1021 = vst.msk [vmem:[%s5 + $0x58] sm:$0xf] %vm998, %v956
  %1022 = vst.msk [vmem:[%s5 + $0x5c] sm:$0xf] %vm998, %v957
  %1023 = vst.msk [vmem:[%s5 + $0x60] sm:$0xf] %vm998, %v958
  %1024 = vst.msk [vmem:[%s5 + $0x64] sm:$0xf] %vm998, %v959
  %1025 = vst.msk [vmem:[%s5 + $0x68] sm:$0xf] %vm998, %v960
  %1026 = vst.msk [vmem:[%s5 + $0x6c] sm:$0xf] %vm998, %v961
  %1027 = vst.msk [vmem:[%s5 + $0x70] sm:$0xf] %vm998, %v962
  %1028 = vst.msk [vmem:[%s5 + $0x74] sm:$0xf] %vm998, %v963
  %1029 = vst.msk [vmem:[%s5 + $0x78] sm:$0xf] %vm998, %v964
  %1030 = vst.msk [vmem:[%s5 + $0x7c] sm:$0xf] %vm998, %v965
  // Predicated region
  $region22: #{second_dsa_forward.19} parent=0 // pred_check
    _
  $region23: #{second_dsa_forward.19} parent=0 // pred_check_branch
    %1032 = sbr.rel (0) target = $region25
  $region24: #{second_dsa_forward.19} parent=0 // pred_region
    _
  $region25: #{second_dsa_forward.19} parent=0 // pred_fallthru
    _
  // Predicated region
  $region26: #{second_dsa_forward.19} parent=0 // pred_check
    _
  $region27: #{second_dsa_forward.19} parent=0 // pred_check_branch
    %1034 = sbr.rel (0) target = $region29
  $region28: #{second_dsa_forward.19} parent=0 // pred_region
    _
  $region29: #{second_dsa_forward.19} parent=0 // pred_fallthru
    _

</llo_original>
